<compile_context>
chip_gen: v5e
topology: v5e:2x2
jax: 0.10.0
libtpu: 0.0.40
codegen_flags: <defaults>
</compile_context>

<pallas_src>
import functools

import jax
import jax.numpy as jnp
from jax.experimental import pallas as pl
from jax.experimental.pallas import tpu as pltpu

# ------------------------------ static sizes --------------------------------

SP = 16               # spatial size of the input feature map (16x16)
PAD = 2               # zero border around every spatial buffer (covers +-1 and +-2 taps)
SPP = SP + 2 * PAD    # 20
CPAD = 128            # every channel / embedding dim padded to one full lane width
CIN_PAD = 128         # padded input-channel width
NS = SP // 4          # 4x4 grid of valid positions after the two pools
NPOS = NS * NS        # 16 positions feeding the FC


# --------------------------- fused encoder kernel ---------------------------

def _encoder_kernel(x_ref, w1_ref, b1_ref, w2_ref, b2_ref, wfc_ref, bfc_ref,
                    out_ref, a1buf, p1buf, a2buf, p2buf, *, n):
    f32 = jnp.float32
    rows = n * SP * SP

    # Zero the scratch buffers: their borders implement the conv zero padding.
    a1buf[...] = jnp.zeros_like(a1buf)
    p1buf[...] = jnp.zeros_like(p1buf)
    a2buf[...] = jnp.zeros_like(a2buf)
    p2buf[...] = jnp.zeros_like(p2buf)

    # ---- conv1 (3x3, pad 1) + ReLU : 9 shifted matmuls on the MXU ----------
    acc = jnp.zeros((rows, CPAD), f32)
    taps1 = [(dh, dw) for dh in (-1, 0, 1) for dw in (-1, 0, 1)]
    for t, (dh, dw) in enumerate(taps1):
        xs = x_ref[:, PAD + dh:PAD + dh + SP, PAD + dw:PAD + dw + SP, :]
        acc = acc + jnp.dot(xs.reshape(rows, CIN_PAD), w1_ref[t],
                            preferred_element_type=f32)
    a1 = jnp.maximum(acc + b1_ref[...], 0.0)
    a1buf[:, PAD:PAD + SP, PAD:PAD + SP, :] = a1.reshape(n, SP, SP, CPAD)

    # ---- maxpool 2x2 (dense grid: valid results live at even positions) ----
    m = a1buf[:, PAD:PAD + SP, PAD:PAD + SP, :]
    for dh, dw in ((0, 1), (1, 0), (1, 1)):
        m = jnp.maximum(m, a1buf[:, PAD + dh:PAD + dh + SP,
                                  PAD + dw:PAD + dw + SP, :])
    p1buf[:, PAD:PAD + SP, PAD:PAD + SP, :] = m

    # ---- conv2 (3x3, pad 1) on the stride-2 grid => taps at +-2 + ReLU -----
    acc2 = jnp.zeros((rows, CPAD), f32)
    taps2 = [(dh, dw) for dh in (-2, 0, 2) for dw in (-2, 0, 2)]
    for t, (dh, dw) in enumerate(taps2):
        ps = p1buf[:, PAD + dh:PAD + dh + SP, PAD + dw:PAD + dw + SP, :]
        acc2 = acc2 + jnp.dot(ps.reshape(rows, CPAD), w2_ref[t],
                              preferred_element_type=f32)
    a2 = jnp.maximum(acc2 + b2_ref[...], 0.0)
    a2buf[:, PAD:PAD + SP, PAD:PAD + SP, :] = a2.reshape(n, SP, SP, CPAD)

    # ---- second maxpool 2x2 (valid results at positions that are mult of 4) -
    m2 = a2buf[:, PAD:PAD + SP, PAD:PAD + SP, :]
    for dh, dw in ((0, 2), (2, 0), (2, 2)):
        m2 = jnp.maximum(m2, a2buf[:, PAD + dh:PAD + dh + SP,
                                    PAD + dw:PAD + dw + SP, :])
    p2buf[:, PAD:PAD + SP, PAD:PAD + SP, :] = m2

    # ---- FC over the 16 valid (stride-4) positions + bias + L2 normalize ---
    emb = jnp.zeros((n, CPAD), f32) + bfc_ref[...]
    for p in range(NPOS):
        i, j = p // NS, p % NS
        v = p2buf[:, PAD + 4 * i, PAD + 4 * j, :]          # (n, CPAD)
        emb = emb + jnp.dot(v, wfc_ref[p], preferred_element_type=f32)
    ssq = jnp.sum(emb * emb, axis=-1, keepdims=True)
    inv = jax.lax.rsqrt(jnp.maximum(ssq, 1e-24))           # == x / max(||x||, 1e-12)
    out_ref[...] = emb * inv


def _encode_pair(x_pair, enc_params):
    """x_pair: (2, N, 20, 20, CIN_PAD).  Returns (2, N, CPAD) L2-normalized embeddings."""
    w1, b1, w2, b2, wfc, bfc = enc_params
    n = x_pair.shape[1]
    return pl.pallas_call(
        functools.partial(_encoder_kernel, n=n),
        out_shape=jax.ShapeDtypeStruct((2, n, CPAD), jnp.float32),
        grid=(2,),
        in_specs=[
            pl.BlockSpec((None, n, SPP, SPP, CIN_PAD), lambda e: (e, 0, 0, 0, 0)),
            pl.BlockSpec((None, 9, CIN_PAD, CPAD), lambda e: (e, 0, 0, 0)),
            pl.BlockSpec((None, 1, CPAD), lambda e: (e, 0, 0)),
            pl.BlockSpec((None, 9, CPAD, CPAD), lambda e: (e, 0, 0, 0)),
            pl.BlockSpec((None, 1, CPAD), lambda e: (e, 0, 0)),
            pl.BlockSpec((None, NPOS, CPAD, CPAD), lambda e: (e, 0, 0, 0)),
            pl.BlockSpec((None, 1, CPAD), lambda e: (e, 0, 0)),
        ],
        out_specs=pl.BlockSpec((None, n, CPAD), lambda e: (e, 0, 0)),
        scratch_shapes=[pltpu.VMEM((n, SPP, SPP, CPAD), jnp.float32)] * 4,
        compiler_params=pltpu.CompilerParams(dimension_semantics=("parallel",)),
    )(x_pair, w1, b1, w2, b2, wfc, bfc)


# ----------------------------- MoCo logits kernel ----------------------------

def _moco_logits_kernel(emb_ref, queue_ref, lpos_ref, lneg_ref, *, inv_t):
    q = emb_ref[0] * inv_t     # fold 1/T into q once (covers both l_pos and l_neg)
    k = emb_ref[1]
    lpos_ref[...] = jnp.sum(q * k, axis=-1, keepdims=True)
    lneg_ref[...] = jnp.dot(q, queue_ref[...], preferred_element_type=jnp.float32)


def _moco_logits(emb_pair, queue_pad, temperature):
    n = emb_pair.shape[1]
    kq = queue_pad.shape[1]
    lpos, lneg = pl.pallas_call(
        functools.partial(_moco_logits_kernel, inv_t=float(1.0 / temperature)),
        out_shape=(jax.ShapeDtypeStruct((n, 1), jnp.float32),
                   jax.ShapeDtypeStruct((n, kq), jnp.float32)),
        grid=(1,),
        in_specs=[
            pl.BlockSpec((2, n, CPAD), lambda i: (0, 0, 0)),
            pl.BlockSpec((CPAD, kq), lambda i: (0, 0)),
        ],
        out_specs=(pl.BlockSpec((n, 1), lambda i: (0, 0)),
                   pl.BlockSpec((n, kq), lambda i: (0, 0))),
    )(emb_pair, queue_pad)
    # positive logit in column 0, negatives after -> MoCo labels are all zeros
    return jnp.concatenate([lpos, lneg], axis=1)


# ------------------------- one-time parameter packing ------------------------

def _prep_encoder_params(p):
    """PyTorch-layout params -> tap-major, 128-lane-padded matrices (done once)."""
    c1, cin = p["conv1_w"].shape[0], p["conv1_w"].shape[1]
    c2 = p["conv2_w"].shape[0]
    embed = p["fc_w"].shape[0]
    assert p["fc_w"].shape[1] == c2 * NS * NS

    # conv taps: w[tap, cin, cout] = w_oihw[cout, cin, kh, kw],  tap = kh*3+kw
    w1 = jnp.transpose(p["conv1_w"], (2, 3, 1, 0)).reshape(9, cin, c1)
    w1 = jnp.pad(w1, ((0, 0), (0, CIN_PAD - cin), (0, CPAD - c1))).astype(jnp.float32)
    b1 = jnp.pad(p["conv1_b"], (0, CPAD - c1)).reshape(1, CPAD).astype(jnp.float32)

    w2 = jnp.transpose(p["conv2_w"], (2, 3, 1, 0)).reshape(9, c1, c2)
    w2 = jnp.pad(w2, ((0, 0), (0, CPAD - c1), (0, CPAD - c2))).astype(jnp.float32)
    b2 = jnp.pad(p["conv2_b"], (0, CPAD - c2)).reshape(1, CPAD).astype(jnp.float32)

    # FC: PyTorch flatten order of (N, C, H, W) is index = c*NS*NS + i*NS + j
    fcw = p["fc_w"].reshape(embed, c2, NS, NS)
    fcw = jnp.transpose(fcw, (2, 3, 1, 0)).reshape(NPOS, c2, embed)   # (pos, cin, emb)
    fcw = jnp.pad(fcw, ((0, 0), (0, CPAD - c2), (0, CPAD - embed))).astype(jnp.float32)
    bfc = jnp.pad(p["fc_b"], (0, CPAD - embed)).reshape(1, CPAD).astype(jnp.float32)
    return (w1, b1, w2, b2, fcw, bfc)


def prepare_moco(params_q, params_k, queue):
    """Pack both encoders' weights (stacked on a leading q/k axis) + padded queue."""
    pq = _prep_encoder_params(params_q)
    pk = _prep_encoder_params(params_k)
    stacked = tuple(jnp.stack([a, b], axis=0) for a, b in zip(pq, pk))
    dim = queue.shape[0]
    queue_pad = jnp.pad(queue.astype(jnp.float32), ((0, CPAD - dim), (0, 0)))
    return stacked, queue_pad


def _prep_image(img_nchw):
    """NCHW image -> zero-bordered NHWC with channels padded to CIN_PAD."""
    n, cin, h, w = img_nchw.shape
    assert h == SP and w == SP
    x = jnp.transpose(img_nchw, (0, 2, 3, 1)).astype(jnp.float32)
    return jnp.pad(x, ((0, 0), (PAD, PAD), (PAD, PAD), (0, CIN_PAD - cin)))


# ------------------------------ MoCo forward ---------------------------------

@functools.partial(jax.jit, static_argnames=("temperature",))
def moco_forward(prepped, im_q, im_k, *, temperature=0.07):
    enc_params, queue_pad = prepped
    x_pair = jnp.stack([_prep_image(im_q), _prep_image(im_k)], axis=0)
    emb_pair = _encode_pair(x_pair, enc_params)        # q and k, L2-normalized
    logits = _moco_logits(emb_pair, queue_pad, temperature)
    labels = jnp.zeros((im_q.shape[0],), dtype=jnp.int32)
    return logits, labels


@functools.partial(jax.jit, static_argnames=("temperature",))
def vgg4moco_forward_eval(prepped, im_q, im_k, *, temperature=0.07):
    """Eval branch of vgg4moco.forward: accuracy of argmax(logits) vs labels."""
    logits, labels = moco_forward(prepped, im_q, im_k, temperature=temperature)
    pred = jnp.argmax(logits, axis=-1).astype(jnp.int32)
    return jnp.mean((pred == labels).astype(jnp.float32))


# ------------------------------ parameter init -------------------------------

def init_params(key, cin=1, c1=8, c2=16, spatial=16, embed_dim=32):
    ks = jax.random.split(key, 6)
    flat = c2 * (spatial // 4) * (spatial // 4)
    scale = 0.1
    return {
        "conv1_w": scale * jax.random.normal(ks[0], (c1, cin, 3, 3), jnp.float32),
        "conv1_b": jnp.zeros((c1,), jnp.float32),
        "conv2_w": scale * jax.random.normal(ks[1], (c2, c1, 3, 3), jnp.float32),
        "conv2_b": jnp.zeros((c2,), jnp.float32),
        "fc_w": scale * jax.random.normal(ks[2], (embed_dim, flat), jnp.float32),
        "fc_b": jnp.zeros((embed_dim,), jnp.float32),
    }


if __name__ == "__main__":
    key = jax.random.PRNGKey(0)
    k_img_q, k_img_k, k_params, k_queue = jax.random.split(key, 4)

    N, Cin, Hs, Ws = 2, 1, 16, 16     # small mel-spectrogram-like inputs
    embed_dim, moco_K, moco_T = 32, 64, 0.07

    image_q = jax.random.normal(k_img_q, (N, Cin, Hs, Ws), jnp.float32)
    image_k = jax.random.normal(k_img_k, (N, Cin, Hs, Ws), jnp.float32)

    params_q = init_params(k_params, cin=Cin, spatial=Hs, embed_dim=embed_dim)
    # MoCo: encoder_k parameters are initialized as a copy of encoder_q
    params_k = jax.tree_util.tree_map(lambda x: x, params_q)

    # normalized negative queue (dim, K)
    queue = jax.random.normal(k_queue, (embed_dim, moco_K), jnp.float32)
    queue = queue / jnp.maximum(jnp.linalg.norm(queue, axis=0, keepdims=True), 1e-12)

    # one-time weight packing (tap layout, lane padding, PyTorch transposes)
    prepped = prepare_moco(params_q, params_k, queue)

    acc = vgg4moco_forward_eval(prepped, image_q, image_k, temperature=moco_T)
    acc = jax.block_until_ready(acc)

    logits, labels = moco_forward(prepped, image_q, image_k, temperature=moco_T)
    jax.block_until_ready((logits, labels))
    assert logits.shape == (N, 1 + moco_K) and labels.shape == (N,)

    print("KERNEL_OK")
</pallas_src>

<mosaic_0001>
module attributes {stable_mosaic.version = 11 : i64} {
  func.func @_encoder_kernel(%arg0: i32, %arg1: memref<1x2x20x20x128xf32, #tpu.memory_space<vmem>>, %arg2: memref<1x9x128x128xf32, #tpu.memory_space<vmem>>, %arg3: memref<1x1x128xf32, #tpu.memory_space<vmem>>, %arg4: memref<1x9x128x128xf32, #tpu.memory_space<vmem>>, %arg5: memref<1x1x128xf32, #tpu.memory_space<vmem>>, %arg6: memref<1x16x128x128xf32, #tpu.memory_space<vmem>>, %arg7: memref<1x1x128xf32, #tpu.memory_space<vmem>>, %arg8: memref<1x2x128xf32, #tpu.memory_space<vmem>>, %arg9: memref<2x20x20x128xf32, #tpu.memory_space<vmem>>, %arg10: memref<2x20x20x128xf32, #tpu.memory_space<vmem>>, %arg11: memref<2x20x20x128xf32, #tpu.memory_space<vmem>>, %arg12: memref<2x20x20x128xf32, #tpu.memory_space<vmem>>) attributes {dimension_semantics = [#tpu.dimension_semantics<parallel>], iteration_bounds = array<i64: 2>, scalar_prefetch = 0 : i64, scratch_operands = 4 : i64, tpu.core_type = #tpu.core_type<tc>, window_params = [{transform_indices = @transform_0, window_bounds = array<i64: 1, 2, 20, 20, 128>}, {transform_indices = @transform_1, window_bounds = array<i64: 1, 9, 128, 128>}, {transform_indices = @transform_2, window_bounds = array<i64: 1, 1, 128>}, {transform_indices = @transform_3, window_bounds = array<i64: 1, 9, 128, 128>}, {transform_indices = @transform_4, window_bounds = array<i64: 1, 1, 128>}, {transform_indices = @transform_5, window_bounds = array<i64: 1, 16, 128, 128>}, {transform_indices = @transform_6, window_bounds = array<i64: 1, 1, 128>}, {transform_indices = @transform_7, window_bounds = array<i64: 1, 2, 128>}]} {
    %cst = arith.constant 0.000000e+00 : f32
    %0 = vector.broadcast %cst : f32 to vector<2x20x20x128xf32>
    %c0 = arith.constant 0 : index
    %c0_0 = arith.constant 0 : index
    %c0_1 = arith.constant 0 : index
    %c0_2 = arith.constant 0 : index
    %1 = vector.load %arg9[%c0, %c0_0, %c0_1, %c0_2] : memref<2x20x20x128xf32, #tpu.memory_space<vmem>>, vector<2x20x20x128xf32>
    tpu.vector_store %arg9[%c0, %c0_0, %c0_1, %c0_2], %0 {strides = array<i32>} : memref<2x20x20x128xf32, #tpu.memory_space<vmem>>, vector<2x20x20x128xf32>,
    %cst_3 = arith.constant 0.000000e+00 : f32
    %2 = vector.broadcast %cst_3 : f32 to vector<2x20x20x128xf32>
    %c0_4 = arith.constant 0 : index
    %c0_5 = arith.constant 0 : index
    %c0_6 = arith.constant 0 : index
    %c0_7 = arith.constant 0 : index
    %3 = vector.load %arg10[%c0_4, %c0_5, %c0_6, %c0_7] : memref<2x20x20x128xf32, #tpu.memory_space<vmem>>, vector<2x20x20x128xf32>
    tpu.vector_store %arg10[%c0_4, %c0_5, %c0_6, %c0_7], %2 {strides = array<i32>} : memref<2x20x20x128xf32, #tpu.memory_space<vmem>>, vector<2x20x20x128xf32>,
    %cst_8 = arith.constant 0.000000e+00 : f32
    %4 = vector.broadcast %cst_8 : f32 to vector<2x20x20x128xf32>
    %c0_9 = arith.constant 0 : index
    %c0_10 = arith.constant 0 : index
    %c0_11 = arith.constant 0 : index
    %c0_12 = arith.constant 0 : index
    %5 = vector.load %arg11[%c0_9, %c0_10, %c0_11, %c0_12] : memref<2x20x20x128xf32, #tpu.memory_space<vmem>>, vector<2x20x20x128xf32>
    tpu.vector_store %arg11[%c0_9, %c0_10, %c0_11, %c0_12], %4 {strides = array<i32>} : memref<2x20x20x128xf32, #tpu.memory_space<vmem>>, vector<2x20x20x128xf32>,
    %cst_13 = arith.constant 0.000000e+00 : f32
    %6 = vector.broadcast %cst_13 : f32 to vector<2x20x20x128xf32>
    %c0_14 = arith.constant 0 : index
    %c0_15 = arith.constant 0 : index
    %c0_16 = arith.constant 0 : index
    %c0_17 = arith.constant 0 : index
    %7 = vector.load %arg12[%c0_14, %c0_15, %c0_16, %c0_17] : memref<2x20x20x128xf32, #tpu.memory_space<vmem>>, vector<2x20x20x128xf32>
    tpu.vector_store %arg12[%c0_14, %c0_15, %c0_16, %c0_17], %6 {strides = array<i32>} : memref<2x20x20x128xf32, #tpu.memory_space<vmem>>, vector<2x20x20x128xf32>,
    %cst_18 = arith.constant 0.000000e+00 : f32
    %8 = vector.broadcast %cst_18 : f32 to vector<512x128xf32>
    %c0_19 = arith.constant 0 : index
    %c0_20 = arith.constant 0 : index
    %c1 = arith.constant 1 : index
    %c1_21 = arith.constant 1 : index
    %c0_22 = arith.constant 0 : index
    %9 = vector.load %arg1[%c0_19, %c0_20, %c1, %c1_21, %c0_22] : memref<1x2x20x20x128xf32, #tpu.memory_space<vmem>>, vector<1x2x16x16x128xf32>
    %10 = vector.shape_cast %9 : vector<1x2x16x16x128xf32> to vector<2x16x16x128xf32>
    %11 = vector.shape_cast %10 : vector<2x16x16x128xf32> to vector<512x128xf32>
    %c0_23 = arith.constant 0 : index
    %c0_24 = arith.constant 0 : index
    %c0_25 = arith.constant 0 : index
    %c0_26 = arith.constant 0 : index
    %12 = vector.load %arg2[%c0_23, %c0_24, %c0_25, %c0_26] : memref<1x9x128x128xf32, #tpu.memory_space<vmem>>, vector<1x1x128x128xf32>
    %13 = vector.shape_cast %12 : vector<1x1x128x128xf32> to vector<128x128xf32>
    %cst_27 = arith.constant dense<0.000000e+00> : vector<512x128xf32>
    %14 = tpu.matmul %11, %13, %cst_27 {dimension_numbers = #tpu.dot_dimension_numbers<[1], [0], [0], [1], [0, 0, 1, 1], [], []>} : vector<512x128xf32>, vector<128x128xf32>, vector<512x128xf32> -> vector<512x128xf32>
    %15 = arith.addf %8, %14 : vector<512x128xf32>
    %c0_28 = arith.constant 0 : index
    %c0_29 = arith.constant 0 : index
    %c1_30 = arith.constant 1 : index
    %c2 = arith.constant 2 : index
    %c0_31 = arith.constant 0 : index
    %16 = vector.load %arg1[%c0_28, %c0_29, %c1_30, %c2, %c0_31] : memref<1x2x20x20x128xf32, #tpu.memory_space<vmem>>, vector<1x2x16x16x128xf32>
    %17 = vector.shape_cast %16 : vector<1x2x16x16x128xf32> to vector<2x16x16x128xf32>
    %18 = vector.shape_cast %17 : vector<2x16x16x128xf32> to vector<512x128xf32>
    %c0_32 = arith.constant 0 : index
    %c1_33 = arith.constant 1 : index
    %c0_34 = arith.constant 0 : index
    %c0_35 = arith.constant 0 : index
    %19 = vector.load %arg2[%c0_32, %c1_33, %c0_34, %c0_35] : memref<1x9x128x128xf32, #tpu.memory_space<vmem>>, vector<1x1x128x128xf32>
    %20 = vector.shape_cast %19 : vector<1x1x128x128xf32> to vector<128x128xf32>
    %cst_36 = arith.constant dense<0.000000e+00> : vector<512x128xf32>
    %21 = tpu.matmul %18, %20, %cst_36 {dimension_numbers = #tpu.dot_dimension_numbers<[1], [0], [0], [1], [0, 0, 1, 1], [], []>} : vector<512x128xf32>, vector<128x128xf32>, vector<512x128xf32> -> vector<512x128xf32>
    %22 = arith.addf %15, %21 : vector<512x128xf32>
    %c0_37 = arith.constant 0 : index
    %c0_38 = arith.constant 0 : index
    %c1_39 = arith.constant 1 : index
    %c3 = arith.constant 3 : index
    %c0_40 = arith.constant 0 : index
    %23 = vector.load %arg1[%c0_37, %c0_38, %c1_39, %c3, %c0_40] : memref<1x2x20x20x128xf32, #tpu.memory_space<vmem>>, vector<1x2x16x16x128xf32>
    %24 = vector.shape_cast %23 : vector<1x2x16x16x128xf32> to vector<2x16x16x128xf32>
    %25 = vector.shape_cast %24 : vector<2x16x16x128xf32> to vector<512x128xf32>
    %c0_41 = arith.constant 0 : index
    %c2_42 = arith.constant 2 : index
    %c0_43 = arith.constant 0 : index
    %c0_44 = arith.constant 0 : index
    %26 = vector.load %arg2[%c0_41, %c2_42, %c0_43, %c0_44] : memref<1x9x128x128xf32, #tpu.memory_space<vmem>>, vector<1x1x128x128xf32>
    %27 = vector.shape_cast %26 : vector<1x1x128x128xf32> to vector<128x128xf32>
    %cst_45 = arith.constant dense<0.000000e+00> : vector<512x128xf32>
    %28 = tpu.matmul %25, %27, %cst_45 {dimension_numbers = #tpu.dot_dimension_numbers<[1], [0], [0], [1], [0, 0, 1, 1], [], []>} : vector<512x128xf32>, vector<128x128xf32>, vector<512x128xf32> -> vector<512x128xf32>
    %29 = arith.addf %22, %28 : vector<512x128xf32>
    %c0_46 = arith.constant 0 : index
    %c0_47 = arith.constant 0 : index
    %c2_48 = arith.constant 2 : index
    %c1_49 = arith.constant 1 : index
    %c0_50 = arith.constant 0 : index
    %30 = vector.load %arg1[%c0_46, %c0_47, %c2_48, %c1_49, %c0_50] : memref<1x2x20x20x128xf32, #tpu.memory_space<vmem>>, vector<1x2x16x16x128xf32>
    %31 = vector.shape_cast %30 : vector<1x2x16x16x128xf32> to vector<2x16x16x128xf32>
    %32 = vector.shape_cast %31 : vector<2x16x16x128xf32> to vector<512x128xf32>
    %c0_51 = arith.constant 0 : index
    %c3_52 = arith.constant 3 : index
    %c0_53 = arith.constant 0 : index
    %c0_54 = arith.constant 0 : index
    %33 = vector.load %arg2[%c0_51, %c3_52, %c0_53, %c0_54] : memref<1x9x128x128xf32, #tpu.memory_space<vmem>>, vector<1x1x128x128xf32>
    %34 = vector.shape_cast %33 : vector<1x1x128x128xf32> to vector<128x128xf32>
    %cst_55 = arith.constant dense<0.000000e+00> : vector<512x128xf32>
    %35 = tpu.matmul %32, %34, %cst_55 {dimension_numbers = #tpu.dot_dimension_numbers<[1], [0], [0], [1], [0, 0, 1, 1], [], []>} : vector<512x128xf32>, vector<128x128xf32>, vector<512x128xf32> -> vector<512x128xf32>
    %36 = arith.addf %29, %35 : vector<512x128xf32>
    %c0_56 = arith.constant 0 : index
    %c0_57 = arith.constant 0 : index
    %c2_58 = arith.constant 2 : index
    %c2_59 = arith.constant 2 : index
    %c0_60 = arith.constant 0 : index
    %37 = vector.load %arg1[%c0_56, %c0_57, %c2_58, %c2_59, %c0_60] : memref<1x2x20x20x128xf32, #tpu.memory_space<vmem>>, vector<1x2x16x16x128xf32>
    %38 = vector.shape_cast %37 : vector<1x2x16x16x128xf32> to vector<2x16x16x128xf32>
    %39 = vector.shape_cast %38 : vector<2x16x16x128xf32> to vector<512x128xf32>
    %c0_61 = arith.constant 0 : index
    %c4 = arith.constant 4 : index
    %c0_62 = arith.constant 0 : index
    %c0_63 = arith.constant 0 : index
    %40 = vector.load %arg2[%c0_61, %c4, %c0_62, %c0_63] : memref<1x9x128x128xf32, #tpu.memory_space<vmem>>, vector<1x1x128x128xf32>
    %41 = vector.shape_cast %40 : vector<1x1x128x128xf32> to vector<128x128xf32>
    %cst_64 = arith.constant dense<0.000000e+00> : vector<512x128xf32>
    %42 = tpu.matmul %39, %41, %cst_64 {dimension_numbers = #tpu.dot_dimension_numbers<[1], [0], [0], [1], [0, 0, 1, 1], [], []>} : vector<512x128xf32>, vector<128x128xf32>, vector<512x128xf32> -> vector<512x128xf32>
    %43 = arith.addf %36, %42 : vector<512x128xf32>
    %c0_65 = arith.constant 0 : index
    %c0_66 = arith.constant 0 : index
    %c2_67 = arith.constant 2 : index
    %c3_68 = arith.constant 3 : index
    %c0_69 = arith.constant 0 : index
    %44 = vector.load %arg1[%c0_65, %c0_66, %c2_67, %c3_68, %c0_69] : memref<1x2x20x20x128xf32, #tpu.memory_space<vmem>>, vector<1x2x16x16x128xf32>
    %45 = vector.shape_cast %44 : vector<1x2x16x16x128xf32> to vector<2x16x16x128xf32>
    %46 = vector.shape_cast %45 : vector<2x16x16x128xf32> to vector<512x128xf32>
    %c0_70 = arith.constant 0 : index
    %c5 = arith.constant 5 : index
    %c0_71 = arith.constant 0 : index
    %c0_72 = arith.constant 0 : index
    %47 = vector.load %arg2[%c0_70, %c5, %c0_71, %c0_72] : memref<1x9x128x128xf32, #tpu.memory_space<vmem>>, vector<1x1x128x128xf32>
    %48 = vector.shape_cast %47 : vector<1x1x128x128xf32> to vector<128x128xf32>
    %cst_73 = arith.constant dense<0.000000e+00> : vector<512x128xf32>
    %49 = tpu.matmul %46, %48, %cst_73 {dimension_numbers = #tpu.dot_dimension_numbers<[1], [0], [0], [1], [0, 0, 1, 1], [], []>} : vector<512x128xf32>, vector<128x128xf32>, vector<512x128xf32> -> vector<512x128xf32>
    %50 = arith.addf %43, %49 : vector<512x128xf32>
    %c0_74 = arith.constant 0 : index
    %c0_75 = arith.constant 0 : index
    %c3_76 = arith.constant 3 : index
    %c1_77 = arith.constant 1 : index
    %c0_78 = arith.constant 0 : index
    %51 = vector.load %arg1[%c0_74, %c0_75, %c3_76, %c1_77, %c0_78] : memref<1x2x20x20x128xf32, #tpu.memory_space<vmem>>, vector<1x2x16x16x128xf32>
    %52 = vector.shape_cast %51 : vector<1x2x16x16x128xf32> to vector<2x16x16x128xf32>
    %53 = vector.shape_cast %52 : vector<2x16x16x128xf32> to vector<512x128xf32>
    %c0_79 = arith.constant 0 : index
    %c6 = arith.constant 6 : index
    %c0_80 = arith.constant 0 : index
    %c0_81 = arith.constant 0 : index
    %54 = vector.load %arg2[%c0_79, %c6, %c0_80, %c0_81] : memref<1x9x128x128xf32, #tpu.memory_space<vmem>>, vector<1x1x128x128xf32>
    %55 = vector.shape_cast %54 : vector<1x1x128x128xf32> to vector<128x128xf32>
    %cst_82 = arith.constant dense<0.000000e+00> : vector<512x128xf32>
    %56 = tpu.matmul %53, %55, %cst_82 {dimension_numbers = #tpu.dot_dimension_numbers<[1], [0], [0], [1], [0, 0, 1, 1], [], []>} : vector<512x128xf32>, vector<128x128xf32>, vector<512x128xf32> -> vector<512x128xf32>
    %57 = arith.addf %50, %56 : vector<512x128xf32>
    %c0_83 = arith.constant 0 : index
    %c0_84 = arith.constant 0 : index
    %c3_85 = arith.constant 3 : index
    %c2_86 = arith.constant 2 : index
    %c0_87 = arith.constant 0 : index
    %58 = vector.load %arg1[%c0_83, %c0_84, %c3_85, %c2_86, %c0_87] : memref<1x2x20x20x128xf32, #tpu.memory_space<vmem>>, vector<1x2x16x16x128xf32>
    %59 = vector.shape_cast %58 : vector<1x2x16x16x128xf32> to vector<2x16x16x128xf32>
    %60 = vector.shape_cast %59 : vector<2x16x16x128xf32> to vector<512x128xf32>
    %c0_88 = arith.constant 0 : index
    %c7 = arith.constant 7 : index
    %c0_89 = arith.constant 0 : index
    %c0_90 = arith.constant 0 : index
    %61 = vector.load %arg2[%c0_88, %c7, %c0_89, %c0_90] : memref<1x9x128x128xf32, #tpu.memory_space<vmem>>, vector<1x1x128x128xf32>
    %62 = vector.shape_cast %61 : vector<1x1x128x128xf32> to vector<128x128xf32>
    %cst_91 = arith.constant dense<0.000000e+00> : vector<512x128xf32>
    %63 = tpu.matmul %60, %62, %cst_91 {dimension_numbers = #tpu.dot_dimension_numbers<[1], [0], [0], [1], [0, 0, 1, 1], [], []>} : vector<512x128xf32>, vector<128x128xf32>, vector<512x128xf32> -> vector<512x128xf32>
    %64 = arith.addf %57, %63 : vector<512x128xf32>
    %c0_92 = arith.constant 0 : index
    %c0_93 = arith.constant 0 : index
    %c3_94 = arith.constant 3 : index
    %c3_95 = arith.constant 3 : index
    %c0_96 = arith.constant 0 : index
    %65 = vector.load %arg1[%c0_92, %c0_93, %c3_94, %c3_95, %c0_96] : memref<1x2x20x20x128xf32, #tpu.memory_space<vmem>>, vector<1x2x16x16x128xf32>
    %66 = vector.shape_cast %65 : vector<1x2x16x16x128xf32> to vector<2x16x16x128xf32>
    %67 = vector.shape_cast %66 : vector<2x16x16x128xf32> to vector<512x128xf32>
    %c0_97 = arith.constant 0 : index
    %c8 = arith.constant 8 : index
    %c0_98 = arith.constant 0 : index
    %c0_99 = arith.constant 0 : index
    %68 = vector.load %arg2[%c0_97, %c8, %c0_98, %c0_99] : memref<1x9x128x128xf32, #tpu.memory_space<vmem>>, vector<1x1x128x128xf32>
    %69 = vector.shape_cast %68 : vector<1x1x128x128xf32> to vector<128x128xf32>
    %cst_100 = arith.constant dense<0.000000e+00> : vector<512x128xf32>
    %70 = tpu.matmul %67, %69, %cst_100 {dimension_numbers = #tpu.dot_dimension_numbers<[1], [0], [0], [1], [0, 0, 1, 1], [], []>} : vector<512x128xf32>, vector<128x128xf32>, vector<512x128xf32> -> vector<512x128xf32>
    %71 = arith.addf %64, %70 : vector<512x128xf32>
    %c0_101 = arith.constant 0 : index
    %c0_102 = arith.constant 0 : index
    %c0_103 = arith.constant 0 : index
    %72 = vector.load %arg3[%c0_101, %c0_102, %c0_103] : memref<1x1x128xf32, #tpu.memory_space<vmem>>, vector<1x1x128xf32>
    %73 = vector.shape_cast %72 : vector<1x1x128xf32> to vector<1x128xf32>
    %74 = vector.broadcast %73 : vector<1x128xf32> to vector<512x128xf32>
    %75 = arith.addf %71, %74 : vector<512x128xf32>
    %cst_104 = arith.constant 0.000000e+00 : f32
    %76 = vector.broadcast %cst_104 : f32 to vector<512x128xf32>
    %77 = arith.maximumf %75, %76 : vector<512x128xf32>
    %78 = vector.shape_cast %77 : vector<512x128xf32> to vector<2x16x16x128xf32>
    %c0_105 = arith.constant 0 : index
    %c2_106 = arith.constant 2 : index
    %c2_107 = arith.constant 2 : index
    %c0_108 = arith.constant 0 : index
    %79 = vector.load %arg9[%c0_105, %c2_106, %c2_107, %c0_108] : memref<2x20x20x128xf32, #tpu.memory_space<vmem>>, vector<2x16x16x128xf32>
    tpu.vector_store %arg9[%c0_105, %c2_106, %c2_107, %c0_108], %78 {strides = array<i32>} : memref<2x20x20x128xf32, #tpu.memory_space<vmem>>, vector<2x16x16x128xf32>,
    %c0_109 = arith.constant 0 : index
    %c2_110 = arith.constant 2 : index
    %c2_111 = arith.constant 2 : index
    %c0_112 = arith.constant 0 : index
    %80 = vector.load %arg9[%c0_109, %c2_110, %c2_111, %c0_112] : memref<2x20x20x128xf32, #tpu.memory_space<vmem>>, vector<2x16x16x128xf32>
    %c0_113 = arith.constant 0 : index
    %c2_114 = arith.constant 2 : index
    %c3_115 = arith.constant 3 : index
    %c0_116 = arith.constant 0 : index
    %81 = vector.load %arg9[%c0_113, %c2_114, %c3_115, %c0_116] : memref<2x20x20x128xf32, #tpu.memory_space<vmem>>, vector<2x16x16x128xf32>
    %82 = arith.maximumf %80, %81 : vector<2x16x16x128xf32>
    %c0_117 = arith.constant 0 : index
    %c3_118 = arith.constant 3 : index
    %c2_119 = arith.constant 2 : index
    %c0_120 = arith.constant 0 : index
    %83 = vector.load %arg9[%c0_117, %c3_118, %c2_119, %c0_120] : memref<2x20x20x128xf32, #tpu.memory_space<vmem>>, vector<2x16x16x128xf32>
    %84 = arith.maximumf %82, %83 : vector<2x16x16x128xf32>
    %c0_121 = arith.constant 0 : index
    %c3_122 = arith.constant 3 : index
    %c3_123 = arith.constant 3 : index
    %c0_124 = arith.constant 0 : index
    %85 = vector.load %arg9[%c0_121, %c3_122, %c3_123, %c0_124] : memref<2x20x20x128xf32, #tpu.memory_space<vmem>>, vector<2x16x16x128xf32>
    %86 = arith.maximumf %84, %85 : vector<2x16x16x128xf32>
    %c0_125 = arith.constant 0 : index
    %c2_126 = arith.constant 2 : index
    %c2_127 = arith.constant 2 : index
    %c0_128 = arith.constant 0 : index
    %87 = vector.load %arg10[%c0_125, %c2_126, %c2_127, %c0_128] : memref<2x20x20x128xf32, #tpu.memory_space<vmem>>, vector<2x16x16x128xf32>
    tpu.vector_store %arg10[%c0_125, %c2_126, %c2_127, %c0_128], %86 {strides = array<i32>} : memref<2x20x20x128xf32, #tpu.memory_space<vmem>>, vector<2x16x16x128xf32>,
    %cst_129 = arith.constant 0.000000e+00 : f32
    %88 = vector.broadcast %cst_129 : f32 to vector<512x128xf32>
    %c0_130 = arith.constant 0 : index
    %c0_131 = arith.constant 0 : index
    %c0_132 = arith.constant 0 : index
    %c0_133 = arith.constant 0 : index
    %89 = vector.load %arg10[%c0_130, %c0_131, %c0_132, %c0_133] : memref<2x20x20x128xf32, #tpu.memory_space<vmem>>, vector<2x16x16x128xf32>
    %90 = vector.shape_cast %89 : vector<2x16x16x128xf32> to vector<512x128xf32>
    %c0_134 = arith.constant 0 : index
    %c0_135 = arith.constant 0 : index
    %c0_136 = arith.constant 0 : index
    %c0_137 = arith.constant 0 : index
    %91 = vector.load %arg4[%c0_134, %c0_135, %c0_136, %c0_137] : memref<1x9x128x128xf32, #tpu.memory_space<vmem>>, vector<1x1x128x128xf32>
    %92 = vector.shape_cast %91 : vector<1x1x128x128xf32> to vector<128x128xf32>
    %cst_138 = arith.constant dense<0.000000e+00> : vector<512x128xf32>
    %93 = tpu.matmul %90, %92, %cst_138 {dimension_numbers = #tpu.dot_dimension_numbers<[1], [0], [0], [1], [0, 0, 1, 1], [], []>} : vector<512x128xf32>, vector<128x128xf32>, vector<512x128xf32> -> vector<512x128xf32>
    %94 = arith.addf %88, %93 : vector<512x128xf32>
    %c0_139 = arith.constant 0 : index
    %c0_140 = arith.constant 0 : index
    %c2_141 = arith.constant 2 : index
    %c0_142 = arith.constant 0 : index
    %95 = vector.load %arg10[%c0_139, %c0_140, %c2_141, %c0_142] : memref<2x20x20x128xf32, #tpu.memory_space<vmem>>, vector<2x16x16x128xf32>
    %96 = vector.shape_cast %95 : vector<2x16x16x128xf32> to vector<512x128xf32>
    %c0_143 = arith.constant 0 : index
    %c1_144 = arith.constant 1 : index
    %c0_145 = arith.constant 0 : index
    %c0_146 = arith.constant 0 : index
    %97 = vector.load %arg4[%c0_143, %c1_144, %c0_145, %c0_146] : memref<1x9x128x128xf32, #tpu.memory_space<vmem>>, vector<1x1x128x128xf32>
    %98 = vector.shape_cast %97 : vector<1x1x128x128xf32> to vector<128x128xf32>
    %cst_147 = arith.constant dense<0.000000e+00> : vector<512x128xf32>
    %99 = tpu.matmul %96, %98, %cst_147 {dimension_numbers = #tpu.dot_dimension_numbers<[1], [0], [0], [1], [0, 0, 1, 1], [], []>} : vector<512x128xf32>, vector<128x128xf32>, vector<512x128xf32> -> vector<512x128xf32>
    %100 = arith.addf %94, %99 : vector<512x128xf32>
    %c0_148 = arith.constant 0 : index
    %c0_149 = arith.constant 0 : index
    %c4_150 = arith.constant 4 : index
    %c0_151 = arith.constant 0 : index
    %101 = vector.load %arg10[%c0_148, %c0_149, %c4_150, %c0_151] : memref<2x20x20x128xf32, #tpu.memory_space<vmem>>, vector<2x16x16x128xf32>
    %102 = vector.shape_cast %101 : vector<2x16x16x128xf32> to vector<512x128xf32>
    %c0_152 = arith.constant 0 : index
    %c2_153 = arith.constant 2 : index
    %c0_154 = arith.constant 0 : index
    %c0_155 = arith.constant 0 : index
    %103 = vector.load %arg4[%c0_152, %c2_153, %c0_154, %c0_155] : memref<1x9x128x128xf32, #tpu.memory_space<vmem>>, vector<1x1x128x128xf32>
    %104 = vector.shape_cast %103 : vector<1x1x128x128xf32> to vector<128x128xf32>
    %cst_156 = arith.constant dense<0.000000e+00> : vector<512x128xf32>
    %105 = tpu.matmul %102, %104, %cst_156 {dimension_numbers = #tpu.dot_dimension_numbers<[1], [0], [0], [1], [0, 0, 1, 1], [], []>} : vector<512x128xf32>, vector<128x128xf32>, vector<512x128xf32> -> vector<512x128xf32>
    %106 = arith.addf %100, %105 : vector<512x128xf32>
    %c0_157 = arith.constant 0 : index
    %c2_158 = arith.constant 2 : index
    %c0_159 = arith.constant 0 : index
    %c0_160 = arith.constant 0 : index
    %107 = vector.load %arg10[%c0_157, %c2_158, %c0_159, %c0_160] : memref<2x20x20x128xf32, #tpu.memory_space<vmem>>, vector<2x16x16x128xf32>
    %108 = vector.shape_cast %107 : vector<2x16x16x128xf32> to vector<512x128xf32>
    %c0_161 = arith.constant 0 : index
    %c3_162 = arith.constant 3 : index
    %c0_163 = arith.constant 0 : index
    %c0_164 = arith.constant 0 : index
    %109 = vector.load %arg4[%c0_161, %c3_162, %c0_163, %c0_164] : memref<1x9x128x128xf32, #tpu.memory_space<vmem>>, vector<1x1x128x128xf32>
    %110 = vector.shape_cast %109 : vector<1x1x128x128xf32> to vector<128x128xf32>
    %cst_165 = arith.constant dense<0.000000e+00> : vector<512x128xf32>
    %111 = tpu.matmul %108, %110, %cst_165 {dimension_numbers = #tpu.dot_dimension_numbers<[1], [0], [0], [1], [0, 0, 1, 1], [], []>} : vector<512x128xf32>, vector<128x128xf32>, vector<512x128xf32> -> vector<512x128xf32>
    %112 = arith.addf %106, %111 : vector<512x128xf32>
    %c0_166 = arith.constant 0 : index
    %c2_167 = arith.constant 2 : index
    %c2_168 = arith.constant 2 : index
    %c0_169 = arith.constant 0 : index
    %113 = vector.load %arg10[%c0_166, %c2_167, %c2_168, %c0_169] : memref<2x20x20x128xf32, #tpu.memory_space<vmem>>, vector<2x16x16x128xf32>
    %114 = vector.shape_cast %113 : vector<2x16x16x128xf32> to vector<512x128xf32>
    %c0_170 = arith.constant 0 : index
    %c4_171 = arith.constant 4 : index
    %c0_172 = arith.constant 0 : index
    %c0_173 = arith.constant 0 : index
    %115 = vector.load %arg4[%c0_170, %c4_171, %c0_172, %c0_173] : memref<1x9x128x128xf32, #tpu.memory_space<vmem>>, vector<1x1x128x128xf32>
    %116 = vector.shape_cast %115 : vector<1x1x128x128xf32> to vector<128x128xf32>
    %cst_174 = arith.constant dense<0.000000e+00> : vector<512x128xf32>
    %117 = tpu.matmul %114, %116, %cst_174 {dimension_numbers = #tpu.dot_dimension_numbers<[1], [0], [0], [1], [0, 0, 1, 1], [], []>} : vector<512x128xf32>, vector<128x128xf32>, vector<512x128xf32> -> vector<512x128xf32>
    %118 = arith.addf %112, %117 : vector<512x128xf32>
    %c0_175 = arith.constant 0 : index
    %c2_176 = arith.constant 2 : index
    %c4_177 = arith.constant 4 : index
    %c0_178 = arith.constant 0 : index
    %119 = vector.load %arg10[%c0_175, %c2_176, %c4_177, %c0_178] : memref<2x20x20x128xf32, #tpu.memory_space<vmem>>, vector<2x16x16x128xf32>
    %120 = vector.shape_cast %119 : vector<2x16x16x128xf32> to vector<512x128xf32>
    %c0_179 = arith.constant 0 : index
    %c5_180 = arith.constant 5 : index
    %c0_181 = arith.constant 0 : index
    %c0_182 = arith.constant 0 : index
    %121 = vector.load %arg4[%c0_179, %c5_180, %c0_181, %c0_182] : memref<1x9x128x128xf32, #tpu.memory_space<vmem>>, vector<1x1x128x128xf32>
    %122 = vector.shape_cast %121 : vector<1x1x128x128xf32> to vector<128x128xf32>
    %cst_183 = arith.constant dense<0.000000e+00> : vector<512x128xf32>
    %123 = tpu.matmul %120, %122, %cst_183 {dimension_numbers = #tpu.dot_dimension_numbers<[1], [0], [0], [1], [0, 0, 1, 1], [], []>} : vector<512x128xf32>, vector<128x128xf32>, vector<512x128xf32> -> vector<512x128xf32>
    %124 = arith.addf %118, %123 : vector<512x128xf32>
    %c0_184 = arith.constant 0 : index
    %c4_185 = arith.constant 4 : index
    %c0_186 = arith.constant 0 : index
    %c0_187 = arith.constant 0 : index
    %125 = vector.load %arg10[%c0_184, %c4_185, %c0_186, %c0_187] : memref<2x20x20x128xf32, #tpu.memory_space<vmem>>, vector<2x16x16x128xf32>
    %126 = vector.shape_cast %125 : vector<2x16x16x128xf32> to vector<512x128xf32>
    %c0_188 = arith.constant 0 : index
    %c6_189 = arith.constant 6 : index
    %c0_190 = arith.constant 0 : index
    %c0_191 = arith.constant 0 : index
    %127 = vector.load %arg4[%c0_188, %c6_189, %c0_190, %c0_191] : memref<1x9x128x128xf32, #tpu.memory_space<vmem>>, vector<1x1x128x128xf32>
    %128 = vector.shape_cast %127 : vector<1x1x128x128xf32> to vector<128x128xf32>
    %cst_192 = arith.constant dense<0.000000e+00> : vector<512x128xf32>
    %129 = tpu.matmul %126, %128, %cst_192 {dimension_numbers = #tpu.dot_dimension_numbers<[1], [0], [0], [1], [0, 0, 1, 1], [], []>} : vector<512x128xf32>, vector<128x128xf32>, vector<512x128xf32> -> vector<512x128xf32>
    %130 = arith.addf %124, %129 : vector<512x128xf32>
    %c0_193 = arith.constant 0 : index
    %c4_194 = arith.constant 4 : index
    %c2_195 = arith.constant 2 : index
    %c0_196 = arith.constant 0 : index
    %131 = vector.load %arg10[%c0_193, %c4_194, %c2_195, %c0_196] : memref<2x20x20x128xf32, #tpu.memory_space<vmem>>, vector<2x16x16x128xf32>
    %132 = vector.shape_cast %131 : vector<2x16x16x128xf32> to vector<512x128xf32>
    %c0_197 = arith.constant 0 : index
    %c7_198 = arith.constant 7 : index
    %c0_199 = arith.constant 0 : index
    %c0_200 = arith.constant 0 : index
    %133 = vector.load %arg4[%c0_197, %c7_198, %c0_199, %c0_200] : memref<1x9x128x128xf32, #tpu.memory_space<vmem>>, vector<1x1x128x128xf32>
    %134 = vector.shape_cast %133 : vector<1x1x128x128xf32> to vector<128x128xf32>
    %cst_201 = arith.constant dense<0.000000e+00> : vector<512x128xf32>
    %135 = tpu.matmul %132, %134, %cst_201 {dimension_numbers = #tpu.dot_dimension_numbers<[1], [0], [0], [1], [0, 0, 1, 1], [], []>} : vector<512x128xf32>, vector<128x128xf32>, vector<512x128xf32> -> vector<512x128xf32>
    %136 = arith.addf %130, %135 : vector<512x128xf32>
    %c0_202 = arith.constant 0 : index
    %c4_203 = arith.constant 4 : index
    %c4_204 = arith.constant 4 : index
    %c0_205 = arith.constant 0 : index
    %137 = vector.load %arg10[%c0_202, %c4_203, %c4_204, %c0_205] : memref<2x20x20x128xf32, #tpu.memory_space<vmem>>, vector<2x16x16x128xf32>
    %138 = vector.shape_cast %137 : vector<2x16x16x128xf32> to vector<512x128xf32>
    %c0_206 = arith.constant 0 : index
    %c8_207 = arith.constant 8 : index
    %c0_208 = arith.constant 0 : index
    %c0_209 = arith.constant 0 : index
    %139 = vector.load %arg4[%c0_206, %c8_207, %c0_208, %c0_209] : memref<1x9x128x128xf32, #tpu.memory_space<vmem>>, vector<1x1x128x128xf32>
    %140 = vector.shape_cast %139 : vector<1x1x128x128xf32> to vector<128x128xf32>
    %cst_210 = arith.constant dense<0.000000e+00> : vector<512x128xf32>
    %141 = tpu.matmul %138, %140, %cst_210 {dimension_numbers = #tpu.dot_dimension_numbers<[1], [0], [0], [1], [0, 0, 1, 1], [], []>} : vector<512x128xf32>, vector<128x128xf32>, vector<512x128xf32> -> vector<512x128xf32>
    %142 = arith.addf %136, %141 : vector<512x128xf32>
    %c0_211 = arith.constant 0 : index
    %c0_212 = arith.constant 0 : index
    %c0_213 = arith.constant 0 : index
    %143 = vector.load %arg5[%c0_211, %c0_212, %c0_213] : memref<1x1x128xf32, #tpu.memory_space<vmem>>, vector<1x1x128xf32>
    %144 = vector.shape_cast %143 : vector<1x1x128xf32> to vector<1x128xf32>
    %145 = vector.broadcast %144 : vector<1x128xf32> to vector<512x128xf32>
    %146 = arith.addf %142, %145 : vector<512x128xf32>
    %cst_214 = arith.constant 0.000000e+00 : f32
    %147 = vector.broadcast %cst_214 : f32 to vector<512x128xf32>
    %148 = arith.maximumf %146, %147 : vector<512x128xf32>
    %149 = vector.shape_cast %148 : vector<512x128xf32> to vector<2x16x16x128xf32>
    %c0_215 = arith.constant 0 : index
    %c2_216 = arith.constant 2 : index
    %c2_217 = arith.constant 2 : index
    %c0_218 = arith.constant 0 : index
    %150 = vector.load %arg11[%c0_215, %c2_216, %c2_217, %c0_218] : memref<2x20x20x128xf32, #tpu.memory_space<vmem>>, vector<2x16x16x128xf32>
    tpu.vector_store %arg11[%c0_215, %c2_216, %c2_217, %c0_218], %149 {strides = array<i32>} : memref<2x20x20x128xf32, #tpu.memory_space<vmem>>, vector<2x16x16x128xf32>,
    %c0_219 = arith.constant 0 : index
    %c2_220 = arith.constant 2 : index
    %c2_221 = arith.constant 2 : index
    %c0_222 = arith.constant 0 : index
    %151 = vector.load %arg11[%c0_219, %c2_220, %c2_221, %c0_222] : memref<2x20x20x128xf32, #tpu.memory_space<vmem>>, vector<2x16x16x128xf32>
    %c0_223 = arith.constant 0 : index
    %c2_224 = arith.constant 2 : index
    %c4_225 = arith.constant 4 : index
    %c0_226 = arith.constant 0 : index
    %152 = vector.load %arg11[%c0_223, %c2_224, %c4_225, %c0_226] : memref<2x20x20x128xf32, #tpu.memory_space<vmem>>, vector<2x16x16x128xf32>
    %153 = arith.maximumf %151, %152 : vector<2x16x16x128xf32>
    %c0_227 = arith.constant 0 : index
    %c4_228 = arith.constant 4 : index
    %c2_229 = arith.constant 2 : index
    %c0_230 = arith.constant 0 : index
    %154 = vector.load %arg11[%c0_227, %c4_228, %c2_229, %c0_230] : memref<2x20x20x128xf32, #tpu.memory_space<vmem>>, vector<2x16x16x128xf32>
    %155 = arith.maximumf %153, %154 : vector<2x16x16x128xf32>
    %c0_231 = arith.constant 0 : index
    %c4_232 = arith.constant 4 : index
    %c4_233 = arith.constant 4 : index
    %c0_234 = arith.constant 0 : index
    %156 = vector.load %arg11[%c0_231, %c4_232, %c4_233, %c0_234] : memref<2x20x20x128xf32, #tpu.memory_space<vmem>>, vector<2x16x16x128xf32>
    %157 = arith.maximumf %155, %156 : vector<2x16x16x128xf32>
    %c0_235 = arith.constant 0 : index
    %c2_236 = arith.constant 2 : index
    %c2_237 = arith.constant 2 : index
    %c0_238 = arith.constant 0 : index
    %158 = vector.load %arg12[%c0_235, %c2_236, %c2_237, %c0_238] : memref<2x20x20x128xf32, #tpu.memory_space<vmem>>, vector<2x16x16x128xf32>
    tpu.vector_store %arg12[%c0_235, %c2_236, %c2_237, %c0_238], %157 {strides = array<i32>} : memref<2x20x20x128xf32, #tpu.memory_space<vmem>>, vector<2x16x16x128xf32>,
    %cst_239 = arith.constant 0.000000e+00 : f32
    %159 = vector.broadcast %cst_239 : f32 to vector<2x128xf32>
    %c0_240 = arith.constant 0 : index
    %c0_241 = arith.constant 0 : index
    %c0_242 = arith.constant 0 : index
    %160 = vector.load %arg7[%c0_240, %c0_241, %c0_242] : memref<1x1x128xf32, #tpu.memory_space<vmem>>, vector<1x1x128xf32>
    %161 = vector.shape_cast %160 : vector<1x1x128xf32> to vector<1x128xf32>
    %162 = vector.broadcast %161 : vector<1x128xf32> to vector<2x128xf32>
    %163 = arith.addf %159, %162 : vector<2x128xf32>
    %c0_243 = arith.constant 0 : index
    %c2_244 = arith.constant 2 : index
    %c2_245 = arith.constant 2 : index
    %c0_246 = arith.constant 0 : index
    %164 = vector.load %arg12[%c0_243, %c2_244, %c2_245, %c0_246] : memref<2x20x20x128xf32, #tpu.memory_space<vmem>>, vector<2x1x1x128xf32>
    %165 = vector.shape_cast %164 : vector<2x1x1x128xf32> to vector<2x128xf32>
    %c0_247 = arith.constant 0 : index
    %c0_248 = arith.constant 0 : index
    %c0_249 = arith.constant 0 : index
    %c0_250 = arith.constant 0 : index
    %166 = vector.load %arg6[%c0_247, %c0_248, %c0_249, %c0_250] : memref<1x16x128x128xf32, #tpu.memory_space<vmem>>, vector<1x1x128x128xf32>
    %167 = vector.shape_cast %166 : vector<1x1x128x128xf32> to vector<128x128xf32>
    %cst_251 = arith.constant dense<0.000000e+00> : vector<2x128xf32>
    %168 = tpu.matmul %165, %167, %cst_251 {dimension_numbers = #tpu.dot_dimension_numbers<[1], [0], [0], [1], [0, 0, 1, 1], [], []>} : vector<2x128xf32>, vector<128x128xf32>, vector<2x128xf32> -> vector<2x128xf32>
    %169 = arith.addf %163, %168 : vector<2x128xf32>
    %c0_252 = arith.constant 0 : index
    %c2_253 = arith.constant 2 : index
    %c6_254 = arith.constant 6 : index
    %c0_255 = arith.constant 0 : index
    %170 = vector.load %arg12[%c0_252, %c2_253, %c6_254, %c0_255] : memref<2x20x20x128xf32, #tpu.memory_space<vmem>>, vector<2x1x1x128xf32>
    %171 = vector.shape_cast %170 : vector<2x1x1x128xf32> to vector<2x128xf32>
    %c0_256 = arith.constant 0 : index
    %c1_257 = arith.constant 1 : index
    %c0_258 = arith.constant 0 : index
    %c0_259 = arith.constant 0 : index
    %172 = vector.load %arg6[%c0_256, %c1_257, %c0_258, %c0_259] : memref<1x16x128x128xf32, #tpu.memory_space<vmem>>, vector<1x1x128x128xf32>
    %173 = vector.shape_cast %172 : vector<1x1x128x128xf32> to vector<128x128xf32>
    %cst_260 = arith.constant dense<0.000000e+00> : vector<2x128xf32>
    %174 = tpu.matmul %171, %173, %cst_260 {dimension_numbers = #tpu.dot_dimension_numbers<[1], [0], [0], [1], [0, 0, 1, 1], [], []>} : vector<2x128xf32>, vector<128x128xf32>, vector<2x128xf32> -> vector<2x128xf32>
    %175 = arith.addf %169, %174 : vector<2x128xf32>
    %c0_261 = arith.constant 0 : index
    %c2_262 = arith.constant 2 : index
    %c10 = arith.constant 10 : index
    %c0_263 = arith.constant 0 : index
    %176 = vector.load %arg12[%c0_261, %c2_262, %c10, %c0_263] : memref<2x20x20x128xf32, #tpu.memory_space<vmem>>, vector<2x1x1x128xf32>
    %177 = vector.shape_cast %176 : vector<2x1x1x128xf32> to vector<2x128xf32>
    %c0_264 = arith.constant 0 : index
    %c2_265 = arith.constant 2 : index
    %c0_266 = arith.constant 0 : index
    %c0_267 = arith.constant 0 : index
    %178 = vector.load %arg6[%c0_264, %c2_265, %c0_266, %c0_267] : memref<1x16x128x128xf32, #tpu.memory_space<vmem>>, vector<1x1x128x128xf32>
    %179 = vector.shape_cast %178 : vector<1x1x128x128xf32> to vector<128x128xf32>
    %cst_268 = arith.constant dense<0.000000e+00> : vector<2x128xf32>
    %180 = tpu.matmul %177, %179, %cst_268 {dimension_numbers = #tpu.dot_dimension_numbers<[1], [0], [0], [1], [0, 0, 1, 1], [], []>} : vector<2x128xf32>, vector<128x128xf32>, vector<2x128xf32> -> vector<2x128xf32>
    %181 = arith.addf %175, %180 : vector<2x128xf32>
    %c0_269 = arith.constant 0 : index
    %c2_270 = arith.constant 2 : index
    %c14 = arith.constant 14 : index
    %c0_271 = arith.constant 0 : index
    %182 = vector.load %arg12[%c0_269, %c2_270, %c14, %c0_271] : memref<2x20x20x128xf32, #tpu.memory_space<vmem>>, vector<2x1x1x128xf32>
    %183 = vector.shape_cast %182 : vector<2x1x1x128xf32> to vector<2x128xf32>
    %c0_272 = arith.constant 0 : index
    %c3_273 = arith.constant 3 : index
    %c0_274 = arith.constant 0 : index
    %c0_275 = arith.constant 0 : index
    %184 = vector.load %arg6[%c0_272, %c3_273, %c0_274, %c0_275] : memref<1x16x128x128xf32, #tpu.memory_space<vmem>>, vector<1x1x128x128xf32>
    %185 = vector.shape_cast %184 : vector<1x1x128x128xf32> to vector<128x128xf32>
    %cst_276 = arith.constant dense<0.000000e+00> : vector<2x128xf32>
    %186 = tpu.matmul %183, %185, %cst_276 {dimension_numbers = #tpu.dot_dimension_numbers<[1], [0], [0], [1], [0, 0, 1, 1], [], []>} : vector<2x128xf32>, vector<128x128xf32>, vector<2x128xf32> -> vector<2x128xf32>
    %187 = arith.addf %181, %186 : vector<2x128xf32>
    %c0_277 = arith.constant 0 : index
    %c6_278 = arith.constant 6 : index
    %c2_279 = arith.constant 2 : index
    %c0_280 = arith.constant 0 : index
    %188 = vector.load %arg12[%c0_277, %c6_278, %c2_279, %c0_280] : memref<2x20x20x128xf32, #tpu.memory_space<vmem>>, vector<2x1x1x128xf32>
    %189 = vector.shape_cast %188 : vector<2x1x1x128xf32> to vector<2x128xf32>
    %c0_281 = arith.constant 0 : index
    %c4_282 = arith.constant 4 : index
    %c0_283 = arith.constant 0 : index
    %c0_284 = arith.constant 0 : index
    %190 = vector.load %arg6[%c0_281, %c4_282, %c0_283, %c0_284] : memref<1x16x128x128xf32, #tpu.memory_space<vmem>>, vector<1x1x128x128xf32>
    %191 = vector.shape_cast %190 : vector<1x1x128x128xf32> to vector<128x128xf32>
    %cst_285 = arith.constant dense<0.000000e+00> : vector<2x128xf32>
    %192 = tpu.matmul %189, %191, %cst_285 {dimension_numbers = #tpu.dot_dimension_numbers<[1], [0], [0], [1], [0, 0, 1, 1], [], []>} : vector<2x128xf32>, vector<128x128xf32>, vector<2x128xf32> -> vector<2x128xf32>
    %193 = arith.addf %187, %192 : vector<2x128xf32>
    %c0_286 = arith.constant 0 : index
    %c6_287 = arith.constant 6 : index
    %c6_288 = arith.constant 6 : index
    %c0_289 = arith.constant 0 : index
    %194 = vector.load %arg12[%c0_286, %c6_287, %c6_288, %c0_289] : memref<2x20x20x128xf32, #tpu.memory_space<vmem>>, vector<2x1x1x128xf32>
    %195 = vector.shape_cast %194 : vector<2x1x1x128xf32> to vector<2x128xf32>
    %c0_290 = arith.constant 0 : index
    %c5_291 = arith.constant 5 : index
    %c0_292 = arith.constant 0 : index
    %c0_293 = arith.constant 0 : index
    %196 = vector.load %arg6[%c0_290, %c5_291, %c0_292, %c0_293] : memref<1x16x128x128xf32, #tpu.memory_space<vmem>>, vector<1x1x128x128xf32>
    %197 = vector.shape_cast %196 : vector<1x1x128x128xf32> to vector<128x128xf32>
    %cst_294 = arith.constant dense<0.000000e+00> : vector<2x128xf32>
    %198 = tpu.matmul %195, %197, %cst_294 {dimension_numbers = #tpu.dot_dimension_numbers<[1], [0], [0], [1], [0, 0, 1, 1], [], []>} : vector<2x128xf32>, vector<128x128xf32>, vector<2x128xf32> -> vector<2x128xf32>
    %199 = arith.addf %193, %198 : vector<2x128xf32>
    %c0_295 = arith.constant 0 : index
    %c6_296 = arith.constant 6 : index
    %c10_297 = arith.constant 10 : index
    %c0_298 = arith.constant 0 : index
    %200 = vector.load %arg12[%c0_295, %c6_296, %c10_297, %c0_298] : memref<2x20x20x128xf32, #tpu.memory_space<vmem>>, vector<2x1x1x128xf32>
    %201 = vector.shape_cast %200 : vector<2x1x1x128xf32> to vector<2x128xf32>
    %c0_299 = arith.constant 0 : index
    %c6_300 = arith.constant 6 : index
    %c0_301 = arith.constant 0 : index
    %c0_302 = arith.constant 0 : index
    %202 = vector.load %arg6[%c0_299, %c6_300, %c0_301, %c0_302] : memref<1x16x128x128xf32, #tpu.memory_space<vmem>>, vector<1x1x128x128xf32>
    %203 = vector.shape_cast %202 : vector<1x1x128x128xf32> to vector<128x128xf32>
    %cst_303 = arith.constant dense<0.000000e+00> : vector<2x128xf32>
    %204 = tpu.matmul %201, %203, %cst_303 {dimension_numbers = #tpu.dot_dimension_numbers<[1], [0], [0], [1], [0, 0, 1, 1], [], []>} : vector<2x128xf32>, vector<128x128xf32>, vector<2x128xf32> -> vector<2x128xf32>
    %205 = arith.addf %199, %204 : vector<2x128xf32>
    %c0_304 = arith.constant 0 : index
    %c6_305 = arith.constant 6 : index
    %c14_306 = arith.constant 14 : index
    %c0_307 = arith.constant 0 : index
    %206 = vector.load %arg12[%c0_304, %c6_305, %c14_306, %c0_307] : memref<2x20x20x128xf32, #tpu.memory_space<vmem>>, vector<2x1x1x128xf32>
    %207 = vector.shape_cast %206 : vector<2x1x1x128xf32> to vector<2x128xf32>
    %c0_308 = arith.constant 0 : index
    %c7_309 = arith.constant 7 : index
    %c0_310 = arith.constant 0 : index
    %c0_311 = arith.constant 0 : index
    %208 = vector.load %arg6[%c0_308, %c7_309, %c0_310, %c0_311] : memref<1x16x128x128xf32, #tpu.memory_space<vmem>>, vector<1x1x128x128xf32>
    %209 = vector.shape_cast %208 : vector<1x1x128x128xf32> to vector<128x128xf32>
    %cst_312 = arith.constant dense<0.000000e+00> : vector<2x128xf32>
    %210 = tpu.matmul %207, %209, %cst_312 {dimension_numbers = #tpu.dot_dimension_numbers<[1], [0], [0], [1], [0, 0, 1, 1], [], []>} : vector<2x128xf32>, vector<128x128xf32>, vector<2x128xf32> -> vector<2x128xf32>
    %211 = arith.addf %205, %210 : vector<2x128xf32>
    %c0_313 = arith.constant 0 : index
    %c10_314 = arith.constant 10 : index
    %c2_315 = arith.constant 2 : index
    %c0_316 = arith.constant 0 : index
    %212 = vector.load %arg12[%c0_313, %c10_314, %c2_315, %c0_316] : memref<2x20x20x128xf32, #tpu.memory_space<vmem>>, vector<2x1x1x128xf32>
    %213 = vector.shape_cast %212 : vector<2x1x1x128xf32> to vector<2x128xf32>
    %c0_317 = arith.constant 0 : index
    %c8_318 = arith.constant 8 : index
    %c0_319 = arith.constant 0 : index
    %c0_320 = arith.constant 0 : index
    %214 = vector.load %arg6[%c0_317, %c8_318, %c0_319, %c0_320] : memref<1x16x128x128xf32, #tpu.memory_space<vmem>>, vector<1x1x128x128xf32>
    %215 = vector.shape_cast %214 : vector<1x1x128x128xf32> to vector<128x128xf32>
    %cst_321 = arith.constant dense<0.000000e+00> : vector<2x128xf32>
    %216 = tpu.matmul %213, %215, %cst_321 {dimension_numbers = #tpu.dot_dimension_numbers<[1], [0], [0], [1], [0, 0, 1, 1], [], []>} : vector<2x128xf32>, vector<128x128xf32>, vector<2x128xf32> -> vector<2x128xf32>
    %217 = arith.addf %211, %216 : vector<2x128xf32>
    %c0_322 = arith.constant 0 : index
    %c10_323 = arith.constant 10 : index
    %c6_324 = arith.constant 6 : index
    %c0_325 = arith.constant 0 : index
    %218 = vector.load %arg12[%c0_322, %c10_323, %c6_324, %c0_325] : memref<2x20x20x128xf32, #tpu.memory_space<vmem>>, vector<2x1x1x128xf32>
    %219 = vector.shape_cast %218 : vector<2x1x1x128xf32> to vector<2x128xf32>
    %c0_326 = arith.constant 0 : index
    %c9 = arith.constant 9 : index
    %c0_327 = arith.constant 0 : index
    %c0_328 = arith.constant 0 : index
    %220 = vector.load %arg6[%c0_326, %c9, %c0_327, %c0_328] : memref<1x16x128x128xf32, #tpu.memory_space<vmem>>, vector<1x1x128x128xf32>
    %221 = vector.shape_cast %220 : vector<1x1x128x128xf32> to vector<128x128xf32>
    %cst_329 = arith.constant dense<0.000000e+00> : vector<2x128xf32>
    %222 = tpu.matmul %219, %221, %cst_329 {dimension_numbers = #tpu.dot_dimension_numbers<[1], [0], [0], [1], [0, 0, 1, 1], [], []>} : vector<2x128xf32>, vector<128x128xf32>, vector<2x128xf32> -> vector<2x128xf32>
    %223 = arith.addf %217, %222 : vector<2x128xf32>
    %c0_330 = arith.constant 0 : index
    %c10_331 = arith.constant 10 : index
    %c10_332 = arith.constant 10 : index
    %c0_333 = arith.constant 0 : index
    %224 = vector.load %arg12[%c0_330, %c10_331, %c10_332, %c0_333] : memref<2x20x20x128xf32, #tpu.memory_space<vmem>>, vector<2x1x1x128xf32>
    %225 = vector.shape_cast %224 : vector<2x1x1x128xf32> to vector<2x128xf32>
    %c0_334 = arith.constant 0 : index
    %c10_335 = arith.constant 10 : index
    %c0_336 = arith.constant 0 : index
    %c0_337 = arith.constant 0 : index
    %226 = vector.load %arg6[%c0_334, %c10_335, %c0_336, %c0_337] : memref<1x16x128x128xf32, #tpu.memory_space<vmem>>, vector<1x1x128x128xf32>
    %227 = vector.shape_cast %226 : vector<1x1x128x128xf32> to vector<128x128xf32>
    %cst_338 = arith.constant dense<0.000000e+00> : vector<2x128xf32>
    %228 = tpu.matmul %225, %227, %cst_338 {dimension_numbers = #tpu.dot_dimension_numbers<[1], [0], [0], [1], [0, 0, 1, 1], [], []>} : vector<2x128xf32>, vector<128x128xf32>, vector<2x128xf32> -> vector<2x128xf32>
    %229 = arith.addf %223, %228 : vector<2x128xf32>
    %c0_339 = arith.constant 0 : index
    %c10_340 = arith.constant 10 : index
    %c14_341 = arith.constant 14 : index
    %c0_342 = arith.constant 0 : index
    %230 = vector.load %arg12[%c0_339, %c10_340, %c14_341, %c0_342] : memref<2x20x20x128xf32, #tpu.memory_space<vmem>>, vector<2x1x1x128xf32>
    %231 = vector.shape_cast %230 : vector<2x1x1x128xf32> to vector<2x128xf32>
    %c0_343 = arith.constant 0 : index
    %c11 = arith.constant 11 : index
    %c0_344 = arith.constant 0 : index
    %c0_345 = arith.constant 0 : index
    %232 = vector.load %arg6[%c0_343, %c11, %c0_344, %c0_345] : memref<1x16x128x128xf32, #tpu.memory_space<vmem>>, vector<1x1x128x128xf32>
    %233 = vector.shape_cast %232 : vector<1x1x128x128xf32> to vector<128x128xf32>
    %cst_346 = arith.constant dense<0.000000e+00> : vector<2x128xf32>
    %234 = tpu.matmul %231, %233, %cst_346 {dimension_numbers = #tpu.dot_dimension_numbers<[1], [0], [0], [1], [0, 0, 1, 1], [], []>} : vector<2x128xf32>, vector<128x128xf32>, vector<2x128xf32> -> vector<2x128xf32>
    %235 = arith.addf %229, %234 : vector<2x128xf32>
    %c0_347 = arith.constant 0 : index
    %c14_348 = arith.constant 14 : index
    %c2_349 = arith.constant 2 : index
    %c0_350 = arith.constant 0 : index
    %236 = vector.load %arg12[%c0_347, %c14_348, %c2_349, %c0_350] : memref<2x20x20x128xf32, #tpu.memory_space<vmem>>, vector<2x1x1x128xf32>
    %237 = vector.shape_cast %236 : vector<2x1x1x128xf32> to vector<2x128xf32>
    %c0_351 = arith.constant 0 : index
    %c12 = arith.constant 12 : index
    %c0_352 = arith.constant 0 : index
    %c0_353 = arith.constant 0 : index
    %238 = vector.load %arg6[%c0_351, %c12, %c0_352, %c0_353] : memref<1x16x128x128xf32, #tpu.memory_space<vmem>>, vector<1x1x128x128xf32>
    %239 = vector.shape_cast %238 : vector<1x1x128x128xf32> to vector<128x128xf32>
    %cst_354 = arith.constant dense<0.000000e+00> : vector<2x128xf32>
    %240 = tpu.matmul %237, %239, %cst_354 {dimension_numbers = #tpu.dot_dimension_numbers<[1], [0], [0], [1], [0, 0, 1, 1], [], []>} : vector<2x128xf32>, vector<128x128xf32>, vector<2x128xf32> -> vector<2x128xf32>
    %241 = arith.addf %235, %240 : vector<2x128xf32>
    %c0_355 = arith.constant 0 : index
    %c14_356 = arith.constant 14 : index
    %c6_357 = arith.constant 6 : index
    %c0_358 = arith.constant 0 : index
    %242 = vector.load %arg12[%c0_355, %c14_356, %c6_357, %c0_358] : memref<2x20x20x128xf32, #tpu.memory_space<vmem>>, vector<2x1x1x128xf32>
    %243 = vector.shape_cast %242 : vector<2x1x1x128xf32> to vector<2x128xf32>
    %c0_359 = arith.constant 0 : index
    %c13 = arith.constant 13 : index
    %c0_360 = arith.constant 0 : index
    %c0_361 = arith.constant 0 : index
    %244 = vector.load %arg6[%c0_359, %c13, %c0_360, %c0_361] : memref<1x16x128x128xf32, #tpu.memory_space<vmem>>, vector<1x1x128x128xf32>
    %245 = vector.shape_cast %244 : vector<1x1x128x128xf32> to vector<128x128xf32>
    %cst_362 = arith.constant dense<0.000000e+00> : vector<2x128xf32>
    %246 = tpu.matmul %243, %245, %cst_362 {dimension_numbers = #tpu.dot_dimension_numbers<[1], [0], [0], [1], [0, 0, 1, 1], [], []>} : vector<2x128xf32>, vector<128x128xf32>, vector<2x128xf32> -> vector<2x128xf32>
    %247 = arith.addf %241, %246 : vector<2x128xf32>
    %c0_363 = arith.constant 0 : index
    %c14_364 = arith.constant 14 : index
    %c10_365 = arith.constant 10 : index
    %c0_366 = arith.constant 0 : index
    %248 = vector.load %arg12[%c0_363, %c14_364, %c10_365, %c0_366] : memref<2x20x20x128xf32, #tpu.memory_space<vmem>>, vector<2x1x1x128xf32>
    %249 = vector.shape_cast %248 : vector<2x1x1x128xf32> to vector<2x128xf32>
    %c0_367 = arith.constant 0 : index
    %c14_368 = arith.constant 14 : index
    %c0_369 = arith.constant 0 : index
    %c0_370 = arith.constant 0 : index
    %250 = vector.load %arg6[%c0_367, %c14_368, %c0_369, %c0_370] : memref<1x16x128x128xf32, #tpu.memory_space<vmem>>, vector<1x1x128x128xf32>
    %251 = vector.shape_cast %250 : vector<1x1x128x128xf32> to vector<128x128xf32>
    %cst_371 = arith.constant dense<0.000000e+00> : vector<2x128xf32>
    %252 = tpu.matmul %249, %251, %cst_371 {dimension_numbers = #tpu.dot_dimension_numbers<[1], [0], [0], [1], [0, 0, 1, 1], [], []>} : vector<2x128xf32>, vector<128x128xf32>, vector<2x128xf32> -> vector<2x128xf32>
    %253 = arith.addf %247, %252 : vector<2x128xf32>
    %c0_372 = arith.constant 0 : index
    %c14_373 = arith.constant 14 : index
    %c14_374 = arith.constant 14 : index
    %c0_375 = arith.constant 0 : index
    %254 = vector.load %arg12[%c0_372, %c14_373, %c14_374, %c0_375] : memref<2x20x20x128xf32, #tpu.memory_space<vmem>>, vector<2x1x1x128xf32>
    %255 = vector.shape_cast %254 : vector<2x1x1x128xf32> to vector<2x128xf32>
    %c0_376 = arith.constant 0 : index
    %c15 = arith.constant 15 : index
    %c0_377 = arith.constant 0 : index
    %c0_378 = arith.constant 0 : index
    %256 = vector.load %arg6[%c0_376, %c15, %c0_377, %c0_378] : memref<1x16x128x128xf32, #tpu.memory_space<vmem>>, vector<1x1x128x128xf32>
    %257 = vector.shape_cast %256 : vector<1x1x128x128xf32> to vector<128x128xf32>
    %cst_379 = arith.constant dense<0.000000e+00> : vector<2x128xf32>
    %258 = tpu.matmul %255, %257, %cst_379 {dimension_numbers = #tpu.dot_dimension_numbers<[1], [0], [0], [1], [0, 0, 1, 1], [], []>} : vector<2x128xf32>, vector<128x128xf32>, vector<2x128xf32> -> vector<2x128xf32>
    %259 = arith.addf %253, %258 : vector<2x128xf32>
    %260 = arith.mulf %259, %259 : vector<2x128xf32>
    %cst_380 = arith.constant dense<0.000000e+00> : vector<2xf32>
    %261 = vector.multi_reduction <add>, %260, %cst_380 [1] : vector<2x128xf32> to vector<2xf32>
    %262 = vector.shape_cast %261 : vector<2xf32> to vector<2x1xf32>
    %cst_381 = arith.constant 1.000000e-24 : f32
    %263 = vector.broadcast %cst_381 : f32 to vector<2x1xf32>
    %264 = arith.maximumf %262, %263 : vector<2x1xf32>
    %265 = math.rsqrt %264 : vector<2x1xf32>
    %266 = vector.broadcast %265 : vector<2x1xf32> to vector<2x128xf32>
    %267 = arith.mulf %259, %266 : vector<2x128xf32>
    %c0_382 = arith.constant 0 : index
    %c0_383 = arith.constant 0 : index
    %c0_384 = arith.constant 0 : index
    %268 = vector.load %arg8[%c0_382, %c0_383, %c0_384] : memref<1x2x128xf32, #tpu.memory_space<vmem>>, vector<1x2x128xf32>
    %269 = vector.shape_cast %268 : vector<1x2x128xf32> to vector<2x128xf32>
    %270 = vector.shape_cast %267 : vector<2x128xf32> to vector<1x2x128xf32>
    tpu.vector_store %arg8[%c0_382, %c0_383, %c0_384], %270 {strides = array<i32>} : memref<1x2x128xf32, #tpu.memory_space<vmem>>, vector<1x2x128xf32>,
    return
  }
  func.func @transform_0(%arg0: i32) -> (i32, i32, i32, i32, i32) {
    %c0_i32 = arith.constant 0 : i32
    %c0_i32_0 = arith.constant 0 : i32
    %c0_i32_1 = arith.constant 0 : i32
    %c0_i32_2 = arith.constant 0 : i32
    %c0_i32_3 = arith.constant 0 : i32
    return %arg0, %c0_i32, %c0_i32_0, %c0_i32_1, %c0_i32_2 : i32, i32, i32, i32, i32
  }
  func.func @transform_1(%arg0: i32) -> (i32, i32, i32, i32) {
    %c0_i32 = arith.constant 0 : i32
    %c0_i32_0 = arith.constant 0 : i32
    %c0_i32_1 = arith.constant 0 : i32
    %c0_i32_2 = arith.constant 0 : i32
    return %arg0, %c0_i32, %c0_i32_0, %c0_i32_1 : i32, i32, i32, i32
  }
  func.func @transform_2(%arg0: i32) -> (i32, i32, i32) {
    %c0_i32 = arith.constant 0 : i32
    %c0_i32_0 = arith.constant 0 : i32
    %c0_i32_1 = arith.constant 0 : i32
    return %arg0, %c0_i32, %c0_i32_0 : i32, i32, i32
  }
  func.func @transform_3(%arg0: i32) -> (i32, i32, i32, i32) {
    %c0_i32 = arith.constant 0 : i32
    %c0_i32_0 = arith.constant 0 : i32
    %c0_i32_1 = arith.constant 0 : i32
    %c0_i32_2 = arith.constant 0 : i32
    return %arg0, %c0_i32, %c0_i32_0, %c0_i32_1 : i32, i32, i32, i32
  }
  func.func @transform_4(%arg0: i32) -> (i32, i32, i32) {
    %c0_i32 = arith.constant 0 : i32
    %c0_i32_0 = arith.constant 0 : i32
    %c0_i32_1 = arith.constant 0 : i32
    return %arg0, %c0_i32, %c0_i32_0 : i32, i32, i32
  }
  func.func @transform_5(%arg0: i32) -> (i32, i32, i32, i32) {
    %c0_i32 = arith.constant 0 : i32
    %c0_i32_0 = arith.constant 0 : i32
    %c0_i32_1 = arith.constant 0 : i32
    %c0_i32_2 = arith.constant 0 : i32
    return %arg0, %c0_i32, %c0_i32_0, %c0_i32_1 : i32, i32, i32, i32
  }
  func.func @transform_6(%arg0: i32) -> (i32, i32, i32) {
    %c0_i32 = arith.constant 0 : i32
    %c0_i32_0 = arith.constant 0 : i32
    %c0_i32_1 = arith.constant 0 : i32
    return %arg0, %c0_i32, %c0_i32_0 : i32, i32, i32
  }
  func.func @transform_7(%arg0: i32) -> (i32, i32, i32) {
    %c0_i32 = arith.constant 0 : i32
    %c0_i32_0 = arith.constant 0 : i32
    %c0_i32_1 = arith.constant 0 : i32
    return %arg0, %c0_i32, %c0_i32_0 : i32, i32, i32
  }
}

module attributes {stable_mosaic.version = 11 : i64} {
  func.func @_moco_logits_kernel(%arg0: i32, %arg1: memref<2x2x128xf32, #tpu.memory_space<vmem>>, %arg2: memref<128x64xf32, #tpu.memory_space<vmem>>, %arg3: memref<2x1xf32, #tpu.memory_space<vmem>>, %arg4: memref<2x64xf32, #tpu.memory_space<vmem>>) attributes {dimension_semantics = [#tpu.dimension_semantics<arbitrary>], iteration_bounds = array<i64: 1>, scalar_prefetch = 0 : i64, scratch_operands = 0 : i64, tpu.core_type = #tpu.core_type<tc>, window_params = [{pipeline_mode = #tpu.pipeline_mode<synchronous>, transform_indices = @transform_0, window_bounds = array<i64: 2, 2, 128>}, {pipeline_mode = #tpu.pipeline_mode<synchronous>, transform_indices = @transform_1, window_bounds = array<i64: 128, 64>}, {pipeline_mode = #tpu.pipeline_mode<synchronous>, transform_indices = @transform_2, window_bounds = array<i64: 2, 1>}, {pipeline_mode = #tpu.pipeline_mode<synchronous>, transform_indices = @transform_3, window_bounds = array<i64: 2, 64>}]} {
    %c0 = arith.constant 0 : index
    %c0_0 = arith.constant 0 : index
    %c0_1 = arith.constant 0 : index
    %0 = vector.load %arg1[%c0, %c0_0, %c0_1] : memref<2x2x128xf32, #tpu.memory_space<vmem>>, vector<1x2x128xf32>
    %1 = vector.shape_cast %0 : vector<1x2x128xf32> to vector<2x128xf32>
    %cst = arith.constant 14.2857141 : f32
    %2 = vector.broadcast %cst : f32 to vector<2x128xf32>
    %3 = arith.mulf %1, %2 : vector<2x128xf32>
    %c1 = arith.constant 1 : index
    %c0_2 = arith.constant 0 : index
    %c0_3 = arith.constant 0 : index
    %4 = vector.load %arg1[%c1, %c0_2, %c0_3] : memref<2x2x128xf32, #tpu.memory_space<vmem>>, vector<1x2x128xf32>
    %5 = vector.shape_cast %4 : vector<1x2x128xf32> to vector<2x128xf32>
    %6 = arith.mulf %3, %5 : vector<2x128xf32>
    %cst_4 = arith.constant dense<0.000000e+00> : vector<2xf32>
    %7 = vector.multi_reduction <add>, %6, %cst_4 [1] : vector<2x128xf32> to vector<2xf32>
    %8 = vector.shape_cast %7 : vector<2xf32> to vector<2x1xf32>
    %c0_5 = arith.constant 0 : index
    %c0_6 = arith.constant 0 : index
    %9 = vector.load %arg3[%c0_5, %c0_6] : memref<2x1xf32, #tpu.memory_space<vmem>>, vector<2x1xf32>
    tpu.vector_store %arg3[%c0_5, %c0_6], %8 {strides = array<i32>} : memref<2x1xf32, #tpu.memory_space<vmem>>, vector<2x1xf32>,
    %c0_7 = arith.constant 0 : index
    %c0_8 = arith.constant 0 : index
    %10 = vector.load %arg2[%c0_7, %c0_8] : memref<128x64xf32, #tpu.memory_space<vmem>>, vector<128x64xf32>
    %cst_9 = arith.constant dense<0.000000e+00> : vector<2x64xf32>
    %11 = tpu.matmul %3, %10, %cst_9 {dimension_numbers = #tpu.dot_dimension_numbers<[1], [0], [0], [1], [0, 0, 1, 1], [], []>} : vector<2x128xf32>, vector<128x64xf32>, vector<2x64xf32> -> vector<2x64xf32>
    %c0_10 = arith.constant 0 : index
    %c0_11 = arith.constant 0 : index
    %12 = vector.load %arg4[%c0_10, %c0_11] : memref<2x64xf32, #tpu.memory_space<vmem>>, vector<2x64xf32>
    tpu.vector_store %arg4[%c0_10, %c0_11], %11 {strides = array<i32>} : memref<2x64xf32, #tpu.memory_space<vmem>>, vector<2x64xf32>,
    return
  }
  func.func @transform_0(%arg0: i32) -> (i32, i32, i32) {
    %c0_i32 = arith.constant 0 : i32
    %c0_i32_0 = arith.constant 0 : i32
    %c0_i32_1 = arith.constant 0 : i32
    %c0_i32_2 = arith.constant 0 : i32
    return %c0_i32, %c0_i32_0, %c0_i32_1 : i32, i32, i32
  }
  func.func @transform_1(%arg0: i32) -> (i32, i32) {
    %c0_i32 = arith.constant 0 : i32
    %c0_i32_0 = arith.constant 0 : i32
    %c0_i32_1 = arith.constant 0 : i32
    return %c0_i32, %c0_i32_0 : i32, i32
  }
  func.func @transform_2(%arg0: i32) -> (i32, i32) {
    %c0_i32 = arith.constant 0 : i32
    %c0_i32_0 = arith.constant 0 : i32
    %c0_i32_1 = arith.constant 0 : i32
    return %c0_i32, %c0_i32_0 : i32, i32
  }
  func.func @transform_3(%arg0: i32) -> (i32, i32) {
    %c0_i32 = arith.constant 0 : i32
    %c0_i32_0 = arith.constant 0 : i32
    %c0_i32_1 = arith.constant 0 : i32
    return %c0_i32, %c0_i32_0 : i32, i32
  }
}

</mosaic_0001>

<llo_original>
// kernel: moco_forward.3
$region0: #{moco_forward.3}
  #allocation0 [shape = 'u32[]', space=smem, size = 0x4, offset = 0x4, fixed_abs, tag = 'smem constant byte address 0x4 - core index']
  #allocation1 [shape = 'u32[72,128]{1,0:T(1,128)}', space=vmem, size = 0x9000, scoped, tag = 'internal scratch']
  %s0 = inlined_call_operand.vmem [shape: f32[2,2,128], index: 0, kind: input, shape index: {}]
  %s1 = inlined_call_operand.vmem [shape: f32[128,64], index: 1, kind: input, shape index: {}]
  %s2 = inlined_call_operand.vmem [shape: f32[2,1], index: 2, kind: output, shape index: {0}]
  %s3 = inlined_call_operand.vmem [shape: f32[2,64], index: 3, kind: output, shape index: {1}]
  %4 = xla_tuple %s2, %s3
  %s5 = sld [smem:[#allocation0]]
  $region26: #{moco_forward.3} parent=0
    _
  %s7 = ssub.s32 1, %s5
  %s8 = scalar_select 0, %s7, %s5
  // Predicated region
  $region2: #{moco_forward.3} parent=0 // pred_check
    _
  $region3: #{moco_forward.3} parent=0 // pred_check_branch
    %10 = sbr.rel (0) target = $region5
  $region4: #{moco_forward.3} parent=0 // pred_region
    _
  $region5: #{moco_forward.3} parent=0 // pred_fallthru
    _
  // Predicated region
  $region6: #{moco_forward.3} parent=0 // pred_check
    _
  $region7: #{moco_forward.3} parent=0 // pred_check_branch
    %12 = sbr.rel (0) target = $region9
  $region8: #{moco_forward.3} parent=0 // pred_region
    _
  $region9: #{moco_forward.3} parent=0 // pred_fallthru
    _
  %v13 = vld [vmem:[%s0] sm:$0x3]
  %v14 = vmul.f32 %v13, 14.285714
  %s15 = scalar_lea.vmem %s0, 2
  %v16 = vld [vmem:[%s15] sm:$0x3]
  %v17 = vmul.f32 %v14, %v16
  %vm18 = vcmask 1041408
  %v19 = vsel %vm18, %v17, 0.0
  %20 = vadd.xlane.f32.xlu0 %v19
  %v21 = vpop.xlane.xlu0 %20
  %vm22 = vcmask 1024
  %23 = vst.msk [vmem:[%s2] sm:$0x3] %vm22, %v21
  %v24 = vld [vmem:[%s1] sm:$0xff]
  %v25 = vld [vmem:[%s1 + $0x8] sm:$0xff]
  %v26 = vld [vmem:[%s1 + $0x10] sm:$0xff]
  %v27 = vld [vmem:[%s1 + $0x18] sm:$0xff]
  %v28 = vld [vmem:[%s1 + $0x20] sm:$0xff]
  %v29 = vld [vmem:[%s1 + $0x28] sm:$0xff]
  %v30 = vld [vmem:[%s1 + $0x30] sm:$0xff]
  %v31 = vld [vmem:[%s1 + $0x38] sm:$0xff]
  %v32 = vld [vmem:[%s1 + $0x40] sm:$0xff]
  %v33 = vld [vmem:[%s1 + $0x48] sm:$0xff]
  %v34 = vld [vmem:[%s1 + $0x50] sm:$0xff]
  %v35 = vld [vmem:[%s1 + $0x58] sm:$0xff]
  %v36 = vld [vmem:[%s1 + $0x60] sm:$0xff]
  %v37 = vld [vmem:[%s1 + $0x68] sm:$0xff]
  %v38 = vld [vmem:[%s1 + $0x70] sm:$0xff]
  %v39 = vld [vmem:[%s1 + $0x78] sm:$0xff]
  %40 = vmatpush.msra.mxu0 %v39
  %41 = vmatpush.msra.mxu0 %v38
  %42 = vmatpush.msra.mxu0 %v37
  %43 = vmatpush.msra.mxu0 %v36
  %44 = vmatpush.msra.mxu0 %v35
  %45 = vmatpush.msra.mxu0 %v34
  %46 = vmatpush.msra.mxu0 %v33
  %47 = vmatpush.msra.mxu0 %v32
  %48 = vmatpush.msra.mxu0 %v31
  %49 = vmatpush.msra.mxu0 %v30
  %50 = vmatpush.msra.mxu0 %v29
  %51 = vmatpush.msra.mxu0 %v28
  %52 = vmatpush.msra.mxu0 %v27
  %53 = vmatpush.msra.mxu0 %v26
  %54 = vmatpush.msra.mxu0 %v25
  %55 = vmatpush.msra.mxu0 %v24
  %56 = vmatmul.f32.gmra.mxu0 %v14
  %v57 = vpop.f32.mrf.mxu0
  %v58 = vadd.f32 0.0, %v57
  %59 = vdwg.mxu0
  %vm60 = vcmask 517120
  %61 = vst.msk [vmem:[%s3] sm:$0x3] %vm60, %v58
  // Predicated region
  $region10: #{moco_forward.3} parent=0 // pred_check
    _
  $region11: #{moco_forward.3} parent=0 // pred_check_branch
    %63 = sbr.rel (0) target = $region13
  $region12: #{moco_forward.3} parent=0 // pred_region
    _
  $region13: #{moco_forward.3} parent=0 // pred_fallthru
    _
  // Predicated region
  $region14: #{moco_forward.3} parent=0 // pred_check
    _
  $region15: #{moco_forward.3} parent=0 // pred_check_branch
    %65 = sbr.rel (0) target = $region17
  $region16: #{moco_forward.3} parent=0 // pred_region
    _
  $region17: #{moco_forward.3} parent=0 // pred_fallthru
    _
  // Predicated region
  $region18: #{moco_forward.3} parent=0 // pred_check
    _
  $region19: #{moco_forward.3} parent=0 // pred_check_branch
    %67 = sbr.rel (0) target = $region21
  $region20: #{moco_forward.3} parent=0 // pred_region
    _
  $region21: #{moco_forward.3} parent=0 // pred_fallthru
    _
  // Predicated region
  $region22: #{moco_forward.3} parent=0 // pred_check
    _
  $region23: #{moco_forward.3} parent=0 // pred_check_branch
    %69 = sbr.rel (0) target = $region25
  $region24: #{moco_forward.3} parent=0 // pred_region
    _
  $region25: #{moco_forward.3} parent=0 // pred_fallthru
    _

// kernel: moco_forward.2
$region0: #{moco_forward.2}
  #allocation0 [shape = 'u32[]', space=smem, size = 0x4, offset = 0x4, fixed_abs, tag = 'smem constant byte address 0x4 - core index']
  #allocation1 [shape = 'u32[72,128]{1,0:T(1,128)}', space=vmem, size = 0x9000, scoped, tag = 'internal scratch']
  #allocation2 [shape = 'f32[2,20,20,128]{3,2,1,0:T(8,128)}', space=vmem, size = 0x78000, scoped, tag = 'scratch operand']
  #allocation3 [shape = 'f32[2,20,20,128]{3,2,1,0:T(8,128)}', space=vmem, size = 0x78000, scoped, tag = 'scratch operand']
  #allocation4 [shape = 'f32[2,20,20,128]{3,2,1,0:T(8,128)}', space=vmem, size = 0x78000, scoped, tag = 'scratch operand']
  #allocation5 [shape = 'f32[2,20,20,128]{3,2,1,0:T(8,128)}', space=vmem, size = 0x78000, scoped, tag = 'scratch operand']
  %s0 = inlined_call_operand.vmem [shape: f32[2,2,20,20,128], index: 0, kind: input, shape index: {}]
  %s1 = inlined_call_operand.vmem [shape: f32[2,9,128,128], index: 1, kind: input, shape index: {}]
  %s2 = inlined_call_operand.vmem [shape: f32[2,1,128], index: 2, kind: input, shape index: {}]
  %s3 = inlined_call_operand.hbm [shape: f32[2,9,128,128], index: 3, kind: input, shape index: {}]
  %s4 = inlined_call_operand.vmem [shape: f32[2,1,128], index: 4, kind: input, shape index: {}]
  %s5 = inlined_call_operand.vmem [shape: f32[2,16,128,128], index: 5, kind: input, shape index: {}]
  %s6 = inlined_call_operand.vmem [shape: f32[2,1,128], index: 6, kind: input, shape index: {}]
  %s7 = inlined_call_operand.vmem [shape: f32[2,2,128], index: 7, kind: output, shape index: {}]
  %s8 = sld [smem:[#allocation0]]
  $region65: #{moco_forward.2} parent=0
    _
  %s10 = ssub.s32 1, %s8
  %s11 = scalar_select 0, %s10, %s8
  $region1: #{moco_forward.2} parent=0
    #allocation6 [shape = 'u8[1179648]{0}', space=vmem, size = 0x120000, scoped, tag = 'input window, operand 3']
    #allocation7 [shape = 's32[2]{0}', space=sflag, size = 0x8, scoped, tag = 'scoped memory for moco_forward.2']
    %12 = vsyncpa [#allocation7], 0
    %s13 = scalar_lea.sflag [#allocation7], 1
    %14 = vsyncpa %s13, 0
    loop: start=0, step=1, limit=4
    $region2: #{moco_forward.2} parent=1 // loop_pre_header
      _
    $region3: #{moco_forward.2} parent=1 // loop_header
      %s16 = sphi 0, %s20
      %p17 = scmp.ge.s32.totalorder %s16, 4
      %s26 = sphi 0, %s28
      %s29 = sphi 0, %s26
      %s30 = sphi 0, %s29
      %s46 = sphi 0, %s30
      %s52 = sphi 0, %s54
      %s55 = sphi 0, %s52
      %s56 = sphi 0, %s55
      %s72 = sphi 0, %s56
      %s78 = sphi 0, %s80
      %s81 = sphi 0, %s78
      %s82 = sphi 0, %s81
      %s98 = sphi 0, %s82
      %s104 = sphi 0, %s106
      %s107 = sphi 0, %s104
      %s108 = sphi 0, %s107
      %s124 = sphi 0, %s108
      %s130 = sphi 0, %s132
      %s133 = sphi 0, %s130
      %s134 = sphi 0, %s133
      %s150 = sphi 0, %s134
      %s156 = sphi 0, %s158
      %s159 = sphi 0, %s156
      %s160 = sphi 0, %s159
      %s176 = sphi 0, %s160
      %s182 = sphi 0, %s184
      %s185 = sphi 0, %s182
      %s186 = sphi 0, %s185
      %s202 = sphi 0, %s186
      %s208 = sphi 0, %s210
      %s211 = sphi 0, %s208
      %s212 = sphi 0, %s211
      %s228 = sphi 0, %s212
    $region4: #{moco_forward.2} parent=1 // loop_header_branch
      %19 = sbr.rel (%p17) target = $region8
    $region5: #{moco_forward.2} parent=1 // loop_body
      %s21 = ssub.s32 %s16, 1
      %s22 = ssub.s32 %s16, 2
      %s23 = sadd.s32 %s16, 1
      %s24 = ssub.s32 %s16, %s23
      %p25 = scmp.eq.s32.totalorder %s24, 0
      %s27 = sadd.s32 %s26, 1
      %s28 = scalar_select %p25, %s26, %s27
      %p31 = pneg %p25
      %p32 = scmp.eq.s32.totalorder %s16, 1
      %p33 = por %p31, %p32
      %p34 = scmp.ne.s32.totalorder %s26, %s29
      %p35 = scmp.eq.s32.totalorder %s16, 0
      %p36 = por %p34, %p35
      %p37 = scmp.ne.s32.totalorder %s26, %s29
      %p38 = scmp.eq.s32.totalorder %s21, 1
      %p39 = por %p37, %p38
      %p40 = scmp.ne.s32.totalorder %s29, %s30
      %p41 = scmp.eq.s32.totalorder %s21, 0
      %p42 = por %p40, %p41
      %p43 = scmp.ne.s32.totalorder %s29, %s30
      %p44 = scmp.eq.s32.totalorder %s22, 1
      %p45 = por %p43, %p44
      %p47 = scmp.ne.s32.totalorder %s30, %s46
      %p48 = scmp.eq.s32.totalorder %s22, 0
      %p49 = por %p47, %p48
      %s50 = ssub.s32 %s16, %s23
      %p51 = scmp.eq.s32.totalorder %s50, 0
      %s53 = sadd.s32 %s52, 1
      %s54 = scalar_select %p51, %s52, %s53
      %p57 = pneg %p51
      %p58 = scmp.eq.s32.totalorder %s16, 1
      %p59 = por %p57, %p58
      %p60 = scmp.ne.s32.totalorder %s52, %s55
      %p61 = scmp.eq.s32.totalorder %s16, 0
      %p62 = por %p60, %p61
      %p63 = scmp.ne.s32.totalorder %s52, %s55
      %p64 = scmp.eq.s32.totalorder %s21, 1
      %p65 = por %p63, %p64
      %p66 = scmp.ne.s32.totalorder %s55, %s56
      %p67 = scmp.eq.s32.totalorder %s21, 0
      %p68 = por %p66, %p67
      %p69 = scmp.ne.s32.totalorder %s55, %s56
      %p70 = scmp.eq.s32.totalorder %s22, 1
      %p71 = por %p69, %p70
      %p73 = scmp.ne.s32.totalorder %s56, %s72
      %p74 = scmp.eq.s32.totalorder %s22, 0
      %p75 = por %p73, %p74
      %s76 = ssub.s32 %s16, %s23
      %p77 = scmp.eq.s32.totalorder %s76, 0
      %s79 = sadd.s32 %s78, 1
      %s80 = scalar_select %p77, %s78, %s79
      %p83 = pneg %p77
      %p84 = scmp.eq.s32.totalorder %s16, 1
      %p85 = por %p83, %p84
      %p86 = scmp.ne.s32.totalorder %s78, %s81
      %p87 = scmp.eq.s32.totalorder %s16, 0
      %p88 = por %p86, %p87
      %p89 = scmp.ne.s32.totalorder %s78, %s81
      %p90 = scmp.eq.s32.totalorder %s21, 1
      %p91 = por %p89, %p90
      %p92 = scmp.ne.s32.totalorder %s81, %s82
      %p93 = scmp.eq.s32.totalorder %s21, 0
      %p94 = por %p92, %p93
      %p95 = scmp.ne.s32.totalorder %s81, %s82
      %p96 = scmp.eq.s32.totalorder %s22, 1
      %p97 = por %p95, %p96
      %p99 = scmp.ne.s32.totalorder %s82, %s98
      %p100 = scmp.eq.s32.totalorder %s22, 0
      %p101 = por %p99, %p100
      %s102 = ssub.s32 %s16, %s23
      %p103 = scmp.eq.s32.totalorder %s102, 0
      %s105 = sadd.s32 %s104, 1
      %s106 = scalar_select %p103, %s104, %s105
      %p109 = pneg %p103
      %p110 = scmp.eq.s32.totalorder %s16, 1
      %p111 = por %p109, %p110
      %p112 = scmp.ne.s32.totalorder %s104, %s107
      %p113 = scmp.eq.s32.totalorder %s16, 0
      %p114 = por %p112, %p113
      %p115 = scmp.ne.s32.totalorder %s104, %s107
      %p116 = scmp.eq.s32.totalorder %s21, 1
      %p117 = por %p115, %p116
      %p118 = scmp.ne.s32.totalorder %s107, %s108
      %p119 = scmp.eq.s32.totalorder %s21, 0
      %p120 = por %p118, %p119
      %p121 = scmp.ne.s32.totalorder %s107, %s108
      %p122 = scmp.eq.s32.totalorder %s22, 1
      %p123 = por %p121, %p122
      %p125 = scmp.ne.s32.totalorder %s108, %s124
      %p126 = scmp.eq.s32.totalorder %s22, 0
      %p127 = por %p125, %p126
      %s128 = ssub.s32 %s16, %s23
      %p129 = scmp.eq.s32.totalorder %s128, 0
      %s131 = sadd.s32 %s130, 1
      %s132 = scalar_select %p129, %s130, %s131
      %p135 = pneg %p129
      %p136 = scmp.eq.s32.totalorder %s16, 1
      %p137 = por %p135, %p136
      %p138 = scmp.ne.s32.totalorder %s130, %s133
      %p139 = scmp.eq.s32.totalorder %s16, 0
      %p140 = por %p138, %p139
      %p141 = scmp.ne.s32.totalorder %s130, %s133
      %p142 = scmp.eq.s32.totalorder %s21, 1
      %p143 = por %p141, %p142
      %p144 = scmp.ne.s32.totalorder %s133, %s134
      %p145 = scmp.eq.s32.totalorder %s21, 0
      %p146 = por %p144, %p145
      %p147 = scmp.ne.s32.totalorder %s133, %s134
      %p148 = scmp.eq.s32.totalorder %s22, 1
      %p149 = por %p147, %p148
      %p151 = scmp.ne.s32.totalorder %s134, %s150
      %p152 = scmp.eq.s32.totalorder %s22, 0
      %p153 = por %p151, %p152
      %s154 = ssub.s32 %s16, %s23
      %p155 = scmp.eq.s32.totalorder %s154, 0
      %s157 = sadd.s32 %s156, 1
      %s158 = scalar_select %p155, %s156, %s157
      %p161 = pneg %p155
      %p162 = scmp.eq.s32.totalorder %s16, 1
      %p163 = por %p161, %p162
      %p164 = scmp.ne.s32.totalorder %s156, %s159
      %p165 = scmp.eq.s32.totalorder %s16, 0
      %p166 = por %p164, %p165
      %p167 = scmp.ne.s32.totalorder %s156, %s159
      %p168 = scmp.eq.s32.totalorder %s21, 1
      %p169 = por %p167, %p168
      %p170 = scmp.ne.s32.totalorder %s159, %s160
      %p171 = scmp.eq.s32.totalorder %s21, 0
      %p172 = por %p170, %p171
      %p173 = scmp.ne.s32.totalorder %s159, %s160
      %p174 = scmp.eq.s32.totalorder %s22, 1
      %p175 = por %p173, %p174
      %p177 = scmp.ne.s32.totalorder %s160, %s176
      %p178 = scmp.eq.s32.totalorder %s22, 0
      %p179 = por %p177, %p178
      %s180 = ssub.s32 %s16, %s23
      %p181 = scmp.eq.s32.totalorder %s180, 0
      %s183 = sadd.s32 %s182, 1
      %s184 = scalar_select %p181, %s182, %s183
      %p187 = pneg %p181
      %p188 = scmp.eq.s32.totalorder %s16, 1
      %p189 = por %p187, %p188
      %p190 = scmp.ne.s32.totalorder %s182, %s185
      %p191 = scmp.eq.s32.totalorder %s16, 0
      %p192 = por %p190, %p191
      %p193 = scmp.ne.s32.totalorder %s182, %s185
      %p194 = scmp.eq.s32.totalorder %s21, 1
      %p195 = por %p193, %p194
      %p196 = scmp.ne.s32.totalorder %s185, %s186
      %p197 = scmp.eq.s32.totalorder %s21, 0
      %p198 = por %p196, %p197
      %p199 = scmp.ne.s32.totalorder %s185, %s186
      %p200 = scmp.eq.s32.totalorder %s22, 1
      %p201 = por %p199, %p200
      %p203 = scmp.ne.s32.totalorder %s186, %s202
      %p204 = scmp.eq.s32.totalorder %s22, 0
      %p205 = por %p203, %p204
      %s206 = ssub.s32 %s16, %s23
      %p207 = scmp.eq.s32.totalorder %s206, 0
      %s209 = sadd.s32 %s208, 1
      %s210 = scalar_select %p207, %s208, %s209
      %p213 = pneg %p207
      %p214 = scmp.eq.s32.totalorder %s16, 1
      %p215 = por %p213, %p214
      %p216 = scmp.ne.s32.totalorder %s208, %s211
      %p217 = scmp.eq.s32.totalorder %s16, 0
      %p218 = por %p216, %p217
      %p219 = scmp.ne.s32.totalorder %s208, %s211
      %p220 = scmp.eq.s32.totalorder %s21, 1
      %p221 = por %p219, %p220
      %p222 = scmp.ne.s32.totalorder %s211, %s212
      %p223 = scmp.eq.s32.totalorder %s21, 0
      %p224 = por %p222, %p223
      %p225 = scmp.ne.s32.totalorder %s211, %s212
      %p226 = scmp.eq.s32.totalorder %s22, 1
      %p227 = por %p225, %p226
      %p229 = scmp.ne.s32.totalorder %s212, %s228
      %p230 = scmp.eq.s32.totalorder %s22, 0
      %p231 = por %p229, %p230
      %p232 = scmp.le.s32.totalorder 1, %s16
      %p233 = scmp.lt.s32.totalorder %s16, 3
      %p234 = pnand %p232, %p233
      %p235 = pneg %p234
      // Predicated region
      $region9: #{moco_forward.2} parent=5 // pred_check
        _
      $region10: #{moco_forward.2} parent=5 // pred_check_branch
        %237 = sbr.rel (%p234) target = $region12
      $region11: #{moco_forward.2} parent=5 // pred_region
        %s238 = ssub.s32 %s16, 1
      $region12: #{moco_forward.2} parent=5 // pred_fallthru
        _
      %p239 = scmp.lt.s32.totalorder %s16, 2
      // Predicated region
      $region13: #{moco_forward.2} parent=5 // pred_check
        %p240 = pneg %p239
      $region14: #{moco_forward.2} parent=5 // pred_check_branch
        %242 = sbr.rel (%p240) target = $region16
      $region15: #{moco_forward.2} parent=5 // pred_region
        // Predicated region
        $region17: #{moco_forward.2} parent=15 // pred_check
          %p243 = pneg %p36
        $region18: #{moco_forward.2} parent=15 // pred_check_branch
          %245 = sbr.rel (%p243) target = $region20
        $region19: #{moco_forward.2} parent=15 // pred_region
          %p246 = scmp.lt.s32.totalorder %s16, 1
          %s247 = scalar_select %p246, %s16, 1
          %s248 = smul.addr %s247, 120
          %s249 = smul.addr %s248, 8
          %s250 = scalar_lea.vmem %s0, %s249
        $region20: #{moco_forward.2} parent=15 // pred_fallthru
          _
        // Predicated region
        $region21: #{moco_forward.2} parent=15 // pred_check
          %p251 = pneg %p62
        $region22: #{moco_forward.2} parent=15 // pred_check_branch
          %253 = sbr.rel (%p251) target = $region24
        $region23: #{moco_forward.2} parent=15 // pred_region
          %p254 = scmp.lt.s32.totalorder %s16, 1
          %s255 = scalar_select %p254, %s16, 1
          %s256 = smul.addr %s255, 144
          %s257 = smul.addr %s256, 8
          %s258 = scalar_lea.vmem %s1, %s257
        $region24: #{moco_forward.2} parent=15 // pred_fallthru
          _
        // Predicated region
        $region25: #{moco_forward.2} parent=15 // pred_check
          %p259 = pneg %p88
        $region26: #{moco_forward.2} parent=15 // pred_check_branch
          %261 = sbr.rel (%p259) target = $region28
        $region27: #{moco_forward.2} parent=15 // pred_region
          %p262 = scmp.lt.s32.totalorder %s16, 1
          %s263 = scalar_select %p262, %s16, 1
          %s264 = scalar_lea.vmem %s2, %s263
        $region28: #{moco_forward.2} parent=15 // pred_fallthru
          _
        // Predicated region
        $region29: #{moco_forward.2} parent=15 // pred_check
          %p265 = pneg %p114
        $region30: #{moco_forward.2} parent=15 // pred_check_branch
          %267 = sbr.rel (%p265) target = $region32
        $region31: #{moco_forward.2} parent=15 // pred_region
          %s268 = sand.u32 %s104, 1
          %s269 = scalar_lea.sflag [#allocation7], %s268
          %s270 = sand.u32 %s104, 1
          %s271 = smul.addr %s270, 1152
          %s272 = scalar_lea.vmem [#allocation6], %s271
          %274 = vsyncadd %s269, 0
          %s275 = smul.addr %s16, 144
          %s276 = smul.addr %s275, 8
          %s277 = scalar_lea.hbm %s3, %s276
          %s278 = sshll.u32 %s277, 4
          %s279 = int_to_ptr.hbm [resolvable:$true] %s278
          %s280 = sshll.u32 %s272, 4
          %s281 = int_to_ptr.vmem [resolvable:$true] %s280
          %286 = dma.hbm_to_vmem [thread:$0]  %s279, 18432, %s281, %s269, 128, 128, 8
        $region32: #{moco_forward.2} parent=15 // pred_fallthru
          _
        // Predicated region
        $region33: #{moco_forward.2} parent=15 // pred_check
          %p287 = pneg %p140
        $region34: #{moco_forward.2} parent=15 // pred_check_branch
          %289 = sbr.rel (%p287) target = $region36
        $region35: #{moco_forward.2} parent=15 // pred_region
          %p290 = scmp.lt.s32.totalorder %s16, 1
          %s291 = scalar_select %p290, %s16, 1
          %s292 = scalar_lea.vmem %s4, %s291
        $region36: #{moco_forward.2} parent=15 // pred_fallthru
          _
        // Predicated region
        $region37: #{moco_forward.2} parent=15 // pred_check
          %p293 = pneg %p166
        $region38: #{moco_forward.2} parent=15 // pred_check_branch
          %295 = sbr.rel (%p293) target = $region40
        $region39: #{moco_forward.2} parent=15 // pred_region
          %p296 = scmp.lt.s32.totalorder %s16, 1
          %s297 = scalar_select %p296, %s16, 1
          %s298 = smul.addr %s297, 256
          %s299 = smul.addr %s298, 8
          %s300 = scalar_lea.vmem %s5, %s299
        $region40: #{moco_forward.2} parent=15 // pred_fallthru
          _
        // Predicated region
        $region41: #{moco_forward.2} parent=15 // pred_check
          %p301 = pneg %p192
        $region42: #{moco_forward.2} parent=15 // pred_check_branch
          %303 = sbr.rel (%p301) target = $region44
        $region43: #{moco_forward.2} parent=15 // pred_region
          %p304 = scmp.lt.s32.totalorder %s16, 1
          %s305 = scalar_select %p304, %s16, 1
          %s306 = scalar_lea.vmem %s6, %s305
        $region44: #{moco_forward.2} parent=15 // pred_fallthru
          _
      $region16: #{moco_forward.2} parent=5 // pred_fallthru
        _
      %p307 = scmp.le.s32.totalorder 1, %s16
      %p308 = scmp.lt.s32.totalorder %s16, 3
      %p309 = pnand %p307, %p308
      %p310 = pneg %p309
      // Predicated region
      $region45: #{moco_forward.2} parent=5 // pred_check
        _
      $region46: #{moco_forward.2} parent=5 // pred_check_branch
        %312 = sbr.rel (%p309) target = $region48
      $region47: #{moco_forward.2} parent=5 // pred_region
        %s313 = ssub.s32 %s16, 1
        %s314 = sand.u32 %s107, 1
        %s315 = scalar_lea.sflag [#allocation7], %s314
        %s316 = sand.u32 %s107, 1
        %s317 = smul.addr %s316, 1152
        %s318 = scalar_lea.vmem [#allocation6], %s317
        // Predicated region
        $region49: #{moco_forward.2} parent=47 // pred_check
          %p319 = pneg %p120
        $region50: #{moco_forward.2} parent=47 // pred_check_branch
          %321 = sbr.rel (%p319) target = $region52
        $region51: #{moco_forward.2} parent=47 // pred_region
          %323 = dma.done %s315, 18432
        $region52: #{moco_forward.2} parent=47 // pred_fallthru
          _
        %p324 = scmp.lt.s32.totalorder %s21, 1
        %s325 = scalar_select %p324, %s21, 1
        %s326 = smul.addr %s325, 120
        %s327 = smul.addr %s326, 8
        %s328 = scalar_lea.vmem %s0, %s327
        %p329 = pneg %p42
        %p330 = pneg %p39
        %p331 = scmp.lt.s32.totalorder %s21, 1
        %s332 = scalar_select %p331, %s21, 1
        %s333 = smul.addr %s332, 144
        %s334 = smul.addr %s333, 8
        %s335 = scalar_lea.vmem %s1, %s334
        %p336 = pneg %p68
        %p337 = pneg %p65
        %p338 = scmp.lt.s32.totalorder %s21, 1
        %s339 = scalar_select %p338, %s21, 1
        %s340 = scalar_lea.vmem %s2, %s339
        %p341 = pneg %p94
        %p342 = pneg %p91
        %s343 = sand.u32 %s107, 1
        %s344 = scalar_lea.sflag [#allocation7], %s343
        %s345 = sand.u32 %s107, 1
        %s346 = smul.addr %s345, 1152
        %s347 = scalar_lea.vmem [#allocation6], %s346
        %p348 = pneg %p120
        %p349 = pneg %p117
        %p350 = scmp.lt.s32.totalorder %s21, 1
        %s351 = scalar_select %p350, %s21, 1
        %s352 = scalar_lea.vmem %s4, %s351
        %p353 = pneg %p146
        %p354 = pneg %p143
        %p355 = scmp.lt.s32.totalorder %s21, 1
        %s356 = scalar_select %p355, %s21, 1
        %s357 = smul.addr %s356, 256
        %s358 = smul.addr %s357, 8
        %s359 = scalar_lea.vmem %s5, %s358
        %p360 = pneg %p172
        %p361 = pneg %p169
        %p362 = scmp.lt.s32.totalorder %s21, 1
        %s363 = scalar_select %p362, %s21, 1
        %s364 = scalar_lea.vmem %s6, %s363
        %p365 = pneg %p198
        %p366 = pneg %p195
        %p367 = pneg %p224
        %p368 = pneg %p221
        %p369 = scmp.lt.s32.totalorder %s21, 1
        %s370 = scalar_select %p369, %s21, 1
        %s371 = smul.addr %s370, 2
        %s372 = scalar_lea.vmem %s7, %s371
        %p373 = scmp.lt.s32.totalorder %s21, 1
        %s374 = scalar_select %p373, %s21, 1
        %s375 = smul.addr %s374, 120
        %s376 = smul.addr %s375, 8
        %s377 = scalar_lea.vmem %s0, %s376
        %p378 = scmp.lt.s32.totalorder %s21, 1
        %s379 = scalar_select %p378, %s21, 1
        %s380 = smul.addr %s379, 144
        %s381 = smul.addr %s380, 8
        %s382 = scalar_lea.vmem %s1, %s381
        %p383 = scmp.lt.s32.totalorder %s21, 1
        %s384 = scalar_select %p383, %s21, 1
        %s385 = scalar_lea.vmem %s2, %s384
        %p386 = scmp.lt.s32.totalorder %s21, 1
        %s387 = scalar_select %p386, %s21, 1
        %s388 = scalar_lea.vmem %s4, %s387
        %p389 = scmp.lt.s32.totalorder %s21, 1
        %s390 = scalar_select %p389, %s21, 1
        %s391 = smul.addr %s390, 256
        %s392 = smul.addr %s391, 8
        %s393 = scalar_lea.vmem %s5, %s392
        %p394 = scmp.lt.s32.totalorder %s21, 1
        %s395 = scalar_select %p394, %s21, 1
        %s396 = scalar_lea.vmem %s6, %s395
        %p397 = scmp.lt.s32.totalorder %s21, 1
        %s398 = scalar_select %p397, %s21, 1
        %s399 = smul.addr %s398, 2
        %s400 = scalar_lea.vmem %s7, %s399
        %401 = vst [vmem:[#allocation2] sm:$0xff] 0.0
        %402 = vst [vmem:[#allocation2 + $0x8] sm:$0xff] 0.0
        %403 = vst [vmem:[#allocation2 + $0x10] sm:$0xf] 0.0
        %404 = vst [vmem:[#allocation2 + $0x18] sm:$0xff] 0.0
        %405 = vst [vmem:[#allocation2 + $0x20] sm:$0xff] 0.0
        %406 = vst [vmem:[#allocation2 + $0x28] sm:$0xf] 0.0
        %407 = vst [vmem:[#allocation2 + $0x30] sm:$0xff] 0.0
        %408 = vst [vmem:[#allocation2 + $0x38] sm:$0xff] 0.0
        %409 = vst [vmem:[#allocation2 + $0x40] sm:$0xf] 0.0
        %410 = vst [vmem:[#allocation2 + $0x48] sm:$0xff] 0.0
        %411 = vst [vmem:[#allocation2 + $0x50] sm:$0xff] 0.0
        %412 = vst [vmem:[#allocation2 + $0x58] sm:$0xf] 0.0
        %413 = vst [vmem:[#allocation2 + $0x60] sm:$0xff] 0.0
        %414 = vst [vmem:[#allocation2 + $0x68] sm:$0xff] 0.0
        %415 = vst [vmem:[#allocation2 + $0x70] sm:$0xf] 0.0
        %416 = vst [vmem:[#allocation2 + $0x78] sm:$0xff] 0.0
        %417 = vst [vmem:[#allocation2 + $0x80] sm:$0xff] 0.0
        %418 = vst [vmem:[#allocation2 + $0x88] sm:$0xf] 0.0
        %419 = vst [vmem:[#allocation2 + $0x90] sm:$0xff] 0.0
        %420 = vst [vmem:[#allocation2 + $0x98] sm:$0xff] 0.0
        %421 = vst [vmem:[#allocation2 + $0xa0] sm:$0xf] 0.0
        %422 = vst [vmem:[#allocation2 + $0xa8] sm:$0xff] 0.0
        %423 = vst [vmem:[#allocation2 + $0xb0] sm:$0xff] 0.0
        %424 = vst [vmem:[#allocation2 + $0xb8] sm:$0xf] 0.0
        %425 = vst [vmem:[#allocation2 + $0xc0] sm:$0xff] 0.0
        %426 = vst [vmem:[#allocation2 + $0xc8] sm:$0xff] 0.0
        %427 = vst [vmem:[#allocation2 + $0xd0] sm:$0xf] 0.0
        %428 = vst [vmem:[#allocation2 + $0xd8] sm:$0xff] 0.0
        %429 = vst [vmem:[#allocation2 + $0xe0] sm:$0xff] 0.0
        %430 = vst [vmem:[#allocation2 + $0xe8] sm:$0xf] 0.0
        %431 = vst [vmem:[#allocation2 + $0xf0] sm:$0xff] 0.0
        %432 = vst [vmem:[#allocation2 + $0xf8] sm:$0xff] 0.0
        %433 = vst [vmem:[#allocation2 + $0x100] sm:$0xf] 0.0
        %434 = vst [vmem:[#allocation2 + $0x108] sm:$0xff] 0.0
        %435 = vst [vmem:[#allocation2 + $0x110] sm:$0xff] 0.0
        %436 = vst [vmem:[#allocation2 + $0x118] sm:$0xf] 0.0
        %437 = vst [vmem:[#allocation2 + $0x120] sm:$0xff] 0.0
        %438 = vst [vmem:[#allocation2 + $0x128] sm:$0xff] 0.0
        %439 = vst [vmem:[#allocation2 + $0x130] sm:$0xf] 0.0
        %440 = vst [vmem:[#allocation2 + $0x138] sm:$0xff] 0.0
        %441 = vst [vmem:[#allocation2 + $0x140] sm:$0xff] 0.0
        %442 = vst [vmem:[#allocation2 + $0x148] sm:$0xf] 0.0
        %443 = vst [vmem:[#allocation2 + $0x150] sm:$0xff] 0.0
        %444 = vst [vmem:[#allocation2 + $0x158] sm:$0xff] 0.0
        %445 = vst [vmem:[#allocation2 + $0x160] sm:$0xf] 0.0
        %446 = vst [vmem:[#allocation2 + $0x168] sm:$0xff] 0.0
        %447 = vst [vmem:[#allocation2 + $0x170] sm:$0xff] 0.0
        %448 = vst [vmem:[#allocation2 + $0x178] sm:$0xf] 0.0
        %449 = vst [vmem:[#allocation2 + $0x180] sm:$0xff] 0.0
        %450 = vst [vmem:[#allocation2 + $0x188] sm:$0xff] 0.0
        %451 = vst [vmem:[#allocation2 + $0x190] sm:$0xf] 0.0
        %452 = vst [vmem:[#allocation2 + $0x198] sm:$0xff] 0.0
        %453 = vst [vmem:[#allocation2 + $0x1a0] sm:$0xff] 0.0
        %454 = vst [vmem:[#allocation2 + $0x1a8] sm:$0xf] 0.0
        %455 = vst [vmem:[#allocation2 + $0x1b0] sm:$0xff] 0.0
        %456 = vst [vmem:[#allocation2 + $0x1b8] sm:$0xff] 0.0
        %457 = vst [vmem:[#allocation2 + $0x1c0] sm:$0xf] 0.0
        %458 = vst [vmem:[#allocation2 + $0x1c8] sm:$0xff] 0.0
        %459 = vst [vmem:[#allocation2 + $0x1d0] sm:$0xff] 0.0
        %460 = vst [vmem:[#allocation2 + $0x1d8] sm:$0xf] 0.0
        %461 = vst [vmem:[#allocation2 + $0x1e0] sm:$0xff] 0.0
        %462 = vst [vmem:[#allocation2 + $0x1e8] sm:$0xff] 0.0
        %463 = vst [vmem:[#allocation2 + $0x1f0] sm:$0xf] 0.0
        %464 = vst [vmem:[#allocation2 + $0x1f8] sm:$0xff] 0.0
        %465 = vst [vmem:[#allocation2 + $0x200] sm:$0xff] 0.0
        %466 = vst [vmem:[#allocation2 + $0x208] sm:$0xf] 0.0
        %467 = vst [vmem:[#allocation2 + $0x210] sm:$0xff] 0.0
        %468 = vst [vmem:[#allocation2 + $0x218] sm:$0xff] 0.0
        %469 = vst [vmem:[#allocation2 + $0x220] sm:$0xf] 0.0
        %470 = vst [vmem:[#allocation2 + $0x228] sm:$0xff] 0.0
        %471 = vst [vmem:[#allocation2 + $0x230] sm:$0xff] 0.0
        %472 = vst [vmem:[#allocation2 + $0x238] sm:$0xf] 0.0
        %473 = vst [vmem:[#allocation2 + $0x240] sm:$0xff] 0.0
        %474 = vst [vmem:[#allocation2 + $0x248] sm:$0xff] 0.0
        %475 = vst [vmem:[#allocation2 + $0x250] sm:$0xf] 0.0
        %476 = vst [vmem:[#allocation2 + $0x258] sm:$0xff] 0.0
        %477 = vst [vmem:[#allocation2 + $0x260] sm:$0xff] 0.0
        %478 = vst [vmem:[#allocation2 + $0x268] sm:$0xf] 0.0
        %479 = vst [vmem:[#allocation2 + $0x270] sm:$0xff] 0.0
        %480 = vst [vmem:[#allocation2 + $0x278] sm:$0xff] 0.0
        %481 = vst [vmem:[#allocation2 + $0x280] sm:$0xf] 0.0
        %482 = vst [vmem:[#allocation2 + $0x288] sm:$0xff] 0.0
        %483 = vst [vmem:[#allocation2 + $0x290] sm:$0xff] 0.0
        %484 = vst [vmem:[#allocation2 + $0x298] sm:$0xf] 0.0
        %485 = vst [vmem:[#allocation2 + $0x2a0] sm:$0xff] 0.0
        %486 = vst [vmem:[#allocation2 + $0x2a8] sm:$0xff] 0.0
        %487 = vst [vmem:[#allocation2 + $0x2b0] sm:$0xf] 0.0
        %488 = vst [vmem:[#allocation2 + $0x2b8] sm:$0xff] 0.0
        %489 = vst [vmem:[#allocation2 + $0x2c0] sm:$0xff] 0.0
        %490 = vst [vmem:[#allocation2 + $0x2c8] sm:$0xf] 0.0
        %491 = vst [vmem:[#allocation2 + $0x2d0] sm:$0xff] 0.0
        %492 = vst [vmem:[#allocation2 + $0x2d8] sm:$0xff] 0.0
        %493 = vst [vmem:[#allocation2 + $0x2e0] sm:$0xf] 0.0
        %494 = vst [vmem:[#allocation2 + $0x2e8] sm:$0xff] 0.0
        %495 = vst [vmem:[#allocation2 + $0x2f0] sm:$0xff] 0.0
        %496 = vst [vmem:[#allocation2 + $0x2f8] sm:$0xf] 0.0
        %497 = vst [vmem:[#allocation2 + $0x300] sm:$0xff] 0.0
        %498 = vst [vmem:[#allocation2 + $0x308] sm:$0xff] 0.0
        %499 = vst [vmem:[#allocation2 + $0x310] sm:$0xf] 0.0
        %500 = vst [vmem:[#allocation2 + $0x318] sm:$0xff] 0.0
        %501 = vst [vmem:[#allocation2 + $0x320] sm:$0xff] 0.0
        %502 = vst [vmem:[#allocation2 + $0x328] sm:$0xf] 0.0
        %503 = vst [vmem:[#allocation2 + $0x330] sm:$0xff] 0.0
        %504 = vst [vmem:[#allocation2 + $0x338] sm:$0xff] 0.0
        %505 = vst [vmem:[#allocation2 + $0x340] sm:$0xf] 0.0
        %506 = vst [vmem:[#allocation2 + $0x348] sm:$0xff] 0.0
        %507 = vst [vmem:[#allocation2 + $0x350] sm:$0xff] 0.0
        %508 = vst [vmem:[#allocation2 + $0x358] sm:$0xf] 0.0
        %509 = vst [vmem:[#allocation2 + $0x360] sm:$0xff] 0.0
        %510 = vst [vmem:[#allocation2 + $0x368] sm:$0xff] 0.0
        %511 = vst [vmem:[#allocation2 + $0x370] sm:$0xf] 0.0
        %512 = vst [vmem:[#allocation2 + $0x378] sm:$0xff] 0.0
        %513 = vst [vmem:[#allocation2 + $0x380] sm:$0xff] 0.0
        %514 = vst [vmem:[#allocation2 + $0x388] sm:$0xf] 0.0
        %515 = vst [vmem:[#allocation2 + $0x390] sm:$0xff] 0.0
        %516 = vst [vmem:[#allocation2 + $0x398] sm:$0xff] 0.0
        %517 = vst [vmem:[#allocation2 + $0x3a0] sm:$0xf] 0.0
        %518 = vst [vmem:[#allocation2 + $0x3a8] sm:$0xff] 0.0
        %519 = vst [vmem:[#allocation2 + $0x3b0] sm:$0xff] 0.0
        %520 = vst [vmem:[#allocation2 + $0x3b8] sm:$0xf] 0.0
        %521 = vst [vmem:[#allocation3] sm:$0xff] 0.0
        %522 = vst [vmem:[#allocation3 + $0x8] sm:$0xff] 0.0
        %523 = vst [vmem:[#allocation3 + $0x10] sm:$0xf] 0.0
        %524 = vst [vmem:[#allocation3 + $0x18] sm:$0xff] 0.0
        %525 = vst [vmem:[#allocation3 + $0x20] sm:$0xff] 0.0
        %526 = vst [vmem:[#allocation3 + $0x28] sm:$0xf] 0.0
        %527 = vst [vmem:[#allocation3 + $0x30] sm:$0xff] 0.0
        %528 = vst [vmem:[#allocation3 + $0x38] sm:$0xff] 0.0
        %529 = vst [vmem:[#allocation3 + $0x40] sm:$0xf] 0.0
        %530 = vst [vmem:[#allocation3 + $0x48] sm:$0xff] 0.0
        %531 = vst [vmem:[#allocation3 + $0x50] sm:$0xff] 0.0
        %532 = vst [vmem:[#allocation3 + $0x58] sm:$0xf] 0.0
        %533 = vst [vmem:[#allocation3 + $0x60] sm:$0xff] 0.0
        %534 = vst [vmem:[#allocation3 + $0x68] sm:$0xff] 0.0
        %535 = vst [vmem:[#allocation3 + $0x70] sm:$0xf] 0.0
        %536 = vst [vmem:[#allocation3 + $0x78] sm:$0xff] 0.0
        %537 = vst [vmem:[#allocation3 + $0x80] sm:$0xff] 0.0
        %538 = vst [vmem:[#allocation3 + $0x88] sm:$0xf] 0.0
        %539 = vst [vmem:[#allocation3 + $0x90] sm:$0xff] 0.0
        %540 = vst [vmem:[#allocation3 + $0x98] sm:$0xff] 0.0
        %541 = vst [vmem:[#allocation3 + $0xa0] sm:$0xf] 0.0
        %542 = vst [vmem:[#allocation3 + $0xa8] sm:$0xff] 0.0
        %543 = vst [vmem:[#allocation3 + $0xb0] sm:$0xff] 0.0
        %544 = vst [vmem:[#allocation3 + $0xb8] sm:$0xf] 0.0
        %545 = vst [vmem:[#allocation3 + $0xc0] sm:$0xff] 0.0
        %546 = vst [vmem:[#allocation3 + $0xc8] sm:$0xff] 0.0
        %547 = vst [vmem:[#allocation3 + $0xd0] sm:$0xf] 0.0
        %548 = vst [vmem:[#allocation3 + $0xd8] sm:$0xff] 0.0
        %549 = vst [vmem:[#allocation3 + $0xe0] sm:$0xff] 0.0
        %550 = vst [vmem:[#allocation3 + $0xe8] sm:$0xf] 0.0
        %551 = vst [vmem:[#allocation3 + $0xf0] sm:$0xff] 0.0
        %552 = vst [vmem:[#allocation3 + $0xf8] sm:$0xff] 0.0
        %553 = vst [vmem:[#allocation3 + $0x100] sm:$0xf] 0.0
        %554 = vst [vmem:[#allocation3 + $0x108] sm:$0xff] 0.0
        %555 = vst [vmem:[#allocation3 + $0x110] sm:$0xff] 0.0
        %556 = vst [vmem:[#allocation3 + $0x118] sm:$0xf] 0.0
        %557 = vst [vmem:[#allocation3 + $0x120] sm:$0xff] 0.0
        %558 = vst [vmem:[#allocation3 + $0x128] sm:$0xff] 0.0
        %559 = vst [vmem:[#allocation3 + $0x130] sm:$0xf] 0.0
        %560 = vst [vmem:[#allocation3 + $0x138] sm:$0xff] 0.0
        %561 = vst [vmem:[#allocation3 + $0x140] sm:$0xff] 0.0
        %562 = vst [vmem:[#allocation3 + $0x148] sm:$0xf] 0.0
        %563 = vst [vmem:[#allocation3 + $0x150] sm:$0xff] 0.0
        %564 = vst [vmem:[#allocation3 + $0x158] sm:$0xff] 0.0
        %565 = vst [vmem:[#allocation3 + $0x160] sm:$0xf] 0.0
        %566 = vst [vmem:[#allocation3 + $0x168] sm:$0xff] 0.0
        %567 = vst [vmem:[#allocation3 + $0x170] sm:$0xff] 0.0
        %568 = vst [vmem:[#allocation3 + $0x178] sm:$0xf] 0.0
        %569 = vst [vmem:[#allocation3 + $0x180] sm:$0xff] 0.0
        %570 = vst [vmem:[#allocation3 + $0x188] sm:$0xff] 0.0
        %571 = vst [vmem:[#allocation3 + $0x190] sm:$0xf] 0.0
        %572 = vst [vmem:[#allocation3 + $0x198] sm:$0xff] 0.0
        %573 = vst [vmem:[#allocation3 + $0x1a0] sm:$0xff] 0.0
        %574 = vst [vmem:[#allocation3 + $0x1a8] sm:$0xf] 0.0
        %575 = vst [vmem:[#allocation3 + $0x1b0] sm:$0xff] 0.0
        %576 = vst [vmem:[#allocation3 + $0x1b8] sm:$0xff] 0.0
        %577 = vst [vmem:[#allocation3 + $0x1c0] sm:$0xf] 0.0
        %578 = vst [vmem:[#allocation3 + $0x1c8] sm:$0xff] 0.0
        %579 = vst [vmem:[#allocation3 + $0x1d0] sm:$0xff] 0.0
        %580 = vst [vmem:[#allocation3 + $0x1d8] sm:$0xf] 0.0
        %581 = vst [vmem:[#allocation3 + $0x1e0] sm:$0xff] 0.0
        %582 = vst [vmem:[#allocation3 + $0x1e8] sm:$0xff] 0.0
        %583 = vst [vmem:[#allocation3 + $0x1f0] sm:$0xf] 0.0
        %584 = vst [vmem:[#allocation3 + $0x1f8] sm:$0xff] 0.0
        %585 = vst [vmem:[#allocation3 + $0x200] sm:$0xff] 0.0
        %586 = vst [vmem:[#allocation3 + $0x208] sm:$0xf] 0.0
        %587 = vst [vmem:[#allocation3 + $0x210] sm:$0xff] 0.0
        %588 = vst [vmem:[#allocation3 + $0x218] sm:$0xff] 0.0
        %589 = vst [vmem:[#allocation3 + $0x220] sm:$0xf] 0.0
        %590 = vst [vmem:[#allocation3 + $0x228] sm:$0xff] 0.0
        %591 = vst [vmem:[#allocation3 + $0x230] sm:$0xff] 0.0
        %592 = vst [vmem:[#allocation3 + $0x238] sm:$0xf] 0.0
        %593 = vst [vmem:[#allocation3 + $0x240] sm:$0xff] 0.0
        %594 = vst [vmem:[#allocation3 + $0x248] sm:$0xff] 0.0
        %595 = vst [vmem:[#allocation3 + $0x250] sm:$0xf] 0.0
        %596 = vst [vmem:[#allocation3 + $0x258] sm:$0xff] 0.0
        %597 = vst [vmem:[#allocation3 + $0x260] sm:$0xff] 0.0
        %598 = vst [vmem:[#allocation3 + $0x268] sm:$0xf] 0.0
        %599 = vst [vmem:[#allocation3 + $0x270] sm:$0xff] 0.0
        %600 = vst [vmem:[#allocation3 + $0x278] sm:$0xff] 0.0
        %601 = vst [vmem:[#allocation3 + $0x280] sm:$0xf] 0.0
        %602 = vst [vmem:[#allocation3 + $0x288] sm:$0xff] 0.0
        %603 = vst [vmem:[#allocation3 + $0x290] sm:$0xff] 0.0
        %604 = vst [vmem:[#allocation3 + $0x298] sm:$0xf] 0.0
        %605 = vst [vmem:[#allocation3 + $0x2a0] sm:$0xff] 0.0
        %606 = vst [vmem:[#allocation3 + $0x2a8] sm:$0xff] 0.0
        %607 = vst [vmem:[#allocation3 + $0x2b0] sm:$0xf] 0.0
        %608 = vst [vmem:[#allocation3 + $0x2b8] sm:$0xff] 0.0
        %609 = vst [vmem:[#allocation3 + $0x2c0] sm:$0xff] 0.0
        %610 = vst [vmem:[#allocation3 + $0x2c8] sm:$0xf] 0.0
        %611 = vst [vmem:[#allocation3 + $0x2d0] sm:$0xff] 0.0
        %612 = vst [vmem:[#allocation3 + $0x2d8] sm:$0xff] 0.0
        %613 = vst [vmem:[#allocation3 + $0x2e0] sm:$0xf] 0.0
        %614 = vst [vmem:[#allocation3 + $0x2e8] sm:$0xff] 0.0
        %615 = vst [vmem:[#allocation3 + $0x2f0] sm:$0xff] 0.0
        %616 = vst [vmem:[#allocation3 + $0x2f8] sm:$0xf] 0.0
        %617 = vst [vmem:[#allocation3 + $0x300] sm:$0xff] 0.0
        %618 = vst [vmem:[#allocation3 + $0x308] sm:$0xff] 0.0
        %619 = vst [vmem:[#allocation3 + $0x310] sm:$0xf] 0.0
        %620 = vst [vmem:[#allocation3 + $0x318] sm:$0xff] 0.0
        %621 = vst [vmem:[#allocation3 + $0x320] sm:$0xff] 0.0
        %622 = vst [vmem:[#allocation3 + $0x328] sm:$0xf] 0.0
        %623 = vst [vmem:[#allocation3 + $0x330] sm:$0xff] 0.0
        %624 = vst [vmem:[#allocation3 + $0x338] sm:$0xff] 0.0
        %625 = vst [vmem:[#allocation3 + $0x340] sm:$0xf] 0.0
        %626 = vst [vmem:[#allocation3 + $0x348] sm:$0xff] 0.0
        %627 = vst [vmem:[#allocation3 + $0x350] sm:$0xff] 0.0
        %628 = vst [vmem:[#allocation3 + $0x358] sm:$0xf] 0.0
        %629 = vst [vmem:[#allocation3 + $0x360] sm:$0xff] 0.0
        %630 = vst [vmem:[#allocation3 + $0x368] sm:$0xff] 0.0
        %631 = vst [vmem:[#allocation3 + $0x370] sm:$0xf] 0.0
        %632 = vst [vmem:[#allocation3 + $0x378] sm:$0xff] 0.0
        %633 = vst [vmem:[#allocation3 + $0x380] sm:$0xff] 0.0
        %634 = vst [vmem:[#allocation3 + $0x388] sm:$0xf] 0.0
        %635 = vst [vmem:[#allocation3 + $0x390] sm:$0xff] 0.0
        %636 = vst [vmem:[#allocation3 + $0x398] sm:$0xff] 0.0
        %637 = vst [vmem:[#allocation3 + $0x3a0] sm:$0xf] 0.0
        %638 = vst [vmem:[#allocation3 + $0x3a8] sm:$0xff] 0.0
        %639 = vst [vmem:[#allocation3 + $0x3b0] sm:$0xff] 0.0
        %640 = vst [vmem:[#allocation3 + $0x3b8] sm:$0xf] 0.0
        %641 = vst [vmem:[#allocation4] sm:$0xff] 0.0
        %642 = vst [vmem:[#allocation4 + $0x8] sm:$0xff] 0.0
        %643 = vst [vmem:[#allocation4 + $0x10] sm:$0xf] 0.0
        %644 = vst [vmem:[#allocation4 + $0x18] sm:$0xff] 0.0
        %645 = vst [vmem:[#allocation4 + $0x20] sm:$0xff] 0.0
        %646 = vst [vmem:[#allocation4 + $0x28] sm:$0xf] 0.0
        %647 = vst [vmem:[#allocation4 + $0x30] sm:$0xff] 0.0
        %648 = vst [vmem:[#allocation4 + $0x38] sm:$0xff] 0.0
        %649 = vst [vmem:[#allocation4 + $0x40] sm:$0xf] 0.0
        %650 = vst [vmem:[#allocation4 + $0x48] sm:$0xff] 0.0
        %651 = vst [vmem:[#allocation4 + $0x50] sm:$0xff] 0.0
        %652 = vst [vmem:[#allocation4 + $0x58] sm:$0xf] 0.0
        %653 = vst [vmem:[#allocation4 + $0x60] sm:$0xff] 0.0
        %654 = vst [vmem:[#allocation4 + $0x68] sm:$0xff] 0.0
        %655 = vst [vmem:[#allocation4 + $0x70] sm:$0xf] 0.0
        %656 = vst [vmem:[#allocation4 + $0x78] sm:$0xff] 0.0
        %657 = vst [vmem:[#allocation4 + $0x80] sm:$0xff] 0.0
        %658 = vst [vmem:[#allocation4 + $0x88] sm:$0xf] 0.0
        %659 = vst [vmem:[#allocation4 + $0x90] sm:$0xff] 0.0
        %660 = vst [vmem:[#allocation4 + $0x98] sm:$0xff] 0.0
        %661 = vst [vmem:[#allocation4 + $0xa0] sm:$0xf] 0.0
        %662 = vst [vmem:[#allocation4 + $0xa8] sm:$0xff] 0.0
        %663 = vst [vmem:[#allocation4 + $0xb0] sm:$0xff] 0.0
        %664 = vst [vmem:[#allocation4 + $0xb8] sm:$0xf] 0.0
        %665 = vst [vmem:[#allocation4 + $0xc0] sm:$0xff] 0.0
        %666 = vst [vmem:[#allocation4 + $0xc8] sm:$0xff] 0.0
        %667 = vst [vmem:[#allocation4 + $0xd0] sm:$0xf] 0.0
        %668 = vst [vmem:[#allocation4 + $0xd8] sm:$0xff] 0.0
        %669 = vst [vmem:[#allocation4 + $0xe0] sm:$0xff] 0.0
        %670 = vst [vmem:[#allocation4 + $0xe8] sm:$0xf] 0.0
        %671 = vst [vmem:[#allocation4 + $0xf0] sm:$0xff] 0.0
        %672 = vst [vmem:[#allocation4 + $0xf8] sm:$0xff] 0.0
        %673 = vst [vmem:[#allocation4 + $0x100] sm:$0xf] 0.0
        %674 = vst [vmem:[#allocation4 + $0x108] sm:$0xff] 0.0
        %675 = vst [vmem:[#allocation4 + $0x110] sm:$0xff] 0.0
        %676 = vst [vmem:[#allocation4 + $0x118] sm:$0xf] 0.0
        %677 = vst [vmem:[#allocation4 + $0x120] sm:$0xff] 0.0
        %678 = vst [vmem:[#allocation4 + $0x128] sm:$0xff] 0.0
        %679 = vst [vmem:[#allocation4 + $0x130] sm:$0xf] 0.0
        %680 = vst [vmem:[#allocation4 + $0x138] sm:$0xff] 0.0
        %681 = vst [vmem:[#allocation4 + $0x140] sm:$0xff] 0.0
        %682 = vst [vmem:[#allocation4 + $0x148] sm:$0xf] 0.0
        %683 = vst [vmem:[#allocation4 + $0x150] sm:$0xff] 0.0
        %684 = vst [vmem:[#allocation4 + $0x158] sm:$0xff] 0.0
        %685 = vst [vmem:[#allocation4 + $0x160] sm:$0xf] 0.0
        %686 = vst [vmem:[#allocation4 + $0x168] sm:$0xff] 0.0
        %687 = vst [vmem:[#allocation4 + $0x170] sm:$0xff] 0.0
        %688 = vst [vmem:[#allocation4 + $0x178] sm:$0xf] 0.0
        %689 = vst [vmem:[#allocation4 + $0x180] sm:$0xff] 0.0
        %690 = vst [vmem:[#allocation4 + $0x188] sm:$0xff] 0.0
        %691 = vst [vmem:[#allocation4 + $0x190] sm:$0xf] 0.0
        %692 = vst [vmem:[#allocation4 + $0x198] sm:$0xff] 0.0
        %693 = vst [vmem:[#allocation4 + $0x1a0] sm:$0xff] 0.0
        %694 = vst [vmem:[#allocation4 + $0x1a8] sm:$0xf] 0.0
        %695 = vst [vmem:[#allocation4 + $0x1b0] sm:$0xff] 0.0
        %696 = vst [vmem:[#allocation4 + $0x1b8] sm:$0xff] 0.0
        %697 = vst [vmem:[#allocation4 + $0x1c0] sm:$0xf] 0.0
        %698 = vst [vmem:[#allocation4 + $0x1c8] sm:$0xff] 0.0
        %699 = vst [vmem:[#allocation4 + $0x1d0] sm:$0xff] 0.0
        %700 = vst [vmem:[#allocation4 + $0x1d8] sm:$0xf] 0.0
        %701 = vst [vmem:[#allocation4 + $0x1e0] sm:$0xff] 0.0
        %702 = vst [vmem:[#allocation4 + $0x1e8] sm:$0xff] 0.0
        %703 = vst [vmem:[#allocation4 + $0x1f0] sm:$0xf] 0.0
        %704 = vst [vmem:[#allocation4 + $0x1f8] sm:$0xff] 0.0
        %705 = vst [vmem:[#allocation4 + $0x200] sm:$0xff] 0.0
        %706 = vst [vmem:[#allocation4 + $0x208] sm:$0xf] 0.0
        %707 = vst [vmem:[#allocation4 + $0x210] sm:$0xff] 0.0
        %708 = vst [vmem:[#allocation4 + $0x218] sm:$0xff] 0.0
        %709 = vst [vmem:[#allocation4 + $0x220] sm:$0xf] 0.0
        %710 = vst [vmem:[#allocation4 + $0x228] sm:$0xff] 0.0
        %711 = vst [vmem:[#allocation4 + $0x230] sm:$0xff] 0.0
        %712 = vst [vmem:[#allocation4 + $0x238] sm:$0xf] 0.0
        %713 = vst [vmem:[#allocation4 + $0x240] sm:$0xff] 0.0
        %714 = vst [vmem:[#allocation4 + $0x248] sm:$0xff] 0.0
        %715 = vst [vmem:[#allocation4 + $0x250] sm:$0xf] 0.0
        %716 = vst [vmem:[#allocation4 + $0x258] sm:$0xff] 0.0
        %717 = vst [vmem:[#allocation4 + $0x260] sm:$0xff] 0.0
        %718 = vst [vmem:[#allocation4 + $0x268] sm:$0xf] 0.0
        %719 = vst [vmem:[#allocation4 + $0x270] sm:$0xff] 0.0
        %720 = vst [vmem:[#allocation4 + $0x278] sm:$0xff] 0.0
        %721 = vst [vmem:[#allocation4 + $0x280] sm:$0xf] 0.0
        %722 = vst [vmem:[#allocation4 + $0x288] sm:$0xff] 0.0
        %723 = vst [vmem:[#allocation4 + $0x290] sm:$0xff] 0.0
        %724 = vst [vmem:[#allocation4 + $0x298] sm:$0xf] 0.0
        %725 = vst [vmem:[#allocation4 + $0x2a0] sm:$0xff] 0.0
        %726 = vst [vmem:[#allocation4 + $0x2a8] sm:$0xff] 0.0
        %727 = vst [vmem:[#allocation4 + $0x2b0] sm:$0xf] 0.0
        %728 = vst [vmem:[#allocation4 + $0x2b8] sm:$0xff] 0.0
        %729 = vst [vmem:[#allocation4 + $0x2c0] sm:$0xff] 0.0
        %730 = vst [vmem:[#allocation4 + $0x2c8] sm:$0xf] 0.0
        %731 = vst [vmem:[#allocation4 + $0x2d0] sm:$0xff] 0.0
        %732 = vst [vmem:[#allocation4 + $0x2d8] sm:$0xff] 0.0
        %733 = vst [vmem:[#allocation4 + $0x2e0] sm:$0xf] 0.0
        %734 = vst [vmem:[#allocation4 + $0x2e8] sm:$0xff] 0.0
        %735 = vst [vmem:[#allocation4 + $0x2f0] sm:$0xff] 0.0
        %736 = vst [vmem:[#allocation4 + $0x2f8] sm:$0xf] 0.0
        %737 = vst [vmem:[#allocation4 + $0x300] sm:$0xff] 0.0
        %738 = vst [vmem:[#allocation4 + $0x308] sm:$0xff] 0.0
        %739 = vst [vmem:[#allocation4 + $0x310] sm:$0xf] 0.0
        %740 = vst [vmem:[#allocation4 + $0x318] sm:$0xff] 0.0
        %741 = vst [vmem:[#allocation4 + $0x320] sm:$0xff] 0.0
        %742 = vst [vmem:[#allocation4 + $0x328] sm:$0xf] 0.0
        %743 = vst [vmem:[#allocation4 + $0x330] sm:$0xff] 0.0
        %744 = vst [vmem:[#allocation4 + $0x338] sm:$0xff] 0.0
        %745 = vst [vmem:[#allocation4 + $0x340] sm:$0xf] 0.0
        %746 = vst [vmem:[#allocation4 + $0x348] sm:$0xff] 0.0
        %747 = vst [vmem:[#allocation4 + $0x350] sm:$0xff] 0.0
        %748 = vst [vmem:[#allocation4 + $0x358] sm:$0xf] 0.0
        %749 = vst [vmem:[#allocation4 + $0x360] sm:$0xff] 0.0
        %750 = vst [vmem:[#allocation4 + $0x368] sm:$0xff] 0.0
        %751 = vst [vmem:[#allocation4 + $0x370] sm:$0xf] 0.0
        %752 = vst [vmem:[#allocation4 + $0x378] sm:$0xff] 0.0
        %753 = vst [vmem:[#allocation4 + $0x380] sm:$0xff] 0.0
        %754 = vst [vmem:[#allocation4 + $0x388] sm:$0xf] 0.0
        %755 = vst [vmem:[#allocation4 + $0x390] sm:$0xff] 0.0
        %756 = vst [vmem:[#allocation4 + $0x398] sm:$0xff] 0.0
        %757 = vst [vmem:[#allocation4 + $0x3a0] sm:$0xf] 0.0
        %758 = vst [vmem:[#allocation4 + $0x3a8] sm:$0xff] 0.0
        %759 = vst [vmem:[#allocation4 + $0x3b0] sm:$0xff] 0.0
        %760 = vst [vmem:[#allocation4 + $0x3b8] sm:$0xf] 0.0
        %761 = vst [vmem:[#allocation5] sm:$0xff] 0.0
        %762 = vst [vmem:[#allocation5 + $0x8] sm:$0xff] 0.0
        %763 = vst [vmem:[#allocation5 + $0x10] sm:$0xf] 0.0
        %764 = vst [vmem:[#allocation5 + $0x18] sm:$0xff] 0.0
        %765 = vst [vmem:[#allocation5 + $0x20] sm:$0xff] 0.0
        %766 = vst [vmem:[#allocation5 + $0x28] sm:$0xf] 0.0
        %767 = vst [vmem:[#allocation5 + $0x30] sm:$0xff] 0.0
        %768 = vst [vmem:[#allocation5 + $0x38] sm:$0xff] 0.0
        %769 = vst [vmem:[#allocation5 + $0x40] sm:$0xf] 0.0
        %770 = vst [vmem:[#allocation5 + $0x48] sm:$0xff] 0.0
        %771 = vst [vmem:[#allocation5 + $0x50] sm:$0xff] 0.0
        %772 = vst [vmem:[#allocation5 + $0x58] sm:$0xf] 0.0
        %773 = vst [vmem:[#allocation5 + $0x60] sm:$0xff] 0.0
        %774 = vst [vmem:[#allocation5 + $0x68] sm:$0xff] 0.0
        %775 = vst [vmem:[#allocation5 + $0x70] sm:$0xf] 0.0
        %776 = vst [vmem:[#allocation5 + $0x78] sm:$0xff] 0.0
        %777 = vst [vmem:[#allocation5 + $0x80] sm:$0xff] 0.0
        %778 = vst [vmem:[#allocation5 + $0x88] sm:$0xf] 0.0
        %779 = vst [vmem:[#allocation5 + $0x90] sm:$0xff] 0.0
        %780 = vst [vmem:[#allocation5 + $0x98] sm:$0xff] 0.0
        %781 = vst [vmem:[#allocation5 + $0xa0] sm:$0xf] 0.0
        %782 = vst [vmem:[#allocation5 + $0xa8] sm:$0xff] 0.0
        %783 = vst [vmem:[#allocation5 + $0xb0] sm:$0xff] 0.0
        %784 = vst [vmem:[#allocation5 + $0xb8] sm:$0xf] 0.0
        %785 = vst [vmem:[#allocation5 + $0xc0] sm:$0xff] 0.0
        %786 = vst [vmem:[#allocation5 + $0xc8] sm:$0xff] 0.0
        %787 = vst [vmem:[#allocation5 + $0xd0] sm:$0xf] 0.0
        %788 = vst [vmem:[#allocation5 + $0xd8] sm:$0xff] 0.0
        %789 = vst [vmem:[#allocation5 + $0xe0] sm:$0xff] 0.0
        %790 = vst [vmem:[#allocation5 + $0xe8] sm:$0xf] 0.0
        %791 = vst [vmem:[#allocation5 + $0xf0] sm:$0xff] 0.0
        %792 = vst [vmem:[#allocation5 + $0xf8] sm:$0xff] 0.0
        %793 = vst [vmem:[#allocation5 + $0x100] sm:$0xf] 0.0
        %794 = vst [vmem:[#allocation5 + $0x108] sm:$0xff] 0.0
        %795 = vst [vmem:[#allocation5 + $0x110] sm:$0xff] 0.0
        %796 = vst [vmem:[#allocation5 + $0x118] sm:$0xf] 0.0
        %797 = vst [vmem:[#allocation5 + $0x120] sm:$0xff] 0.0
        %798 = vst [vmem:[#allocation5 + $0x128] sm:$0xff] 0.0
        %799 = vst [vmem:[#allocation5 + $0x130] sm:$0xf] 0.0
        %800 = vst [vmem:[#allocation5 + $0x138] sm:$0xff] 0.0
        %801 = vst [vmem:[#allocation5 + $0x140] sm:$0xff] 0.0
        %802 = vst [vmem:[#allocation5 + $0x148] sm:$0xf] 0.0
        %803 = vst [vmem:[#allocation5 + $0x150] sm:$0xff] 0.0
        %804 = vst [vmem:[#allocation5 + $0x158] sm:$0xff] 0.0
        %805 = vst [vmem:[#allocation5 + $0x160] sm:$0xf] 0.0
        %806 = vst [vmem:[#allocation5 + $0x168] sm:$0xff] 0.0
        %807 = vst [vmem:[#allocation5 + $0x170] sm:$0xff] 0.0
        %808 = vst [vmem:[#allocation5 + $0x178] sm:$0xf] 0.0
        %809 = vst [vmem:[#allocation5 + $0x180] sm:$0xff] 0.0
        %810 = vst [vmem:[#allocation5 + $0x188] sm:$0xff] 0.0
        %811 = vst [vmem:[#allocation5 + $0x190] sm:$0xf] 0.0
        %812 = vst [vmem:[#allocation5 + $0x198] sm:$0xff] 0.0
        %813 = vst [vmem:[#allocation5 + $0x1a0] sm:$0xff] 0.0
        %814 = vst [vmem:[#allocation5 + $0x1a8] sm:$0xf] 0.0
        %815 = vst [vmem:[#allocation5 + $0x1b0] sm:$0xff] 0.0
        %816 = vst [vmem:[#allocation5 + $0x1b8] sm:$0xff] 0.0
        %817 = vst [vmem:[#allocation5 + $0x1c0] sm:$0xf] 0.0
        %818 = vst [vmem:[#allocation5 + $0x1c8] sm:$0xff] 0.0
        %819 = vst [vmem:[#allocation5 + $0x1d0] sm:$0xff] 0.0
        %820 = vst [vmem:[#allocation5 + $0x1d8] sm:$0xf] 0.0
        %821 = vst [vmem:[#allocation5 + $0x1e0] sm:$0xff] 0.0
        %822 = vst [vmem:[#allocation5 + $0x1e8] sm:$0xff] 0.0
        %823 = vst [vmem:[#allocation5 + $0x1f0] sm:$0xf] 0.0
        %824 = vst [vmem:[#allocation5 + $0x1f8] sm:$0xff] 0.0
        %825 = vst [vmem:[#allocation5 + $0x200] sm:$0xff] 0.0
        %826 = vst [vmem:[#allocation5 + $0x208] sm:$0xf] 0.0
        %827 = vst [vmem:[#allocation5 + $0x210] sm:$0xff] 0.0
        %828 = vst [vmem:[#allocation5 + $0x218] sm:$0xff] 0.0
        %829 = vst [vmem:[#allocation5 + $0x220] sm:$0xf] 0.0
        %830 = vst [vmem:[#allocation5 + $0x228] sm:$0xff] 0.0
        %831 = vst [vmem:[#allocation5 + $0x230] sm:$0xff] 0.0
        %832 = vst [vmem:[#allocation5 + $0x238] sm:$0xf] 0.0
        %833 = vst [vmem:[#allocation5 + $0x240] sm:$0xff] 0.0
        %834 = vst [vmem:[#allocation5 + $0x248] sm:$0xff] 0.0
        %835 = vst [vmem:[#allocation5 + $0x250] sm:$0xf] 0.0
        %836 = vst [vmem:[#allocation5 + $0x258] sm:$0xff] 0.0
        %837 = vst [vmem:[#allocation5 + $0x260] sm:$0xff] 0.0
        %838 = vst [vmem:[#allocation5 + $0x268] sm:$0xf] 0.0
        %839 = vst [vmem:[#allocation5 + $0x270] sm:$0xff] 0.0
        %840 = vst [vmem:[#allocation5 + $0x278] sm:$0xff] 0.0
        %841 = vst [vmem:[#allocation5 + $0x280] sm:$0xf] 0.0
        %842 = vst [vmem:[#allocation5 + $0x288] sm:$0xff] 0.0
        %843 = vst [vmem:[#allocation5 + $0x290] sm:$0xff] 0.0
        %844 = vst [vmem:[#allocation5 + $0x298] sm:$0xf] 0.0
        %845 = vst [vmem:[#allocation5 + $0x2a0] sm:$0xff] 0.0
        %846 = vst [vmem:[#allocation5 + $0x2a8] sm:$0xff] 0.0
        %847 = vst [vmem:[#allocation5 + $0x2b0] sm:$0xf] 0.0
        %848 = vst [vmem:[#allocation5 + $0x2b8] sm:$0xff] 0.0
        %849 = vst [vmem:[#allocation5 + $0x2c0] sm:$0xff] 0.0
        %850 = vst [vmem:[#allocation5 + $0x2c8] sm:$0xf] 0.0
        %851 = vst [vmem:[#allocation5 + $0x2d0] sm:$0xff] 0.0
        %852 = vst [vmem:[#allocation5 + $0x2d8] sm:$0xff] 0.0
        %853 = vst [vmem:[#allocation5 + $0x2e0] sm:$0xf] 0.0
        %854 = vst [vmem:[#allocation5 + $0x2e8] sm:$0xff] 0.0
        %855 = vst [vmem:[#allocation5 + $0x2f0] sm:$0xff] 0.0
        %856 = vst [vmem:[#allocation5 + $0x2f8] sm:$0xf] 0.0
        %857 = vst [vmem:[#allocation5 + $0x300] sm:$0xff] 0.0
        %858 = vst [vmem:[#allocation5 + $0x308] sm:$0xff] 0.0
        %859 = vst [vmem:[#allocation5 + $0x310] sm:$0xf] 0.0
        %860 = vst [vmem:[#allocation5 + $0x318] sm:$0xff] 0.0
        %861 = vst [vmem:[#allocation5 + $0x320] sm:$0xff] 0.0
        %862 = vst [vmem:[#allocation5 + $0x328] sm:$0xf] 0.0
        %863 = vst [vmem:[#allocation5 + $0x330] sm:$0xff] 0.0
        %864 = vst [vmem:[#allocation5 + $0x338] sm:$0xff] 0.0
        %865 = vst [vmem:[#allocation5 + $0x340] sm:$0xf] 0.0
        %866 = vst [vmem:[#allocation5 + $0x348] sm:$0xff] 0.0
        %867 = vst [vmem:[#allocation5 + $0x350] sm:$0xff] 0.0
        %868 = vst [vmem:[#allocation5 + $0x358] sm:$0xf] 0.0
        %869 = vst [vmem:[#allocation5 + $0x360] sm:$0xff] 0.0
        %870 = vst [vmem:[#allocation5 + $0x368] sm:$0xff] 0.0
        %871 = vst [vmem:[#allocation5 + $0x370] sm:$0xf] 0.0
        %872 = vst [vmem:[#allocation5 + $0x378] sm:$0xff] 0.0
        %873 = vst [vmem:[#allocation5 + $0x380] sm:$0xff] 0.0
        %874 = vst [vmem:[#allocation5 + $0x388] sm:$0xf] 0.0
        %875 = vst [vmem:[#allocation5 + $0x390] sm:$0xff] 0.0
        %876 = vst [vmem:[#allocation5 + $0x398] sm:$0xff] 0.0
        %877 = vst [vmem:[#allocation5 + $0x3a0] sm:$0xf] 0.0
        %878 = vst [vmem:[#allocation5 + $0x3a8] sm:$0xff] 0.0
        %879 = vst [vmem:[#allocation5 + $0x3b0] sm:$0xff] 0.0
        %880 = vst [vmem:[#allocation5 + $0x3b8] sm:$0xf] 0.0
        %s881 = scalar_lea.vmem %s377, 24
        %v882 = vld [vmem:[%s881 + $0x1] sm:$0xff]
        %v883 = vld [vmem:[%s881 + $0x9] sm:$0xff]
        %v884 = vld [vmem:[%s881 + $0x19] sm:$0xff]
        %v885 = vld [vmem:[%s881 + $0x21] sm:$0xff]
        %v886 = vld [vmem:[%s881 + $0x31] sm:$0xff]
        %v887 = vld [vmem:[%s881 + $0x39] sm:$0xff]
        %v888 = vld [vmem:[%s881 + $0x49] sm:$0xff]
        %v889 = vld [vmem:[%s881 + $0x51] sm:$0xff]
        %v890 = vld [vmem:[%s881 + $0x61] sm:$0xff]
        %v891 = vld [vmem:[%s881 + $0x69] sm:$0xff]
        %v892 = vld [vmem:[%s881 + $0x79] sm:$0xff]
        %v893 = vld [vmem:[%s881 + $0x81] sm:$0xff]
        %v894 = vld [vmem:[%s881 + $0x91] sm:$0xff]
        %v895 = vld [vmem:[%s881 + $0x99] sm:$0xff]
        %v896 = vld [vmem:[%s881 + $0xa9] sm:$0xff]
        %v897 = vld [vmem:[%s881 + $0xb1] sm:$0xff]
        %v898 = vld [vmem:[%s881 + $0xc1] sm:$0xff]
        %v899 = vld [vmem:[%s881 + $0xc9] sm:$0xff]
        %v900 = vld [vmem:[%s881 + $0xd9] sm:$0xff]
        %v901 = vld [vmem:[%s881 + $0xe1] sm:$0xff]
        %v902 = vld [vmem:[%s881 + $0xf1] sm:$0xff]
        %v903 = vld [vmem:[%s881 + $0xf9] sm:$0xff]
        %v904 = vld [vmem:[%s881 + $0x109] sm:$0xff]
        %v905 = vld [vmem:[%s881 + $0x111] sm:$0xff]
        %v906 = vld [vmem:[%s881 + $0x121] sm:$0xff]
        %v907 = vld [vmem:[%s881 + $0x129] sm:$0xff]
        %v908 = vld [vmem:[%s881 + $0x139] sm:$0xff]
        %v909 = vld [vmem:[%s881 + $0x141] sm:$0xff]
        %v910 = vld [vmem:[%s881 + $0x151] sm:$0xff]
        %v911 = vld [vmem:[%s881 + $0x159] sm:$0xff]
        %v912 = vld [vmem:[%s881 + $0x169] sm:$0xff]
        %v913 = vld [vmem:[%s881 + $0x171] sm:$0xff]
        %v914 = vld [vmem:[%s881 + $0x1e1] sm:$0xff]
        %v915 = vld [vmem:[%s881 + $0x1e9] sm:$0xff]
        %v916 = vld [vmem:[%s881 + $0x1f9] sm:$0xff]
        %v917 = vld [vmem:[%s881 + $0x201] sm:$0xff]
        %v918 = vld [vmem:[%s881 + $0x211] sm:$0xff]
        %v919 = vld [vmem:[%s881 + $0x219] sm:$0xff]
        %v920 = vld [vmem:[%s881 + $0x229] sm:$0xff]
        %v921 = vld [vmem:[%s881 + $0x231] sm:$0xff]
        %v922 = vld [vmem:[%s881 + $0x241] sm:$0xff]
        %v923 = vld [vmem:[%s881 + $0x249] sm:$0xff]
        %v924 = vld [vmem:[%s881 + $0x259] sm:$0xff]
        %v925 = vld [vmem:[%s881 + $0x261] sm:$0xff]
        %v926 = vld [vmem:[%s881 + $0x271] sm:$0xff]
        %v927 = vld [vmem:[%s881 + $0x279] sm:$0xff]
        %v928 = vld [vmem:[%s881 + $0x289] sm:$0xff]
        %v929 = vld [vmem:[%s881 + $0x291] sm:$0xff]
        %v930 = vld [vmem:[%s881 + $0x2a1] sm:$0xff]
        %v931 = vld [vmem:[%s881 + $0x2a9] sm:$0xff]
        %v932 = vld [vmem:[%s881 + $0x2b9] sm:$0xff]
        %v933 = vld [vmem:[%s881 + $0x2c1] sm:$0xff]
        %v934 = vld [vmem:[%s881 + $0x2d1] sm:$0xff]
        %v935 = vld [vmem:[%s881 + $0x2d9] sm:$0xff]
        %v936 = vld [vmem:[%s881 + $0x2e9] sm:$0xff]
        %v937 = vld [vmem:[%s881 + $0x2f1] sm:$0xff]
        %v938 = vld [vmem:[%s881 + $0x301] sm:$0xff]
        %v939 = vld [vmem:[%s881 + $0x309] sm:$0xff]
        %v940 = vld [vmem:[%s881 + $0x319] sm:$0xff]
        %v941 = vld [vmem:[%s881 + $0x321] sm:$0xff]
        %v942 = vld [vmem:[%s881 + $0x331] sm:$0xff]
        %v943 = vld [vmem:[%s881 + $0x339] sm:$0xff]
        %v944 = vld [vmem:[%s881 + $0x349] sm:$0xff]
        %v945 = vld [vmem:[%s881 + $0x351] sm:$0xff]
        %v946 = vld [vmem:[%s382] sm:$0xff]
        %v947 = vld [vmem:[%s382 + $0x8] sm:$0xff]
        %v948 = vld [vmem:[%s382 + $0x10] sm:$0xff]
        %v949 = vld [vmem:[%s382 + $0x18] sm:$0xff]
        %v950 = vld [vmem:[%s382 + $0x20] sm:$0xff]
        %v951 = vld [vmem:[%s382 + $0x28] sm:$0xff]
        %v952 = vld [vmem:[%s382 + $0x30] sm:$0xff]
        %v953 = vld [vmem:[%s382 + $0x38] sm:$0xff]
        %v954 = vld [vmem:[%s382 + $0x40] sm:$0xff]
        %v955 = vld [vmem:[%s382 + $0x48] sm:$0xff]
        %v956 = vld [vmem:[%s382 + $0x50] sm:$0xff]
        %v957 = vld [vmem:[%s382 + $0x58] sm:$0xff]
        %v958 = vld [vmem:[%s382 + $0x60] sm:$0xff]
        %v959 = vld [vmem:[%s382 + $0x68] sm:$0xff]
        %v960 = vld [vmem:[%s382 + $0x70] sm:$0xff]
        %v961 = vld [vmem:[%s382 + $0x78] sm:$0xff]
        %v962 = vld [vmem:[%s881 + $0x2] sm:$0xff]
        %v963 = vld [vmem:[%s881 + $0xa] sm:$0xff]
        %v964 = vld [vmem:[%s881 + $0x1a] sm:$0xff]
        %v965 = vld [vmem:[%s881 + $0x22] sm:$0xff]
        %v966 = vld [vmem:[%s881 + $0x32] sm:$0xff]
        %v967 = vld [vmem:[%s881 + $0x3a] sm:$0xff]
        %v968 = vld [vmem:[%s881 + $0x4a] sm:$0xff]
        %v969 = vld [vmem:[%s881 + $0x52] sm:$0xff]
        %v970 = vld [vmem:[%s881 + $0x62] sm:$0xff]
        %v971 = vld [vmem:[%s881 + $0x6a] sm:$0xff]
        %v972 = vld [vmem:[%s881 + $0x7a] sm:$0xff]
        %v973 = vld [vmem:[%s881 + $0x82] sm:$0xff]
        %v974 = vld [vmem:[%s881 + $0x92] sm:$0xff]
        %v975 = vld [vmem:[%s881 + $0x9a] sm:$0xff]
        %v976 = vld [vmem:[%s881 + $0xaa] sm:$0xff]
        %v977 = vld [vmem:[%s881 + $0xb2] sm:$0xff]
        %v978 = vld [vmem:[%s881 + $0xc2] sm:$0xff]
        %v979 = vld [vmem:[%s881 + $0xca] sm:$0xff]
        %v980 = vld [vmem:[%s881 + $0xda] sm:$0xff]
        %v981 = vld [vmem:[%s881 + $0xe2] sm:$0xff]
        %v982 = vld [vmem:[%s881 + $0xf2] sm:$0xff]
        %v983 = vld [vmem:[%s881 + $0xfa] sm:$0xff]
        %v984 = vld [vmem:[%s881 + $0x10a] sm:$0xff]
        %v985 = vld [vmem:[%s881 + $0x112] sm:$0xff]
        %v986 = vld [vmem:[%s881 + $0x122] sm:$0xff]
        %v987 = vld [vmem:[%s881 + $0x12a] sm:$0xff]
        %v988 = vld [vmem:[%s881 + $0x13a] sm:$0xff]
        %v989 = vld [vmem:[%s881 + $0x142] sm:$0xff]
        %v990 = vld [vmem:[%s881 + $0x152] sm:$0xff]
        %v991 = vld [vmem:[%s881 + $0x15a] sm:$0xff]
        %v992 = vld [vmem:[%s881 + $0x16a] sm:$0xff]
        %v993 = vld [vmem:[%s881 + $0x172] sm:$0xff]
        %v994 = vld [vmem:[%s881 + $0x1e2] sm:$0xff]
        %v995 = vld [vmem:[%s881 + $0x1ea] sm:$0xff]
        %v996 = vld [vmem:[%s881 + $0x1fa] sm:$0xff]
        %v997 = vld [vmem:[%s881 + $0x202] sm:$0xff]
        %v998 = vld [vmem:[%s881 + $0x212] sm:$0xff]
        %v999 = vld [vmem:[%s881 + $0x21a] sm:$0xff]
        %v1000 = vld [vmem:[%s881 + $0x22a] sm:$0xff]
        %v1001 = vld [vmem:[%s881 + $0x232] sm:$0xff]
        %v1002 = vld [vmem:[%s881 + $0x242] sm:$0xff]
        %v1003 = vld [vmem:[%s881 + $0x24a] sm:$0xff]
        %v1004 = vld [vmem:[%s881 + $0x25a] sm:$0xff]
        %v1005 = vld [vmem:[%s881 + $0x262] sm:$0xff]
        %v1006 = vld [vmem:[%s881 + $0x272] sm:$0xff]
        %v1007 = vld [vmem:[%s881 + $0x27a] sm:$0xff]
        %v1008 = vld [vmem:[%s881 + $0x28a] sm:$0xff]
        %v1009 = vld [vmem:[%s881 + $0x292] sm:$0xff]
        %v1010 = vld [vmem:[%s881 + $0x2a2] sm:$0xff]
        %v1011 = vld [vmem:[%s881 + $0x2aa] sm:$0xff]
        %v1012 = vld [vmem:[%s881 + $0x2ba] sm:$0xff]
        %v1013 = vld [vmem:[%s881 + $0x2c2] sm:$0xff]
        %v1014 = vld [vmem:[%s881 + $0x2d2] sm:$0xff]
        %v1015 = vld [vmem:[%s881 + $0x2da] sm:$0xff]
        %v1016 = vld [vmem:[%s881 + $0x2ea] sm:$0xff]
        %v1017 = vld [vmem:[%s881 + $0x2f2] sm:$0xff]
        %v1018 = vld [vmem:[%s881 + $0x302] sm:$0xff]
        %v1019 = vld [vmem:[%s881 + $0x30a] sm:$0xff]
        %v1020 = vld [vmem:[%s881 + $0x31a] sm:$0xff]
        %v1021 = vld [vmem:[%s881 + $0x322] sm:$0xff]
        %v1022 = vld [vmem:[%s881 + $0x332] sm:$0xff]
        %v1023 = vld [vmem:[%s881 + $0x33a] sm:$0xff]
        %v1024 = vld [vmem:[%s881 + $0x34a] sm:$0xff]
        %v1025 = vld [vmem:[%s881 + $0x352] sm:$0xff]
        %s1026 = scalar_lea.vmem %s382, 128
        %v1027 = vld [vmem:[%s1026] sm:$0xff]
        %v1028 = vld [vmem:[%s1026 + $0x8] sm:$0xff]
        %v1029 = vld [vmem:[%s1026 + $0x10] sm:$0xff]
        %v1030 = vld [vmem:[%s1026 + $0x18] sm:$0xff]
        %v1031 = vld [vmem:[%s1026 + $0x20] sm:$0xff]
        %v1032 = vld [vmem:[%s1026 + $0x28] sm:$0xff]
        %v1033 = vld [vmem:[%s1026 + $0x30] sm:$0xff]
        %v1034 = vld [vmem:[%s1026 + $0x38] sm:$0xff]
        %v1035 = vld [vmem:[%s1026 + $0x40] sm:$0xff]
        %v1036 = vld [vmem:[%s1026 + $0x48] sm:$0xff]
        %v1037 = vld [vmem:[%s1026 + $0x50] sm:$0xff]
        %v1038 = vld [vmem:[%s1026 + $0x58] sm:$0xff]
        %v1039 = vld [vmem:[%s1026 + $0x60] sm:$0xff]
        %v1040 = vld [vmem:[%s1026 + $0x68] sm:$0xff]
        %v1041 = vld [vmem:[%s1026 + $0x70] sm:$0xff]
        %v1042 = vld [vmem:[%s1026 + $0x78] sm:$0xff]
        %1043 = vmatpush.msra.mxu0 %v1042
        %1044 = vmatpush.msra.mxu0 %v1041
        %1045 = vmatpush.msra.mxu0 %v1040
        %1046 = vmatpush.msra.mxu0 %v1039
        %1047 = vmatpush.msra.mxu0 %v1038
        %1048 = vmatpush.msra.mxu0 %v1037
        %1049 = vmatpush.msra.mxu0 %v1036
        %1050 = vmatpush.msra.mxu0 %v1035
        %1051 = vmatpush.msra.mxu0 %v1034
        %1052 = vmatpush.msra.mxu0 %v1033
        %1053 = vmatpush.msra.mxu0 %v1032
        %1054 = vmatpush.msra.mxu0 %v1031
        %1055 = vmatpush.msra.mxu0 %v1030
        %1056 = vmatpush.msra.mxu0 %v1029
        %1057 = vmatpush.msra.mxu0 %v1028
        %1058 = vmatpush.msra.mxu0 %v1027
        %1059 = vmatmul.f32.gmra.mxu0 %v962
        %v1060 = vpop.f32.mrf.mxu0
        %v1061 = vadd.f32 0.0, %v1060
        %1062 = vmatmul.f32.gmra.mxu0 %v963
        %v1063 = vpop.f32.mrf.mxu0
        %v1064 = vadd.f32 0.0, %v1063
        %1065 = vmatmul.f32.gmra.mxu0 %v964
        %v1066 = vpop.f32.mrf.mxu0
        %v1067 = vadd.f32 0.0, %v1066
        %1068 = vmatmul.f32.gmra.mxu0 %v965
        %v1069 = vpop.f32.mrf.mxu0
        %v1070 = vadd.f32 0.0, %v1069
        %1071 = vmatmul.f32.gmra.mxu0 %v966
        %v1072 = vpop.f32.mrf.mxu0
        %v1073 = vadd.f32 0.0, %v1072
        %1074 = vmatmul.f32.gmra.mxu0 %v967
        %v1075 = vpop.f32.mrf.mxu0
        %v1076 = vadd.f32 0.0, %v1075
        %1077 = vmatmul.f32.gmra.mxu0 %v968
        %v1078 = vpop.f32.mrf.mxu0
        %v1079 = vadd.f32 0.0, %v1078
        %1080 = vmatmul.f32.gmra.mxu0 %v969
        %v1081 = vpop.f32.mrf.mxu0
        %v1082 = vadd.f32 0.0, %v1081
        %1083 = vmatmul.f32.gmra.mxu0 %v970
        %v1084 = vpop.f32.mrf.mxu0
        %v1085 = vadd.f32 0.0, %v1084
        %1086 = vmatmul.f32.gmra.mxu0 %v971
        %v1087 = vpop.f32.mrf.mxu0
        %v1088 = vadd.f32 0.0, %v1087
        %1089 = vmatmul.f32.gmra.mxu0 %v972
        %v1090 = vpop.f32.mrf.mxu0
        %v1091 = vadd.f32 0.0, %v1090
        %1092 = vmatmul.f32.gmra.mxu0 %v973
        %v1093 = vpop.f32.mrf.mxu0
        %v1094 = vadd.f32 0.0, %v1093
        %1095 = vmatmul.f32.gmra.mxu0 %v974
        %v1096 = vpop.f32.mrf.mxu0
        %v1097 = vadd.f32 0.0, %v1096
        %1098 = vmatmul.f32.gmra.mxu0 %v975
        %v1099 = vpop.f32.mrf.mxu0
        %v1100 = vadd.f32 0.0, %v1099
        %1101 = vmatmul.f32.gmra.mxu0 %v976
        %v1102 = vpop.f32.mrf.mxu0
        %v1103 = vadd.f32 0.0, %v1102
        %1104 = vmatmul.f32.gmra.mxu0 %v977
        %v1105 = vpop.f32.mrf.mxu0
        %v1106 = vadd.f32 0.0, %v1105
        %1107 = vmatmul.f32.gmra.mxu0 %v978
        %v1108 = vpop.f32.mrf.mxu0
        %v1109 = vadd.f32 0.0, %v1108
        %1110 = vmatmul.f32.gmra.mxu0 %v979
        %v1111 = vpop.f32.mrf.mxu0
        %v1112 = vadd.f32 0.0, %v1111
        %1113 = vmatmul.f32.gmra.mxu0 %v980
        %v1114 = vpop.f32.mrf.mxu0
        %v1115 = vadd.f32 0.0, %v1114
        %1116 = vmatmul.f32.gmra.mxu0 %v981
        %v1117 = vpop.f32.mrf.mxu0
        %v1118 = vadd.f32 0.0, %v1117
        %1119 = vmatmul.f32.gmra.mxu0 %v982
        %v1120 = vpop.f32.mrf.mxu0
        %v1121 = vadd.f32 0.0, %v1120
        %1122 = vmatmul.f32.gmra.mxu0 %v983
        %v1123 = vpop.f32.mrf.mxu0
        %v1124 = vadd.f32 0.0, %v1123
        %1125 = vmatmul.f32.gmra.mxu0 %v984
        %v1126 = vpop.f32.mrf.mxu0
        %v1127 = vadd.f32 0.0, %v1126
        %1128 = vmatmul.f32.gmra.mxu0 %v985
        %v1129 = vpop.f32.mrf.mxu0
        %v1130 = vadd.f32 0.0, %v1129
        %1131 = vmatmul.f32.gmra.mxu0 %v986
        %v1132 = vpop.f32.mrf.mxu0
        %v1133 = vadd.f32 0.0, %v1132
        %1134 = vmatmul.f32.gmra.mxu0 %v987
        %v1135 = vpop.f32.mrf.mxu0
        %v1136 = vadd.f32 0.0, %v1135
        %1137 = vmatmul.f32.gmra.mxu0 %v988
        %v1138 = vpop.f32.mrf.mxu0
        %v1139 = vadd.f32 0.0, %v1138
        %1140 = vmatmul.f32.gmra.mxu0 %v989
        %v1141 = vpop.f32.mrf.mxu0
        %v1142 = vadd.f32 0.0, %v1141
        %1143 = vmatmul.f32.gmra.mxu0 %v990
        %v1144 = vpop.f32.mrf.mxu0
        %v1145 = vadd.f32 0.0, %v1144
        %1146 = vmatmul.f32.gmra.mxu0 %v991
        %v1147 = vpop.f32.mrf.mxu0
        %v1148 = vadd.f32 0.0, %v1147
        %1149 = vmatmul.f32.gmra.mxu0 %v992
        %v1150 = vpop.f32.mrf.mxu0
        %v1151 = vadd.f32 0.0, %v1150
        %1152 = vmatmul.f32.gmra.mxu0 %v993
        %v1153 = vpop.f32.mrf.mxu0
        %v1154 = vadd.f32 0.0, %v1153
        %1155 = vmatmul.f32.gmra.mxu0 %v994
        %v1156 = vpop.f32.mrf.mxu0
        %v1157 = vadd.f32 0.0, %v1156
        %1158 = vmatmul.f32.gmra.mxu0 %v995
        %v1159 = vpop.f32.mrf.mxu0
        %v1160 = vadd.f32 0.0, %v1159
        %1161 = vmatmul.f32.gmra.mxu0 %v996
        %v1162 = vpop.f32.mrf.mxu0
        %v1163 = vadd.f32 0.0, %v1162
        %1164 = vmatmul.f32.gmra.mxu0 %v997
        %v1165 = vpop.f32.mrf.mxu0
        %v1166 = vadd.f32 0.0, %v1165
        %1167 = vmatmul.f32.gmra.mxu0 %v998
        %v1168 = vpop.f32.mrf.mxu0
        %v1169 = vadd.f32 0.0, %v1168
        %1170 = vmatmul.f32.gmra.mxu0 %v999
        %v1171 = vpop.f32.mrf.mxu0
        %v1172 = vadd.f32 0.0, %v1171
        %1173 = vmatmul.f32.gmra.mxu0 %v1000
        %v1174 = vpop.f32.mrf.mxu0
        %v1175 = vadd.f32 0.0, %v1174
        %1176 = vmatmul.f32.gmra.mxu0 %v1001
        %v1177 = vpop.f32.mrf.mxu0
        %v1178 = vadd.f32 0.0, %v1177
        %1179 = vmatmul.f32.gmra.mxu0 %v1002
        %v1180 = vpop.f32.mrf.mxu0
        %v1181 = vadd.f32 0.0, %v1180
        %1182 = vmatmul.f32.gmra.mxu0 %v1003
        %v1183 = vpop.f32.mrf.mxu0
        %v1184 = vadd.f32 0.0, %v1183
        %1185 = vmatmul.f32.gmra.mxu0 %v1004
        %v1186 = vpop.f32.mrf.mxu0
        %v1187 = vadd.f32 0.0, %v1186
        %1188 = vmatmul.f32.gmra.mxu0 %v1005
        %v1189 = vpop.f32.mrf.mxu0
        %v1190 = vadd.f32 0.0, %v1189
        %1191 = vmatmul.f32.gmra.mxu0 %v1006
        %v1192 = vpop.f32.mrf.mxu0
        %v1193 = vadd.f32 0.0, %v1192
        %1194 = vmatmul.f32.gmra.mxu0 %v1007
        %v1195 = vpop.f32.mrf.mxu0
        %v1196 = vadd.f32 0.0, %v1195
        %1197 = vmatmul.f32.gmra.mxu0 %v1008
        %v1198 = vpop.f32.mrf.mxu0
        %v1199 = vadd.f32 0.0, %v1198
        %1200 = vmatmul.f32.gmra.mxu0 %v1009
        %v1201 = vpop.f32.mrf.mxu0
        %v1202 = vadd.f32 0.0, %v1201
        %1203 = vmatmul.f32.gmra.mxu0 %v1010
        %v1204 = vpop.f32.mrf.mxu0
        %v1205 = vadd.f32 0.0, %v1204
        %1206 = vmatmul.f32.gmra.mxu0 %v1011
        %v1207 = vpop.f32.mrf.mxu0
        %v1208 = vadd.f32 0.0, %v1207
        %1209 = vmatmul.f32.gmra.mxu0 %v1012
        %v1210 = vpop.f32.mrf.mxu0
        %v1211 = vadd.f32 0.0, %v1210
        %1212 = vmatmul.f32.gmra.mxu0 %v1013
        %v1213 = vpop.f32.mrf.mxu0
        %v1214 = vadd.f32 0.0, %v1213
        %1215 = vmatmul.f32.gmra.mxu0 %v1014
        %v1216 = vpop.f32.mrf.mxu0
        %v1217 = vadd.f32 0.0, %v1216
        %1218 = vmatmul.f32.gmra.mxu0 %v1015
        %v1219 = vpop.f32.mrf.mxu0
        %v1220 = vadd.f32 0.0, %v1219
        %1221 = vmatmul.f32.gmra.mxu0 %v1016
        %v1222 = vpop.f32.mrf.mxu0
        %v1223 = vadd.f32 0.0, %v1222
        %1224 = vmatmul.f32.gmra.mxu0 %v1017
        %v1225 = vpop.f32.mrf.mxu0
        %v1226 = vadd.f32 0.0, %v1225
        %1227 = vmatmul.f32.gmra.mxu0 %v1018
        %v1228 = vpop.f32.mrf.mxu0
        %v1229 = vadd.f32 0.0, %v1228
        %1230 = vmatmul.f32.gmra.mxu0 %v1019
        %v1231 = vpop.f32.mrf.mxu0
        %v1232 = vadd.f32 0.0, %v1231
        %1233 = vmatmul.f32.gmra.mxu0 %v1020
        %v1234 = vpop.f32.mrf.mxu0
        %v1235 = vadd.f32 0.0, %v1234
        %1236 = vmatmul.f32.gmra.mxu0 %v1021
        %v1237 = vpop.f32.mrf.mxu0
        %v1238 = vadd.f32 0.0, %v1237
        %1239 = vmatmul.f32.gmra.mxu0 %v1022
        %v1240 = vpop.f32.mrf.mxu0
        %v1241 = vadd.f32 0.0, %v1240
        %1242 = vmatmul.f32.gmra.mxu0 %v1023
        %v1243 = vpop.f32.mrf.mxu0
        %v1244 = vadd.f32 0.0, %v1243
        %1245 = vmatmul.f32.gmra.mxu0 %v1024
        %v1246 = vpop.f32.mrf.mxu0
        %v1247 = vadd.f32 0.0, %v1246
        %1248 = vmatmul.f32.gmra.mxu0 %v1025
        %v1249 = vpop.f32.mrf.mxu0
        %v1250 = vadd.f32 0.0, %v1249
        %1251 = vdwg.mxu0
        %1252 = vmatpush.msra.mxu0 %v961
        %1253 = vmatpush.msra.mxu0 %v960
        %1254 = vmatpush.msra.mxu0 %v959
        %1255 = vmatpush.msra.mxu0 %v958
        %1256 = vmatpush.msra.mxu0 %v957
        %1257 = vmatpush.msra.mxu0 %v956
        %1258 = vmatpush.msra.mxu0 %v955
        %1259 = vmatpush.msra.mxu0 %v954
        %1260 = vmatpush.msra.mxu0 %v953
        %1261 = vmatpush.msra.mxu0 %v952
        %1262 = vmatpush.msra.mxu0 %v951
        %1263 = vmatpush.msra.mxu0 %v950
        %1264 = vmatpush.msra.mxu0 %v949
        %1265 = vmatpush.msra.mxu0 %v948
        %1266 = vmatpush.msra.mxu0 %v947
        %1267 = vmatpush.msra.mxu0 %v946
        %1268 = vmatmul.f32.gmra.mxu0 %v882
        %v1269 = vpop.f32.mrf.mxu0
        %v1270 = vadd.f32 %v1061, %v1269
        %1271 = vmatmul.f32.gmra.mxu0 %v883
        %v1272 = vpop.f32.mrf.mxu0
        %v1273 = vadd.f32 %v1064, %v1272
        %1274 = vmatmul.f32.gmra.mxu0 %v884
        %v1275 = vpop.f32.mrf.mxu0
        %v1276 = vadd.f32 %v1067, %v1275
        %1277 = vmatmul.f32.gmra.mxu0 %v885
        %v1278 = vpop.f32.mrf.mxu0
        %v1279 = vadd.f32 %v1070, %v1278
        %1280 = vmatmul.f32.gmra.mxu0 %v886
        %v1281 = vpop.f32.mrf.mxu0
        %v1282 = vadd.f32 %v1073, %v1281
        %1283 = vmatmul.f32.gmra.mxu0 %v887
        %v1284 = vpop.f32.mrf.mxu0
        %v1285 = vadd.f32 %v1076, %v1284
        %1286 = vmatmul.f32.gmra.mxu0 %v888
        %v1287 = vpop.f32.mrf.mxu0
        %v1288 = vadd.f32 %v1079, %v1287
        %1289 = vmatmul.f32.gmra.mxu0 %v889
        %v1290 = vpop.f32.mrf.mxu0
        %v1291 = vadd.f32 %v1082, %v1290
        %1292 = vmatmul.f32.gmra.mxu0 %v890
        %v1293 = vpop.f32.mrf.mxu0
        %v1294 = vadd.f32 %v1085, %v1293
        %1295 = vmatmul.f32.gmra.mxu0 %v891
        %v1296 = vpop.f32.mrf.mxu0
        %v1297 = vadd.f32 %v1088, %v1296
        %1298 = vmatmul.f32.gmra.mxu0 %v892
        %v1299 = vpop.f32.mrf.mxu0
        %v1300 = vadd.f32 %v1091, %v1299
        %1301 = vmatmul.f32.gmra.mxu0 %v893
        %v1302 = vpop.f32.mrf.mxu0
        %v1303 = vadd.f32 %v1094, %v1302
        %1304 = vmatmul.f32.gmra.mxu0 %v894
        %v1305 = vpop.f32.mrf.mxu0
        %v1306 = vadd.f32 %v1097, %v1305
        %1307 = vmatmul.f32.gmra.mxu0 %v895
        %v1308 = vpop.f32.mrf.mxu0
        %v1309 = vadd.f32 %v1100, %v1308
        %1310 = vmatmul.f32.gmra.mxu0 %v896
        %v1311 = vpop.f32.mrf.mxu0
        %v1312 = vadd.f32 %v1103, %v1311
        %1313 = vmatmul.f32.gmra.mxu0 %v897
        %v1314 = vpop.f32.mrf.mxu0
        %v1315 = vadd.f32 %v1106, %v1314
        %1316 = vmatmul.f32.gmra.mxu0 %v898
        %v1317 = vpop.f32.mrf.mxu0
        %v1318 = vadd.f32 %v1109, %v1317
        %1319 = vmatmul.f32.gmra.mxu0 %v899
        %v1320 = vpop.f32.mrf.mxu0
        %v1321 = vadd.f32 %v1112, %v1320
        %1322 = vmatmul.f32.gmra.mxu0 %v900
        %v1323 = vpop.f32.mrf.mxu0
        %v1324 = vadd.f32 %v1115, %v1323
        %1325 = vmatmul.f32.gmra.mxu0 %v901
        %v1326 = vpop.f32.mrf.mxu0
        %v1327 = vadd.f32 %v1118, %v1326
        %1328 = vmatmul.f32.gmra.mxu0 %v902
        %v1329 = vpop.f32.mrf.mxu0
        %v1330 = vadd.f32 %v1121, %v1329
        %1331 = vmatmul.f32.gmra.mxu0 %v903
        %v1332 = vpop.f32.mrf.mxu0
        %v1333 = vadd.f32 %v1124, %v1332
        %1334 = vmatmul.f32.gmra.mxu0 %v904
        %v1335 = vpop.f32.mrf.mxu0
        %v1336 = vadd.f32 %v1127, %v1335
        %1337 = vmatmul.f32.gmra.mxu0 %v905
        %v1338 = vpop.f32.mrf.mxu0
        %v1339 = vadd.f32 %v1130, %v1338
        %1340 = vmatmul.f32.gmra.mxu0 %v906
        %v1341 = vpop.f32.mrf.mxu0
        %v1342 = vadd.f32 %v1133, %v1341
        %1343 = vmatmul.f32.gmra.mxu0 %v907
        %v1344 = vpop.f32.mrf.mxu0
        %v1345 = vadd.f32 %v1136, %v1344
        %1346 = vmatmul.f32.gmra.mxu0 %v908
        %v1347 = vpop.f32.mrf.mxu0
        %v1348 = vadd.f32 %v1139, %v1347
        %1349 = vmatmul.f32.gmra.mxu0 %v909
        %v1350 = vpop.f32.mrf.mxu0
        %v1351 = vadd.f32 %v1142, %v1350
        %1352 = vmatmul.f32.gmra.mxu0 %v910
        %v1353 = vpop.f32.mrf.mxu0
        %v1354 = vadd.f32 %v1145, %v1353
        %1355 = vmatmul.f32.gmra.mxu0 %v911
        %v1356 = vpop.f32.mrf.mxu0
        %v1357 = vadd.f32 %v1148, %v1356
        %1358 = vmatmul.f32.gmra.mxu0 %v912
        %v1359 = vpop.f32.mrf.mxu0
        %v1360 = vadd.f32 %v1151, %v1359
        %1361 = vmatmul.f32.gmra.mxu0 %v913
        %v1362 = vpop.f32.mrf.mxu0
        %v1363 = vadd.f32 %v1154, %v1362
        %1364 = vmatmul.f32.gmra.mxu0 %v914
        %v1365 = vpop.f32.mrf.mxu0
        %v1366 = vadd.f32 %v1157, %v1365
        %1367 = vmatmul.f32.gmra.mxu0 %v915
        %v1368 = vpop.f32.mrf.mxu0
        %v1369 = vadd.f32 %v1160, %v1368
        %1370 = vmatmul.f32.gmra.mxu0 %v916
        %v1371 = vpop.f32.mrf.mxu0
        %v1372 = vadd.f32 %v1163, %v1371
        %1373 = vmatmul.f32.gmra.mxu0 %v917
        %v1374 = vpop.f32.mrf.mxu0
        %v1375 = vadd.f32 %v1166, %v1374
        %1376 = vmatmul.f32.gmra.mxu0 %v918
        %v1377 = vpop.f32.mrf.mxu0
        %v1378 = vadd.f32 %v1169, %v1377
        %1379 = vmatmul.f32.gmra.mxu0 %v919
        %v1380 = vpop.f32.mrf.mxu0
        %v1381 = vadd.f32 %v1172, %v1380
        %1382 = vmatmul.f32.gmra.mxu0 %v920
        %v1383 = vpop.f32.mrf.mxu0
        %v1384 = vadd.f32 %v1175, %v1383
        %1385 = vmatmul.f32.gmra.mxu0 %v921
        %v1386 = vpop.f32.mrf.mxu0
        %v1387 = vadd.f32 %v1178, %v1386
        %1388 = vmatmul.f32.gmra.mxu0 %v922
        %v1389 = vpop.f32.mrf.mxu0
        %v1390 = vadd.f32 %v1181, %v1389
        %1391 = vmatmul.f32.gmra.mxu0 %v923
        %v1392 = vpop.f32.mrf.mxu0
        %v1393 = vadd.f32 %v1184, %v1392
        %1394 = vmatmul.f32.gmra.mxu0 %v924
        %v1395 = vpop.f32.mrf.mxu0
        %v1396 = vadd.f32 %v1187, %v1395
        %1397 = vmatmul.f32.gmra.mxu0 %v925
        %v1398 = vpop.f32.mrf.mxu0
        %v1399 = vadd.f32 %v1190, %v1398
        %1400 = vmatmul.f32.gmra.mxu0 %v926
        %v1401 = vpop.f32.mrf.mxu0
        %v1402 = vadd.f32 %v1193, %v1401
        %1403 = vmatmul.f32.gmra.mxu0 %v927
        %v1404 = vpop.f32.mrf.mxu0
        %v1405 = vadd.f32 %v1196, %v1404
        %1406 = vmatmul.f32.gmra.mxu0 %v928
        %v1407 = vpop.f32.mrf.mxu0
        %v1408 = vadd.f32 %v1199, %v1407
        %1409 = vmatmul.f32.gmra.mxu0 %v929
        %v1410 = vpop.f32.mrf.mxu0
        %v1411 = vadd.f32 %v1202, %v1410
        %1412 = vmatmul.f32.gmra.mxu0 %v930
        %v1413 = vpop.f32.mrf.mxu0
        %v1414 = vadd.f32 %v1205, %v1413
        %1415 = vmatmul.f32.gmra.mxu0 %v931
        %v1416 = vpop.f32.mrf.mxu0
        %v1417 = vadd.f32 %v1208, %v1416
        %1418 = vmatmul.f32.gmra.mxu0 %v932
        %v1419 = vpop.f32.mrf.mxu0
        %v1420 = vadd.f32 %v1211, %v1419
        %1421 = vmatmul.f32.gmra.mxu0 %v933
        %v1422 = vpop.f32.mrf.mxu0
        %v1423 = vadd.f32 %v1214, %v1422
        %1424 = vmatmul.f32.gmra.mxu0 %v934
        %v1425 = vpop.f32.mrf.mxu0
        %v1426 = vadd.f32 %v1217, %v1425
        %1427 = vmatmul.f32.gmra.mxu0 %v935
        %v1428 = vpop.f32.mrf.mxu0
        %v1429 = vadd.f32 %v1220, %v1428
        %1430 = vmatmul.f32.gmra.mxu0 %v936
        %v1431 = vpop.f32.mrf.mxu0
        %v1432 = vadd.f32 %v1223, %v1431
        %1433 = vmatmul.f32.gmra.mxu0 %v937
        %v1434 = vpop.f32.mrf.mxu0
        %v1435 = vadd.f32 %v1226, %v1434
        %1436 = vmatmul.f32.gmra.mxu0 %v938
        %v1437 = vpop.f32.mrf.mxu0
        %v1438 = vadd.f32 %v1229, %v1437
        %1439 = vmatmul.f32.gmra.mxu0 %v939
        %v1440 = vpop.f32.mrf.mxu0
        %v1441 = vadd.f32 %v1232, %v1440
        %1442 = vmatmul.f32.gmra.mxu0 %v940
        %v1443 = vpop.f32.mrf.mxu0
        %v1444 = vadd.f32 %v1235, %v1443
        %1445 = vmatmul.f32.gmra.mxu0 %v941
        %v1446 = vpop.f32.mrf.mxu0
        %v1447 = vadd.f32 %v1238, %v1446
        %1448 = vmatmul.f32.gmra.mxu0 %v942
        %v1449 = vpop.f32.mrf.mxu0
        %v1450 = vadd.f32 %v1241, %v1449
        %1451 = vmatmul.f32.gmra.mxu0 %v943
        %v1452 = vpop.f32.mrf.mxu0
        %v1453 = vadd.f32 %v1244, %v1452
        %1454 = vmatmul.f32.gmra.mxu0 %v944
        %v1455 = vpop.f32.mrf.mxu0
        %v1456 = vadd.f32 %v1247, %v1455
        %1457 = vmatmul.f32.gmra.mxu0 %v945
        %v1458 = vpop.f32.mrf.mxu0
        %v1459 = vadd.f32 %v1250, %v1458
        %1460 = vdwg.mxu0
        %v1461 = vld [vmem:[%s881 + $0x3] sm:$0xff]
        %v1462 = vld [vmem:[%s881 + $0xb] sm:$0xff]
        %v1463 = vld [vmem:[%s881 + $0x1b] sm:$0xff]
        %v1464 = vld [vmem:[%s881 + $0x23] sm:$0xff]
        %v1465 = vld [vmem:[%s881 + $0x33] sm:$0xff]
        %v1466 = vld [vmem:[%s881 + $0x3b] sm:$0xff]
        %v1467 = vld [vmem:[%s881 + $0x4b] sm:$0xff]
        %v1468 = vld [vmem:[%s881 + $0x53] sm:$0xff]
        %v1469 = vld [vmem:[%s881 + $0x63] sm:$0xff]
        %v1470 = vld [vmem:[%s881 + $0x6b] sm:$0xff]
        %v1471 = vld [vmem:[%s881 + $0x7b] sm:$0xff]
        %v1472 = vld [vmem:[%s881 + $0x83] sm:$0xff]
        %v1473 = vld [vmem:[%s881 + $0x93] sm:$0xff]
        %v1474 = vld [vmem:[%s881 + $0x9b] sm:$0xff]
        %v1475 = vld [vmem:[%s881 + $0xab] sm:$0xff]
        %v1476 = vld [vmem:[%s881 + $0xb3] sm:$0xff]
        %v1477 = vld [vmem:[%s881 + $0xc3] sm:$0xff]
        %v1478 = vld [vmem:[%s881 + $0xcb] sm:$0xff]
        %v1479 = vld [vmem:[%s881 + $0xdb] sm:$0xff]
        %v1480 = vld [vmem:[%s881 + $0xe3] sm:$0xff]
        %v1481 = vld [vmem:[%s881 + $0xf3] sm:$0xff]
        %v1482 = vld [vmem:[%s881 + $0xfb] sm:$0xff]
        %v1483 = vld [vmem:[%s881 + $0x10b] sm:$0xff]
        %v1484 = vld [vmem:[%s881 + $0x113] sm:$0xff]
        %v1485 = vld [vmem:[%s881 + $0x123] sm:$0xff]
        %v1486 = vld [vmem:[%s881 + $0x12b] sm:$0xff]
        %v1487 = vld [vmem:[%s881 + $0x13b] sm:$0xff]
        %v1488 = vld [vmem:[%s881 + $0x143] sm:$0xff]
        %v1489 = vld [vmem:[%s881 + $0x153] sm:$0xff]
        %v1490 = vld [vmem:[%s881 + $0x15b] sm:$0xff]
        %v1491 = vld [vmem:[%s881 + $0x16b] sm:$0xff]
        %v1492 = vld [vmem:[%s881 + $0x173] sm:$0xff]
        %v1493 = vld [vmem:[%s881 + $0x1e3] sm:$0xff]
        %v1494 = vld [vmem:[%s881 + $0x1eb] sm:$0xff]
        %v1495 = vld [vmem:[%s881 + $0x1fb] sm:$0xff]
        %v1496 = vld [vmem:[%s881 + $0x203] sm:$0xff]
        %v1497 = vld [vmem:[%s881 + $0x213] sm:$0xff]
        %v1498 = vld [vmem:[%s881 + $0x21b] sm:$0xff]
        %v1499 = vld [vmem:[%s881 + $0x22b] sm:$0xff]
        %v1500 = vld [vmem:[%s881 + $0x233] sm:$0xff]
        %v1501 = vld [vmem:[%s881 + $0x243] sm:$0xff]
        %v1502 = vld [vmem:[%s881 + $0x24b] sm:$0xff]
        %v1503 = vld [vmem:[%s881 + $0x25b] sm:$0xff]
        %v1504 = vld [vmem:[%s881 + $0x263] sm:$0xff]
        %v1505 = vld [vmem:[%s881 + $0x273] sm:$0xff]
        %v1506 = vld [vmem:[%s881 + $0x27b] sm:$0xff]
        %v1507 = vld [vmem:[%s881 + $0x28b] sm:$0xff]
        %v1508 = vld [vmem:[%s881 + $0x293] sm:$0xff]
        %v1509 = vld [vmem:[%s881 + $0x2a3] sm:$0xff]
        %v1510 = vld [vmem:[%s881 + $0x2ab] sm:$0xff]
        %v1511 = vld [vmem:[%s881 + $0x2bb] sm:$0xff]
        %v1512 = vld [vmem:[%s881 + $0x2c3] sm:$0xff]
        %v1513 = vld [vmem:[%s881 + $0x2d3] sm:$0xff]
        %v1514 = vld [vmem:[%s881 + $0x2db] sm:$0xff]
        %v1515 = vld [vmem:[%s881 + $0x2eb] sm:$0xff]
        %v1516 = vld [vmem:[%s881 + $0x2f3] sm:$0xff]
        %v1517 = vld [vmem:[%s881 + $0x303] sm:$0xff]
        %v1518 = vld [vmem:[%s881 + $0x30b] sm:$0xff]
        %v1519 = vld [vmem:[%s881 + $0x31b] sm:$0xff]
        %v1520 = vld [vmem:[%s881 + $0x323] sm:$0xff]
        %v1521 = vld [vmem:[%s881 + $0x333] sm:$0xff]
        %v1522 = vld [vmem:[%s881 + $0x33b] sm:$0xff]
        %v1523 = vld [vmem:[%s881 + $0x34b] sm:$0xff]
        %v1524 = vld [vmem:[%s881 + $0x353] sm:$0xff]
        %s1525 = scalar_lea.vmem %s382, 256
        %v1526 = vld [vmem:[%s1525] sm:$0xff]
        %v1527 = vld [vmem:[%s1525 + $0x8] sm:$0xff]
        %v1528 = vld [vmem:[%s1525 + $0x10] sm:$0xff]
        %v1529 = vld [vmem:[%s1525 + $0x18] sm:$0xff]
        %v1530 = vld [vmem:[%s1525 + $0x20] sm:$0xff]
        %v1531 = vld [vmem:[%s1525 + $0x28] sm:$0xff]
        %v1532 = vld [vmem:[%s1525 + $0x30] sm:$0xff]
        %v1533 = vld [vmem:[%s1525 + $0x38] sm:$0xff]
        %v1534 = vld [vmem:[%s1525 + $0x40] sm:$0xff]
        %v1535 = vld [vmem:[%s1525 + $0x48] sm:$0xff]
        %v1536 = vld [vmem:[%s1525 + $0x50] sm:$0xff]
        %v1537 = vld [vmem:[%s1525 + $0x58] sm:$0xff]
        %v1538 = vld [vmem:[%s1525 + $0x60] sm:$0xff]
        %v1539 = vld [vmem:[%s1525 + $0x68] sm:$0xff]
        %v1540 = vld [vmem:[%s1525 + $0x70] sm:$0xff]
        %v1541 = vld [vmem:[%s1525 + $0x78] sm:$0xff]
        %1542 = vmatpush.msra.mxu0 %v1541
        %1543 = vmatpush.msra.mxu0 %v1540
        %1544 = vmatpush.msra.mxu0 %v1539
        %1545 = vmatpush.msra.mxu0 %v1538
        %1546 = vmatpush.msra.mxu0 %v1537
        %1547 = vmatpush.msra.mxu0 %v1536
        %1548 = vmatpush.msra.mxu0 %v1535
        %1549 = vmatpush.msra.mxu0 %v1534
        %1550 = vmatpush.msra.mxu0 %v1533
        %1551 = vmatpush.msra.mxu0 %v1532
        %1552 = vmatpush.msra.mxu0 %v1531
        %1553 = vmatpush.msra.mxu0 %v1530
        %1554 = vmatpush.msra.mxu0 %v1529
        %1555 = vmatpush.msra.mxu0 %v1528
        %1556 = vmatpush.msra.mxu0 %v1527
        %1557 = vmatpush.msra.mxu0 %v1526
        %1558 = vmatmul.f32.gmra.mxu0 %v1461
        %v1559 = vpop.f32.mrf.mxu0
        %v1560 = vadd.f32 0.0, %v1559
        %1561 = vmatmul.f32.gmra.mxu0 %v1462
        %v1562 = vpop.f32.mrf.mxu0
        %v1563 = vadd.f32 0.0, %v1562
        %1564 = vmatmul.f32.gmra.mxu0 %v1463
        %v1565 = vpop.f32.mrf.mxu0
        %v1566 = vadd.f32 0.0, %v1565
        %1567 = vmatmul.f32.gmra.mxu0 %v1464
        %v1568 = vpop.f32.mrf.mxu0
        %v1569 = vadd.f32 0.0, %v1568
        %1570 = vmatmul.f32.gmra.mxu0 %v1465
        %v1571 = vpop.f32.mrf.mxu0
        %v1572 = vadd.f32 0.0, %v1571
        %1573 = vmatmul.f32.gmra.mxu0 %v1466
        %v1574 = vpop.f32.mrf.mxu0
        %v1575 = vadd.f32 0.0, %v1574
        %1576 = vmatmul.f32.gmra.mxu0 %v1467
        %v1577 = vpop.f32.mrf.mxu0
        %v1578 = vadd.f32 0.0, %v1577
        %1579 = vmatmul.f32.gmra.mxu0 %v1468
        %v1580 = vpop.f32.mrf.mxu0
        %v1581 = vadd.f32 0.0, %v1580
        %1582 = vmatmul.f32.gmra.mxu0 %v1469
        %v1583 = vpop.f32.mrf.mxu0
        %v1584 = vadd.f32 0.0, %v1583
        %1585 = vmatmul.f32.gmra.mxu0 %v1470
        %v1586 = vpop.f32.mrf.mxu0
        %v1587 = vadd.f32 0.0, %v1586
        %1588 = vmatmul.f32.gmra.mxu0 %v1471
        %v1589 = vpop.f32.mrf.mxu0
        %v1590 = vadd.f32 0.0, %v1589
        %1591 = vmatmul.f32.gmra.mxu0 %v1472
        %v1592 = vpop.f32.mrf.mxu0
        %v1593 = vadd.f32 0.0, %v1592
        %1594 = vmatmul.f32.gmra.mxu0 %v1473
        %v1595 = vpop.f32.mrf.mxu0
        %v1596 = vadd.f32 0.0, %v1595
        %1597 = vmatmul.f32.gmra.mxu0 %v1474
        %v1598 = vpop.f32.mrf.mxu0
        %v1599 = vadd.f32 0.0, %v1598
        %1600 = vmatmul.f32.gmra.mxu0 %v1475
        %v1601 = vpop.f32.mrf.mxu0
        %v1602 = vadd.f32 0.0, %v1601
        %1603 = vmatmul.f32.gmra.mxu0 %v1476
        %v1604 = vpop.f32.mrf.mxu0
        %v1605 = vadd.f32 0.0, %v1604
        %1606 = vmatmul.f32.gmra.mxu0 %v1477
        %v1607 = vpop.f32.mrf.mxu0
        %v1608 = vadd.f32 0.0, %v1607
        %1609 = vmatmul.f32.gmra.mxu0 %v1478
        %v1610 = vpop.f32.mrf.mxu0
        %v1611 = vadd.f32 0.0, %v1610
        %1612 = vmatmul.f32.gmra.mxu0 %v1479
        %v1613 = vpop.f32.mrf.mxu0
        %v1614 = vadd.f32 0.0, %v1613
        %1615 = vmatmul.f32.gmra.mxu0 %v1480
        %v1616 = vpop.f32.mrf.mxu0
        %v1617 = vadd.f32 0.0, %v1616
        %1618 = vmatmul.f32.gmra.mxu0 %v1481
        %v1619 = vpop.f32.mrf.mxu0
        %v1620 = vadd.f32 0.0, %v1619
        %1621 = vmatmul.f32.gmra.mxu0 %v1482
        %v1622 = vpop.f32.mrf.mxu0
        %v1623 = vadd.f32 0.0, %v1622
        %1624 = vmatmul.f32.gmra.mxu0 %v1483
        %v1625 = vpop.f32.mrf.mxu0
        %v1626 = vadd.f32 0.0, %v1625
        %1627 = vmatmul.f32.gmra.mxu0 %v1484
        %v1628 = vpop.f32.mrf.mxu0
        %v1629 = vadd.f32 0.0, %v1628
        %1630 = vmatmul.f32.gmra.mxu0 %v1485
        %v1631 = vpop.f32.mrf.mxu0
        %v1632 = vadd.f32 0.0, %v1631
        %1633 = vmatmul.f32.gmra.mxu0 %v1486
        %v1634 = vpop.f32.mrf.mxu0
        %v1635 = vadd.f32 0.0, %v1634
        %1636 = vmatmul.f32.gmra.mxu0 %v1487
        %v1637 = vpop.f32.mrf.mxu0
        %v1638 = vadd.f32 0.0, %v1637
        %1639 = vmatmul.f32.gmra.mxu0 %v1488
        %v1640 = vpop.f32.mrf.mxu0
        %v1641 = vadd.f32 0.0, %v1640
        %1642 = vmatmul.f32.gmra.mxu0 %v1489
        %v1643 = vpop.f32.mrf.mxu0
        %v1644 = vadd.f32 0.0, %v1643
        %1645 = vmatmul.f32.gmra.mxu0 %v1490
        %v1646 = vpop.f32.mrf.mxu0
        %v1647 = vadd.f32 0.0, %v1646
        %1648 = vmatmul.f32.gmra.mxu0 %v1491
        %v1649 = vpop.f32.mrf.mxu0
        %v1650 = vadd.f32 0.0, %v1649
        %1651 = vmatmul.f32.gmra.mxu0 %v1492
        %v1652 = vpop.f32.mrf.mxu0
        %v1653 = vadd.f32 0.0, %v1652
        %1654 = vmatmul.f32.gmra.mxu0 %v1493
        %v1655 = vpop.f32.mrf.mxu0
        %v1656 = vadd.f32 0.0, %v1655
        %1657 = vmatmul.f32.gmra.mxu0 %v1494
        %v1658 = vpop.f32.mrf.mxu0
        %v1659 = vadd.f32 0.0, %v1658
        %1660 = vmatmul.f32.gmra.mxu0 %v1495
        %v1661 = vpop.f32.mrf.mxu0
        %v1662 = vadd.f32 0.0, %v1661
        %1663 = vmatmul.f32.gmra.mxu0 %v1496
        %v1664 = vpop.f32.mrf.mxu0
        %v1665 = vadd.f32 0.0, %v1664
        %1666 = vmatmul.f32.gmra.mxu0 %v1497
        %v1667 = vpop.f32.mrf.mxu0
        %v1668 = vadd.f32 0.0, %v1667
        %1669 = vmatmul.f32.gmra.mxu0 %v1498
        %v1670 = vpop.f32.mrf.mxu0
        %v1671 = vadd.f32 0.0, %v1670
        %1672 = vmatmul.f32.gmra.mxu0 %v1499
        %v1673 = vpop.f32.mrf.mxu0
        %v1674 = vadd.f32 0.0, %v1673
        %1675 = vmatmul.f32.gmra.mxu0 %v1500
        %v1676 = vpop.f32.mrf.mxu0
        %v1677 = vadd.f32 0.0, %v1676
        %1678 = vmatmul.f32.gmra.mxu0 %v1501
        %v1679 = vpop.f32.mrf.mxu0
        %v1680 = vadd.f32 0.0, %v1679
        %1681 = vmatmul.f32.gmra.mxu0 %v1502
        %v1682 = vpop.f32.mrf.mxu0
        %v1683 = vadd.f32 0.0, %v1682
        %1684 = vmatmul.f32.gmra.mxu0 %v1503
        %v1685 = vpop.f32.mrf.mxu0
        %v1686 = vadd.f32 0.0, %v1685
        %1687 = vmatmul.f32.gmra.mxu0 %v1504
        %v1688 = vpop.f32.mrf.mxu0
        %v1689 = vadd.f32 0.0, %v1688
        %1690 = vmatmul.f32.gmra.mxu0 %v1505
        %v1691 = vpop.f32.mrf.mxu0
        %v1692 = vadd.f32 0.0, %v1691
        %1693 = vmatmul.f32.gmra.mxu0 %v1506
        %v1694 = vpop.f32.mrf.mxu0
        %v1695 = vadd.f32 0.0, %v1694
        %1696 = vmatmul.f32.gmra.mxu0 %v1507
        %v1697 = vpop.f32.mrf.mxu0
        %v1698 = vadd.f32 0.0, %v1697
        %1699 = vmatmul.f32.gmra.mxu0 %v1508
        %v1700 = vpop.f32.mrf.mxu0
        %v1701 = vadd.f32 0.0, %v1700
        %1702 = vmatmul.f32.gmra.mxu0 %v1509
        %v1703 = vpop.f32.mrf.mxu0
        %v1704 = vadd.f32 0.0, %v1703
        %1705 = vmatmul.f32.gmra.mxu0 %v1510
        %v1706 = vpop.f32.mrf.mxu0
        %v1707 = vadd.f32 0.0, %v1706
        %1708 = vmatmul.f32.gmra.mxu0 %v1511
        %v1709 = vpop.f32.mrf.mxu0
        %v1710 = vadd.f32 0.0, %v1709
        %1711 = vmatmul.f32.gmra.mxu0 %v1512
        %v1712 = vpop.f32.mrf.mxu0
        %v1713 = vadd.f32 0.0, %v1712
        %1714 = vmatmul.f32.gmra.mxu0 %v1513
        %v1715 = vpop.f32.mrf.mxu0
        %v1716 = vadd.f32 0.0, %v1715
        %1717 = vmatmul.f32.gmra.mxu0 %v1514
        %v1718 = vpop.f32.mrf.mxu0
        %v1719 = vadd.f32 0.0, %v1718
        %1720 = vmatmul.f32.gmra.mxu0 %v1515
        %v1721 = vpop.f32.mrf.mxu0
        %v1722 = vadd.f32 0.0, %v1721
        %1723 = vmatmul.f32.gmra.mxu0 %v1516
        %v1724 = vpop.f32.mrf.mxu0
        %v1725 = vadd.f32 0.0, %v1724
        %1726 = vmatmul.f32.gmra.mxu0 %v1517
        %v1727 = vpop.f32.mrf.mxu0
        %v1728 = vadd.f32 0.0, %v1727
        %1729 = vmatmul.f32.gmra.mxu0 %v1518
        %v1730 = vpop.f32.mrf.mxu0
        %v1731 = vadd.f32 0.0, %v1730
        %1732 = vmatmul.f32.gmra.mxu0 %v1519
        %v1733 = vpop.f32.mrf.mxu0
        %v1734 = vadd.f32 0.0, %v1733
        %1735 = vmatmul.f32.gmra.mxu0 %v1520
        %v1736 = vpop.f32.mrf.mxu0
        %v1737 = vadd.f32 0.0, %v1736
        %1738 = vmatmul.f32.gmra.mxu0 %v1521
        %v1739 = vpop.f32.mrf.mxu0
        %v1740 = vadd.f32 0.0, %v1739
        %1741 = vmatmul.f32.gmra.mxu0 %v1522
        %v1742 = vpop.f32.mrf.mxu0
        %v1743 = vadd.f32 0.0, %v1742
        %1744 = vmatmul.f32.gmra.mxu0 %v1523
        %v1745 = vpop.f32.mrf.mxu0
        %v1746 = vadd.f32 0.0, %v1745
        %1747 = vmatmul.f32.gmra.mxu0 %v1524
        %v1748 = vpop.f32.mrf.mxu0
        %v1749 = vadd.f32 0.0, %v1748
        %1750 = vdwg.mxu0
        %v1751 = vadd.f32 %v1270, %v1560
        %v1752 = vadd.f32 %v1273, %v1563
        %v1753 = vadd.f32 %v1276, %v1566
        %v1754 = vadd.f32 %v1279, %v1569
        %v1755 = vadd.f32 %v1282, %v1572
        %v1756 = vadd.f32 %v1285, %v1575
        %v1757 = vadd.f32 %v1288, %v1578
        %v1758 = vadd.f32 %v1291, %v1581
        %v1759 = vadd.f32 %v1294, %v1584
        %v1760 = vadd.f32 %v1297, %v1587
        %v1761 = vadd.f32 %v1300, %v1590
        %v1762 = vadd.f32 %v1303, %v1593
        %v1763 = vadd.f32 %v1306, %v1596
        %v1764 = vadd.f32 %v1309, %v1599
        %v1765 = vadd.f32 %v1312, %v1602
        %v1766 = vadd.f32 %v1315, %v1605
        %v1767 = vadd.f32 %v1318, %v1608
        %v1768 = vadd.f32 %v1321, %v1611
        %v1769 = vadd.f32 %v1324, %v1614
        %v1770 = vadd.f32 %v1327, %v1617
        %v1771 = vadd.f32 %v1330, %v1620
        %v1772 = vadd.f32 %v1333, %v1623
        %v1773 = vadd.f32 %v1336, %v1626
        %v1774 = vadd.f32 %v1339, %v1629
        %v1775 = vadd.f32 %v1342, %v1632
        %v1776 = vadd.f32 %v1345, %v1635
        %v1777 = vadd.f32 %v1348, %v1638
        %v1778 = vadd.f32 %v1351, %v1641
        %v1779 = vadd.f32 %v1354, %v1644
        %v1780 = vadd.f32 %v1357, %v1647
        %v1781 = vadd.f32 %v1360, %v1650
        %v1782 = vadd.f32 %v1363, %v1653
        %v1783 = vadd.f32 %v1366, %v1656
        %v1784 = vadd.f32 %v1369, %v1659
        %v1785 = vadd.f32 %v1372, %v1662
        %v1786 = vadd.f32 %v1375, %v1665
        %v1787 = vadd.f32 %v1378, %v1668
        %v1788 = vadd.f32 %v1381, %v1671
        %v1789 = vadd.f32 %v1384, %v1674
        %v1790 = vadd.f32 %v1387, %v1677
        %v1791 = vadd.f32 %v1390, %v1680
        %v1792 = vadd.f32 %v1393, %v1683
        %v1793 = vadd.f32 %v1396, %v1686
        %v1794 = vadd.f32 %v1399, %v1689
        %v1795 = vadd.f32 %v1402, %v1692
        %v1796 = vadd.f32 %v1405, %v1695
        %v1797 = vadd.f32 %v1408, %v1698
        %v1798 = vadd.f32 %v1411, %v1701
        %v1799 = vadd.f32 %v1414, %v1704
        %v1800 = vadd.f32 %v1417, %v1707
        %v1801 = vadd.f32 %v1420, %v1710
        %v1802 = vadd.f32 %v1423, %v1713
        %v1803 = vadd.f32 %v1426, %v1716
        %v1804 = vadd.f32 %v1429, %v1719
        %v1805 = vadd.f32 %v1432, %v1722
        %v1806 = vadd.f32 %v1435, %v1725
        %v1807 = vadd.f32 %v1438, %v1728
        %v1808 = vadd.f32 %v1441, %v1731
        %v1809 = vadd.f32 %v1444, %v1734
        %v1810 = vadd.f32 %v1447, %v1737
        %v1811 = vadd.f32 %v1450, %v1740
        %v1812 = vadd.f32 %v1453, %v1743
        %v1813 = vadd.f32 %v1456, %v1746
        %v1814 = vadd.f32 %v1459, %v1749
        %s1815 = scalar_lea.vmem %s377, 48
        %v1816 = vld [vmem:[%s1815 + $0x1] sm:$0xff]
        %v1817 = vld [vmem:[%s1815 + $0x9] sm:$0xff]
        %v1818 = vld [vmem:[%s1815 + $0x19] sm:$0xff]
        %v1819 = vld [vmem:[%s1815 + $0x21] sm:$0xff]
        %v1820 = vld [vmem:[%s1815 + $0x31] sm:$0xff]
        %v1821 = vld [vmem:[%s1815 + $0x39] sm:$0xff]
        %v1822 = vld [vmem:[%s1815 + $0x49] sm:$0xff]
        %v1823 = vld [vmem:[%s1815 + $0x51] sm:$0xff]
        %v1824 = vld [vmem:[%s1815 + $0x61] sm:$0xff]
        %v1825 = vld [vmem:[%s1815 + $0x69] sm:$0xff]
        %v1826 = vld [vmem:[%s1815 + $0x79] sm:$0xff]
        %v1827 = vld [vmem:[%s1815 + $0x81] sm:$0xff]
        %v1828 = vld [vmem:[%s1815 + $0x91] sm:$0xff]
        %v1829 = vld [vmem:[%s1815 + $0x99] sm:$0xff]
        %v1830 = vld [vmem:[%s1815 + $0xa9] sm:$0xff]
        %v1831 = vld [vmem:[%s1815 + $0xb1] sm:$0xff]
        %v1832 = vld [vmem:[%s1815 + $0xc1] sm:$0xff]
        %v1833 = vld [vmem:[%s1815 + $0xc9] sm:$0xff]
        %v1834 = vld [vmem:[%s1815 + $0xd9] sm:$0xff]
        %v1835 = vld [vmem:[%s1815 + $0xe1] sm:$0xff]
        %v1836 = vld [vmem:[%s1815 + $0xf1] sm:$0xff]
        %v1837 = vld [vmem:[%s1815 + $0xf9] sm:$0xff]
        %v1838 = vld [vmem:[%s1815 + $0x109] sm:$0xff]
        %v1839 = vld [vmem:[%s1815 + $0x111] sm:$0xff]
        %v1840 = vld [vmem:[%s1815 + $0x121] sm:$0xff]
        %v1841 = vld [vmem:[%s1815 + $0x129] sm:$0xff]
        %v1842 = vld [vmem:[%s1815 + $0x139] sm:$0xff]
        %v1843 = vld [vmem:[%s1815 + $0x141] sm:$0xff]
        %v1844 = vld [vmem:[%s1815 + $0x151] sm:$0xff]
        %v1845 = vld [vmem:[%s1815 + $0x159] sm:$0xff]
        %v1846 = vld [vmem:[%s1815 + $0x169] sm:$0xff]
        %v1847 = vld [vmem:[%s1815 + $0x171] sm:$0xff]
        %v1848 = vld [vmem:[%s1815 + $0x1e1] sm:$0xff]
        %v1849 = vld [vmem:[%s1815 + $0x1e9] sm:$0xff]
        %v1850 = vld [vmem:[%s1815 + $0x1f9] sm:$0xff]
        %v1851 = vld [vmem:[%s1815 + $0x201] sm:$0xff]
        %v1852 = vld [vmem:[%s1815 + $0x211] sm:$0xff]
        %v1853 = vld [vmem:[%s1815 + $0x219] sm:$0xff]
        %v1854 = vld [vmem:[%s1815 + $0x229] sm:$0xff]
        %v1855 = vld [vmem:[%s1815 + $0x231] sm:$0xff]
        %v1856 = vld [vmem:[%s1815 + $0x241] sm:$0xff]
        %v1857 = vld [vmem:[%s1815 + $0x249] sm:$0xff]
        %v1858 = vld [vmem:[%s1815 + $0x259] sm:$0xff]
        %v1859 = vld [vmem:[%s1815 + $0x261] sm:$0xff]
        %v1860 = vld [vmem:[%s1815 + $0x271] sm:$0xff]
        %v1861 = vld [vmem:[%s1815 + $0x279] sm:$0xff]
        %v1862 = vld [vmem:[%s1815 + $0x289] sm:$0xff]
        %v1863 = vld [vmem:[%s1815 + $0x291] sm:$0xff]
        %v1864 = vld [vmem:[%s1815 + $0x2a1] sm:$0xff]
        %v1865 = vld [vmem:[%s1815 + $0x2a9] sm:$0xff]
        %v1866 = vld [vmem:[%s1815 + $0x2b9] sm:$0xff]
        %v1867 = vld [vmem:[%s1815 + $0x2c1] sm:$0xff]
        %v1868 = vld [vmem:[%s1815 + $0x2d1] sm:$0xff]
        %v1869 = vld [vmem:[%s1815 + $0x2d9] sm:$0xff]
        %v1870 = vld [vmem:[%s1815 + $0x2e9] sm:$0xff]
        %v1871 = vld [vmem:[%s1815 + $0x2f1] sm:$0xff]
        %v1872 = vld [vmem:[%s1815 + $0x301] sm:$0xff]
        %v1873 = vld [vmem:[%s1815 + $0x309] sm:$0xff]
        %v1874 = vld [vmem:[%s1815 + $0x319] sm:$0xff]
        %v1875 = vld [vmem:[%s1815 + $0x321] sm:$0xff]
        %v1876 = vld [vmem:[%s1815 + $0x331] sm:$0xff]
        %v1877 = vld [vmem:[%s1815 + $0x339] sm:$0xff]
        %v1878 = vld [vmem:[%s1815 + $0x349] sm:$0xff]
        %v1879 = vld [vmem:[%s1815 + $0x351] sm:$0xff]
        %s1880 = scalar_lea.vmem %s382, 384
        %v1881 = vld [vmem:[%s1880] sm:$0xff]
        %v1882 = vld [vmem:[%s1880 + $0x8] sm:$0xff]
        %v1883 = vld [vmem:[%s1880 + $0x10] sm:$0xff]
        %v1884 = vld [vmem:[%s1880 + $0x18] sm:$0xff]
        %v1885 = vld [vmem:[%s1880 + $0x20] sm:$0xff]
        %v1886 = vld [vmem:[%s1880 + $0x28] sm:$0xff]
        %v1887 = vld [vmem:[%s1880 + $0x30] sm:$0xff]
        %v1888 = vld [vmem:[%s1880 + $0x38] sm:$0xff]
        %v1889 = vld [vmem:[%s1880 + $0x40] sm:$0xff]
        %v1890 = vld [vmem:[%s1880 + $0x48] sm:$0xff]
        %v1891 = vld [vmem:[%s1880 + $0x50] sm:$0xff]
        %v1892 = vld [vmem:[%s1880 + $0x58] sm:$0xff]
        %v1893 = vld [vmem:[%s1880 + $0x60] sm:$0xff]
        %v1894 = vld [vmem:[%s1880 + $0x68] sm:$0xff]
        %v1895 = vld [vmem:[%s1880 + $0x70] sm:$0xff]
        %v1896 = vld [vmem:[%s1880 + $0x78] sm:$0xff]
        %1897 = vmatpush.msra.mxu0 %v1896
        %1898 = vmatpush.msra.mxu0 %v1895
        %1899 = vmatpush.msra.mxu0 %v1894
        %1900 = vmatpush.msra.mxu0 %v1893
        %1901 = vmatpush.msra.mxu0 %v1892
        %1902 = vmatpush.msra.mxu0 %v1891
        %1903 = vmatpush.msra.mxu0 %v1890
        %1904 = vmatpush.msra.mxu0 %v1889
        %1905 = vmatpush.msra.mxu0 %v1888
        %1906 = vmatpush.msra.mxu0 %v1887
        %1907 = vmatpush.msra.mxu0 %v1886
        %1908 = vmatpush.msra.mxu0 %v1885
        %1909 = vmatpush.msra.mxu0 %v1884
        %1910 = vmatpush.msra.mxu0 %v1883
        %1911 = vmatpush.msra.mxu0 %v1882
        %1912 = vmatpush.msra.mxu0 %v1881
        %1913 = vmatmul.f32.gmra.mxu0 %v1816
        %v1914 = vpop.f32.mrf.mxu0
        %v1915 = vadd.f32 0.0, %v1914
        %1916 = vmatmul.f32.gmra.mxu0 %v1817
        %v1917 = vpop.f32.mrf.mxu0
        %v1918 = vadd.f32 0.0, %v1917
        %1919 = vmatmul.f32.gmra.mxu0 %v1818
        %v1920 = vpop.f32.mrf.mxu0
        %v1921 = vadd.f32 0.0, %v1920
        %1922 = vmatmul.f32.gmra.mxu0 %v1819
        %v1923 = vpop.f32.mrf.mxu0
        %v1924 = vadd.f32 0.0, %v1923
        %1925 = vmatmul.f32.gmra.mxu0 %v1820
        %v1926 = vpop.f32.mrf.mxu0
        %v1927 = vadd.f32 0.0, %v1926
        %1928 = vmatmul.f32.gmra.mxu0 %v1821
        %v1929 = vpop.f32.mrf.mxu0
        %v1930 = vadd.f32 0.0, %v1929
        %1931 = vmatmul.f32.gmra.mxu0 %v1822
        %v1932 = vpop.f32.mrf.mxu0
        %v1933 = vadd.f32 0.0, %v1932
        %1934 = vmatmul.f32.gmra.mxu0 %v1823
        %v1935 = vpop.f32.mrf.mxu0
        %v1936 = vadd.f32 0.0, %v1935
        %1937 = vmatmul.f32.gmra.mxu0 %v1824
        %v1938 = vpop.f32.mrf.mxu0
        %v1939 = vadd.f32 0.0, %v1938
        %1940 = vmatmul.f32.gmra.mxu0 %v1825
        %v1941 = vpop.f32.mrf.mxu0
        %v1942 = vadd.f32 0.0, %v1941
        %1943 = vmatmul.f32.gmra.mxu0 %v1826
        %v1944 = vpop.f32.mrf.mxu0
        %v1945 = vadd.f32 0.0, %v1944
        %1946 = vmatmul.f32.gmra.mxu0 %v1827
        %v1947 = vpop.f32.mrf.mxu0
        %v1948 = vadd.f32 0.0, %v1947
        %1949 = vmatmul.f32.gmra.mxu0 %v1828
        %v1950 = vpop.f32.mrf.mxu0
        %v1951 = vadd.f32 0.0, %v1950
        %1952 = vmatmul.f32.gmra.mxu0 %v1829
        %v1953 = vpop.f32.mrf.mxu0
        %v1954 = vadd.f32 0.0, %v1953
        %1955 = vmatmul.f32.gmra.mxu0 %v1830
        %v1956 = vpop.f32.mrf.mxu0
        %v1957 = vadd.f32 0.0, %v1956
        %1958 = vmatmul.f32.gmra.mxu0 %v1831
        %v1959 = vpop.f32.mrf.mxu0
        %v1960 = vadd.f32 0.0, %v1959
        %1961 = vmatmul.f32.gmra.mxu0 %v1832
        %v1962 = vpop.f32.mrf.mxu0
        %v1963 = vadd.f32 0.0, %v1962
        %1964 = vmatmul.f32.gmra.mxu0 %v1833
        %v1965 = vpop.f32.mrf.mxu0
        %v1966 = vadd.f32 0.0, %v1965
        %1967 = vmatmul.f32.gmra.mxu0 %v1834
        %v1968 = vpop.f32.mrf.mxu0
        %v1969 = vadd.f32 0.0, %v1968
        %1970 = vmatmul.f32.gmra.mxu0 %v1835
        %v1971 = vpop.f32.mrf.mxu0
        %v1972 = vadd.f32 0.0, %v1971
        %1973 = vmatmul.f32.gmra.mxu0 %v1836
        %v1974 = vpop.f32.mrf.mxu0
        %v1975 = vadd.f32 0.0, %v1974
        %1976 = vmatmul.f32.gmra.mxu0 %v1837
        %v1977 = vpop.f32.mrf.mxu0
        %v1978 = vadd.f32 0.0, %v1977
        %1979 = vmatmul.f32.gmra.mxu0 %v1838
        %v1980 = vpop.f32.mrf.mxu0
        %v1981 = vadd.f32 0.0, %v1980
        %1982 = vmatmul.f32.gmra.mxu0 %v1839
        %v1983 = vpop.f32.mrf.mxu0
        %v1984 = vadd.f32 0.0, %v1983
        %1985 = vmatmul.f32.gmra.mxu0 %v1840
        %v1986 = vpop.f32.mrf.mxu0
        %v1987 = vadd.f32 0.0, %v1986
        %1988 = vmatmul.f32.gmra.mxu0 %v1841
        %v1989 = vpop.f32.mrf.mxu0
        %v1990 = vadd.f32 0.0, %v1989
        %1991 = vmatmul.f32.gmra.mxu0 %v1842
        %v1992 = vpop.f32.mrf.mxu0
        %v1993 = vadd.f32 0.0, %v1992
        %1994 = vmatmul.f32.gmra.mxu0 %v1843
        %v1995 = vpop.f32.mrf.mxu0
        %v1996 = vadd.f32 0.0, %v1995
        %1997 = vmatmul.f32.gmra.mxu0 %v1844
        %v1998 = vpop.f32.mrf.mxu0
        %v1999 = vadd.f32 0.0, %v1998
        %2000 = vmatmul.f32.gmra.mxu0 %v1845
        %v2001 = vpop.f32.mrf.mxu0
        %v2002 = vadd.f32 0.0, %v2001
        %2003 = vmatmul.f32.gmra.mxu0 %v1846
        %v2004 = vpop.f32.mrf.mxu0
        %v2005 = vadd.f32 0.0, %v2004
        %2006 = vmatmul.f32.gmra.mxu0 %v1847
        %v2007 = vpop.f32.mrf.mxu0
        %v2008 = vadd.f32 0.0, %v2007
        %2009 = vmatmul.f32.gmra.mxu0 %v1848
        %v2010 = vpop.f32.mrf.mxu0
        %v2011 = vadd.f32 0.0, %v2010
        %2012 = vmatmul.f32.gmra.mxu0 %v1849
        %v2013 = vpop.f32.mrf.mxu0
        %v2014 = vadd.f32 0.0, %v2013
        %2015 = vmatmul.f32.gmra.mxu0 %v1850
        %v2016 = vpop.f32.mrf.mxu0
        %v2017 = vadd.f32 0.0, %v2016
        %2018 = vmatmul.f32.gmra.mxu0 %v1851
        %v2019 = vpop.f32.mrf.mxu0
        %v2020 = vadd.f32 0.0, %v2019
        %2021 = vmatmul.f32.gmra.mxu0 %v1852
        %v2022 = vpop.f32.mrf.mxu0
        %v2023 = vadd.f32 0.0, %v2022
        %2024 = vmatmul.f32.gmra.mxu0 %v1853
        %v2025 = vpop.f32.mrf.mxu0
        %v2026 = vadd.f32 0.0, %v2025
        %2027 = vmatmul.f32.gmra.mxu0 %v1854
        %v2028 = vpop.f32.mrf.mxu0
        %v2029 = vadd.f32 0.0, %v2028
        %2030 = vmatmul.f32.gmra.mxu0 %v1855
        %v2031 = vpop.f32.mrf.mxu0
        %v2032 = vadd.f32 0.0, %v2031
        %2033 = vmatmul.f32.gmra.mxu0 %v1856
        %v2034 = vpop.f32.mrf.mxu0
        %v2035 = vadd.f32 0.0, %v2034
        %2036 = vmatmul.f32.gmra.mxu0 %v1857
        %v2037 = vpop.f32.mrf.mxu0
        %v2038 = vadd.f32 0.0, %v2037
        %2039 = vmatmul.f32.gmra.mxu0 %v1858
        %v2040 = vpop.f32.mrf.mxu0
        %v2041 = vadd.f32 0.0, %v2040
        %2042 = vmatmul.f32.gmra.mxu0 %v1859
        %v2043 = vpop.f32.mrf.mxu0
        %v2044 = vadd.f32 0.0, %v2043
        %2045 = vmatmul.f32.gmra.mxu0 %v1860
        %v2046 = vpop.f32.mrf.mxu0
        %v2047 = vadd.f32 0.0, %v2046
        %2048 = vmatmul.f32.gmra.mxu0 %v1861
        %v2049 = vpop.f32.mrf.mxu0
        %v2050 = vadd.f32 0.0, %v2049
        %2051 = vmatmul.f32.gmra.mxu0 %v1862
        %v2052 = vpop.f32.mrf.mxu0
        %v2053 = vadd.f32 0.0, %v2052
        %2054 = vmatmul.f32.gmra.mxu0 %v1863
        %v2055 = vpop.f32.mrf.mxu0
        %v2056 = vadd.f32 0.0, %v2055
        %2057 = vmatmul.f32.gmra.mxu0 %v1864
        %v2058 = vpop.f32.mrf.mxu0
        %v2059 = vadd.f32 0.0, %v2058
        %2060 = vmatmul.f32.gmra.mxu0 %v1865
        %v2061 = vpop.f32.mrf.mxu0
        %v2062 = vadd.f32 0.0, %v2061
        %2063 = vmatmul.f32.gmra.mxu0 %v1866
        %v2064 = vpop.f32.mrf.mxu0
        %v2065 = vadd.f32 0.0, %v2064
        %2066 = vmatmul.f32.gmra.mxu0 %v1867
        %v2067 = vpop.f32.mrf.mxu0
        %v2068 = vadd.f32 0.0, %v2067
        %2069 = vmatmul.f32.gmra.mxu0 %v1868
        %v2070 = vpop.f32.mrf.mxu0
        %v2071 = vadd.f32 0.0, %v2070
        %2072 = vmatmul.f32.gmra.mxu0 %v1869
        %v2073 = vpop.f32.mrf.mxu0
        %v2074 = vadd.f32 0.0, %v2073
        %2075 = vmatmul.f32.gmra.mxu0 %v1870
        %v2076 = vpop.f32.mrf.mxu0
        %v2077 = vadd.f32 0.0, %v2076
        %2078 = vmatmul.f32.gmra.mxu0 %v1871
        %v2079 = vpop.f32.mrf.mxu0
        %v2080 = vadd.f32 0.0, %v2079
        %2081 = vmatmul.f32.gmra.mxu0 %v1872
        %v2082 = vpop.f32.mrf.mxu0
        %v2083 = vadd.f32 0.0, %v2082
        %2084 = vmatmul.f32.gmra.mxu0 %v1873
        %v2085 = vpop.f32.mrf.mxu0
        %v2086 = vadd.f32 0.0, %v2085
        %2087 = vmatmul.f32.gmra.mxu0 %v1874
        %v2088 = vpop.f32.mrf.mxu0
        %v2089 = vadd.f32 0.0, %v2088
        %2090 = vmatmul.f32.gmra.mxu0 %v1875
        %v2091 = vpop.f32.mrf.mxu0
        %v2092 = vadd.f32 0.0, %v2091
        %2093 = vmatmul.f32.gmra.mxu0 %v1876
        %v2094 = vpop.f32.mrf.mxu0
        %v2095 = vadd.f32 0.0, %v2094
        %2096 = vmatmul.f32.gmra.mxu0 %v1877
        %v2097 = vpop.f32.mrf.mxu0
        %v2098 = vadd.f32 0.0, %v2097
        %2099 = vmatmul.f32.gmra.mxu0 %v1878
        %v2100 = vpop.f32.mrf.mxu0
        %v2101 = vadd.f32 0.0, %v2100
        %2102 = vmatmul.f32.gmra.mxu0 %v1879
        %v2103 = vpop.f32.mrf.mxu0
        %v2104 = vadd.f32 0.0, %v2103
        %2105 = vdwg.mxu0
        %v2106 = vadd.f32 %v1751, %v1915
        %v2107 = vadd.f32 %v1752, %v1918
        %v2108 = vadd.f32 %v1753, %v1921
        %v2109 = vadd.f32 %v1754, %v1924
        %v2110 = vadd.f32 %v1755, %v1927
        %v2111 = vadd.f32 %v1756, %v1930
        %v2112 = vadd.f32 %v1757, %v1933
        %v2113 = vadd.f32 %v1758, %v1936
        %v2114 = vadd.f32 %v1759, %v1939
        %v2115 = vadd.f32 %v1760, %v1942
        %v2116 = vadd.f32 %v1761, %v1945
        %v2117 = vadd.f32 %v1762, %v1948
        %v2118 = vadd.f32 %v1763, %v1951
        %v2119 = vadd.f32 %v1764, %v1954
        %v2120 = vadd.f32 %v1765, %v1957
        %v2121 = vadd.f32 %v1766, %v1960
        %v2122 = vadd.f32 %v1767, %v1963
        %v2123 = vadd.f32 %v1768, %v1966
        %v2124 = vadd.f32 %v1769, %v1969
        %v2125 = vadd.f32 %v1770, %v1972
        %v2126 = vadd.f32 %v1771, %v1975
        %v2127 = vadd.f32 %v1772, %v1978
        %v2128 = vadd.f32 %v1773, %v1981
        %v2129 = vadd.f32 %v1774, %v1984
        %v2130 = vadd.f32 %v1775, %v1987
        %v2131 = vadd.f32 %v1776, %v1990
        %v2132 = vadd.f32 %v1777, %v1993
        %v2133 = vadd.f32 %v1778, %v1996
        %v2134 = vadd.f32 %v1779, %v1999
        %v2135 = vadd.f32 %v1780, %v2002
        %v2136 = vadd.f32 %v1781, %v2005
        %v2137 = vadd.f32 %v1782, %v2008
        %v2138 = vadd.f32 %v1783, %v2011
        %v2139 = vadd.f32 %v1784, %v2014
        %v2140 = vadd.f32 %v1785, %v2017
        %v2141 = vadd.f32 %v1786, %v2020
        %v2142 = vadd.f32 %v1787, %v2023
        %v2143 = vadd.f32 %v1788, %v2026
        %v2144 = vadd.f32 %v1789, %v2029
        %v2145 = vadd.f32 %v1790, %v2032
        %v2146 = vadd.f32 %v1791, %v2035
        %v2147 = vadd.f32 %v1792, %v2038
        %v2148 = vadd.f32 %v1793, %v2041
        %v2149 = vadd.f32 %v1794, %v2044
        %v2150 = vadd.f32 %v1795, %v2047
        %v2151 = vadd.f32 %v1796, %v2050
        %v2152 = vadd.f32 %v1797, %v2053
        %v2153 = vadd.f32 %v1798, %v2056
        %v2154 = vadd.f32 %v1799, %v2059
        %v2155 = vadd.f32 %v1800, %v2062
        %v2156 = vadd.f32 %v1801, %v2065
        %v2157 = vadd.f32 %v1802, %v2068
        %v2158 = vadd.f32 %v1803, %v2071
        %v2159 = vadd.f32 %v1804, %v2074
        %v2160 = vadd.f32 %v1805, %v2077
        %v2161 = vadd.f32 %v1806, %v2080
        %v2162 = vadd.f32 %v1807, %v2083
        %v2163 = vadd.f32 %v1808, %v2086
        %v2164 = vadd.f32 %v1809, %v2089
        %v2165 = vadd.f32 %v1810, %v2092
        %v2166 = vadd.f32 %v1811, %v2095
        %v2167 = vadd.f32 %v1812, %v2098
        %v2168 = vadd.f32 %v1813, %v2101
        %v2169 = vadd.f32 %v1814, %v2104
        %v2170 = vld [vmem:[%s1815 + $0x2] sm:$0xff]
        %v2171 = vld [vmem:[%s1815 + $0xa] sm:$0xff]
        %v2172 = vld [vmem:[%s1815 + $0x1a] sm:$0xff]
        %v2173 = vld [vmem:[%s1815 + $0x22] sm:$0xff]
        %v2174 = vld [vmem:[%s1815 + $0x32] sm:$0xff]
        %v2175 = vld [vmem:[%s1815 + $0x3a] sm:$0xff]
        %v2176 = vld [vmem:[%s1815 + $0x4a] sm:$0xff]
        %v2177 = vld [vmem:[%s1815 + $0x52] sm:$0xff]
        %v2178 = vld [vmem:[%s1815 + $0x62] sm:$0xff]
        %v2179 = vld [vmem:[%s1815 + $0x6a] sm:$0xff]
        %v2180 = vld [vmem:[%s1815 + $0x7a] sm:$0xff]
        %v2181 = vld [vmem:[%s1815 + $0x82] sm:$0xff]
        %v2182 = vld [vmem:[%s1815 + $0x92] sm:$0xff]
        %v2183 = vld [vmem:[%s1815 + $0x9a] sm:$0xff]
        %v2184 = vld [vmem:[%s1815 + $0xaa] sm:$0xff]
        %v2185 = vld [vmem:[%s1815 + $0xb2] sm:$0xff]
        %v2186 = vld [vmem:[%s1815 + $0xc2] sm:$0xff]
        %v2187 = vld [vmem:[%s1815 + $0xca] sm:$0xff]
        %v2188 = vld [vmem:[%s1815 + $0xda] sm:$0xff]
        %v2189 = vld [vmem:[%s1815 + $0xe2] sm:$0xff]
        %v2190 = vld [vmem:[%s1815 + $0xf2] sm:$0xff]
        %v2191 = vld [vmem:[%s1815 + $0xfa] sm:$0xff]
        %v2192 = vld [vmem:[%s1815 + $0x10a] sm:$0xff]
        %v2193 = vld [vmem:[%s1815 + $0x112] sm:$0xff]
        %v2194 = vld [vmem:[%s1815 + $0x122] sm:$0xff]
        %v2195 = vld [vmem:[%s1815 + $0x12a] sm:$0xff]
        %v2196 = vld [vmem:[%s1815 + $0x13a] sm:$0xff]
        %v2197 = vld [vmem:[%s1815 + $0x142] sm:$0xff]
        %v2198 = vld [vmem:[%s1815 + $0x152] sm:$0xff]
        %v2199 = vld [vmem:[%s1815 + $0x15a] sm:$0xff]
        %v2200 = vld [vmem:[%s1815 + $0x16a] sm:$0xff]
        %v2201 = vld [vmem:[%s1815 + $0x172] sm:$0xff]
        %v2202 = vld [vmem:[%s1815 + $0x1e2] sm:$0xff]
        %v2203 = vld [vmem:[%s1815 + $0x1ea] sm:$0xff]
        %v2204 = vld [vmem:[%s1815 + $0x1fa] sm:$0xff]
        %v2205 = vld [vmem:[%s1815 + $0x202] sm:$0xff]
        %v2206 = vld [vmem:[%s1815 + $0x212] sm:$0xff]
        %v2207 = vld [vmem:[%s1815 + $0x21a] sm:$0xff]
        %v2208 = vld [vmem:[%s1815 + $0x22a] sm:$0xff]
        %v2209 = vld [vmem:[%s1815 + $0x232] sm:$0xff]
        %v2210 = vld [vmem:[%s1815 + $0x242] sm:$0xff]
        %v2211 = vld [vmem:[%s1815 + $0x24a] sm:$0xff]
        %v2212 = vld [vmem:[%s1815 + $0x25a] sm:$0xff]
        %v2213 = vld [vmem:[%s1815 + $0x262] sm:$0xff]
        %v2214 = vld [vmem:[%s1815 + $0x272] sm:$0xff]
        %v2215 = vld [vmem:[%s1815 + $0x27a] sm:$0xff]
        %v2216 = vld [vmem:[%s1815 + $0x28a] sm:$0xff]
        %v2217 = vld [vmem:[%s1815 + $0x292] sm:$0xff]
        %v2218 = vld [vmem:[%s1815 + $0x2a2] sm:$0xff]
        %v2219 = vld [vmem:[%s1815 + $0x2aa] sm:$0xff]
        %v2220 = vld [vmem:[%s1815 + $0x2ba] sm:$0xff]
        %v2221 = vld [vmem:[%s1815 + $0x2c2] sm:$0xff]
        %v2222 = vld [vmem:[%s1815 + $0x2d2] sm:$0xff]
        %v2223 = vld [vmem:[%s1815 + $0x2da] sm:$0xff]
        %v2224 = vld [vmem:[%s1815 + $0x2ea] sm:$0xff]
        %v2225 = vld [vmem:[%s1815 + $0x2f2] sm:$0xff]
        %v2226 = vld [vmem:[%s1815 + $0x302] sm:$0xff]
        %v2227 = vld [vmem:[%s1815 + $0x30a] sm:$0xff]
        %v2228 = vld [vmem:[%s1815 + $0x31a] sm:$0xff]
        %v2229 = vld [vmem:[%s1815 + $0x322] sm:$0xff]
        %v2230 = vld [vmem:[%s1815 + $0x332] sm:$0xff]
        %v2231 = vld [vmem:[%s1815 + $0x33a] sm:$0xff]
        %v2232 = vld [vmem:[%s1815 + $0x34a] sm:$0xff]
        %v2233 = vld [vmem:[%s1815 + $0x352] sm:$0xff]
        %s2234 = scalar_lea.vmem %s382, 512
        %v2235 = vld [vmem:[%s2234] sm:$0xff]
        %v2236 = vld [vmem:[%s2234 + $0x8] sm:$0xff]
        %v2237 = vld [vmem:[%s2234 + $0x10] sm:$0xff]
        %v2238 = vld [vmem:[%s2234 + $0x18] sm:$0xff]
        %v2239 = vld [vmem:[%s2234 + $0x20] sm:$0xff]
        %v2240 = vld [vmem:[%s2234 + $0x28] sm:$0xff]
        %v2241 = vld [vmem:[%s2234 + $0x30] sm:$0xff]
        %v2242 = vld [vmem:[%s2234 + $0x38] sm:$0xff]
        %v2243 = vld [vmem:[%s2234 + $0x40] sm:$0xff]
        %v2244 = vld [vmem:[%s2234 + $0x48] sm:$0xff]
        %v2245 = vld [vmem:[%s2234 + $0x50] sm:$0xff]
        %v2246 = vld [vmem:[%s2234 + $0x58] sm:$0xff]
        %v2247 = vld [vmem:[%s2234 + $0x60] sm:$0xff]
        %v2248 = vld [vmem:[%s2234 + $0x68] sm:$0xff]
        %v2249 = vld [vmem:[%s2234 + $0x70] sm:$0xff]
        %v2250 = vld [vmem:[%s2234 + $0x78] sm:$0xff]
        %2251 = vmatpush.msra.mxu0 %v2250
        %2252 = vmatpush.msra.mxu0 %v2249
        %2253 = vmatpush.msra.mxu0 %v2248
        %2254 = vmatpush.msra.mxu0 %v2247
        %2255 = vmatpush.msra.mxu0 %v2246
        %2256 = vmatpush.msra.mxu0 %v2245
        %2257 = vmatpush.msra.mxu0 %v2244
        %2258 = vmatpush.msra.mxu0 %v2243
        %2259 = vmatpush.msra.mxu0 %v2242
        %2260 = vmatpush.msra.mxu0 %v2241
        %2261 = vmatpush.msra.mxu0 %v2240
        %2262 = vmatpush.msra.mxu0 %v2239
        %2263 = vmatpush.msra.mxu0 %v2238
        %2264 = vmatpush.msra.mxu0 %v2237
        %2265 = vmatpush.msra.mxu0 %v2236
        %2266 = vmatpush.msra.mxu0 %v2235
        %2267 = vmatmul.f32.gmra.mxu0 %v2170
        %v2268 = vpop.f32.mrf.mxu0
        %v2269 = vadd.f32 0.0, %v2268
        %2270 = vmatmul.f32.gmra.mxu0 %v2171
        %v2271 = vpop.f32.mrf.mxu0
        %v2272 = vadd.f32 0.0, %v2271
        %2273 = vmatmul.f32.gmra.mxu0 %v2172
        %v2274 = vpop.f32.mrf.mxu0
        %v2275 = vadd.f32 0.0, %v2274
        %2276 = vmatmul.f32.gmra.mxu0 %v2173
        %v2277 = vpop.f32.mrf.mxu0
        %v2278 = vadd.f32 0.0, %v2277
        %2279 = vmatmul.f32.gmra.mxu0 %v2174
        %v2280 = vpop.f32.mrf.mxu0
        %v2281 = vadd.f32 0.0, %v2280
        %2282 = vmatmul.f32.gmra.mxu0 %v2175
        %v2283 = vpop.f32.mrf.mxu0
        %v2284 = vadd.f32 0.0, %v2283
        %2285 = vmatmul.f32.gmra.mxu0 %v2176
        %v2286 = vpop.f32.mrf.mxu0
        %v2287 = vadd.f32 0.0, %v2286
        %2288 = vmatmul.f32.gmra.mxu0 %v2177
        %v2289 = vpop.f32.mrf.mxu0
        %v2290 = vadd.f32 0.0, %v2289
        %2291 = vmatmul.f32.gmra.mxu0 %v2178
        %v2292 = vpop.f32.mrf.mxu0
        %v2293 = vadd.f32 0.0, %v2292
        %2294 = vmatmul.f32.gmra.mxu0 %v2179
        %v2295 = vpop.f32.mrf.mxu0
        %v2296 = vadd.f32 0.0, %v2295
        %2297 = vmatmul.f32.gmra.mxu0 %v2180
        %v2298 = vpop.f32.mrf.mxu0
        %v2299 = vadd.f32 0.0, %v2298
        %2300 = vmatmul.f32.gmra.mxu0 %v2181
        %v2301 = vpop.f32.mrf.mxu0
        %v2302 = vadd.f32 0.0, %v2301
        %2303 = vmatmul.f32.gmra.mxu0 %v2182
        %v2304 = vpop.f32.mrf.mxu0
        %v2305 = vadd.f32 0.0, %v2304
        %2306 = vmatmul.f32.gmra.mxu0 %v2183
        %v2307 = vpop.f32.mrf.mxu0
        %v2308 = vadd.f32 0.0, %v2307
        %2309 = vmatmul.f32.gmra.mxu0 %v2184
        %v2310 = vpop.f32.mrf.mxu0
        %v2311 = vadd.f32 0.0, %v2310
        %2312 = vmatmul.f32.gmra.mxu0 %v2185
        %v2313 = vpop.f32.mrf.mxu0
        %v2314 = vadd.f32 0.0, %v2313
        %2315 = vmatmul.f32.gmra.mxu0 %v2186
        %v2316 = vpop.f32.mrf.mxu0
        %v2317 = vadd.f32 0.0, %v2316
        %2318 = vmatmul.f32.gmra.mxu0 %v2187
        %v2319 = vpop.f32.mrf.mxu0
        %v2320 = vadd.f32 0.0, %v2319
        %2321 = vmatmul.f32.gmra.mxu0 %v2188
        %v2322 = vpop.f32.mrf.mxu0
        %v2323 = vadd.f32 0.0, %v2322
        %2324 = vmatmul.f32.gmra.mxu0 %v2189
        %v2325 = vpop.f32.mrf.mxu0
        %v2326 = vadd.f32 0.0, %v2325
        %2327 = vmatmul.f32.gmra.mxu0 %v2190
        %v2328 = vpop.f32.mrf.mxu0
        %v2329 = vadd.f32 0.0, %v2328
        %2330 = vmatmul.f32.gmra.mxu0 %v2191
        %v2331 = vpop.f32.mrf.mxu0
        %v2332 = vadd.f32 0.0, %v2331
        %2333 = vmatmul.f32.gmra.mxu0 %v2192
        %v2334 = vpop.f32.mrf.mxu0
        %v2335 = vadd.f32 0.0, %v2334
        %2336 = vmatmul.f32.gmra.mxu0 %v2193
        %v2337 = vpop.f32.mrf.mxu0
        %v2338 = vadd.f32 0.0, %v2337
        %2339 = vmatmul.f32.gmra.mxu0 %v2194
        %v2340 = vpop.f32.mrf.mxu0
        %v2341 = vadd.f32 0.0, %v2340
        %2342 = vmatmul.f32.gmra.mxu0 %v2195
        %v2343 = vpop.f32.mrf.mxu0
        %v2344 = vadd.f32 0.0, %v2343
        %2345 = vmatmul.f32.gmra.mxu0 %v2196
        %v2346 = vpop.f32.mrf.mxu0
        %v2347 = vadd.f32 0.0, %v2346
        %2348 = vmatmul.f32.gmra.mxu0 %v2197
        %v2349 = vpop.f32.mrf.mxu0
        %v2350 = vadd.f32 0.0, %v2349
        %2351 = vmatmul.f32.gmra.mxu0 %v2198
        %v2352 = vpop.f32.mrf.mxu0
        %v2353 = vadd.f32 0.0, %v2352
        %2354 = vmatmul.f32.gmra.mxu0 %v2199
        %v2355 = vpop.f32.mrf.mxu0
        %v2356 = vadd.f32 0.0, %v2355
        %2357 = vmatmul.f32.gmra.mxu0 %v2200
        %v2358 = vpop.f32.mrf.mxu0
        %v2359 = vadd.f32 0.0, %v2358
        %2360 = vmatmul.f32.gmra.mxu0 %v2201
        %v2361 = vpop.f32.mrf.mxu0
        %v2362 = vadd.f32 0.0, %v2361
        %2363 = vmatmul.f32.gmra.mxu0 %v2202
        %v2364 = vpop.f32.mrf.mxu0
        %v2365 = vadd.f32 0.0, %v2364
        %2366 = vmatmul.f32.gmra.mxu0 %v2203
        %v2367 = vpop.f32.mrf.mxu0
        %v2368 = vadd.f32 0.0, %v2367
        %2369 = vmatmul.f32.gmra.mxu0 %v2204
        %v2370 = vpop.f32.mrf.mxu0
        %v2371 = vadd.f32 0.0, %v2370
        %2372 = vmatmul.f32.gmra.mxu0 %v2205
        %v2373 = vpop.f32.mrf.mxu0
        %v2374 = vadd.f32 0.0, %v2373
        %2375 = vmatmul.f32.gmra.mxu0 %v2206
        %v2376 = vpop.f32.mrf.mxu0
        %v2377 = vadd.f32 0.0, %v2376
        %2378 = vmatmul.f32.gmra.mxu0 %v2207
        %v2379 = vpop.f32.mrf.mxu0
        %v2380 = vadd.f32 0.0, %v2379
        %2381 = vmatmul.f32.gmra.mxu0 %v2208
        %v2382 = vpop.f32.mrf.mxu0
        %v2383 = vadd.f32 0.0, %v2382
        %2384 = vmatmul.f32.gmra.mxu0 %v2209
        %v2385 = vpop.f32.mrf.mxu0
        %v2386 = vadd.f32 0.0, %v2385
        %2387 = vmatmul.f32.gmra.mxu0 %v2210
        %v2388 = vpop.f32.mrf.mxu0
        %v2389 = vadd.f32 0.0, %v2388
        %2390 = vmatmul.f32.gmra.mxu0 %v2211
        %v2391 = vpop.f32.mrf.mxu0
        %v2392 = vadd.f32 0.0, %v2391
        %2393 = vmatmul.f32.gmra.mxu0 %v2212
        %v2394 = vpop.f32.mrf.mxu0
        %v2395 = vadd.f32 0.0, %v2394
        %2396 = vmatmul.f32.gmra.mxu0 %v2213
        %v2397 = vpop.f32.mrf.mxu0
        %v2398 = vadd.f32 0.0, %v2397
        %2399 = vmatmul.f32.gmra.mxu0 %v2214
        %v2400 = vpop.f32.mrf.mxu0
        %v2401 = vadd.f32 0.0, %v2400
        %2402 = vmatmul.f32.gmra.mxu0 %v2215
        %v2403 = vpop.f32.mrf.mxu0
        %v2404 = vadd.f32 0.0, %v2403
        %2405 = vmatmul.f32.gmra.mxu0 %v2216
        %v2406 = vpop.f32.mrf.mxu0
        %v2407 = vadd.f32 0.0, %v2406
        %2408 = vmatmul.f32.gmra.mxu0 %v2217
        %v2409 = vpop.f32.mrf.mxu0
        %v2410 = vadd.f32 0.0, %v2409
        %2411 = vmatmul.f32.gmra.mxu0 %v2218
        %v2412 = vpop.f32.mrf.mxu0
        %v2413 = vadd.f32 0.0, %v2412
        %2414 = vmatmul.f32.gmra.mxu0 %v2219
        %v2415 = vpop.f32.mrf.mxu0
        %v2416 = vadd.f32 0.0, %v2415
        %2417 = vmatmul.f32.gmra.mxu0 %v2220
        %v2418 = vpop.f32.mrf.mxu0
        %v2419 = vadd.f32 0.0, %v2418
        %2420 = vmatmul.f32.gmra.mxu0 %v2221
        %v2421 = vpop.f32.mrf.mxu0
        %v2422 = vadd.f32 0.0, %v2421
        %2423 = vmatmul.f32.gmra.mxu0 %v2222
        %v2424 = vpop.f32.mrf.mxu0
        %v2425 = vadd.f32 0.0, %v2424
        %2426 = vmatmul.f32.gmra.mxu0 %v2223
        %v2427 = vpop.f32.mrf.mxu0
        %v2428 = vadd.f32 0.0, %v2427
        %2429 = vmatmul.f32.gmra.mxu0 %v2224
        %v2430 = vpop.f32.mrf.mxu0
        %v2431 = vadd.f32 0.0, %v2430
        %2432 = vmatmul.f32.gmra.mxu0 %v2225
        %v2433 = vpop.f32.mrf.mxu0
        %v2434 = vadd.f32 0.0, %v2433
        %2435 = vmatmul.f32.gmra.mxu0 %v2226
        %v2436 = vpop.f32.mrf.mxu0
        %v2437 = vadd.f32 0.0, %v2436
        %2438 = vmatmul.f32.gmra.mxu0 %v2227
        %v2439 = vpop.f32.mrf.mxu0
        %v2440 = vadd.f32 0.0, %v2439
        %2441 = vmatmul.f32.gmra.mxu0 %v2228
        %v2442 = vpop.f32.mrf.mxu0
        %v2443 = vadd.f32 0.0, %v2442
        %2444 = vmatmul.f32.gmra.mxu0 %v2229
        %v2445 = vpop.f32.mrf.mxu0
        %v2446 = vadd.f32 0.0, %v2445
        %2447 = vmatmul.f32.gmra.mxu0 %v2230
        %v2448 = vpop.f32.mrf.mxu0
        %v2449 = vadd.f32 0.0, %v2448
        %2450 = vmatmul.f32.gmra.mxu0 %v2231
        %v2451 = vpop.f32.mrf.mxu0
        %v2452 = vadd.f32 0.0, %v2451
        %2453 = vmatmul.f32.gmra.mxu0 %v2232
        %v2454 = vpop.f32.mrf.mxu0
        %v2455 = vadd.f32 0.0, %v2454
        %2456 = vmatmul.f32.gmra.mxu0 %v2233
        %v2457 = vpop.f32.mrf.mxu0
        %v2458 = vadd.f32 0.0, %v2457
        %2459 = vdwg.mxu0
        %v2460 = vadd.f32 %v2106, %v2269
        %v2461 = vadd.f32 %v2107, %v2272
        %v2462 = vadd.f32 %v2108, %v2275
        %v2463 = vadd.f32 %v2109, %v2278
        %v2464 = vadd.f32 %v2110, %v2281
        %v2465 = vadd.f32 %v2111, %v2284
        %v2466 = vadd.f32 %v2112, %v2287
        %v2467 = vadd.f32 %v2113, %v2290
        %v2468 = vadd.f32 %v2114, %v2293
        %v2469 = vadd.f32 %v2115, %v2296
        %v2470 = vadd.f32 %v2116, %v2299
        %v2471 = vadd.f32 %v2117, %v2302
        %v2472 = vadd.f32 %v2118, %v2305
        %v2473 = vadd.f32 %v2119, %v2308
        %v2474 = vadd.f32 %v2120, %v2311
        %v2475 = vadd.f32 %v2121, %v2314
        %v2476 = vadd.f32 %v2122, %v2317
        %v2477 = vadd.f32 %v2123, %v2320
        %v2478 = vadd.f32 %v2124, %v2323
        %v2479 = vadd.f32 %v2125, %v2326
        %v2480 = vadd.f32 %v2126, %v2329
        %v2481 = vadd.f32 %v2127, %v2332
        %v2482 = vadd.f32 %v2128, %v2335
        %v2483 = vadd.f32 %v2129, %v2338
        %v2484 = vadd.f32 %v2130, %v2341
        %v2485 = vadd.f32 %v2131, %v2344
        %v2486 = vadd.f32 %v2132, %v2347
        %v2487 = vadd.f32 %v2133, %v2350
        %v2488 = vadd.f32 %v2134, %v2353
        %v2489 = vadd.f32 %v2135, %v2356
        %v2490 = vadd.f32 %v2136, %v2359
        %v2491 = vadd.f32 %v2137, %v2362
        %v2492 = vadd.f32 %v2138, %v2365
        %v2493 = vadd.f32 %v2139, %v2368
        %v2494 = vadd.f32 %v2140, %v2371
        %v2495 = vadd.f32 %v2141, %v2374
        %v2496 = vadd.f32 %v2142, %v2377
        %v2497 = vadd.f32 %v2143, %v2380
        %v2498 = vadd.f32 %v2144, %v2383
        %v2499 = vadd.f32 %v2145, %v2386
        %v2500 = vadd.f32 %v2146, %v2389
        %v2501 = vadd.f32 %v2147, %v2392
        %v2502 = vadd.f32 %v2148, %v2395
        %v2503 = vadd.f32 %v2149, %v2398
        %v2504 = vadd.f32 %v2150, %v2401
        %v2505 = vadd.f32 %v2151, %v2404
        %v2506 = vadd.f32 %v2152, %v2407
        %v2507 = vadd.f32 %v2153, %v2410
        %v2508 = vadd.f32 %v2154, %v2413
        %v2509 = vadd.f32 %v2155, %v2416
        %v2510 = vadd.f32 %v2156, %v2419
        %v2511 = vadd.f32 %v2157, %v2422
        %v2512 = vadd.f32 %v2158, %v2425
        %v2513 = vadd.f32 %v2159, %v2428
        %v2514 = vadd.f32 %v2160, %v2431
        %v2515 = vadd.f32 %v2161, %v2434
        %v2516 = vadd.f32 %v2162, %v2437
        %v2517 = vadd.f32 %v2163, %v2440
        %v2518 = vadd.f32 %v2164, %v2443
        %v2519 = vadd.f32 %v2165, %v2446
        %v2520 = vadd.f32 %v2166, %v2449
        %v2521 = vadd.f32 %v2167, %v2452
        %v2522 = vadd.f32 %v2168, %v2455
        %v2523 = vadd.f32 %v2169, %v2458
        %v2524 = vld [vmem:[%s1815 + $0x3] sm:$0xff]
        %v2525 = vld [vmem:[%s1815 + $0xb] sm:$0xff]
        %v2526 = vld [vmem:[%s1815 + $0x1b] sm:$0xff]
        %v2527 = vld [vmem:[%s1815 + $0x23] sm:$0xff]
        %v2528 = vld [vmem:[%s1815 + $0x33] sm:$0xff]
        %v2529 = vld [vmem:[%s1815 + $0x3b] sm:$0xff]
        %v2530 = vld [vmem:[%s1815 + $0x4b] sm:$0xff]
        %v2531 = vld [vmem:[%s1815 + $0x53] sm:$0xff]
        %v2532 = vld [vmem:[%s1815 + $0x63] sm:$0xff]
        %v2533 = vld [vmem:[%s1815 + $0x6b] sm:$0xff]
        %v2534 = vld [vmem:[%s1815 + $0x7b] sm:$0xff]
        %v2535 = vld [vmem:[%s1815 + $0x83] sm:$0xff]
        %v2536 = vld [vmem:[%s1815 + $0x93] sm:$0xff]
        %v2537 = vld [vmem:[%s1815 + $0x9b] sm:$0xff]
        %v2538 = vld [vmem:[%s1815 + $0xab] sm:$0xff]
        %v2539 = vld [vmem:[%s1815 + $0xb3] sm:$0xff]
        %v2540 = vld [vmem:[%s1815 + $0xc3] sm:$0xff]
        %v2541 = vld [vmem:[%s1815 + $0xcb] sm:$0xff]
        %v2542 = vld [vmem:[%s1815 + $0xdb] sm:$0xff]
        %v2543 = vld [vmem:[%s1815 + $0xe3] sm:$0xff]
        %v2544 = vld [vmem:[%s1815 + $0xf3] sm:$0xff]
        %v2545 = vld [vmem:[%s1815 + $0xfb] sm:$0xff]
        %v2546 = vld [vmem:[%s1815 + $0x10b] sm:$0xff]
        %v2547 = vld [vmem:[%s1815 + $0x113] sm:$0xff]
        %v2548 = vld [vmem:[%s1815 + $0x123] sm:$0xff]
        %v2549 = vld [vmem:[%s1815 + $0x12b] sm:$0xff]
        %v2550 = vld [vmem:[%s1815 + $0x13b] sm:$0xff]
        %v2551 = vld [vmem:[%s1815 + $0x143] sm:$0xff]
        %v2552 = vld [vmem:[%s1815 + $0x153] sm:$0xff]
        %v2553 = vld [vmem:[%s1815 + $0x15b] sm:$0xff]
        %v2554 = vld [vmem:[%s1815 + $0x16b] sm:$0xff]
        %v2555 = vld [vmem:[%s1815 + $0x173] sm:$0xff]
        %v2556 = vld [vmem:[%s1815 + $0x1e3] sm:$0xff]
        %v2557 = vld [vmem:[%s1815 + $0x1eb] sm:$0xff]
        %v2558 = vld [vmem:[%s1815 + $0x1fb] sm:$0xff]
        %v2559 = vld [vmem:[%s1815 + $0x203] sm:$0xff]
        %v2560 = vld [vmem:[%s1815 + $0x213] sm:$0xff]
        %v2561 = vld [vmem:[%s1815 + $0x21b] sm:$0xff]
        %v2562 = vld [vmem:[%s1815 + $0x22b] sm:$0xff]
        %v2563 = vld [vmem:[%s1815 + $0x233] sm:$0xff]
        %v2564 = vld [vmem:[%s1815 + $0x243] sm:$0xff]
        %v2565 = vld [vmem:[%s1815 + $0x24b] sm:$0xff]
        %v2566 = vld [vmem:[%s1815 + $0x25b] sm:$0xff]
        %v2567 = vld [vmem:[%s1815 + $0x263] sm:$0xff]
        %v2568 = vld [vmem:[%s1815 + $0x273] sm:$0xff]
        %v2569 = vld [vmem:[%s1815 + $0x27b] sm:$0xff]
        %v2570 = vld [vmem:[%s1815 + $0x28b] sm:$0xff]
        %v2571 = vld [vmem:[%s1815 + $0x293] sm:$0xff]
        %v2572 = vld [vmem:[%s1815 + $0x2a3] sm:$0xff]
        %v2573 = vld [vmem:[%s1815 + $0x2ab] sm:$0xff]
        %v2574 = vld [vmem:[%s1815 + $0x2bb] sm:$0xff]
        %v2575 = vld [vmem:[%s1815 + $0x2c3] sm:$0xff]
        %v2576 = vld [vmem:[%s1815 + $0x2d3] sm:$0xff]
        %v2577 = vld [vmem:[%s1815 + $0x2db] sm:$0xff]
        %v2578 = vld [vmem:[%s1815 + $0x2eb] sm:$0xff]
        %v2579 = vld [vmem:[%s1815 + $0x2f3] sm:$0xff]
        %v2580 = vld [vmem:[%s1815 + $0x303] sm:$0xff]
        %v2581 = vld [vmem:[%s1815 + $0x30b] sm:$0xff]
        %v2582 = vld [vmem:[%s1815 + $0x31b] sm:$0xff]
        %v2583 = vld [vmem:[%s1815 + $0x323] sm:$0xff]
        %v2584 = vld [vmem:[%s1815 + $0x333] sm:$0xff]
        %v2585 = vld [vmem:[%s1815 + $0x33b] sm:$0xff]
        %v2586 = vld [vmem:[%s1815 + $0x34b] sm:$0xff]
        %v2587 = vld [vmem:[%s1815 + $0x353] sm:$0xff]
        %s2588 = scalar_lea.vmem %s382, 640
        %v2589 = vld [vmem:[%s2588] sm:$0xff]
        %v2590 = vld [vmem:[%s2588 + $0x8] sm:$0xff]
        %v2591 = vld [vmem:[%s2588 + $0x10] sm:$0xff]
        %v2592 = vld [vmem:[%s2588 + $0x18] sm:$0xff]
        %v2593 = vld [vmem:[%s2588 + $0x20] sm:$0xff]
        %v2594 = vld [vmem:[%s2588 + $0x28] sm:$0xff]
        %v2595 = vld [vmem:[%s2588 + $0x30] sm:$0xff]
        %v2596 = vld [vmem:[%s2588 + $0x38] sm:$0xff]
        %v2597 = vld [vmem:[%s2588 + $0x40] sm:$0xff]
        %v2598 = vld [vmem:[%s2588 + $0x48] sm:$0xff]
        %v2599 = vld [vmem:[%s2588 + $0x50] sm:$0xff]
        %v2600 = vld [vmem:[%s2588 + $0x58] sm:$0xff]
        %v2601 = vld [vmem:[%s2588 + $0x60] sm:$0xff]
        %v2602 = vld [vmem:[%s2588 + $0x68] sm:$0xff]
        %v2603 = vld [vmem:[%s2588 + $0x70] sm:$0xff]
        %v2604 = vld [vmem:[%s2588 + $0x78] sm:$0xff]
        %2605 = vmatpush.msra.mxu0 %v2604
        %2606 = vmatpush.msra.mxu0 %v2603
        %2607 = vmatpush.msra.mxu0 %v2602
        %2608 = vmatpush.msra.mxu0 %v2601
        %2609 = vmatpush.msra.mxu0 %v2600
        %2610 = vmatpush.msra.mxu0 %v2599
        %2611 = vmatpush.msra.mxu0 %v2598
        %2612 = vmatpush.msra.mxu0 %v2597
        %2613 = vmatpush.msra.mxu0 %v2596
        %2614 = vmatpush.msra.mxu0 %v2595
        %2615 = vmatpush.msra.mxu0 %v2594
        %2616 = vmatpush.msra.mxu0 %v2593
        %2617 = vmatpush.msra.mxu0 %v2592
        %2618 = vmatpush.msra.mxu0 %v2591
        %2619 = vmatpush.msra.mxu0 %v2590
        %2620 = vmatpush.msra.mxu0 %v2589
        %2621 = vmatmul.f32.gmra.mxu0 %v2524
        %v2622 = vpop.f32.mrf.mxu0
        %v2623 = vadd.f32 0.0, %v2622
        %2624 = vmatmul.f32.gmra.mxu0 %v2525
        %v2625 = vpop.f32.mrf.mxu0
        %v2626 = vadd.f32 0.0, %v2625
        %2627 = vmatmul.f32.gmra.mxu0 %v2526
        %v2628 = vpop.f32.mrf.mxu0
        %v2629 = vadd.f32 0.0, %v2628
        %2630 = vmatmul.f32.gmra.mxu0 %v2527
        %v2631 = vpop.f32.mrf.mxu0
        %v2632 = vadd.f32 0.0, %v2631
        %2633 = vmatmul.f32.gmra.mxu0 %v2528
        %v2634 = vpop.f32.mrf.mxu0
        %v2635 = vadd.f32 0.0, %v2634
        %2636 = vmatmul.f32.gmra.mxu0 %v2529
        %v2637 = vpop.f32.mrf.mxu0
        %v2638 = vadd.f32 0.0, %v2637
        %2639 = vmatmul.f32.gmra.mxu0 %v2530
        %v2640 = vpop.f32.mrf.mxu0
        %v2641 = vadd.f32 0.0, %v2640
        %2642 = vmatmul.f32.gmra.mxu0 %v2531
        %v2643 = vpop.f32.mrf.mxu0
        %v2644 = vadd.f32 0.0, %v2643
        %2645 = vmatmul.f32.gmra.mxu0 %v2532
        %v2646 = vpop.f32.mrf.mxu0
        %v2647 = vadd.f32 0.0, %v2646
        %2648 = vmatmul.f32.gmra.mxu0 %v2533
        %v2649 = vpop.f32.mrf.mxu0
        %v2650 = vadd.f32 0.0, %v2649
        %2651 = vmatmul.f32.gmra.mxu0 %v2534
        %v2652 = vpop.f32.mrf.mxu0
        %v2653 = vadd.f32 0.0, %v2652
        %2654 = vmatmul.f32.gmra.mxu0 %v2535
        %v2655 = vpop.f32.mrf.mxu0
        %v2656 = vadd.f32 0.0, %v2655
        %2657 = vmatmul.f32.gmra.mxu0 %v2536
        %v2658 = vpop.f32.mrf.mxu0
        %v2659 = vadd.f32 0.0, %v2658
        %2660 = vmatmul.f32.gmra.mxu0 %v2537
        %v2661 = vpop.f32.mrf.mxu0
        %v2662 = vadd.f32 0.0, %v2661
        %2663 = vmatmul.f32.gmra.mxu0 %v2538
        %v2664 = vpop.f32.mrf.mxu0
        %v2665 = vadd.f32 0.0, %v2664
        %2666 = vmatmul.f32.gmra.mxu0 %v2539
        %v2667 = vpop.f32.mrf.mxu0
        %v2668 = vadd.f32 0.0, %v2667
        %2669 = vmatmul.f32.gmra.mxu0 %v2540
        %v2670 = vpop.f32.mrf.mxu0
        %v2671 = vadd.f32 0.0, %v2670
        %2672 = vmatmul.f32.gmra.mxu0 %v2541
        %v2673 = vpop.f32.mrf.mxu0
        %v2674 = vadd.f32 0.0, %v2673
        %2675 = vmatmul.f32.gmra.mxu0 %v2542
        %v2676 = vpop.f32.mrf.mxu0
        %v2677 = vadd.f32 0.0, %v2676
        %2678 = vmatmul.f32.gmra.mxu0 %v2543
        %v2679 = vpop.f32.mrf.mxu0
        %v2680 = vadd.f32 0.0, %v2679
        %2681 = vmatmul.f32.gmra.mxu0 %v2544
        %v2682 = vpop.f32.mrf.mxu0
        %v2683 = vadd.f32 0.0, %v2682
        %2684 = vmatmul.f32.gmra.mxu0 %v2545
        %v2685 = vpop.f32.mrf.mxu0
        %v2686 = vadd.f32 0.0, %v2685
        %2687 = vmatmul.f32.gmra.mxu0 %v2546
        %v2688 = vpop.f32.mrf.mxu0
        %v2689 = vadd.f32 0.0, %v2688
        %2690 = vmatmul.f32.gmra.mxu0 %v2547
        %v2691 = vpop.f32.mrf.mxu0
        %v2692 = vadd.f32 0.0, %v2691
        %2693 = vmatmul.f32.gmra.mxu0 %v2548
        %v2694 = vpop.f32.mrf.mxu0
        %v2695 = vadd.f32 0.0, %v2694
        %2696 = vmatmul.f32.gmra.mxu0 %v2549
        %v2697 = vpop.f32.mrf.mxu0
        %v2698 = vadd.f32 0.0, %v2697
        %2699 = vmatmul.f32.gmra.mxu0 %v2550
        %v2700 = vpop.f32.mrf.mxu0
        %v2701 = vadd.f32 0.0, %v2700
        %2702 = vmatmul.f32.gmra.mxu0 %v2551
        %v2703 = vpop.f32.mrf.mxu0
        %v2704 = vadd.f32 0.0, %v2703
        %2705 = vmatmul.f32.gmra.mxu0 %v2552
        %v2706 = vpop.f32.mrf.mxu0
        %v2707 = vadd.f32 0.0, %v2706
        %2708 = vmatmul.f32.gmra.mxu0 %v2553
        %v2709 = vpop.f32.mrf.mxu0
        %v2710 = vadd.f32 0.0, %v2709
        %2711 = vmatmul.f32.gmra.mxu0 %v2554
        %v2712 = vpop.f32.mrf.mxu0
        %v2713 = vadd.f32 0.0, %v2712
        %2714 = vmatmul.f32.gmra.mxu0 %v2555
        %v2715 = vpop.f32.mrf.mxu0
        %v2716 = vadd.f32 0.0, %v2715
        %2717 = vmatmul.f32.gmra.mxu0 %v2556
        %v2718 = vpop.f32.mrf.mxu0
        %v2719 = vadd.f32 0.0, %v2718
        %2720 = vmatmul.f32.gmra.mxu0 %v2557
        %v2721 = vpop.f32.mrf.mxu0
        %v2722 = vadd.f32 0.0, %v2721
        %2723 = vmatmul.f32.gmra.mxu0 %v2558
        %v2724 = vpop.f32.mrf.mxu0
        %v2725 = vadd.f32 0.0, %v2724
        %2726 = vmatmul.f32.gmra.mxu0 %v2559
        %v2727 = vpop.f32.mrf.mxu0
        %v2728 = vadd.f32 0.0, %v2727
        %2729 = vmatmul.f32.gmra.mxu0 %v2560
        %v2730 = vpop.f32.mrf.mxu0
        %v2731 = vadd.f32 0.0, %v2730
        %2732 = vmatmul.f32.gmra.mxu0 %v2561
        %v2733 = vpop.f32.mrf.mxu0
        %v2734 = vadd.f32 0.0, %v2733
        %2735 = vmatmul.f32.gmra.mxu0 %v2562
        %v2736 = vpop.f32.mrf.mxu0
        %v2737 = vadd.f32 0.0, %v2736
        %2738 = vmatmul.f32.gmra.mxu0 %v2563
        %v2739 = vpop.f32.mrf.mxu0
        %v2740 = vadd.f32 0.0, %v2739
        %2741 = vmatmul.f32.gmra.mxu0 %v2564
        %v2742 = vpop.f32.mrf.mxu0
        %v2743 = vadd.f32 0.0, %v2742
        %2744 = vmatmul.f32.gmra.mxu0 %v2565
        %v2745 = vpop.f32.mrf.mxu0
        %v2746 = vadd.f32 0.0, %v2745
        %2747 = vmatmul.f32.gmra.mxu0 %v2566
        %v2748 = vpop.f32.mrf.mxu0
        %v2749 = vadd.f32 0.0, %v2748
        %2750 = vmatmul.f32.gmra.mxu0 %v2567
        %v2751 = vpop.f32.mrf.mxu0
        %v2752 = vadd.f32 0.0, %v2751
        %2753 = vmatmul.f32.gmra.mxu0 %v2568
        %v2754 = vpop.f32.mrf.mxu0
        %v2755 = vadd.f32 0.0, %v2754
        %2756 = vmatmul.f32.gmra.mxu0 %v2569
        %v2757 = vpop.f32.mrf.mxu0
        %v2758 = vadd.f32 0.0, %v2757
        %2759 = vmatmul.f32.gmra.mxu0 %v2570
        %v2760 = vpop.f32.mrf.mxu0
        %v2761 = vadd.f32 0.0, %v2760
        %2762 = vmatmul.f32.gmra.mxu0 %v2571
        %v2763 = vpop.f32.mrf.mxu0
        %v2764 = vadd.f32 0.0, %v2763
        %2765 = vmatmul.f32.gmra.mxu0 %v2572
        %v2766 = vpop.f32.mrf.mxu0
        %v2767 = vadd.f32 0.0, %v2766
        %2768 = vmatmul.f32.gmra.mxu0 %v2573
        %v2769 = vpop.f32.mrf.mxu0
        %v2770 = vadd.f32 0.0, %v2769
        %2771 = vmatmul.f32.gmra.mxu0 %v2574
        %v2772 = vpop.f32.mrf.mxu0
        %v2773 = vadd.f32 0.0, %v2772
        %2774 = vmatmul.f32.gmra.mxu0 %v2575
        %v2775 = vpop.f32.mrf.mxu0
        %v2776 = vadd.f32 0.0, %v2775
        %2777 = vmatmul.f32.gmra.mxu0 %v2576
        %v2778 = vpop.f32.mrf.mxu0
        %v2779 = vadd.f32 0.0, %v2778
        %2780 = vmatmul.f32.gmra.mxu0 %v2577
        %v2781 = vpop.f32.mrf.mxu0
        %v2782 = vadd.f32 0.0, %v2781
        %2783 = vmatmul.f32.gmra.mxu0 %v2578
        %v2784 = vpop.f32.mrf.mxu0
        %v2785 = vadd.f32 0.0, %v2784
        %2786 = vmatmul.f32.gmra.mxu0 %v2579
        %v2787 = vpop.f32.mrf.mxu0
        %v2788 = vadd.f32 0.0, %v2787
        %2789 = vmatmul.f32.gmra.mxu0 %v2580
        %v2790 = vpop.f32.mrf.mxu0
        %v2791 = vadd.f32 0.0, %v2790
        %2792 = vmatmul.f32.gmra.mxu0 %v2581
        %v2793 = vpop.f32.mrf.mxu0
        %v2794 = vadd.f32 0.0, %v2793
        %2795 = vmatmul.f32.gmra.mxu0 %v2582
        %v2796 = vpop.f32.mrf.mxu0
        %v2797 = vadd.f32 0.0, %v2796
        %2798 = vmatmul.f32.gmra.mxu0 %v2583
        %v2799 = vpop.f32.mrf.mxu0
        %v2800 = vadd.f32 0.0, %v2799
        %2801 = vmatmul.f32.gmra.mxu0 %v2584
        %v2802 = vpop.f32.mrf.mxu0
        %v2803 = vadd.f32 0.0, %v2802
        %2804 = vmatmul.f32.gmra.mxu0 %v2585
        %v2805 = vpop.f32.mrf.mxu0
        %v2806 = vadd.f32 0.0, %v2805
        %2807 = vmatmul.f32.gmra.mxu0 %v2586
        %v2808 = vpop.f32.mrf.mxu0
        %v2809 = vadd.f32 0.0, %v2808
        %2810 = vmatmul.f32.gmra.mxu0 %v2587
        %v2811 = vpop.f32.mrf.mxu0
        %v2812 = vadd.f32 0.0, %v2811
        %2813 = vdwg.mxu0
        %v2814 = vadd.f32 %v2460, %v2623
        %v2815 = vadd.f32 %v2461, %v2626
        %v2816 = vadd.f32 %v2462, %v2629
        %v2817 = vadd.f32 %v2463, %v2632
        %v2818 = vadd.f32 %v2464, %v2635
        %v2819 = vadd.f32 %v2465, %v2638
        %v2820 = vadd.f32 %v2466, %v2641
        %v2821 = vadd.f32 %v2467, %v2644
        %v2822 = vadd.f32 %v2468, %v2647
        %v2823 = vadd.f32 %v2469, %v2650
        %v2824 = vadd.f32 %v2470, %v2653
        %v2825 = vadd.f32 %v2471, %v2656
        %v2826 = vadd.f32 %v2472, %v2659
        %v2827 = vadd.f32 %v2473, %v2662
        %v2828 = vadd.f32 %v2474, %v2665
        %v2829 = vadd.f32 %v2475, %v2668
        %v2830 = vadd.f32 %v2476, %v2671
        %v2831 = vadd.f32 %v2477, %v2674
        %v2832 = vadd.f32 %v2478, %v2677
        %v2833 = vadd.f32 %v2479, %v2680
        %v2834 = vadd.f32 %v2480, %v2683
        %v2835 = vadd.f32 %v2481, %v2686
        %v2836 = vadd.f32 %v2482, %v2689
        %v2837 = vadd.f32 %v2483, %v2692
        %v2838 = vadd.f32 %v2484, %v2695
        %v2839 = vadd.f32 %v2485, %v2698
        %v2840 = vadd.f32 %v2486, %v2701
        %v2841 = vadd.f32 %v2487, %v2704
        %v2842 = vadd.f32 %v2488, %v2707
        %v2843 = vadd.f32 %v2489, %v2710
        %v2844 = vadd.f32 %v2490, %v2713
        %v2845 = vadd.f32 %v2491, %v2716
        %v2846 = vadd.f32 %v2492, %v2719
        %v2847 = vadd.f32 %v2493, %v2722
        %v2848 = vadd.f32 %v2494, %v2725
        %v2849 = vadd.f32 %v2495, %v2728
        %v2850 = vadd.f32 %v2496, %v2731
        %v2851 = vadd.f32 %v2497, %v2734
        %v2852 = vadd.f32 %v2498, %v2737
        %v2853 = vadd.f32 %v2499, %v2740
        %v2854 = vadd.f32 %v2500, %v2743
        %v2855 = vadd.f32 %v2501, %v2746
        %v2856 = vadd.f32 %v2502, %v2749
        %v2857 = vadd.f32 %v2503, %v2752
        %v2858 = vadd.f32 %v2504, %v2755
        %v2859 = vadd.f32 %v2505, %v2758
        %v2860 = vadd.f32 %v2506, %v2761
        %v2861 = vadd.f32 %v2507, %v2764
        %v2862 = vadd.f32 %v2508, %v2767
        %v2863 = vadd.f32 %v2509, %v2770
        %v2864 = vadd.f32 %v2510, %v2773
        %v2865 = vadd.f32 %v2511, %v2776
        %v2866 = vadd.f32 %v2512, %v2779
        %v2867 = vadd.f32 %v2513, %v2782
        %v2868 = vadd.f32 %v2514, %v2785
        %v2869 = vadd.f32 %v2515, %v2788
        %v2870 = vadd.f32 %v2516, %v2791
        %v2871 = vadd.f32 %v2517, %v2794
        %v2872 = vadd.f32 %v2518, %v2797
        %v2873 = vadd.f32 %v2519, %v2800
        %v2874 = vadd.f32 %v2520, %v2803
        %v2875 = vadd.f32 %v2521, %v2806
        %v2876 = vadd.f32 %v2522, %v2809
        %v2877 = vadd.f32 %v2523, %v2812
        %s2878 = scalar_lea.vmem %s377, 72
        %v2879 = vld [vmem:[%s2878 + $0x1] sm:$0xff]
        %v2880 = vld [vmem:[%s2878 + $0x9] sm:$0xff]
        %v2881 = vld [vmem:[%s2878 + $0x19] sm:$0xff]
        %v2882 = vld [vmem:[%s2878 + $0x21] sm:$0xff]
        %v2883 = vld [vmem:[%s2878 + $0x31] sm:$0xff]
        %v2884 = vld [vmem:[%s2878 + $0x39] sm:$0xff]
        %v2885 = vld [vmem:[%s2878 + $0x49] sm:$0xff]
        %v2886 = vld [vmem:[%s2878 + $0x51] sm:$0xff]
        %v2887 = vld [vmem:[%s2878 + $0x61] sm:$0xff]
        %v2888 = vld [vmem:[%s2878 + $0x69] sm:$0xff]
        %v2889 = vld [vmem:[%s2878 + $0x79] sm:$0xff]
        %v2890 = vld [vmem:[%s2878 + $0x81] sm:$0xff]
        %v2891 = vld [vmem:[%s2878 + $0x91] sm:$0xff]
        %v2892 = vld [vmem:[%s2878 + $0x99] sm:$0xff]
        %v2893 = vld [vmem:[%s2878 + $0xa9] sm:$0xff]
        %v2894 = vld [vmem:[%s2878 + $0xb1] sm:$0xff]
        %v2895 = vld [vmem:[%s2878 + $0xc1] sm:$0xff]
        %v2896 = vld [vmem:[%s2878 + $0xc9] sm:$0xff]
        %v2897 = vld [vmem:[%s2878 + $0xd9] sm:$0xff]
        %v2898 = vld [vmem:[%s2878 + $0xe1] sm:$0xff]
        %v2899 = vld [vmem:[%s2878 + $0xf1] sm:$0xff]
        %v2900 = vld [vmem:[%s2878 + $0xf9] sm:$0xff]
        %v2901 = vld [vmem:[%s2878 + $0x109] sm:$0xff]
        %v2902 = vld [vmem:[%s2878 + $0x111] sm:$0xff]
        %v2903 = vld [vmem:[%s2878 + $0x121] sm:$0xff]
        %v2904 = vld [vmem:[%s2878 + $0x129] sm:$0xff]
        %v2905 = vld [vmem:[%s2878 + $0x139] sm:$0xff]
        %v2906 = vld [vmem:[%s2878 + $0x141] sm:$0xff]
        %v2907 = vld [vmem:[%s2878 + $0x151] sm:$0xff]
        %v2908 = vld [vmem:[%s2878 + $0x159] sm:$0xff]
        %v2909 = vld [vmem:[%s2878 + $0x169] sm:$0xff]
        %v2910 = vld [vmem:[%s2878 + $0x171] sm:$0xff]
        %v2911 = vld [vmem:[%s2878 + $0x1e1] sm:$0xff]
        %v2912 = vld [vmem:[%s2878 + $0x1e9] sm:$0xff]
        %v2913 = vld [vmem:[%s2878 + $0x1f9] sm:$0xff]
        %v2914 = vld [vmem:[%s2878 + $0x201] sm:$0xff]
        %v2915 = vld [vmem:[%s2878 + $0x211] sm:$0xff]
        %v2916 = vld [vmem:[%s2878 + $0x219] sm:$0xff]
        %v2917 = vld [vmem:[%s2878 + $0x229] sm:$0xff]
        %v2918 = vld [vmem:[%s2878 + $0x231] sm:$0xff]
        %v2919 = vld [vmem:[%s2878 + $0x241] sm:$0xff]
        %v2920 = vld [vmem:[%s2878 + $0x249] sm:$0xff]
        %v2921 = vld [vmem:[%s2878 + $0x259] sm:$0xff]
        %v2922 = vld [vmem:[%s2878 + $0x261] sm:$0xff]
        %v2923 = vld [vmem:[%s2878 + $0x271] sm:$0xff]
        %v2924 = vld [vmem:[%s2878 + $0x279] sm:$0xff]
        %v2925 = vld [vmem:[%s2878 + $0x289] sm:$0xff]
        %v2926 = vld [vmem:[%s2878 + $0x291] sm:$0xff]
        %v2927 = vld [vmem:[%s2878 + $0x2a1] sm:$0xff]
        %v2928 = vld [vmem:[%s2878 + $0x2a9] sm:$0xff]
        %v2929 = vld [vmem:[%s2878 + $0x2b9] sm:$0xff]
        %v2930 = vld [vmem:[%s2878 + $0x2c1] sm:$0xff]
        %v2931 = vld [vmem:[%s2878 + $0x2d1] sm:$0xff]
        %v2932 = vld [vmem:[%s2878 + $0x2d9] sm:$0xff]
        %v2933 = vld [vmem:[%s2878 + $0x2e9] sm:$0xff]
        %v2934 = vld [vmem:[%s2878 + $0x2f1] sm:$0xff]
        %v2935 = vld [vmem:[%s2878 + $0x301] sm:$0xff]
        %v2936 = vld [vmem:[%s2878 + $0x309] sm:$0xff]
        %v2937 = vld [vmem:[%s2878 + $0x319] sm:$0xff]
        %v2938 = vld [vmem:[%s2878 + $0x321] sm:$0xff]
        %v2939 = vld [vmem:[%s2878 + $0x331] sm:$0xff]
        %v2940 = vld [vmem:[%s2878 + $0x339] sm:$0xff]
        %v2941 = vld [vmem:[%s2878 + $0x349] sm:$0xff]
        %v2942 = vld [vmem:[%s2878 + $0x351] sm:$0xff]
        %s2943 = scalar_lea.vmem %s382, 768
        %v2944 = vld [vmem:[%s2943] sm:$0xff]
        %v2945 = vld [vmem:[%s2943 + $0x8] sm:$0xff]
        %v2946 = vld [vmem:[%s2943 + $0x10] sm:$0xff]
        %v2947 = vld [vmem:[%s2943 + $0x18] sm:$0xff]
        %v2948 = vld [vmem:[%s2943 + $0x20] sm:$0xff]
        %v2949 = vld [vmem:[%s2943 + $0x28] sm:$0xff]
        %v2950 = vld [vmem:[%s2943 + $0x30] sm:$0xff]
        %v2951 = vld [vmem:[%s2943 + $0x38] sm:$0xff]
        %v2952 = vld [vmem:[%s2943 + $0x40] sm:$0xff]
        %v2953 = vld [vmem:[%s2943 + $0x48] sm:$0xff]
        %v2954 = vld [vmem:[%s2943 + $0x50] sm:$0xff]
        %v2955 = vld [vmem:[%s2943 + $0x58] sm:$0xff]
        %v2956 = vld [vmem:[%s2943 + $0x60] sm:$0xff]
        %v2957 = vld [vmem:[%s2943 + $0x68] sm:$0xff]
        %v2958 = vld [vmem:[%s2943 + $0x70] sm:$0xff]
        %v2959 = vld [vmem:[%s2943 + $0x78] sm:$0xff]
        %2960 = vmatpush.msra.mxu0 %v2959
        %2961 = vmatpush.msra.mxu0 %v2958
        %2962 = vmatpush.msra.mxu0 %v2957
        %2963 = vmatpush.msra.mxu0 %v2956
        %2964 = vmatpush.msra.mxu0 %v2955
        %2965 = vmatpush.msra.mxu0 %v2954
        %2966 = vmatpush.msra.mxu0 %v2953
        %2967 = vmatpush.msra.mxu0 %v2952
        %2968 = vmatpush.msra.mxu0 %v2951
        %2969 = vmatpush.msra.mxu0 %v2950
        %2970 = vmatpush.msra.mxu0 %v2949
        %2971 = vmatpush.msra.mxu0 %v2948
        %2972 = vmatpush.msra.mxu0 %v2947
        %2973 = vmatpush.msra.mxu0 %v2946
        %2974 = vmatpush.msra.mxu0 %v2945
        %2975 = vmatpush.msra.mxu0 %v2944
        %2976 = vmatmul.f32.gmra.mxu0 %v2879
        %v2977 = vpop.f32.mrf.mxu0
        %v2978 = vadd.f32 0.0, %v2977
        %2979 = vmatmul.f32.gmra.mxu0 %v2880
        %v2980 = vpop.f32.mrf.mxu0
        %v2981 = vadd.f32 0.0, %v2980
        %2982 = vmatmul.f32.gmra.mxu0 %v2881
        %v2983 = vpop.f32.mrf.mxu0
        %v2984 = vadd.f32 0.0, %v2983
        %2985 = vmatmul.f32.gmra.mxu0 %v2882
        %v2986 = vpop.f32.mrf.mxu0
        %v2987 = vadd.f32 0.0, %v2986
        %2988 = vmatmul.f32.gmra.mxu0 %v2883
        %v2989 = vpop.f32.mrf.mxu0
        %v2990 = vadd.f32 0.0, %v2989
        %2991 = vmatmul.f32.gmra.mxu0 %v2884
        %v2992 = vpop.f32.mrf.mxu0
        %v2993 = vadd.f32 0.0, %v2992
        %2994 = vmatmul.f32.gmra.mxu0 %v2885
        %v2995 = vpop.f32.mrf.mxu0
        %v2996 = vadd.f32 0.0, %v2995
        %2997 = vmatmul.f32.gmra.mxu0 %v2886
        %v2998 = vpop.f32.mrf.mxu0
        %v2999 = vadd.f32 0.0, %v2998
        %3000 = vmatmul.f32.gmra.mxu0 %v2887
        %v3001 = vpop.f32.mrf.mxu0
        %v3002 = vadd.f32 0.0, %v3001
        %3003 = vmatmul.f32.gmra.mxu0 %v2888
        %v3004 = vpop.f32.mrf.mxu0
        %v3005 = vadd.f32 0.0, %v3004
        %3006 = vmatmul.f32.gmra.mxu0 %v2889
        %v3007 = vpop.f32.mrf.mxu0
        %v3008 = vadd.f32 0.0, %v3007
        %3009 = vmatmul.f32.gmra.mxu0 %v2890
        %v3010 = vpop.f32.mrf.mxu0
        %v3011 = vadd.f32 0.0, %v3010
        %3012 = vmatmul.f32.gmra.mxu0 %v2891
        %v3013 = vpop.f32.mrf.mxu0
        %v3014 = vadd.f32 0.0, %v3013
        %3015 = vmatmul.f32.gmra.mxu0 %v2892
        %v3016 = vpop.f32.mrf.mxu0
        %v3017 = vadd.f32 0.0, %v3016
        %3018 = vmatmul.f32.gmra.mxu0 %v2893
        %v3019 = vpop.f32.mrf.mxu0
        %v3020 = vadd.f32 0.0, %v3019
        %3021 = vmatmul.f32.gmra.mxu0 %v2894
        %v3022 = vpop.f32.mrf.mxu0
        %v3023 = vadd.f32 0.0, %v3022
        %3024 = vmatmul.f32.gmra.mxu0 %v2895
        %v3025 = vpop.f32.mrf.mxu0
        %v3026 = vadd.f32 0.0, %v3025
        %3027 = vmatmul.f32.gmra.mxu0 %v2896
        %v3028 = vpop.f32.mrf.mxu0
        %v3029 = vadd.f32 0.0, %v3028
        %3030 = vmatmul.f32.gmra.mxu0 %v2897
        %v3031 = vpop.f32.mrf.mxu0
        %v3032 = vadd.f32 0.0, %v3031
        %3033 = vmatmul.f32.gmra.mxu0 %v2898
        %v3034 = vpop.f32.mrf.mxu0
        %v3035 = vadd.f32 0.0, %v3034
        %3036 = vmatmul.f32.gmra.mxu0 %v2899
        %v3037 = vpop.f32.mrf.mxu0
        %v3038 = vadd.f32 0.0, %v3037
        %3039 = vmatmul.f32.gmra.mxu0 %v2900
        %v3040 = vpop.f32.mrf.mxu0
        %v3041 = vadd.f32 0.0, %v3040
        %3042 = vmatmul.f32.gmra.mxu0 %v2901
        %v3043 = vpop.f32.mrf.mxu0
        %v3044 = vadd.f32 0.0, %v3043
        %3045 = vmatmul.f32.gmra.mxu0 %v2902
        %v3046 = vpop.f32.mrf.mxu0
        %v3047 = vadd.f32 0.0, %v3046
        %3048 = vmatmul.f32.gmra.mxu0 %v2903
        %v3049 = vpop.f32.mrf.mxu0
        %v3050 = vadd.f32 0.0, %v3049
        %3051 = vmatmul.f32.gmra.mxu0 %v2904
        %v3052 = vpop.f32.mrf.mxu0
        %v3053 = vadd.f32 0.0, %v3052
        %3054 = vmatmul.f32.gmra.mxu0 %v2905
        %v3055 = vpop.f32.mrf.mxu0
        %v3056 = vadd.f32 0.0, %v3055
        %3057 = vmatmul.f32.gmra.mxu0 %v2906
        %v3058 = vpop.f32.mrf.mxu0
        %v3059 = vadd.f32 0.0, %v3058
        %3060 = vmatmul.f32.gmra.mxu0 %v2907
        %v3061 = vpop.f32.mrf.mxu0
        %v3062 = vadd.f32 0.0, %v3061
        %3063 = vmatmul.f32.gmra.mxu0 %v2908
        %v3064 = vpop.f32.mrf.mxu0
        %v3065 = vadd.f32 0.0, %v3064
        %3066 = vmatmul.f32.gmra.mxu0 %v2909
        %v3067 = vpop.f32.mrf.mxu0
        %v3068 = vadd.f32 0.0, %v3067
        %3069 = vmatmul.f32.gmra.mxu0 %v2910
        %v3070 = vpop.f32.mrf.mxu0
        %v3071 = vadd.f32 0.0, %v3070
        %3072 = vmatmul.f32.gmra.mxu0 %v2911
        %v3073 = vpop.f32.mrf.mxu0
        %v3074 = vadd.f32 0.0, %v3073
        %3075 = vmatmul.f32.gmra.mxu0 %v2912
        %v3076 = vpop.f32.mrf.mxu0
        %v3077 = vadd.f32 0.0, %v3076
        %3078 = vmatmul.f32.gmra.mxu0 %v2913
        %v3079 = vpop.f32.mrf.mxu0
        %v3080 = vadd.f32 0.0, %v3079
        %3081 = vmatmul.f32.gmra.mxu0 %v2914
        %v3082 = vpop.f32.mrf.mxu0
        %v3083 = vadd.f32 0.0, %v3082
        %3084 = vmatmul.f32.gmra.mxu0 %v2915
        %v3085 = vpop.f32.mrf.mxu0
        %v3086 = vadd.f32 0.0, %v3085
        %3087 = vmatmul.f32.gmra.mxu0 %v2916
        %v3088 = vpop.f32.mrf.mxu0
        %v3089 = vadd.f32 0.0, %v3088
        %3090 = vmatmul.f32.gmra.mxu0 %v2917
        %v3091 = vpop.f32.mrf.mxu0
        %v3092 = vadd.f32 0.0, %v3091
        %3093 = vmatmul.f32.gmra.mxu0 %v2918
        %v3094 = vpop.f32.mrf.mxu0
        %v3095 = vadd.f32 0.0, %v3094
        %3096 = vmatmul.f32.gmra.mxu0 %v2919
        %v3097 = vpop.f32.mrf.mxu0
        %v3098 = vadd.f32 0.0, %v3097
        %3099 = vmatmul.f32.gmra.mxu0 %v2920
        %v3100 = vpop.f32.mrf.mxu0
        %v3101 = vadd.f32 0.0, %v3100
        %3102 = vmatmul.f32.gmra.mxu0 %v2921
        %v3103 = vpop.f32.mrf.mxu0
        %v3104 = vadd.f32 0.0, %v3103
        %3105 = vmatmul.f32.gmra.mxu0 %v2922
        %v3106 = vpop.f32.mrf.mxu0
        %v3107 = vadd.f32 0.0, %v3106
        %3108 = vmatmul.f32.gmra.mxu0 %v2923
        %v3109 = vpop.f32.mrf.mxu0
        %v3110 = vadd.f32 0.0, %v3109
        %3111 = vmatmul.f32.gmra.mxu0 %v2924
        %v3112 = vpop.f32.mrf.mxu0
        %v3113 = vadd.f32 0.0, %v3112
        %3114 = vmatmul.f32.gmra.mxu0 %v2925
        %v3115 = vpop.f32.mrf.mxu0
        %v3116 = vadd.f32 0.0, %v3115
        %3117 = vmatmul.f32.gmra.mxu0 %v2926
        %v3118 = vpop.f32.mrf.mxu0
        %v3119 = vadd.f32 0.0, %v3118
        %3120 = vmatmul.f32.gmra.mxu0 %v2927
        %v3121 = vpop.f32.mrf.mxu0
        %v3122 = vadd.f32 0.0, %v3121
        %3123 = vmatmul.f32.gmra.mxu0 %v2928
        %v3124 = vpop.f32.mrf.mxu0
        %v3125 = vadd.f32 0.0, %v3124
        %3126 = vmatmul.f32.gmra.mxu0 %v2929
        %v3127 = vpop.f32.mrf.mxu0
        %v3128 = vadd.f32 0.0, %v3127
        %3129 = vmatmul.f32.gmra.mxu0 %v2930
        %v3130 = vpop.f32.mrf.mxu0
        %v3131 = vadd.f32 0.0, %v3130
        %3132 = vmatmul.f32.gmra.mxu0 %v2931
        %v3133 = vpop.f32.mrf.mxu0
        %v3134 = vadd.f32 0.0, %v3133
        %3135 = vmatmul.f32.gmra.mxu0 %v2932
        %v3136 = vpop.f32.mrf.mxu0
        %v3137 = vadd.f32 0.0, %v3136
        %3138 = vmatmul.f32.gmra.mxu0 %v2933
        %v3139 = vpop.f32.mrf.mxu0
        %v3140 = vadd.f32 0.0, %v3139
        %3141 = vmatmul.f32.gmra.mxu0 %v2934
        %v3142 = vpop.f32.mrf.mxu0
        %v3143 = vadd.f32 0.0, %v3142
        %3144 = vmatmul.f32.gmra.mxu0 %v2935
        %v3145 = vpop.f32.mrf.mxu0
        %v3146 = vadd.f32 0.0, %v3145
        %3147 = vmatmul.f32.gmra.mxu0 %v2936
        %v3148 = vpop.f32.mrf.mxu0
        %v3149 = vadd.f32 0.0, %v3148
        %3150 = vmatmul.f32.gmra.mxu0 %v2937
        %v3151 = vpop.f32.mrf.mxu0
        %v3152 = vadd.f32 0.0, %v3151
        %3153 = vmatmul.f32.gmra.mxu0 %v2938
        %v3154 = vpop.f32.mrf.mxu0
        %v3155 = vadd.f32 0.0, %v3154
        %3156 = vmatmul.f32.gmra.mxu0 %v2939
        %v3157 = vpop.f32.mrf.mxu0
        %v3158 = vadd.f32 0.0, %v3157
        %3159 = vmatmul.f32.gmra.mxu0 %v2940
        %v3160 = vpop.f32.mrf.mxu0
        %v3161 = vadd.f32 0.0, %v3160
        %3162 = vmatmul.f32.gmra.mxu0 %v2941
        %v3163 = vpop.f32.mrf.mxu0
        %v3164 = vadd.f32 0.0, %v3163
        %3165 = vmatmul.f32.gmra.mxu0 %v2942
        %v3166 = vpop.f32.mrf.mxu0
        %v3167 = vadd.f32 0.0, %v3166
        %3168 = vdwg.mxu0
        %v3169 = vadd.f32 %v2814, %v2978
        %v3170 = vadd.f32 %v2815, %v2981
        %v3171 = vadd.f32 %v2816, %v2984
        %v3172 = vadd.f32 %v2817, %v2987
        %v3173 = vadd.f32 %v2818, %v2990
        %v3174 = vadd.f32 %v2819, %v2993
        %v3175 = vadd.f32 %v2820, %v2996
        %v3176 = vadd.f32 %v2821, %v2999
        %v3177 = vadd.f32 %v2822, %v3002
        %v3178 = vadd.f32 %v2823, %v3005
        %v3179 = vadd.f32 %v2824, %v3008
        %v3180 = vadd.f32 %v2825, %v3011
        %v3181 = vadd.f32 %v2826, %v3014
        %v3182 = vadd.f32 %v2827, %v3017
        %v3183 = vadd.f32 %v2828, %v3020
        %v3184 = vadd.f32 %v2829, %v3023
        %v3185 = vadd.f32 %v2830, %v3026
        %v3186 = vadd.f32 %v2831, %v3029
        %v3187 = vadd.f32 %v2832, %v3032
        %v3188 = vadd.f32 %v2833, %v3035
        %v3189 = vadd.f32 %v2834, %v3038
        %v3190 = vadd.f32 %v2835, %v3041
        %v3191 = vadd.f32 %v2836, %v3044
        %v3192 = vadd.f32 %v2837, %v3047
        %v3193 = vadd.f32 %v2838, %v3050
        %v3194 = vadd.f32 %v2839, %v3053
        %v3195 = vadd.f32 %v2840, %v3056
        %v3196 = vadd.f32 %v2841, %v3059
        %v3197 = vadd.f32 %v2842, %v3062
        %v3198 = vadd.f32 %v2843, %v3065
        %v3199 = vadd.f32 %v2844, %v3068
        %v3200 = vadd.f32 %v2845, %v3071
        %v3201 = vadd.f32 %v2846, %v3074
        %v3202 = vadd.f32 %v2847, %v3077
        %v3203 = vadd.f32 %v2848, %v3080
        %v3204 = vadd.f32 %v2849, %v3083
        %v3205 = vadd.f32 %v2850, %v3086
        %v3206 = vadd.f32 %v2851, %v3089
        %v3207 = vadd.f32 %v2852, %v3092
        %v3208 = vadd.f32 %v2853, %v3095
        %v3209 = vadd.f32 %v2854, %v3098
        %v3210 = vadd.f32 %v2855, %v3101
        %v3211 = vadd.f32 %v2856, %v3104
        %v3212 = vadd.f32 %v2857, %v3107
        %v3213 = vadd.f32 %v2858, %v3110
        %v3214 = vadd.f32 %v2859, %v3113
        %v3215 = vadd.f32 %v2860, %v3116
        %v3216 = vadd.f32 %v2861, %v3119
        %v3217 = vadd.f32 %v2862, %v3122
        %v3218 = vadd.f32 %v2863, %v3125
        %v3219 = vadd.f32 %v2864, %v3128
        %v3220 = vadd.f32 %v2865, %v3131
        %v3221 = vadd.f32 %v2866, %v3134
        %v3222 = vadd.f32 %v2867, %v3137
        %v3223 = vadd.f32 %v2868, %v3140
        %v3224 = vadd.f32 %v2869, %v3143
        %v3225 = vadd.f32 %v2870, %v3146
        %v3226 = vadd.f32 %v2871, %v3149
        %v3227 = vadd.f32 %v2872, %v3152
        %v3228 = vadd.f32 %v2873, %v3155
        %v3229 = vadd.f32 %v2874, %v3158
        %v3230 = vadd.f32 %v2875, %v3161
        %v3231 = vadd.f32 %v2876, %v3164
        %v3232 = vadd.f32 %v2877, %v3167
        %v3233 = vld [vmem:[%s2878 + $0x2] sm:$0xff]
        %v3234 = vld [vmem:[%s2878 + $0xa] sm:$0xff]
        %v3235 = vld [vmem:[%s2878 + $0x1a] sm:$0xff]
        %v3236 = vld [vmem:[%s2878 + $0x22] sm:$0xff]
        %v3237 = vld [vmem:[%s2878 + $0x32] sm:$0xff]
        %v3238 = vld [vmem:[%s2878 + $0x3a] sm:$0xff]
        %v3239 = vld [vmem:[%s2878 + $0x4a] sm:$0xff]
        %v3240 = vld [vmem:[%s2878 + $0x52] sm:$0xff]
        %v3241 = vld [vmem:[%s2878 + $0x62] sm:$0xff]
        %v3242 = vld [vmem:[%s2878 + $0x6a] sm:$0xff]
        %v3243 = vld [vmem:[%s2878 + $0x7a] sm:$0xff]
        %v3244 = vld [vmem:[%s2878 + $0x82] sm:$0xff]
        %v3245 = vld [vmem:[%s2878 + $0x92] sm:$0xff]
        %v3246 = vld [vmem:[%s2878 + $0x9a] sm:$0xff]
        %v3247 = vld [vmem:[%s2878 + $0xaa] sm:$0xff]
        %v3248 = vld [vmem:[%s2878 + $0xb2] sm:$0xff]
        %v3249 = vld [vmem:[%s2878 + $0xc2] sm:$0xff]
        %v3250 = vld [vmem:[%s2878 + $0xca] sm:$0xff]
        %v3251 = vld [vmem:[%s2878 + $0xda] sm:$0xff]
        %v3252 = vld [vmem:[%s2878 + $0xe2] sm:$0xff]
        %v3253 = vld [vmem:[%s2878 + $0xf2] sm:$0xff]
        %v3254 = vld [vmem:[%s2878 + $0xfa] sm:$0xff]
        %v3255 = vld [vmem:[%s2878 + $0x10a] sm:$0xff]
        %v3256 = vld [vmem:[%s2878 + $0x112] sm:$0xff]
        %v3257 = vld [vmem:[%s2878 + $0x122] sm:$0xff]
        %v3258 = vld [vmem:[%s2878 + $0x12a] sm:$0xff]
        %v3259 = vld [vmem:[%s2878 + $0x13a] sm:$0xff]
        %v3260 = vld [vmem:[%s2878 + $0x142] sm:$0xff]
        %v3261 = vld [vmem:[%s2878 + $0x152] sm:$0xff]
        %v3262 = vld [vmem:[%s2878 + $0x15a] sm:$0xff]
        %v3263 = vld [vmem:[%s2878 + $0x16a] sm:$0xff]
        %v3264 = vld [vmem:[%s2878 + $0x172] sm:$0xff]
        %v3265 = vld [vmem:[%s2878 + $0x1e2] sm:$0xff]
        %v3266 = vld [vmem:[%s2878 + $0x1ea] sm:$0xff]
        %v3267 = vld [vmem:[%s2878 + $0x1fa] sm:$0xff]
        %v3268 = vld [vmem:[%s2878 + $0x202] sm:$0xff]
        %v3269 = vld [vmem:[%s2878 + $0x212] sm:$0xff]
        %v3270 = vld [vmem:[%s2878 + $0x21a] sm:$0xff]
        %v3271 = vld [vmem:[%s2878 + $0x22a] sm:$0xff]
        %v3272 = vld [vmem:[%s2878 + $0x232] sm:$0xff]
        %v3273 = vld [vmem:[%s2878 + $0x242] sm:$0xff]
        %v3274 = vld [vmem:[%s2878 + $0x24a] sm:$0xff]
        %v3275 = vld [vmem:[%s2878 + $0x25a] sm:$0xff]
        %v3276 = vld [vmem:[%s2878 + $0x262] sm:$0xff]
        %v3277 = vld [vmem:[%s2878 + $0x272] sm:$0xff]
        %v3278 = vld [vmem:[%s2878 + $0x27a] sm:$0xff]
        %v3279 = vld [vmem:[%s2878 + $0x28a] sm:$0xff]
        %v3280 = vld [vmem:[%s2878 + $0x292] sm:$0xff]
        %v3281 = vld [vmem:[%s2878 + $0x2a2] sm:$0xff]
        %v3282 = vld [vmem:[%s2878 + $0x2aa] sm:$0xff]
        %v3283 = vld [vmem:[%s2878 + $0x2ba] sm:$0xff]
        %v3284 = vld [vmem:[%s2878 + $0x2c2] sm:$0xff]
        %v3285 = vld [vmem:[%s2878 + $0x2d2] sm:$0xff]
        %v3286 = vld [vmem:[%s2878 + $0x2da] sm:$0xff]
        %v3287 = vld [vmem:[%s2878 + $0x2ea] sm:$0xff]
        %v3288 = vld [vmem:[%s2878 + $0x2f2] sm:$0xff]
        %v3289 = vld [vmem:[%s2878 + $0x302] sm:$0xff]
        %v3290 = vld [vmem:[%s2878 + $0x30a] sm:$0xff]
        %v3291 = vld [vmem:[%s2878 + $0x31a] sm:$0xff]
        %v3292 = vld [vmem:[%s2878 + $0x322] sm:$0xff]
        %v3293 = vld [vmem:[%s2878 + $0x332] sm:$0xff]
        %v3294 = vld [vmem:[%s2878 + $0x33a] sm:$0xff]
        %v3295 = vld [vmem:[%s2878 + $0x34a] sm:$0xff]
        %v3296 = vld [vmem:[%s2878 + $0x352] sm:$0xff]
        %s3297 = scalar_lea.vmem %s382, 896
        %v3298 = vld [vmem:[%s3297] sm:$0xff]
        %v3299 = vld [vmem:[%s3297 + $0x8] sm:$0xff]
        %v3300 = vld [vmem:[%s3297 + $0x10] sm:$0xff]
        %v3301 = vld [vmem:[%s3297 + $0x18] sm:$0xff]
        %v3302 = vld [vmem:[%s3297 + $0x20] sm:$0xff]
        %v3303 = vld [vmem:[%s3297 + $0x28] sm:$0xff]
        %v3304 = vld [vmem:[%s3297 + $0x30] sm:$0xff]
        %v3305 = vld [vmem:[%s3297 + $0x38] sm:$0xff]
        %v3306 = vld [vmem:[%s3297 + $0x40] sm:$0xff]
        %v3307 = vld [vmem:[%s3297 + $0x48] sm:$0xff]
        %v3308 = vld [vmem:[%s3297 + $0x50] sm:$0xff]
        %v3309 = vld [vmem:[%s3297 + $0x58] sm:$0xff]
        %v3310 = vld [vmem:[%s3297 + $0x60] sm:$0xff]
        %v3311 = vld [vmem:[%s3297 + $0x68] sm:$0xff]
        %v3312 = vld [vmem:[%s3297 + $0x70] sm:$0xff]
        %v3313 = vld [vmem:[%s3297 + $0x78] sm:$0xff]
        %3314 = vmatpush.msra.mxu0 %v3313
        %3315 = vmatpush.msra.mxu0 %v3312
        %3316 = vmatpush.msra.mxu0 %v3311
        %3317 = vmatpush.msra.mxu0 %v3310
        %3318 = vmatpush.msra.mxu0 %v3309
        %3319 = vmatpush.msra.mxu0 %v3308
        %3320 = vmatpush.msra.mxu0 %v3307
        %3321 = vmatpush.msra.mxu0 %v3306
        %3322 = vmatpush.msra.mxu0 %v3305
        %3323 = vmatpush.msra.mxu0 %v3304
        %3324 = vmatpush.msra.mxu0 %v3303
        %3325 = vmatpush.msra.mxu0 %v3302
        %3326 = vmatpush.msra.mxu0 %v3301
        %3327 = vmatpush.msra.mxu0 %v3300
        %3328 = vmatpush.msra.mxu0 %v3299
        %3329 = vmatpush.msra.mxu0 %v3298
        %3330 = vmatmul.f32.gmra.mxu0 %v3233
        %v3331 = vpop.f32.mrf.mxu0
        %v3332 = vadd.f32 0.0, %v3331
        %3333 = vmatmul.f32.gmra.mxu0 %v3234
        %v3334 = vpop.f32.mrf.mxu0
        %v3335 = vadd.f32 0.0, %v3334
        %3336 = vmatmul.f32.gmra.mxu0 %v3235
        %v3337 = vpop.f32.mrf.mxu0
        %v3338 = vadd.f32 0.0, %v3337
        %3339 = vmatmul.f32.gmra.mxu0 %v3236
        %v3340 = vpop.f32.mrf.mxu0
        %v3341 = vadd.f32 0.0, %v3340
        %3342 = vmatmul.f32.gmra.mxu0 %v3237
        %v3343 = vpop.f32.mrf.mxu0
        %v3344 = vadd.f32 0.0, %v3343
        %3345 = vmatmul.f32.gmra.mxu0 %v3238
        %v3346 = vpop.f32.mrf.mxu0
        %v3347 = vadd.f32 0.0, %v3346
        %3348 = vmatmul.f32.gmra.mxu0 %v3239
        %v3349 = vpop.f32.mrf.mxu0
        %v3350 = vadd.f32 0.0, %v3349
        %3351 = vmatmul.f32.gmra.mxu0 %v3240
        %v3352 = vpop.f32.mrf.mxu0
        %v3353 = vadd.f32 0.0, %v3352
        %3354 = vmatmul.f32.gmra.mxu0 %v3241
        %v3355 = vpop.f32.mrf.mxu0
        %v3356 = vadd.f32 0.0, %v3355
        %3357 = vmatmul.f32.gmra.mxu0 %v3242
        %v3358 = vpop.f32.mrf.mxu0
        %v3359 = vadd.f32 0.0, %v3358
        %3360 = vmatmul.f32.gmra.mxu0 %v3243
        %v3361 = vpop.f32.mrf.mxu0
        %v3362 = vadd.f32 0.0, %v3361
        %3363 = vmatmul.f32.gmra.mxu0 %v3244
        %v3364 = vpop.f32.mrf.mxu0
        %v3365 = vadd.f32 0.0, %v3364
        %3366 = vmatmul.f32.gmra.mxu0 %v3245
        %v3367 = vpop.f32.mrf.mxu0
        %v3368 = vadd.f32 0.0, %v3367
        %3369 = vmatmul.f32.gmra.mxu0 %v3246
        %v3370 = vpop.f32.mrf.mxu0
        %v3371 = vadd.f32 0.0, %v3370
        %3372 = vmatmul.f32.gmra.mxu0 %v3247
        %v3373 = vpop.f32.mrf.mxu0
        %v3374 = vadd.f32 0.0, %v3373
        %3375 = vmatmul.f32.gmra.mxu0 %v3248
        %v3376 = vpop.f32.mrf.mxu0
        %v3377 = vadd.f32 0.0, %v3376
        %3378 = vmatmul.f32.gmra.mxu0 %v3249
        %v3379 = vpop.f32.mrf.mxu0
        %v3380 = vadd.f32 0.0, %v3379
        %3381 = vmatmul.f32.gmra.mxu0 %v3250
        %v3382 = vpop.f32.mrf.mxu0
        %v3383 = vadd.f32 0.0, %v3382
        %3384 = vmatmul.f32.gmra.mxu0 %v3251
        %v3385 = vpop.f32.mrf.mxu0
        %v3386 = vadd.f32 0.0, %v3385
        %3387 = vmatmul.f32.gmra.mxu0 %v3252
        %v3388 = vpop.f32.mrf.mxu0
        %v3389 = vadd.f32 0.0, %v3388
        %3390 = vmatmul.f32.gmra.mxu0 %v3253
        %v3391 = vpop.f32.mrf.mxu0
        %v3392 = vadd.f32 0.0, %v3391
        %3393 = vmatmul.f32.gmra.mxu0 %v3254
        %v3394 = vpop.f32.mrf.mxu0
        %v3395 = vadd.f32 0.0, %v3394
        %3396 = vmatmul.f32.gmra.mxu0 %v3255
        %v3397 = vpop.f32.mrf.mxu0
        %v3398 = vadd.f32 0.0, %v3397
        %3399 = vmatmul.f32.gmra.mxu0 %v3256
        %v3400 = vpop.f32.mrf.mxu0
        %v3401 = vadd.f32 0.0, %v3400
        %3402 = vmatmul.f32.gmra.mxu0 %v3257
        %v3403 = vpop.f32.mrf.mxu0
        %v3404 = vadd.f32 0.0, %v3403
        %3405 = vmatmul.f32.gmra.mxu0 %v3258
        %v3406 = vpop.f32.mrf.mxu0
        %v3407 = vadd.f32 0.0, %v3406
        %3408 = vmatmul.f32.gmra.mxu0 %v3259
        %v3409 = vpop.f32.mrf.mxu0
        %v3410 = vadd.f32 0.0, %v3409
        %3411 = vmatmul.f32.gmra.mxu0 %v3260
        %v3412 = vpop.f32.mrf.mxu0
        %v3413 = vadd.f32 0.0, %v3412
        %3414 = vmatmul.f32.gmra.mxu0 %v3261
        %v3415 = vpop.f32.mrf.mxu0
        %v3416 = vadd.f32 0.0, %v3415
        %3417 = vmatmul.f32.gmra.mxu0 %v3262
        %v3418 = vpop.f32.mrf.mxu0
        %v3419 = vadd.f32 0.0, %v3418
        %3420 = vmatmul.f32.gmra.mxu0 %v3263
        %v3421 = vpop.f32.mrf.mxu0
        %v3422 = vadd.f32 0.0, %v3421
        %3423 = vmatmul.f32.gmra.mxu0 %v3264
        %v3424 = vpop.f32.mrf.mxu0
        %v3425 = vadd.f32 0.0, %v3424
        %3426 = vmatmul.f32.gmra.mxu0 %v3265
        %v3427 = vpop.f32.mrf.mxu0
        %v3428 = vadd.f32 0.0, %v3427
        %3429 = vmatmul.f32.gmra.mxu0 %v3266
        %v3430 = vpop.f32.mrf.mxu0
        %v3431 = vadd.f32 0.0, %v3430
        %3432 = vmatmul.f32.gmra.mxu0 %v3267
        %v3433 = vpop.f32.mrf.mxu0
        %v3434 = vadd.f32 0.0, %v3433
        %3435 = vmatmul.f32.gmra.mxu0 %v3268
        %v3436 = vpop.f32.mrf.mxu0
        %v3437 = vadd.f32 0.0, %v3436
        %3438 = vmatmul.f32.gmra.mxu0 %v3269
        %v3439 = vpop.f32.mrf.mxu0
        %v3440 = vadd.f32 0.0, %v3439
        %3441 = vmatmul.f32.gmra.mxu0 %v3270
        %v3442 = vpop.f32.mrf.mxu0
        %v3443 = vadd.f32 0.0, %v3442
        %3444 = vmatmul.f32.gmra.mxu0 %v3271
        %v3445 = vpop.f32.mrf.mxu0
        %v3446 = vadd.f32 0.0, %v3445
        %3447 = vmatmul.f32.gmra.mxu0 %v3272
        %v3448 = vpop.f32.mrf.mxu0
        %v3449 = vadd.f32 0.0, %v3448
        %3450 = vmatmul.f32.gmra.mxu0 %v3273
        %v3451 = vpop.f32.mrf.mxu0
        %v3452 = vadd.f32 0.0, %v3451
        %3453 = vmatmul.f32.gmra.mxu0 %v3274
        %v3454 = vpop.f32.mrf.mxu0
        %v3455 = vadd.f32 0.0, %v3454
        %3456 = vmatmul.f32.gmra.mxu0 %v3275
        %v3457 = vpop.f32.mrf.mxu0
        %v3458 = vadd.f32 0.0, %v3457
        %3459 = vmatmul.f32.gmra.mxu0 %v3276
        %v3460 = vpop.f32.mrf.mxu0
        %v3461 = vadd.f32 0.0, %v3460
        %3462 = vmatmul.f32.gmra.mxu0 %v3277
        %v3463 = vpop.f32.mrf.mxu0
        %v3464 = vadd.f32 0.0, %v3463
        %3465 = vmatmul.f32.gmra.mxu0 %v3278
        %v3466 = vpop.f32.mrf.mxu0
        %v3467 = vadd.f32 0.0, %v3466
        %3468 = vmatmul.f32.gmra.mxu0 %v3279
        %v3469 = vpop.f32.mrf.mxu0
        %v3470 = vadd.f32 0.0, %v3469
        %3471 = vmatmul.f32.gmra.mxu0 %v3280
        %v3472 = vpop.f32.mrf.mxu0
        %v3473 = vadd.f32 0.0, %v3472
        %3474 = vmatmul.f32.gmra.mxu0 %v3281
        %v3475 = vpop.f32.mrf.mxu0
        %v3476 = vadd.f32 0.0, %v3475
        %3477 = vmatmul.f32.gmra.mxu0 %v3282
        %v3478 = vpop.f32.mrf.mxu0
        %v3479 = vadd.f32 0.0, %v3478
        %3480 = vmatmul.f32.gmra.mxu0 %v3283
        %v3481 = vpop.f32.mrf.mxu0
        %v3482 = vadd.f32 0.0, %v3481
        %3483 = vmatmul.f32.gmra.mxu0 %v3284
        %v3484 = vpop.f32.mrf.mxu0
        %v3485 = vadd.f32 0.0, %v3484
        %3486 = vmatmul.f32.gmra.mxu0 %v3285
        %v3487 = vpop.f32.mrf.mxu0
        %v3488 = vadd.f32 0.0, %v3487
        %3489 = vmatmul.f32.gmra.mxu0 %v3286
        %v3490 = vpop.f32.mrf.mxu0
        %v3491 = vadd.f32 0.0, %v3490
        %3492 = vmatmul.f32.gmra.mxu0 %v3287
        %v3493 = vpop.f32.mrf.mxu0
        %v3494 = vadd.f32 0.0, %v3493
        %3495 = vmatmul.f32.gmra.mxu0 %v3288
        %v3496 = vpop.f32.mrf.mxu0
        %v3497 = vadd.f32 0.0, %v3496
        %3498 = vmatmul.f32.gmra.mxu0 %v3289
        %v3499 = vpop.f32.mrf.mxu0
        %v3500 = vadd.f32 0.0, %v3499
        %3501 = vmatmul.f32.gmra.mxu0 %v3290
        %v3502 = vpop.f32.mrf.mxu0
        %v3503 = vadd.f32 0.0, %v3502
        %3504 = vmatmul.f32.gmra.mxu0 %v3291
        %v3505 = vpop.f32.mrf.mxu0
        %v3506 = vadd.f32 0.0, %v3505
        %3507 = vmatmul.f32.gmra.mxu0 %v3292
        %v3508 = vpop.f32.mrf.mxu0
        %v3509 = vadd.f32 0.0, %v3508
        %3510 = vmatmul.f32.gmra.mxu0 %v3293
        %v3511 = vpop.f32.mrf.mxu0
        %v3512 = vadd.f32 0.0, %v3511
        %3513 = vmatmul.f32.gmra.mxu0 %v3294
        %v3514 = vpop.f32.mrf.mxu0
        %v3515 = vadd.f32 0.0, %v3514
        %3516 = vmatmul.f32.gmra.mxu0 %v3295
        %v3517 = vpop.f32.mrf.mxu0
        %v3518 = vadd.f32 0.0, %v3517
        %3519 = vmatmul.f32.gmra.mxu0 %v3296
        %v3520 = vpop.f32.mrf.mxu0
        %v3521 = vadd.f32 0.0, %v3520
        %3522 = vdwg.mxu0
        %v3523 = vadd.f32 %v3169, %v3332
        %v3524 = vadd.f32 %v3170, %v3335
        %v3525 = vadd.f32 %v3171, %v3338
        %v3526 = vadd.f32 %v3172, %v3341
        %v3527 = vadd.f32 %v3173, %v3344
        %v3528 = vadd.f32 %v3174, %v3347
        %v3529 = vadd.f32 %v3175, %v3350
        %v3530 = vadd.f32 %v3176, %v3353
        %v3531 = vadd.f32 %v3177, %v3356
        %v3532 = vadd.f32 %v3178, %v3359
        %v3533 = vadd.f32 %v3179, %v3362
        %v3534 = vadd.f32 %v3180, %v3365
        %v3535 = vadd.f32 %v3181, %v3368
        %v3536 = vadd.f32 %v3182, %v3371
        %v3537 = vadd.f32 %v3183, %v3374
        %v3538 = vadd.f32 %v3184, %v3377
        %v3539 = vadd.f32 %v3185, %v3380
        %v3540 = vadd.f32 %v3186, %v3383
        %v3541 = vadd.f32 %v3187, %v3386
        %v3542 = vadd.f32 %v3188, %v3389
        %v3543 = vadd.f32 %v3189, %v3392
        %v3544 = vadd.f32 %v3190, %v3395
        %v3545 = vadd.f32 %v3191, %v3398
        %v3546 = vadd.f32 %v3192, %v3401
        %v3547 = vadd.f32 %v3193, %v3404
        %v3548 = vadd.f32 %v3194, %v3407
        %v3549 = vadd.f32 %v3195, %v3410
        %v3550 = vadd.f32 %v3196, %v3413
        %v3551 = vadd.f32 %v3197, %v3416
        %v3552 = vadd.f32 %v3198, %v3419
        %v3553 = vadd.f32 %v3199, %v3422
        %v3554 = vadd.f32 %v3200, %v3425
        %v3555 = vadd.f32 %v3201, %v3428
        %v3556 = vadd.f32 %v3202, %v3431
        %v3557 = vadd.f32 %v3203, %v3434
        %v3558 = vadd.f32 %v3204, %v3437
        %v3559 = vadd.f32 %v3205, %v3440
        %v3560 = vadd.f32 %v3206, %v3443
        %v3561 = vadd.f32 %v3207, %v3446
        %v3562 = vadd.f32 %v3208, %v3449
        %v3563 = vadd.f32 %v3209, %v3452
        %v3564 = vadd.f32 %v3210, %v3455
        %v3565 = vadd.f32 %v3211, %v3458
        %v3566 = vadd.f32 %v3212, %v3461
        %v3567 = vadd.f32 %v3213, %v3464
        %v3568 = vadd.f32 %v3214, %v3467
        %v3569 = vadd.f32 %v3215, %v3470
        %v3570 = vadd.f32 %v3216, %v3473
        %v3571 = vadd.f32 %v3217, %v3476
        %v3572 = vadd.f32 %v3218, %v3479
        %v3573 = vadd.f32 %v3219, %v3482
        %v3574 = vadd.f32 %v3220, %v3485
        %v3575 = vadd.f32 %v3221, %v3488
        %v3576 = vadd.f32 %v3222, %v3491
        %v3577 = vadd.f32 %v3223, %v3494
        %v3578 = vadd.f32 %v3224, %v3497
        %v3579 = vadd.f32 %v3225, %v3500
        %v3580 = vadd.f32 %v3226, %v3503
        %v3581 = vadd.f32 %v3227, %v3506
        %v3582 = vadd.f32 %v3228, %v3509
        %v3583 = vadd.f32 %v3229, %v3512
        %v3584 = vadd.f32 %v3230, %v3515
        %v3585 = vadd.f32 %v3231, %v3518
        %v3586 = vadd.f32 %v3232, %v3521
        %v3587 = vld [vmem:[%s2878 + $0x3] sm:$0xff]
        %v3588 = vld [vmem:[%s2878 + $0xb] sm:$0xff]
        %v3589 = vld [vmem:[%s2878 + $0x1b] sm:$0xff]
        %v3590 = vld [vmem:[%s2878 + $0x23] sm:$0xff]
        %v3591 = vld [vmem:[%s2878 + $0x33] sm:$0xff]
        %v3592 = vld [vmem:[%s2878 + $0x3b] sm:$0xff]
        %v3593 = vld [vmem:[%s2878 + $0x4b] sm:$0xff]
        %v3594 = vld [vmem:[%s2878 + $0x53] sm:$0xff]
        %v3595 = vld [vmem:[%s2878 + $0x63] sm:$0xff]
        %v3596 = vld [vmem:[%s2878 + $0x6b] sm:$0xff]
        %v3597 = vld [vmem:[%s2878 + $0x7b] sm:$0xff]
        %v3598 = vld [vmem:[%s2878 + $0x83] sm:$0xff]
        %v3599 = vld [vmem:[%s2878 + $0x93] sm:$0xff]
        %v3600 = vld [vmem:[%s2878 + $0x9b] sm:$0xff]
        %v3601 = vld [vmem:[%s2878 + $0xab] sm:$0xff]
        %v3602 = vld [vmem:[%s2878 + $0xb3] sm:$0xff]
        %v3603 = vld [vmem:[%s2878 + $0xc3] sm:$0xff]
        %v3604 = vld [vmem:[%s2878 + $0xcb] sm:$0xff]
        %v3605 = vld [vmem:[%s2878 + $0xdb] sm:$0xff]
        %v3606 = vld [vmem:[%s2878 + $0xe3] sm:$0xff]
        %v3607 = vld [vmem:[%s2878 + $0xf3] sm:$0xff]
        %v3608 = vld [vmem:[%s2878 + $0xfb] sm:$0xff]
        %v3609 = vld [vmem:[%s2878 + $0x10b] sm:$0xff]
        %v3610 = vld [vmem:[%s2878 + $0x113] sm:$0xff]
        %v3611 = vld [vmem:[%s2878 + $0x123] sm:$0xff]
        %v3612 = vld [vmem:[%s2878 + $0x12b] sm:$0xff]
        %v3613 = vld [vmem:[%s2878 + $0x13b] sm:$0xff]
        %v3614 = vld [vmem:[%s2878 + $0x143] sm:$0xff]
        %v3615 = vld [vmem:[%s2878 + $0x153] sm:$0xff]
        %v3616 = vld [vmem:[%s2878 + $0x15b] sm:$0xff]
        %v3617 = vld [vmem:[%s2878 + $0x16b] sm:$0xff]
        %v3618 = vld [vmem:[%s2878 + $0x173] sm:$0xff]
        %v3619 = vld [vmem:[%s2878 + $0x1e3] sm:$0xff]
        %v3620 = vld [vmem:[%s2878 + $0x1eb] sm:$0xff]
        %v3621 = vld [vmem:[%s2878 + $0x1fb] sm:$0xff]
        %v3622 = vld [vmem:[%s2878 + $0x203] sm:$0xff]
        %v3623 = vld [vmem:[%s2878 + $0x213] sm:$0xff]
        %v3624 = vld [vmem:[%s2878 + $0x21b] sm:$0xff]
        %v3625 = vld [vmem:[%s2878 + $0x22b] sm:$0xff]
        %v3626 = vld [vmem:[%s2878 + $0x233] sm:$0xff]
        %v3627 = vld [vmem:[%s2878 + $0x243] sm:$0xff]
        %v3628 = vld [vmem:[%s2878 + $0x24b] sm:$0xff]
        %v3629 = vld [vmem:[%s2878 + $0x25b] sm:$0xff]
        %v3630 = vld [vmem:[%s2878 + $0x263] sm:$0xff]
        %v3631 = vld [vmem:[%s2878 + $0x273] sm:$0xff]
        %v3632 = vld [vmem:[%s2878 + $0x27b] sm:$0xff]
        %v3633 = vld [vmem:[%s2878 + $0x28b] sm:$0xff]
        %v3634 = vld [vmem:[%s2878 + $0x293] sm:$0xff]
        %v3635 = vld [vmem:[%s2878 + $0x2a3] sm:$0xff]
        %v3636 = vld [vmem:[%s2878 + $0x2ab] sm:$0xff]
        %v3637 = vld [vmem:[%s2878 + $0x2bb] sm:$0xff]
        %v3638 = vld [vmem:[%s2878 + $0x2c3] sm:$0xff]
        %v3639 = vld [vmem:[%s2878 + $0x2d3] sm:$0xff]
        %v3640 = vld [vmem:[%s2878 + $0x2db] sm:$0xff]
        %v3641 = vld [vmem:[%s2878 + $0x2eb] sm:$0xff]
        %v3642 = vld [vmem:[%s2878 + $0x2f3] sm:$0xff]
        %v3643 = vld [vmem:[%s2878 + $0x303] sm:$0xff]
        %v3644 = vld [vmem:[%s2878 + $0x30b] sm:$0xff]
        %v3645 = vld [vmem:[%s2878 + $0x31b] sm:$0xff]
        %v3646 = vld [vmem:[%s2878 + $0x323] sm:$0xff]
        %v3647 = vld [vmem:[%s2878 + $0x333] sm:$0xff]
        %v3648 = vld [vmem:[%s2878 + $0x33b] sm:$0xff]
        %v3649 = vld [vmem:[%s2878 + $0x34b] sm:$0xff]
        %v3650 = vld [vmem:[%s2878 + $0x353] sm:$0xff]
        %s3651 = scalar_lea.vmem %s382, 1024
        %v3652 = vld [vmem:[%s3651] sm:$0xff]
        %v3653 = vld [vmem:[%s3651 + $0x8] sm:$0xff]
        %v3654 = vld [vmem:[%s3651 + $0x10] sm:$0xff]
        %v3655 = vld [vmem:[%s3651 + $0x18] sm:$0xff]
        %v3656 = vld [vmem:[%s3651 + $0x20] sm:$0xff]
        %v3657 = vld [vmem:[%s3651 + $0x28] sm:$0xff]
        %v3658 = vld [vmem:[%s3651 + $0x30] sm:$0xff]
        %v3659 = vld [vmem:[%s3651 + $0x38] sm:$0xff]
        %v3660 = vld [vmem:[%s3651 + $0x40] sm:$0xff]
        %v3661 = vld [vmem:[%s3651 + $0x48] sm:$0xff]
        %v3662 = vld [vmem:[%s3651 + $0x50] sm:$0xff]
        %v3663 = vld [vmem:[%s3651 + $0x58] sm:$0xff]
        %v3664 = vld [vmem:[%s3651 + $0x60] sm:$0xff]
        %v3665 = vld [vmem:[%s3651 + $0x68] sm:$0xff]
        %v3666 = vld [vmem:[%s3651 + $0x70] sm:$0xff]
        %v3667 = vld [vmem:[%s3651 + $0x78] sm:$0xff]
        %3668 = vmatpush.msra.mxu0 %v3667
        %3669 = vmatpush.msra.mxu0 %v3666
        %3670 = vmatpush.msra.mxu0 %v3665
        %3671 = vmatpush.msra.mxu0 %v3664
        %3672 = vmatpush.msra.mxu0 %v3663
        %3673 = vmatpush.msra.mxu0 %v3662
        %3674 = vmatpush.msra.mxu0 %v3661
        %3675 = vmatpush.msra.mxu0 %v3660
        %3676 = vmatpush.msra.mxu0 %v3659
        %3677 = vmatpush.msra.mxu0 %v3658
        %3678 = vmatpush.msra.mxu0 %v3657
        %3679 = vmatpush.msra.mxu0 %v3656
        %3680 = vmatpush.msra.mxu0 %v3655
        %3681 = vmatpush.msra.mxu0 %v3654
        %3682 = vmatpush.msra.mxu0 %v3653
        %3683 = vmatpush.msra.mxu0 %v3652
        %3684 = vmatmul.f32.gmra.mxu0 %v3587
        %v3685 = vpop.f32.mrf.mxu0
        %v3686 = vadd.f32 0.0, %v3685
        %3687 = vmatmul.f32.gmra.mxu0 %v3588
        %v3688 = vpop.f32.mrf.mxu0
        %v3689 = vadd.f32 0.0, %v3688
        %3690 = vmatmul.f32.gmra.mxu0 %v3589
        %v3691 = vpop.f32.mrf.mxu0
        %v3692 = vadd.f32 0.0, %v3691
        %3693 = vmatmul.f32.gmra.mxu0 %v3590
        %v3694 = vpop.f32.mrf.mxu0
        %v3695 = vadd.f32 0.0, %v3694
        %3696 = vmatmul.f32.gmra.mxu0 %v3591
        %v3697 = vpop.f32.mrf.mxu0
        %v3698 = vadd.f32 0.0, %v3697
        %3699 = vmatmul.f32.gmra.mxu0 %v3592
        %v3700 = vpop.f32.mrf.mxu0
        %v3701 = vadd.f32 0.0, %v3700
        %3702 = vmatmul.f32.gmra.mxu0 %v3593
        %v3703 = vpop.f32.mrf.mxu0
        %v3704 = vadd.f32 0.0, %v3703
        %3705 = vmatmul.f32.gmra.mxu0 %v3594
        %v3706 = vpop.f32.mrf.mxu0
        %v3707 = vadd.f32 0.0, %v3706
        %3708 = vmatmul.f32.gmra.mxu0 %v3595
        %v3709 = vpop.f32.mrf.mxu0
        %v3710 = vadd.f32 0.0, %v3709
        %3711 = vmatmul.f32.gmra.mxu0 %v3596
        %v3712 = vpop.f32.mrf.mxu0
        %v3713 = vadd.f32 0.0, %v3712
        %3714 = vmatmul.f32.gmra.mxu0 %v3597
        %v3715 = vpop.f32.mrf.mxu0
        %v3716 = vadd.f32 0.0, %v3715
        %3717 = vmatmul.f32.gmra.mxu0 %v3598
        %v3718 = vpop.f32.mrf.mxu0
        %v3719 = vadd.f32 0.0, %v3718
        %3720 = vmatmul.f32.gmra.mxu0 %v3599
        %v3721 = vpop.f32.mrf.mxu0
        %v3722 = vadd.f32 0.0, %v3721
        %3723 = vmatmul.f32.gmra.mxu0 %v3600
        %v3724 = vpop.f32.mrf.mxu0
        %v3725 = vadd.f32 0.0, %v3724
        %3726 = vmatmul.f32.gmra.mxu0 %v3601
        %v3727 = vpop.f32.mrf.mxu0
        %v3728 = vadd.f32 0.0, %v3727
        %3729 = vmatmul.f32.gmra.mxu0 %v3602
        %v3730 = vpop.f32.mrf.mxu0
        %v3731 = vadd.f32 0.0, %v3730
        %3732 = vmatmul.f32.gmra.mxu0 %v3603
        %v3733 = vpop.f32.mrf.mxu0
        %v3734 = vadd.f32 0.0, %v3733
        %3735 = vmatmul.f32.gmra.mxu0 %v3604
        %v3736 = vpop.f32.mrf.mxu0
        %v3737 = vadd.f32 0.0, %v3736
        %3738 = vmatmul.f32.gmra.mxu0 %v3605
        %v3739 = vpop.f32.mrf.mxu0
        %v3740 = vadd.f32 0.0, %v3739
        %3741 = vmatmul.f32.gmra.mxu0 %v3606
        %v3742 = vpop.f32.mrf.mxu0
        %v3743 = vadd.f32 0.0, %v3742
        %3744 = vmatmul.f32.gmra.mxu0 %v3607
        %v3745 = vpop.f32.mrf.mxu0
        %v3746 = vadd.f32 0.0, %v3745
        %3747 = vmatmul.f32.gmra.mxu0 %v3608
        %v3748 = vpop.f32.mrf.mxu0
        %v3749 = vadd.f32 0.0, %v3748
        %3750 = vmatmul.f32.gmra.mxu0 %v3609
        %v3751 = vpop.f32.mrf.mxu0
        %v3752 = vadd.f32 0.0, %v3751
        %3753 = vmatmul.f32.gmra.mxu0 %v3610
        %v3754 = vpop.f32.mrf.mxu0
        %v3755 = vadd.f32 0.0, %v3754
        %3756 = vmatmul.f32.gmra.mxu0 %v3611
        %v3757 = vpop.f32.mrf.mxu0
        %v3758 = vadd.f32 0.0, %v3757
        %3759 = vmatmul.f32.gmra.mxu0 %v3612
        %v3760 = vpop.f32.mrf.mxu0
        %v3761 = vadd.f32 0.0, %v3760
        %3762 = vmatmul.f32.gmra.mxu0 %v3613
        %v3763 = vpop.f32.mrf.mxu0
        %v3764 = vadd.f32 0.0, %v3763
        %3765 = vmatmul.f32.gmra.mxu0 %v3614
        %v3766 = vpop.f32.mrf.mxu0
        %v3767 = vadd.f32 0.0, %v3766
        %3768 = vmatmul.f32.gmra.mxu0 %v3615
        %v3769 = vpop.f32.mrf.mxu0
        %v3770 = vadd.f32 0.0, %v3769
        %3771 = vmatmul.f32.gmra.mxu0 %v3616
        %v3772 = vpop.f32.mrf.mxu0
        %v3773 = vadd.f32 0.0, %v3772
        %3774 = vmatmul.f32.gmra.mxu0 %v3617
        %v3775 = vpop.f32.mrf.mxu0
        %v3776 = vadd.f32 0.0, %v3775
        %3777 = vmatmul.f32.gmra.mxu0 %v3618
        %v3778 = vpop.f32.mrf.mxu0
        %v3779 = vadd.f32 0.0, %v3778
        %3780 = vmatmul.f32.gmra.mxu0 %v3619
        %v3781 = vpop.f32.mrf.mxu0
        %v3782 = vadd.f32 0.0, %v3781
        %3783 = vmatmul.f32.gmra.mxu0 %v3620
        %v3784 = vpop.f32.mrf.mxu0
        %v3785 = vadd.f32 0.0, %v3784
        %3786 = vmatmul.f32.gmra.mxu0 %v3621
        %v3787 = vpop.f32.mrf.mxu0
        %v3788 = vadd.f32 0.0, %v3787
        %3789 = vmatmul.f32.gmra.mxu0 %v3622
        %v3790 = vpop.f32.mrf.mxu0
        %v3791 = vadd.f32 0.0, %v3790
        %3792 = vmatmul.f32.gmra.mxu0 %v3623
        %v3793 = vpop.f32.mrf.mxu0
        %v3794 = vadd.f32 0.0, %v3793
        %3795 = vmatmul.f32.gmra.mxu0 %v3624
        %v3796 = vpop.f32.mrf.mxu0
        %v3797 = vadd.f32 0.0, %v3796
        %3798 = vmatmul.f32.gmra.mxu0 %v3625
        %v3799 = vpop.f32.mrf.mxu0
        %v3800 = vadd.f32 0.0, %v3799
        %3801 = vmatmul.f32.gmra.mxu0 %v3626
        %v3802 = vpop.f32.mrf.mxu0
        %v3803 = vadd.f32 0.0, %v3802
        %3804 = vmatmul.f32.gmra.mxu0 %v3627
        %v3805 = vpop.f32.mrf.mxu0
        %v3806 = vadd.f32 0.0, %v3805
        %3807 = vmatmul.f32.gmra.mxu0 %v3628
        %v3808 = vpop.f32.mrf.mxu0
        %v3809 = vadd.f32 0.0, %v3808
        %3810 = vmatmul.f32.gmra.mxu0 %v3629
        %v3811 = vpop.f32.mrf.mxu0
        %v3812 = vadd.f32 0.0, %v3811
        %3813 = vmatmul.f32.gmra.mxu0 %v3630
        %v3814 = vpop.f32.mrf.mxu0
        %v3815 = vadd.f32 0.0, %v3814
        %3816 = vmatmul.f32.gmra.mxu0 %v3631
        %v3817 = vpop.f32.mrf.mxu0
        %v3818 = vadd.f32 0.0, %v3817
        %3819 = vmatmul.f32.gmra.mxu0 %v3632
        %v3820 = vpop.f32.mrf.mxu0
        %v3821 = vadd.f32 0.0, %v3820
        %3822 = vmatmul.f32.gmra.mxu0 %v3633
        %v3823 = vpop.f32.mrf.mxu0
        %v3824 = vadd.f32 0.0, %v3823
        %3825 = vmatmul.f32.gmra.mxu0 %v3634
        %v3826 = vpop.f32.mrf.mxu0
        %v3827 = vadd.f32 0.0, %v3826
        %3828 = vmatmul.f32.gmra.mxu0 %v3635
        %v3829 = vpop.f32.mrf.mxu0
        %v3830 = vadd.f32 0.0, %v3829
        %3831 = vmatmul.f32.gmra.mxu0 %v3636
        %v3832 = vpop.f32.mrf.mxu0
        %v3833 = vadd.f32 0.0, %v3832
        %3834 = vmatmul.f32.gmra.mxu0 %v3637
        %v3835 = vpop.f32.mrf.mxu0
        %v3836 = vadd.f32 0.0, %v3835
        %3837 = vmatmul.f32.gmra.mxu0 %v3638
        %v3838 = vpop.f32.mrf.mxu0
        %v3839 = vadd.f32 0.0, %v3838
        %3840 = vmatmul.f32.gmra.mxu0 %v3639
        %v3841 = vpop.f32.mrf.mxu0
        %v3842 = vadd.f32 0.0, %v3841
        %3843 = vmatmul.f32.gmra.mxu0 %v3640
        %v3844 = vpop.f32.mrf.mxu0
        %v3845 = vadd.f32 0.0, %v3844
        %3846 = vmatmul.f32.gmra.mxu0 %v3641
        %v3847 = vpop.f32.mrf.mxu0
        %v3848 = vadd.f32 0.0, %v3847
        %3849 = vmatmul.f32.gmra.mxu0 %v3642
        %v3850 = vpop.f32.mrf.mxu0
        %v3851 = vadd.f32 0.0, %v3850
        %3852 = vmatmul.f32.gmra.mxu0 %v3643
        %v3853 = vpop.f32.mrf.mxu0
        %v3854 = vadd.f32 0.0, %v3853
        %3855 = vmatmul.f32.gmra.mxu0 %v3644
        %v3856 = vpop.f32.mrf.mxu0
        %v3857 = vadd.f32 0.0, %v3856
        %3858 = vmatmul.f32.gmra.mxu0 %v3645
        %v3859 = vpop.f32.mrf.mxu0
        %v3860 = vadd.f32 0.0, %v3859
        %3861 = vmatmul.f32.gmra.mxu0 %v3646
        %v3862 = vpop.f32.mrf.mxu0
        %v3863 = vadd.f32 0.0, %v3862
        %3864 = vmatmul.f32.gmra.mxu0 %v3647
        %v3865 = vpop.f32.mrf.mxu0
        %v3866 = vadd.f32 0.0, %v3865
        %3867 = vmatmul.f32.gmra.mxu0 %v3648
        %v3868 = vpop.f32.mrf.mxu0
        %v3869 = vadd.f32 0.0, %v3868
        %3870 = vmatmul.f32.gmra.mxu0 %v3649
        %v3871 = vpop.f32.mrf.mxu0
        %v3872 = vadd.f32 0.0, %v3871
        %3873 = vmatmul.f32.gmra.mxu0 %v3650
        %v3874 = vpop.f32.mrf.mxu0
        %v3875 = vadd.f32 0.0, %v3874
        %3876 = vdwg.mxu0
        %v3877 = vadd.f32 %v3523, %v3686
        %v3878 = vadd.f32 %v3524, %v3689
        %v3879 = vadd.f32 %v3525, %v3692
        %v3880 = vadd.f32 %v3526, %v3695
        %v3881 = vadd.f32 %v3527, %v3698
        %v3882 = vadd.f32 %v3528, %v3701
        %v3883 = vadd.f32 %v3529, %v3704
        %v3884 = vadd.f32 %v3530, %v3707
        %v3885 = vadd.f32 %v3531, %v3710
        %v3886 = vadd.f32 %v3532, %v3713
        %v3887 = vadd.f32 %v3533, %v3716
        %v3888 = vadd.f32 %v3534, %v3719
        %v3889 = vadd.f32 %v3535, %v3722
        %v3890 = vadd.f32 %v3536, %v3725
        %v3891 = vadd.f32 %v3537, %v3728
        %v3892 = vadd.f32 %v3538, %v3731
        %v3893 = vadd.f32 %v3539, %v3734
        %v3894 = vadd.f32 %v3540, %v3737
        %v3895 = vadd.f32 %v3541, %v3740
        %v3896 = vadd.f32 %v3542, %v3743
        %v3897 = vadd.f32 %v3543, %v3746
        %v3898 = vadd.f32 %v3544, %v3749
        %v3899 = vadd.f32 %v3545, %v3752
        %v3900 = vadd.f32 %v3546, %v3755
        %v3901 = vadd.f32 %v3547, %v3758
        %v3902 = vadd.f32 %v3548, %v3761
        %v3903 = vadd.f32 %v3549, %v3764
        %v3904 = vadd.f32 %v3550, %v3767
        %v3905 = vadd.f32 %v3551, %v3770
        %v3906 = vadd.f32 %v3552, %v3773
        %v3907 = vadd.f32 %v3553, %v3776
        %v3908 = vadd.f32 %v3554, %v3779
        %v3909 = vadd.f32 %v3555, %v3782
        %v3910 = vadd.f32 %v3556, %v3785
        %v3911 = vadd.f32 %v3557, %v3788
        %v3912 = vadd.f32 %v3558, %v3791
        %v3913 = vadd.f32 %v3559, %v3794
        %v3914 = vadd.f32 %v3560, %v3797
        %v3915 = vadd.f32 %v3561, %v3800
        %v3916 = vadd.f32 %v3562, %v3803
        %v3917 = vadd.f32 %v3563, %v3806
        %v3918 = vadd.f32 %v3564, %v3809
        %v3919 = vadd.f32 %v3565, %v3812
        %v3920 = vadd.f32 %v3566, %v3815
        %v3921 = vadd.f32 %v3567, %v3818
        %v3922 = vadd.f32 %v3568, %v3821
        %v3923 = vadd.f32 %v3569, %v3824
        %v3924 = vadd.f32 %v3570, %v3827
        %v3925 = vadd.f32 %v3571, %v3830
        %v3926 = vadd.f32 %v3572, %v3833
        %v3927 = vadd.f32 %v3573, %v3836
        %v3928 = vadd.f32 %v3574, %v3839
        %v3929 = vadd.f32 %v3575, %v3842
        %v3930 = vadd.f32 %v3576, %v3845
        %v3931 = vadd.f32 %v3577, %v3848
        %v3932 = vadd.f32 %v3578, %v3851
        %v3933 = vadd.f32 %v3579, %v3854
        %v3934 = vadd.f32 %v3580, %v3857
        %v3935 = vadd.f32 %v3581, %v3860
        %v3936 = vadd.f32 %v3582, %v3863
        %v3937 = vadd.f32 %v3583, %v3866
        %v3938 = vadd.f32 %v3584, %v3869
        %v3939 = vadd.f32 %v3585, %v3872
        %v3940 = vadd.f32 %v3586, %v3875
        %v3941 = vld [vmem:[%s385] sm:$0x1]
        %v3943 = vperm.slane %v3941, 0
        %v3945 = vadd.f32 %v3877, %v3943
        %v3946 = vadd.f32 %v3878, %v3943
        %v3947 = vadd.f32 %v3879, %v3943
        %v3948 = vadd.f32 %v3880, %v3943
        %v3949 = vadd.f32 %v3881, %v3943
        %v3950 = vadd.f32 %v3882, %v3943
        %v3951 = vadd.f32 %v3883, %v3943
        %v3952 = vadd.f32 %v3884, %v3943
        %v3953 = vadd.f32 %v3885, %v3943
        %v3954 = vadd.f32 %v3886, %v3943
        %v3955 = vadd.f32 %v3887, %v3943
        %v3956 = vadd.f32 %v3888, %v3943
        %v3957 = vadd.f32 %v3889, %v3943
        %v3958 = vadd.f32 %v3890, %v3943
        %v3959 = vadd.f32 %v3891, %v3943
        %v3960 = vadd.f32 %v3892, %v3943
        %v3961 = vadd.f32 %v3893, %v3943
        %v3962 = vadd.f32 %v3894, %v3943
        %v3963 = vadd.f32 %v3895, %v3943
        %v3964 = vadd.f32 %v3896, %v3943
        %v3965 = vadd.f32 %v3897, %v3943
        %v3966 = vadd.f32 %v3898, %v3943
        %v3967 = vadd.f32 %v3899, %v3943
        %v3968 = vadd.f32 %v3900, %v3943
        %v3969 = vadd.f32 %v3901, %v3943
        %v3970 = vadd.f32 %v3902, %v3943
        %v3971 = vadd.f32 %v3903, %v3943
        %v3972 = vadd.f32 %v3904, %v3943
        %v3973 = vadd.f32 %v3905, %v3943
        %v3974 = vadd.f32 %v3906, %v3943
        %v3975 = vadd.f32 %v3907, %v3943
        %v3976 = vadd.f32 %v3908, %v3943
        %v3977 = vadd.f32 %v3909, %v3943
        %v3978 = vadd.f32 %v3910, %v3943
        %v3979 = vadd.f32 %v3911, %v3943
        %v3980 = vadd.f32 %v3912, %v3943
        %v3981 = vadd.f32 %v3913, %v3943
        %v3982 = vadd.f32 %v3914, %v3943
        %v3983 = vadd.f32 %v3915, %v3943
        %v3984 = vadd.f32 %v3916, %v3943
        %v3985 = vadd.f32 %v3917, %v3943
        %v3986 = vadd.f32 %v3918, %v3943
        %v3987 = vadd.f32 %v3919, %v3943
        %v3988 = vadd.f32 %v3920, %v3943
        %v3989 = vadd.f32 %v3921, %v3943
        %v3990 = vadd.f32 %v3922, %v3943
        %v3991 = vadd.f32 %v3923, %v3943
        %v3992 = vadd.f32 %v3924, %v3943
        %v3993 = vadd.f32 %v3925, %v3943
        %v3994 = vadd.f32 %v3926, %v3943
        %v3995 = vadd.f32 %v3927, %v3943
        %v3996 = vadd.f32 %v3928, %v3943
        %v3997 = vadd.f32 %v3929, %v3943
        %v3998 = vadd.f32 %v3930, %v3943
        %v3999 = vadd.f32 %v3931, %v3943
        %v4000 = vadd.f32 %v3932, %v3943
        %v4001 = vadd.f32 %v3933, %v3943
        %v4002 = vadd.f32 %v3934, %v3943
        %v4003 = vadd.f32 %v3935, %v3943
        %v4004 = vadd.f32 %v3936, %v3943
        %v4005 = vadd.f32 %v3937, %v3943
        %v4006 = vadd.f32 %v3938, %v3943
        %v4007 = vadd.f32 %v3939, %v3943
        %v4008 = vadd.f32 %v3940, %v3943
        %v4009 = vmax.f32 %v3945, 0.0
        %v4010 = vmax.f32 %v3946, 0.0
        %v4011 = vmax.f32 %v3947, 0.0
        %v4012 = vmax.f32 %v3948, 0.0
        %v4013 = vmax.f32 %v3949, 0.0
        %v4014 = vmax.f32 %v3950, 0.0
        %v4015 = vmax.f32 %v3951, 0.0
        %v4016 = vmax.f32 %v3952, 0.0
        %v4017 = vmax.f32 %v3953, 0.0
        %v4018 = vmax.f32 %v3954, 0.0
        %v4019 = vmax.f32 %v3955, 0.0
        %v4020 = vmax.f32 %v3956, 0.0
        %v4021 = vmax.f32 %v3957, 0.0
        %v4022 = vmax.f32 %v3958, 0.0
        %v4023 = vmax.f32 %v3959, 0.0
        %v4024 = vmax.f32 %v3960, 0.0
        %v4025 = vmax.f32 %v3961, 0.0
        %v4026 = vmax.f32 %v3962, 0.0
        %v4027 = vmax.f32 %v3963, 0.0
        %v4028 = vmax.f32 %v3964, 0.0
        %v4029 = vmax.f32 %v3965, 0.0
        %v4030 = vmax.f32 %v3966, 0.0
        %v4031 = vmax.f32 %v3967, 0.0
        %v4032 = vmax.f32 %v3968, 0.0
        %v4033 = vmax.f32 %v3969, 0.0
        %v4034 = vmax.f32 %v3970, 0.0
        %v4035 = vmax.f32 %v3971, 0.0
        %v4036 = vmax.f32 %v3972, 0.0
        %v4037 = vmax.f32 %v3973, 0.0
        %v4038 = vmax.f32 %v3974, 0.0
        %v4039 = vmax.f32 %v3975, 0.0
        %v4040 = vmax.f32 %v3976, 0.0
        %v4041 = vmax.f32 %v3977, 0.0
        %v4042 = vmax.f32 %v3978, 0.0
        %v4043 = vmax.f32 %v3979, 0.0
        %v4044 = vmax.f32 %v3980, 0.0
        %v4045 = vmax.f32 %v3981, 0.0
        %v4046 = vmax.f32 %v3982, 0.0
        %v4047 = vmax.f32 %v3983, 0.0
        %v4048 = vmax.f32 %v3984, 0.0
        %v4049 = vmax.f32 %v3985, 0.0
        %v4050 = vmax.f32 %v3986, 0.0
        %v4051 = vmax.f32 %v3987, 0.0
        %v4052 = vmax.f32 %v3988, 0.0
        %v4053 = vmax.f32 %v3989, 0.0
        %v4054 = vmax.f32 %v3990, 0.0
        %v4055 = vmax.f32 %v3991, 0.0
        %v4056 = vmax.f32 %v3992, 0.0
        %v4057 = vmax.f32 %v3993, 0.0
        %v4058 = vmax.f32 %v3994, 0.0
        %v4059 = vmax.f32 %v3995, 0.0
        %v4060 = vmax.f32 %v3996, 0.0
        %v4061 = vmax.f32 %v3997, 0.0
        %v4062 = vmax.f32 %v3998, 0.0
        %v4063 = vmax.f32 %v3999, 0.0
        %v4064 = vmax.f32 %v4000, 0.0
        %v4065 = vmax.f32 %v4001, 0.0
        %v4066 = vmax.f32 %v4002, 0.0
        %v4067 = vmax.f32 %v4003, 0.0
        %v4068 = vmax.f32 %v4004, 0.0
        %v4069 = vmax.f32 %v4005, 0.0
        %v4070 = vmax.f32 %v4006, 0.0
        %v4071 = vmax.f32 %v4007, 0.0
        %v4072 = vmax.f32 %v4008, 0.0
        %s4073 = scalar_lea.vmem [#allocation2], 48
        %4074 = vst [vmem:[%s4073 + $0x2] sm:$0xff] %v4009
        %4075 = vst [vmem:[%s4073 + $0xa] sm:$0xff] %v4010
        %4076 = vst [vmem:[%s4073 + $0x1a] sm:$0xff] %v4011
        %4077 = vst [vmem:[%s4073 + $0x22] sm:$0xff] %v4012
        %4078 = vst [vmem:[%s4073 + $0x32] sm:$0xff] %v4013
        %4079 = vst [vmem:[%s4073 + $0x3a] sm:$0xff] %v4014
        %4080 = vst [vmem:[%s4073 + $0x4a] sm:$0xff] %v4015
        %4081 = vst [vmem:[%s4073 + $0x52] sm:$0xff] %v4016
        %4082 = vst [vmem:[%s4073 + $0x62] sm:$0xff] %v4017
        %4083 = vst [vmem:[%s4073 + $0x6a] sm:$0xff] %v4018
        %4084 = vst [vmem:[%s4073 + $0x7a] sm:$0xff] %v4019
        %4085 = vst [vmem:[%s4073 + $0x82] sm:$0xff] %v4020
        %4086 = vst [vmem:[%s4073 + $0x92] sm:$0xff] %v4021
        %4087 = vst [vmem:[%s4073 + $0x9a] sm:$0xff] %v4022
        %4088 = vst [vmem:[%s4073 + $0xaa] sm:$0xff] %v4023
        %4089 = vst [vmem:[%s4073 + $0xb2] sm:$0xff] %v4024
        %4090 = vst [vmem:[%s4073 + $0xc2] sm:$0xff] %v4025
        %4091 = vst [vmem:[%s4073 + $0xca] sm:$0xff] %v4026
        %4092 = vst [vmem:[%s4073 + $0xda] sm:$0xff] %v4027
        %4093 = vst [vmem:[%s4073 + $0xe2] sm:$0xff] %v4028
        %4094 = vst [vmem:[%s4073 + $0xf2] sm:$0xff] %v4029
        %4095 = vst [vmem:[%s4073 + $0xfa] sm:$0xff] %v4030
        %4096 = vst [vmem:[%s4073 + $0x10a] sm:$0xff] %v4031
        %4097 = vst [vmem:[%s4073 + $0x112] sm:$0xff] %v4032
        %4098 = vst [vmem:[%s4073 + $0x122] sm:$0xff] %v4033
        %4099 = vst [vmem:[%s4073 + $0x12a] sm:$0xff] %v4034
        %4100 = vst [vmem:[%s4073 + $0x13a] sm:$0xff] %v4035
        %4101 = vst [vmem:[%s4073 + $0x142] sm:$0xff] %v4036
        %4102 = vst [vmem:[%s4073 + $0x152] sm:$0xff] %v4037
        %4103 = vst [vmem:[%s4073 + $0x15a] sm:$0xff] %v4038
        %4104 = vst [vmem:[%s4073 + $0x16a] sm:$0xff] %v4039
        %4105 = vst [vmem:[%s4073 + $0x172] sm:$0xff] %v4040
        %4106 = vst [vmem:[%s4073 + $0x1e2] sm:$0xff] %v4041
        %4107 = vst [vmem:[%s4073 + $0x1ea] sm:$0xff] %v4042
        %4108 = vst [vmem:[%s4073 + $0x1fa] sm:$0xff] %v4043
        %4109 = vst [vmem:[%s4073 + $0x202] sm:$0xff] %v4044
        %4110 = vst [vmem:[%s4073 + $0x212] sm:$0xff] %v4045
        %4111 = vst [vmem:[%s4073 + $0x21a] sm:$0xff] %v4046
        %4112 = vst [vmem:[%s4073 + $0x22a] sm:$0xff] %v4047
        %4113 = vst [vmem:[%s4073 + $0x232] sm:$0xff] %v4048
        %4114 = vst [vmem:[%s4073 + $0x242] sm:$0xff] %v4049
        %4115 = vst [vmem:[%s4073 + $0x24a] sm:$0xff] %v4050
        %4116 = vst [vmem:[%s4073 + $0x25a] sm:$0xff] %v4051
        %4117 = vst [vmem:[%s4073 + $0x262] sm:$0xff] %v4052
        %4118 = vst [vmem:[%s4073 + $0x272] sm:$0xff] %v4053
        %4119 = vst [vmem:[%s4073 + $0x27a] sm:$0xff] %v4054
        %4120 = vst [vmem:[%s4073 + $0x28a] sm:$0xff] %v4055
        %4121 = vst [vmem:[%s4073 + $0x292] sm:$0xff] %v4056
        %4122 = vst [vmem:[%s4073 + $0x2a2] sm:$0xff] %v4057
        %4123 = vst [vmem:[%s4073 + $0x2aa] sm:$0xff] %v4058
        %4124 = vst [vmem:[%s4073 + $0x2ba] sm:$0xff] %v4059
        %4125 = vst [vmem:[%s4073 + $0x2c2] sm:$0xff] %v4060
        %4126 = vst [vmem:[%s4073 + $0x2d2] sm:$0xff] %v4061
        %4127 = vst [vmem:[%s4073 + $0x2da] sm:$0xff] %v4062
        %4128 = vst [vmem:[%s4073 + $0x2ea] sm:$0xff] %v4063
        %4129 = vst [vmem:[%s4073 + $0x2f2] sm:$0xff] %v4064
        %4130 = vst [vmem:[%s4073 + $0x302] sm:$0xff] %v4065
        %4131 = vst [vmem:[%s4073 + $0x30a] sm:$0xff] %v4066
        %4132 = vst [vmem:[%s4073 + $0x31a] sm:$0xff] %v4067
        %4133 = vst [vmem:[%s4073 + $0x322] sm:$0xff] %v4068
        %4134 = vst [vmem:[%s4073 + $0x332] sm:$0xff] %v4069
        %4135 = vst [vmem:[%s4073 + $0x33a] sm:$0xff] %v4070
        %4136 = vst [vmem:[%s4073 + $0x34a] sm:$0xff] %v4071
        %4137 = vst [vmem:[%s4073 + $0x352] sm:$0xff] %v4072
        %v4138 = vld [vmem:[%s4073 + $0x2] sm:$0xff]
        %v4139 = vld [vmem:[%s4073 + $0xa] sm:$0xff]
        %v4140 = vld [vmem:[%s4073 + $0x1a] sm:$0xff]
        %v4141 = vld [vmem:[%s4073 + $0x22] sm:$0xff]
        %v4142 = vld [vmem:[%s4073 + $0x32] sm:$0xff]
        %v4143 = vld [vmem:[%s4073 + $0x3a] sm:$0xff]
        %v4144 = vld [vmem:[%s4073 + $0x4a] sm:$0xff]
        %v4145 = vld [vmem:[%s4073 + $0x52] sm:$0xff]
        %v4146 = vld [vmem:[%s4073 + $0x62] sm:$0xff]
        %v4147 = vld [vmem:[%s4073 + $0x6a] sm:$0xff]
        %v4148 = vld [vmem:[%s4073 + $0x7a] sm:$0xff]
        %v4149 = vld [vmem:[%s4073 + $0x82] sm:$0xff]
        %v4150 = vld [vmem:[%s4073 + $0x92] sm:$0xff]
        %v4151 = vld [vmem:[%s4073 + $0x9a] sm:$0xff]
        %v4152 = vld [vmem:[%s4073 + $0xaa] sm:$0xff]
        %v4153 = vld [vmem:[%s4073 + $0xb2] sm:$0xff]
        %v4154 = vld [vmem:[%s4073 + $0xc2] sm:$0xff]
        %v4155 = vld [vmem:[%s4073 + $0xca] sm:$0xff]
        %v4156 = vld [vmem:[%s4073 + $0xda] sm:$0xff]
        %v4157 = vld [vmem:[%s4073 + $0xe2] sm:$0xff]
        %v4158 = vld [vmem:[%s4073 + $0xf2] sm:$0xff]
        %v4159 = vld [vmem:[%s4073 + $0xfa] sm:$0xff]
        %v4160 = vld [vmem:[%s4073 + $0x10a] sm:$0xff]
        %v4161 = vld [vmem:[%s4073 + $0x112] sm:$0xff]
        %v4162 = vld [vmem:[%s4073 + $0x122] sm:$0xff]
        %v4163 = vld [vmem:[%s4073 + $0x12a] sm:$0xff]
        %v4164 = vld [vmem:[%s4073 + $0x13a] sm:$0xff]
        %v4165 = vld [vmem:[%s4073 + $0x142] sm:$0xff]
        %v4166 = vld [vmem:[%s4073 + $0x152] sm:$0xff]
        %v4167 = vld [vmem:[%s4073 + $0x15a] sm:$0xff]
        %v4168 = vld [vmem:[%s4073 + $0x16a] sm:$0xff]
        %v4169 = vld [vmem:[%s4073 + $0x172] sm:$0xff]
        %v4170 = vld [vmem:[%s4073 + $0x1e2] sm:$0xff]
        %v4171 = vld [vmem:[%s4073 + $0x1ea] sm:$0xff]
        %v4172 = vld [vmem:[%s4073 + $0x1fa] sm:$0xff]
        %v4173 = vld [vmem:[%s4073 + $0x202] sm:$0xff]
        %v4174 = vld [vmem:[%s4073 + $0x212] sm:$0xff]
        %v4175 = vld [vmem:[%s4073 + $0x21a] sm:$0xff]
        %v4176 = vld [vmem:[%s4073 + $0x22a] sm:$0xff]
        %v4177 = vld [vmem:[%s4073 + $0x232] sm:$0xff]
        %v4178 = vld [vmem:[%s4073 + $0x242] sm:$0xff]
        %v4179 = vld [vmem:[%s4073 + $0x24a] sm:$0xff]
        %v4180 = vld [vmem:[%s4073 + $0x25a] sm:$0xff]
        %v4181 = vld [vmem:[%s4073 + $0x262] sm:$0xff]
        %v4182 = vld [vmem:[%s4073 + $0x272] sm:$0xff]
        %v4183 = vld [vmem:[%s4073 + $0x27a] sm:$0xff]
        %v4184 = vld [vmem:[%s4073 + $0x28a] sm:$0xff]
        %v4185 = vld [vmem:[%s4073 + $0x292] sm:$0xff]
        %v4186 = vld [vmem:[%s4073 + $0x2a2] sm:$0xff]
        %v4187 = vld [vmem:[%s4073 + $0x2aa] sm:$0xff]
        %v4188 = vld [vmem:[%s4073 + $0x2ba] sm:$0xff]
        %v4189 = vld [vmem:[%s4073 + $0x2c2] sm:$0xff]
        %v4190 = vld [vmem:[%s4073 + $0x2d2] sm:$0xff]
        %v4191 = vld [vmem:[%s4073 + $0x2da] sm:$0xff]
        %v4192 = vld [vmem:[%s4073 + $0x2ea] sm:$0xff]
        %v4193 = vld [vmem:[%s4073 + $0x2f2] sm:$0xff]
        %v4194 = vld [vmem:[%s4073 + $0x302] sm:$0xff]
        %v4195 = vld [vmem:[%s4073 + $0x30a] sm:$0xff]
        %v4196 = vld [vmem:[%s4073 + $0x31a] sm:$0xff]
        %v4197 = vld [vmem:[%s4073 + $0x322] sm:$0xff]
        %v4198 = vld [vmem:[%s4073 + $0x332] sm:$0xff]
        %v4199 = vld [vmem:[%s4073 + $0x33a] sm:$0xff]
        %v4200 = vld [vmem:[%s4073 + $0x34a] sm:$0xff]
        %v4201 = vld [vmem:[%s4073 + $0x352] sm:$0xff]
        %v4202 = vld [vmem:[%s4073 + $0x3] sm:$0xff]
        %v4203 = vld [vmem:[%s4073 + $0xb] sm:$0xff]
        %v4204 = vld [vmem:[%s4073 + $0x1b] sm:$0xff]
        %v4205 = vld [vmem:[%s4073 + $0x23] sm:$0xff]
        %v4206 = vld [vmem:[%s4073 + $0x33] sm:$0xff]
        %v4207 = vld [vmem:[%s4073 + $0x3b] sm:$0xff]
        %v4208 = vld [vmem:[%s4073 + $0x4b] sm:$0xff]
        %v4209 = vld [vmem:[%s4073 + $0x53] sm:$0xff]
        %v4210 = vld [vmem:[%s4073 + $0x63] sm:$0xff]
        %v4211 = vld [vmem:[%s4073 + $0x6b] sm:$0xff]
        %v4212 = vld [vmem:[%s4073 + $0x7b] sm:$0xff]
        %v4213 = vld [vmem:[%s4073 + $0x83] sm:$0xff]
        %v4214 = vld [vmem:[%s4073 + $0x93] sm:$0xff]
        %v4215 = vld [vmem:[%s4073 + $0x9b] sm:$0xff]
        %v4216 = vld [vmem:[%s4073 + $0xab] sm:$0xff]
        %v4217 = vld [vmem:[%s4073 + $0xb3] sm:$0xff]
        %v4218 = vld [vmem:[%s4073 + $0xc3] sm:$0xff]
        %v4219 = vld [vmem:[%s4073 + $0xcb] sm:$0xff]
        %v4220 = vld [vmem:[%s4073 + $0xdb] sm:$0xff]
        %v4221 = vld [vmem:[%s4073 + $0xe3] sm:$0xff]
        %v4222 = vld [vmem:[%s4073 + $0xf3] sm:$0xff]
        %v4223 = vld [vmem:[%s4073 + $0xfb] sm:$0xff]
        %v4224 = vld [vmem:[%s4073 + $0x10b] sm:$0xff]
        %v4225 = vld [vmem:[%s4073 + $0x113] sm:$0xff]
        %v4226 = vld [vmem:[%s4073 + $0x123] sm:$0xff]
        %v4227 = vld [vmem:[%s4073 + $0x12b] sm:$0xff]
        %v4228 = vld [vmem:[%s4073 + $0x13b] sm:$0xff]
        %v4229 = vld [vmem:[%s4073 + $0x143] sm:$0xff]
        %v4230 = vld [vmem:[%s4073 + $0x153] sm:$0xff]
        %v4231 = vld [vmem:[%s4073 + $0x15b] sm:$0xff]
        %v4232 = vld [vmem:[%s4073 + $0x16b] sm:$0xff]
        %v4233 = vld [vmem:[%s4073 + $0x173] sm:$0xff]
        %v4234 = vld [vmem:[%s4073 + $0x1e3] sm:$0xff]
        %v4235 = vld [vmem:[%s4073 + $0x1eb] sm:$0xff]
        %v4236 = vld [vmem:[%s4073 + $0x1fb] sm:$0xff]
        %v4237 = vld [vmem:[%s4073 + $0x203] sm:$0xff]
        %v4238 = vld [vmem:[%s4073 + $0x213] sm:$0xff]
        %v4239 = vld [vmem:[%s4073 + $0x21b] sm:$0xff]
        %v4240 = vld [vmem:[%s4073 + $0x22b] sm:$0xff]
        %v4241 = vld [vmem:[%s4073 + $0x233] sm:$0xff]
        %v4242 = vld [vmem:[%s4073 + $0x243] sm:$0xff]
        %v4243 = vld [vmem:[%s4073 + $0x24b] sm:$0xff]
        %v4244 = vld [vmem:[%s4073 + $0x25b] sm:$0xff]
        %v4245 = vld [vmem:[%s4073 + $0x263] sm:$0xff]
        %v4246 = vld [vmem:[%s4073 + $0x273] sm:$0xff]
        %v4247 = vld [vmem:[%s4073 + $0x27b] sm:$0xff]
        %v4248 = vld [vmem:[%s4073 + $0x28b] sm:$0xff]
        %v4249 = vld [vmem:[%s4073 + $0x293] sm:$0xff]
        %v4250 = vld [vmem:[%s4073 + $0x2a3] sm:$0xff]
        %v4251 = vld [vmem:[%s4073 + $0x2ab] sm:$0xff]
        %v4252 = vld [vmem:[%s4073 + $0x2bb] sm:$0xff]
        %v4253 = vld [vmem:[%s4073 + $0x2c3] sm:$0xff]
        %v4254 = vld [vmem:[%s4073 + $0x2d3] sm:$0xff]
        %v4255 = vld [vmem:[%s4073 + $0x2db] sm:$0xff]
        %v4256 = vld [vmem:[%s4073 + $0x2eb] sm:$0xff]
        %v4257 = vld [vmem:[%s4073 + $0x2f3] sm:$0xff]
        %v4258 = vld [vmem:[%s4073 + $0x303] sm:$0xff]
        %v4259 = vld [vmem:[%s4073 + $0x30b] sm:$0xff]
        %v4260 = vld [vmem:[%s4073 + $0x31b] sm:$0xff]
        %v4261 = vld [vmem:[%s4073 + $0x323] sm:$0xff]
        %v4262 = vld [vmem:[%s4073 + $0x333] sm:$0xff]
        %v4263 = vld [vmem:[%s4073 + $0x33b] sm:$0xff]
        %v4264 = vld [vmem:[%s4073 + $0x34b] sm:$0xff]
        %v4265 = vld [vmem:[%s4073 + $0x353] sm:$0xff]
        %v4266 = vmax.f32 %v4138, %v4202
        %v4267 = vmax.f32 %v4139, %v4203
        %v4268 = vmax.f32 %v4140, %v4204
        %v4269 = vmax.f32 %v4141, %v4205
        %v4270 = vmax.f32 %v4142, %v4206
        %v4271 = vmax.f32 %v4143, %v4207
        %v4272 = vmax.f32 %v4144, %v4208
        %v4273 = vmax.f32 %v4145, %v4209
        %v4274 = vmax.f32 %v4146, %v4210
        %v4275 = vmax.f32 %v4147, %v4211
        %v4276 = vmax.f32 %v4148, %v4212
        %v4277 = vmax.f32 %v4149, %v4213
        %v4278 = vmax.f32 %v4150, %v4214
        %v4279 = vmax.f32 %v4151, %v4215
        %v4280 = vmax.f32 %v4152, %v4216
        %v4281 = vmax.f32 %v4153, %v4217
        %v4282 = vmax.f32 %v4154, %v4218
        %v4283 = vmax.f32 %v4155, %v4219
        %v4284 = vmax.f32 %v4156, %v4220
        %v4285 = vmax.f32 %v4157, %v4221
        %v4286 = vmax.f32 %v4158, %v4222
        %v4287 = vmax.f32 %v4159, %v4223
        %v4288 = vmax.f32 %v4160, %v4224
        %v4289 = vmax.f32 %v4161, %v4225
        %v4290 = vmax.f32 %v4162, %v4226
        %v4291 = vmax.f32 %v4163, %v4227
        %v4292 = vmax.f32 %v4164, %v4228
        %v4293 = vmax.f32 %v4165, %v4229
        %v4294 = vmax.f32 %v4166, %v4230
        %v4295 = vmax.f32 %v4167, %v4231
        %v4296 = vmax.f32 %v4168, %v4232
        %v4297 = vmax.f32 %v4169, %v4233
        %v4298 = vmax.f32 %v4170, %v4234
        %v4299 = vmax.f32 %v4171, %v4235
        %v4300 = vmax.f32 %v4172, %v4236
        %v4301 = vmax.f32 %v4173, %v4237
        %v4302 = vmax.f32 %v4174, %v4238
        %v4303 = vmax.f32 %v4175, %v4239
        %v4304 = vmax.f32 %v4176, %v4240
        %v4305 = vmax.f32 %v4177, %v4241
        %v4306 = vmax.f32 %v4178, %v4242
        %v4307 = vmax.f32 %v4179, %v4243
        %v4308 = vmax.f32 %v4180, %v4244
        %v4309 = vmax.f32 %v4181, %v4245
        %v4310 = vmax.f32 %v4182, %v4246
        %v4311 = vmax.f32 %v4183, %v4247
        %v4312 = vmax.f32 %v4184, %v4248
        %v4313 = vmax.f32 %v4185, %v4249
        %v4314 = vmax.f32 %v4186, %v4250
        %v4315 = vmax.f32 %v4187, %v4251
        %v4316 = vmax.f32 %v4188, %v4252
        %v4317 = vmax.f32 %v4189, %v4253
        %v4318 = vmax.f32 %v4190, %v4254
        %v4319 = vmax.f32 %v4191, %v4255
        %v4320 = vmax.f32 %v4192, %v4256
        %v4321 = vmax.f32 %v4193, %v4257
        %v4322 = vmax.f32 %v4194, %v4258
        %v4323 = vmax.f32 %v4195, %v4259
        %v4324 = vmax.f32 %v4196, %v4260
        %v4325 = vmax.f32 %v4197, %v4261
        %v4326 = vmax.f32 %v4198, %v4262
        %v4327 = vmax.f32 %v4199, %v4263
        %v4328 = vmax.f32 %v4200, %v4264
        %v4329 = vmax.f32 %v4201, %v4265
        %s4330 = scalar_lea.vmem [#allocation2], 72
        %v4331 = vld [vmem:[%s4330 + $0x2] sm:$0xff]
        %v4332 = vld [vmem:[%s4330 + $0xa] sm:$0xff]
        %v4333 = vld [vmem:[%s4330 + $0x1a] sm:$0xff]
        %v4334 = vld [vmem:[%s4330 + $0x22] sm:$0xff]
        %v4335 = vld [vmem:[%s4330 + $0x32] sm:$0xff]
        %v4336 = vld [vmem:[%s4330 + $0x3a] sm:$0xff]
        %v4337 = vld [vmem:[%s4330 + $0x4a] sm:$0xff]
        %v4338 = vld [vmem:[%s4330 + $0x52] sm:$0xff]
        %v4339 = vld [vmem:[%s4330 + $0x62] sm:$0xff]
        %v4340 = vld [vmem:[%s4330 + $0x6a] sm:$0xff]
        %v4341 = vld [vmem:[%s4330 + $0x7a] sm:$0xff]
        %v4342 = vld [vmem:[%s4330 + $0x82] sm:$0xff]
        %v4343 = vld [vmem:[%s4330 + $0x92] sm:$0xff]
        %v4344 = vld [vmem:[%s4330 + $0x9a] sm:$0xff]
        %v4345 = vld [vmem:[%s4330 + $0xaa] sm:$0xff]
        %v4346 = vld [vmem:[%s4330 + $0xb2] sm:$0xff]
        %v4347 = vld [vmem:[%s4330 + $0xc2] sm:$0xff]
        %v4348 = vld [vmem:[%s4330 + $0xca] sm:$0xff]
        %v4349 = vld [vmem:[%s4330 + $0xda] sm:$0xff]
        %v4350 = vld [vmem:[%s4330 + $0xe2] sm:$0xff]
        %v4351 = vld [vmem:[%s4330 + $0xf2] sm:$0xff]
        %v4352 = vld [vmem:[%s4330 + $0xfa] sm:$0xff]
        %v4353 = vld [vmem:[%s4330 + $0x10a] sm:$0xff]
        %v4354 = vld [vmem:[%s4330 + $0x112] sm:$0xff]
        %v4355 = vld [vmem:[%s4330 + $0x122] sm:$0xff]
        %v4356 = vld [vmem:[%s4330 + $0x12a] sm:$0xff]
        %v4357 = vld [vmem:[%s4330 + $0x13a] sm:$0xff]
        %v4358 = vld [vmem:[%s4330 + $0x142] sm:$0xff]
        %v4359 = vld [vmem:[%s4330 + $0x152] sm:$0xff]
        %v4360 = vld [vmem:[%s4330 + $0x15a] sm:$0xff]
        %v4361 = vld [vmem:[%s4330 + $0x16a] sm:$0xff]
        %v4362 = vld [vmem:[%s4330 + $0x172] sm:$0xff]
        %v4363 = vld [vmem:[%s4330 + $0x1e2] sm:$0xff]
        %v4364 = vld [vmem:[%s4330 + $0x1ea] sm:$0xff]
        %v4365 = vld [vmem:[%s4330 + $0x1fa] sm:$0xff]
        %v4366 = vld [vmem:[%s4330 + $0x202] sm:$0xff]
        %v4367 = vld [vmem:[%s4330 + $0x212] sm:$0xff]
        %v4368 = vld [vmem:[%s4330 + $0x21a] sm:$0xff]
        %v4369 = vld [vmem:[%s4330 + $0x22a] sm:$0xff]
        %v4370 = vld [vmem:[%s4330 + $0x232] sm:$0xff]
        %v4371 = vld [vmem:[%s4330 + $0x242] sm:$0xff]
        %v4372 = vld [vmem:[%s4330 + $0x24a] sm:$0xff]
        %v4373 = vld [vmem:[%s4330 + $0x25a] sm:$0xff]
        %v4374 = vld [vmem:[%s4330 + $0x262] sm:$0xff]
        %v4375 = vld [vmem:[%s4330 + $0x272] sm:$0xff]
        %v4376 = vld [vmem:[%s4330 + $0x27a] sm:$0xff]
        %v4377 = vld [vmem:[%s4330 + $0x28a] sm:$0xff]
        %v4378 = vld [vmem:[%s4330 + $0x292] sm:$0xff]
        %v4379 = vld [vmem:[%s4330 + $0x2a2] sm:$0xff]
        %v4380 = vld [vmem:[%s4330 + $0x2aa] sm:$0xff]
        %v4381 = vld [vmem:[%s4330 + $0x2ba] sm:$0xff]
        %v4382 = vld [vmem:[%s4330 + $0x2c2] sm:$0xff]
        %v4383 = vld [vmem:[%s4330 + $0x2d2] sm:$0xff]
        %v4384 = vld [vmem:[%s4330 + $0x2da] sm:$0xff]
        %v4385 = vld [vmem:[%s4330 + $0x2ea] sm:$0xff]
        %v4386 = vld [vmem:[%s4330 + $0x2f2] sm:$0xff]
        %v4387 = vld [vmem:[%s4330 + $0x302] sm:$0xff]
        %v4388 = vld [vmem:[%s4330 + $0x30a] sm:$0xff]
        %v4389 = vld [vmem:[%s4330 + $0x31a] sm:$0xff]
        %v4390 = vld [vmem:[%s4330 + $0x322] sm:$0xff]
        %v4391 = vld [vmem:[%s4330 + $0x332] sm:$0xff]
        %v4392 = vld [vmem:[%s4330 + $0x33a] sm:$0xff]
        %v4393 = vld [vmem:[%s4330 + $0x34a] sm:$0xff]
        %v4394 = vld [vmem:[%s4330 + $0x352] sm:$0xff]
        %v4395 = vmax.f32 %v4266, %v4331
        %v4396 = vmax.f32 %v4267, %v4332
        %v4397 = vmax.f32 %v4268, %v4333
        %v4398 = vmax.f32 %v4269, %v4334
        %v4399 = vmax.f32 %v4270, %v4335
        %v4400 = vmax.f32 %v4271, %v4336
        %v4401 = vmax.f32 %v4272, %v4337
        %v4402 = vmax.f32 %v4273, %v4338
        %v4403 = vmax.f32 %v4274, %v4339
        %v4404 = vmax.f32 %v4275, %v4340
        %v4405 = vmax.f32 %v4276, %v4341
        %v4406 = vmax.f32 %v4277, %v4342
        %v4407 = vmax.f32 %v4278, %v4343
        %v4408 = vmax.f32 %v4279, %v4344
        %v4409 = vmax.f32 %v4280, %v4345
        %v4410 = vmax.f32 %v4281, %v4346
        %v4411 = vmax.f32 %v4282, %v4347
        %v4412 = vmax.f32 %v4283, %v4348
        %v4413 = vmax.f32 %v4284, %v4349
        %v4414 = vmax.f32 %v4285, %v4350
        %v4415 = vmax.f32 %v4286, %v4351
        %v4416 = vmax.f32 %v4287, %v4352
        %v4417 = vmax.f32 %v4288, %v4353
        %v4418 = vmax.f32 %v4289, %v4354
        %v4419 = vmax.f32 %v4290, %v4355
        %v4420 = vmax.f32 %v4291, %v4356
        %v4421 = vmax.f32 %v4292, %v4357
        %v4422 = vmax.f32 %v4293, %v4358
        %v4423 = vmax.f32 %v4294, %v4359
        %v4424 = vmax.f32 %v4295, %v4360
        %v4425 = vmax.f32 %v4296, %v4361
        %v4426 = vmax.f32 %v4297, %v4362
        %v4427 = vmax.f32 %v4298, %v4363
        %v4428 = vmax.f32 %v4299, %v4364
        %v4429 = vmax.f32 %v4300, %v4365
        %v4430 = vmax.f32 %v4301, %v4366
        %v4431 = vmax.f32 %v4302, %v4367
        %v4432 = vmax.f32 %v4303, %v4368
        %v4433 = vmax.f32 %v4304, %v4369
        %v4434 = vmax.f32 %v4305, %v4370
        %v4435 = vmax.f32 %v4306, %v4371
        %v4436 = vmax.f32 %v4307, %v4372
        %v4437 = vmax.f32 %v4308, %v4373
        %v4438 = vmax.f32 %v4309, %v4374
        %v4439 = vmax.f32 %v4310, %v4375
        %v4440 = vmax.f32 %v4311, %v4376
        %v4441 = vmax.f32 %v4312, %v4377
        %v4442 = vmax.f32 %v4313, %v4378
        %v4443 = vmax.f32 %v4314, %v4379
        %v4444 = vmax.f32 %v4315, %v4380
        %v4445 = vmax.f32 %v4316, %v4381
        %v4446 = vmax.f32 %v4317, %v4382
        %v4447 = vmax.f32 %v4318, %v4383
        %v4448 = vmax.f32 %v4319, %v4384
        %v4449 = vmax.f32 %v4320, %v4385
        %v4450 = vmax.f32 %v4321, %v4386
        %v4451 = vmax.f32 %v4322, %v4387
        %v4452 = vmax.f32 %v4323, %v4388
        %v4453 = vmax.f32 %v4324, %v4389
        %v4454 = vmax.f32 %v4325, %v4390
        %v4455 = vmax.f32 %v4326, %v4391
        %v4456 = vmax.f32 %v4327, %v4392
        %v4457 = vmax.f32 %v4328, %v4393
        %v4458 = vmax.f32 %v4329, %v4394
        %v4459 = vld [vmem:[%s4330 + $0x3] sm:$0xff]
        %v4460 = vld [vmem:[%s4330 + $0xb] sm:$0xff]
        %v4461 = vld [vmem:[%s4330 + $0x1b] sm:$0xff]
        %v4462 = vld [vmem:[%s4330 + $0x23] sm:$0xff]
        %v4463 = vld [vmem:[%s4330 + $0x33] sm:$0xff]
        %v4464 = vld [vmem:[%s4330 + $0x3b] sm:$0xff]
        %v4465 = vld [vmem:[%s4330 + $0x4b] sm:$0xff]
        %v4466 = vld [vmem:[%s4330 + $0x53] sm:$0xff]
        %v4467 = vld [vmem:[%s4330 + $0x63] sm:$0xff]
        %v4468 = vld [vmem:[%s4330 + $0x6b] sm:$0xff]
        %v4469 = vld [vmem:[%s4330 + $0x7b] sm:$0xff]
        %v4470 = vld [vmem:[%s4330 + $0x83] sm:$0xff]
        %v4471 = vld [vmem:[%s4330 + $0x93] sm:$0xff]
        %v4472 = vld [vmem:[%s4330 + $0x9b] sm:$0xff]
        %v4473 = vld [vmem:[%s4330 + $0xab] sm:$0xff]
        %v4474 = vld [vmem:[%s4330 + $0xb3] sm:$0xff]
        %v4475 = vld [vmem:[%s4330 + $0xc3] sm:$0xff]
        %v4476 = vld [vmem:[%s4330 + $0xcb] sm:$0xff]
        %v4477 = vld [vmem:[%s4330 + $0xdb] sm:$0xff]
        %v4478 = vld [vmem:[%s4330 + $0xe3] sm:$0xff]
        %v4479 = vld [vmem:[%s4330 + $0xf3] sm:$0xff]
        %v4480 = vld [vmem:[%s4330 + $0xfb] sm:$0xff]
        %v4481 = vld [vmem:[%s4330 + $0x10b] sm:$0xff]
        %v4482 = vld [vmem:[%s4330 + $0x113] sm:$0xff]
        %v4483 = vld [vmem:[%s4330 + $0x123] sm:$0xff]
        %v4484 = vld [vmem:[%s4330 + $0x12b] sm:$0xff]
        %v4485 = vld [vmem:[%s4330 + $0x13b] sm:$0xff]
        %v4486 = vld [vmem:[%s4330 + $0x143] sm:$0xff]
        %v4487 = vld [vmem:[%s4330 + $0x153] sm:$0xff]
        %v4488 = vld [vmem:[%s4330 + $0x15b] sm:$0xff]
        %v4489 = vld [vmem:[%s4330 + $0x16b] sm:$0xff]
        %v4490 = vld [vmem:[%s4330 + $0x173] sm:$0xff]
        %v4491 = vld [vmem:[%s4330 + $0x1e3] sm:$0xff]
        %v4492 = vld [vmem:[%s4330 + $0x1eb] sm:$0xff]
        %v4493 = vld [vmem:[%s4330 + $0x1fb] sm:$0xff]
        %v4494 = vld [vmem:[%s4330 + $0x203] sm:$0xff]
        %v4495 = vld [vmem:[%s4330 + $0x213] sm:$0xff]
        %v4496 = vld [vmem:[%s4330 + $0x21b] sm:$0xff]
        %v4497 = vld [vmem:[%s4330 + $0x22b] sm:$0xff]
        %v4498 = vld [vmem:[%s4330 + $0x233] sm:$0xff]
        %v4499 = vld [vmem:[%s4330 + $0x243] sm:$0xff]
        %v4500 = vld [vmem:[%s4330 + $0x24b] sm:$0xff]
        %v4501 = vld [vmem:[%s4330 + $0x25b] sm:$0xff]
        %v4502 = vld [vmem:[%s4330 + $0x263] sm:$0xff]
        %v4503 = vld [vmem:[%s4330 + $0x273] sm:$0xff]
        %v4504 = vld [vmem:[%s4330 + $0x27b] sm:$0xff]
        %v4505 = vld [vmem:[%s4330 + $0x28b] sm:$0xff]
        %v4506 = vld [vmem:[%s4330 + $0x293] sm:$0xff]
        %v4507 = vld [vmem:[%s4330 + $0x2a3] sm:$0xff]
        %v4508 = vld [vmem:[%s4330 + $0x2ab] sm:$0xff]
        %v4509 = vld [vmem:[%s4330 + $0x2bb] sm:$0xff]
        %v4510 = vld [vmem:[%s4330 + $0x2c3] sm:$0xff]
        %v4511 = vld [vmem:[%s4330 + $0x2d3] sm:$0xff]
        %v4512 = vld [vmem:[%s4330 + $0x2db] sm:$0xff]
        %v4513 = vld [vmem:[%s4330 + $0x2eb] sm:$0xff]
        %v4514 = vld [vmem:[%s4330 + $0x2f3] sm:$0xff]
        %v4515 = vld [vmem:[%s4330 + $0x303] sm:$0xff]
        %v4516 = vld [vmem:[%s4330 + $0x30b] sm:$0xff]
        %v4517 = vld [vmem:[%s4330 + $0x31b] sm:$0xff]
        %v4518 = vld [vmem:[%s4330 + $0x323] sm:$0xff]
        %v4519 = vld [vmem:[%s4330 + $0x333] sm:$0xff]
        %v4520 = vld [vmem:[%s4330 + $0x33b] sm:$0xff]
        %v4521 = vld [vmem:[%s4330 + $0x34b] sm:$0xff]
        %v4522 = vld [vmem:[%s4330 + $0x353] sm:$0xff]
        %v4523 = vmax.f32 %v4395, %v4459
        %v4524 = vmax.f32 %v4396, %v4460
        %v4525 = vmax.f32 %v4397, %v4461
        %v4526 = vmax.f32 %v4398, %v4462
        %v4527 = vmax.f32 %v4399, %v4463
        %v4528 = vmax.f32 %v4400, %v4464
        %v4529 = vmax.f32 %v4401, %v4465
        %v4530 = vmax.f32 %v4402, %v4466
        %v4531 = vmax.f32 %v4403, %v4467
        %v4532 = vmax.f32 %v4404, %v4468
        %v4533 = vmax.f32 %v4405, %v4469
        %v4534 = vmax.f32 %v4406, %v4470
        %v4535 = vmax.f32 %v4407, %v4471
        %v4536 = vmax.f32 %v4408, %v4472
        %v4537 = vmax.f32 %v4409, %v4473
        %v4538 = vmax.f32 %v4410, %v4474
        %v4539 = vmax.f32 %v4411, %v4475
        %v4540 = vmax.f32 %v4412, %v4476
        %v4541 = vmax.f32 %v4413, %v4477
        %v4542 = vmax.f32 %v4414, %v4478
        %v4543 = vmax.f32 %v4415, %v4479
        %v4544 = vmax.f32 %v4416, %v4480
        %v4545 = vmax.f32 %v4417, %v4481
        %v4546 = vmax.f32 %v4418, %v4482
        %v4547 = vmax.f32 %v4419, %v4483
        %v4548 = vmax.f32 %v4420, %v4484
        %v4549 = vmax.f32 %v4421, %v4485
        %v4550 = vmax.f32 %v4422, %v4486
        %v4551 = vmax.f32 %v4423, %v4487
        %v4552 = vmax.f32 %v4424, %v4488
        %v4553 = vmax.f32 %v4425, %v4489
        %v4554 = vmax.f32 %v4426, %v4490
        %v4555 = vmax.f32 %v4427, %v4491
        %v4556 = vmax.f32 %v4428, %v4492
        %v4557 = vmax.f32 %v4429, %v4493
        %v4558 = vmax.f32 %v4430, %v4494
        %v4559 = vmax.f32 %v4431, %v4495
        %v4560 = vmax.f32 %v4432, %v4496
        %v4561 = vmax.f32 %v4433, %v4497
        %v4562 = vmax.f32 %v4434, %v4498
        %v4563 = vmax.f32 %v4435, %v4499
        %v4564 = vmax.f32 %v4436, %v4500
        %v4565 = vmax.f32 %v4437, %v4501
        %v4566 = vmax.f32 %v4438, %v4502
        %v4567 = vmax.f32 %v4439, %v4503
        %v4568 = vmax.f32 %v4440, %v4504
        %v4569 = vmax.f32 %v4441, %v4505
        %v4570 = vmax.f32 %v4442, %v4506
        %v4571 = vmax.f32 %v4443, %v4507
        %v4572 = vmax.f32 %v4444, %v4508
        %v4573 = vmax.f32 %v4445, %v4509
        %v4574 = vmax.f32 %v4446, %v4510
        %v4575 = vmax.f32 %v4447, %v4511
        %v4576 = vmax.f32 %v4448, %v4512
        %v4577 = vmax.f32 %v4449, %v4513
        %v4578 = vmax.f32 %v4450, %v4514
        %v4579 = vmax.f32 %v4451, %v4515
        %v4580 = vmax.f32 %v4452, %v4516
        %v4581 = vmax.f32 %v4453, %v4517
        %v4582 = vmax.f32 %v4454, %v4518
        %v4583 = vmax.f32 %v4455, %v4519
        %v4584 = vmax.f32 %v4456, %v4520
        %v4585 = vmax.f32 %v4457, %v4521
        %v4586 = vmax.f32 %v4458, %v4522
        %s4587 = scalar_lea.vmem [#allocation3], 48
        %4588 = vst [vmem:[%s4587 + $0x2] sm:$0xff] %v4523
        %4589 = vst [vmem:[%s4587 + $0xa] sm:$0xff] %v4524
        %4590 = vst [vmem:[%s4587 + $0x1a] sm:$0xff] %v4525
        %4591 = vst [vmem:[%s4587 + $0x22] sm:$0xff] %v4526
        %4592 = vst [vmem:[%s4587 + $0x32] sm:$0xff] %v4527
        %4593 = vst [vmem:[%s4587 + $0x3a] sm:$0xff] %v4528
        %4594 = vst [vmem:[%s4587 + $0x4a] sm:$0xff] %v4529
        %4595 = vst [vmem:[%s4587 + $0x52] sm:$0xff] %v4530
        %4596 = vst [vmem:[%s4587 + $0x62] sm:$0xff] %v4531
        %4597 = vst [vmem:[%s4587 + $0x6a] sm:$0xff] %v4532
        %4598 = vst [vmem:[%s4587 + $0x7a] sm:$0xff] %v4533
        %4599 = vst [vmem:[%s4587 + $0x82] sm:$0xff] %v4534
        %4600 = vst [vmem:[%s4587 + $0x92] sm:$0xff] %v4535
        %4601 = vst [vmem:[%s4587 + $0x9a] sm:$0xff] %v4536
        %4602 = vst [vmem:[%s4587 + $0xaa] sm:$0xff] %v4537
        %4603 = vst [vmem:[%s4587 + $0xb2] sm:$0xff] %v4538
        %4604 = vst [vmem:[%s4587 + $0xc2] sm:$0xff] %v4539
        %4605 = vst [vmem:[%s4587 + $0xca] sm:$0xff] %v4540
        %4606 = vst [vmem:[%s4587 + $0xda] sm:$0xff] %v4541
        %4607 = vst [vmem:[%s4587 + $0xe2] sm:$0xff] %v4542
        %4608 = vst [vmem:[%s4587 + $0xf2] sm:$0xff] %v4543
        %4609 = vst [vmem:[%s4587 + $0xfa] sm:$0xff] %v4544
        %4610 = vst [vmem:[%s4587 + $0x10a] sm:$0xff] %v4545
        %4611 = vst [vmem:[%s4587 + $0x112] sm:$0xff] %v4546
        %4612 = vst [vmem:[%s4587 + $0x122] sm:$0xff] %v4547
        %4613 = vst [vmem:[%s4587 + $0x12a] sm:$0xff] %v4548
        %4614 = vst [vmem:[%s4587 + $0x13a] sm:$0xff] %v4549
        %4615 = vst [vmem:[%s4587 + $0x142] sm:$0xff] %v4550
        %4616 = vst [vmem:[%s4587 + $0x152] sm:$0xff] %v4551
        %4617 = vst [vmem:[%s4587 + $0x15a] sm:$0xff] %v4552
        %4618 = vst [vmem:[%s4587 + $0x16a] sm:$0xff] %v4553
        %4619 = vst [vmem:[%s4587 + $0x172] sm:$0xff] %v4554
        %4620 = vst [vmem:[%s4587 + $0x1e2] sm:$0xff] %v4555
        %4621 = vst [vmem:[%s4587 + $0x1ea] sm:$0xff] %v4556
        %4622 = vst [vmem:[%s4587 + $0x1fa] sm:$0xff] %v4557
        %4623 = vst [vmem:[%s4587 + $0x202] sm:$0xff] %v4558
        %4624 = vst [vmem:[%s4587 + $0x212] sm:$0xff] %v4559
        %4625 = vst [vmem:[%s4587 + $0x21a] sm:$0xff] %v4560
        %4626 = vst [vmem:[%s4587 + $0x22a] sm:$0xff] %v4561
        %4627 = vst [vmem:[%s4587 + $0x232] sm:$0xff] %v4562
        %4628 = vst [vmem:[%s4587 + $0x242] sm:$0xff] %v4563
        %4629 = vst [vmem:[%s4587 + $0x24a] sm:$0xff] %v4564
        %4630 = vst [vmem:[%s4587 + $0x25a] sm:$0xff] %v4565
        %4631 = vst [vmem:[%s4587 + $0x262] sm:$0xff] %v4566
        %4632 = vst [vmem:[%s4587 + $0x272] sm:$0xff] %v4567
        %4633 = vst [vmem:[%s4587 + $0x27a] sm:$0xff] %v4568
        %4634 = vst [vmem:[%s4587 + $0x28a] sm:$0xff] %v4569
        %4635 = vst [vmem:[%s4587 + $0x292] sm:$0xff] %v4570
        %4636 = vst [vmem:[%s4587 + $0x2a2] sm:$0xff] %v4571
        %4637 = vst [vmem:[%s4587 + $0x2aa] sm:$0xff] %v4572
        %4638 = vst [vmem:[%s4587 + $0x2ba] sm:$0xff] %v4573
        %4639 = vst [vmem:[%s4587 + $0x2c2] sm:$0xff] %v4574
        %4640 = vst [vmem:[%s4587 + $0x2d2] sm:$0xff] %v4575
        %4641 = vst [vmem:[%s4587 + $0x2da] sm:$0xff] %v4576
        %4642 = vst [vmem:[%s4587 + $0x2ea] sm:$0xff] %v4577
        %4643 = vst [vmem:[%s4587 + $0x2f2] sm:$0xff] %v4578
        %4644 = vst [vmem:[%s4587 + $0x302] sm:$0xff] %v4579
        %4645 = vst [vmem:[%s4587 + $0x30a] sm:$0xff] %v4580
        %4646 = vst [vmem:[%s4587 + $0x31a] sm:$0xff] %v4581
        %4647 = vst [vmem:[%s4587 + $0x322] sm:$0xff] %v4582
        %4648 = vst [vmem:[%s4587 + $0x332] sm:$0xff] %v4583
        %4649 = vst [vmem:[%s4587 + $0x33a] sm:$0xff] %v4584
        %4650 = vst [vmem:[%s4587 + $0x34a] sm:$0xff] %v4585
        %4651 = vst [vmem:[%s4587 + $0x352] sm:$0xff] %v4586
        %v4652 = vld [vmem:[#allocation3] sm:$0xff]
        %v4653 = vld [vmem:[#allocation3 + $0x8] sm:$0xff]
        %v4654 = vld [vmem:[#allocation3 + $0x18] sm:$0xff]
        %v4655 = vld [vmem:[#allocation3 + $0x20] sm:$0xff]
        %v4656 = vld [vmem:[#allocation3 + $0x30] sm:$0xff]
        %v4657 = vld [vmem:[#allocation3 + $0x38] sm:$0xff]
        %v4658 = vld [vmem:[#allocation3 + $0x48] sm:$0xff]
        %v4659 = vld [vmem:[#allocation3 + $0x50] sm:$0xff]
        %v4660 = vld [vmem:[#allocation3 + $0x60] sm:$0xff]
        %v4661 = vld [vmem:[#allocation3 + $0x68] sm:$0xff]
        %v4662 = vld [vmem:[#allocation3 + $0x78] sm:$0xff]
        %v4663 = vld [vmem:[#allocation3 + $0x80] sm:$0xff]
        %v4664 = vld [vmem:[#allocation3 + $0x90] sm:$0xff]
        %v4665 = vld [vmem:[#allocation3 + $0x98] sm:$0xff]
        %v4666 = vld [vmem:[#allocation3 + $0xa8] sm:$0xff]
        %v4667 = vld [vmem:[#allocation3 + $0xb0] sm:$0xff]
        %v4668 = vld [vmem:[#allocation3 + $0xc0] sm:$0xff]
        %v4669 = vld [vmem:[#allocation3 + $0xc8] sm:$0xff]
        %v4670 = vld [vmem:[#allocation3 + $0xd8] sm:$0xff]
        %v4671 = vld [vmem:[#allocation3 + $0xe0] sm:$0xff]
        %v4672 = vld [vmem:[#allocation3 + $0xf0] sm:$0xff]
        %v4673 = vld [vmem:[#allocation3 + $0xf8] sm:$0xff]
        %v4674 = vld [vmem:[#allocation3 + $0x108] sm:$0xff]
        %v4675 = vld [vmem:[#allocation3 + $0x110] sm:$0xff]
        %v4676 = vld [vmem:[#allocation3 + $0x120] sm:$0xff]
        %v4677 = vld [vmem:[#allocation3 + $0x128] sm:$0xff]
        %v4678 = vld [vmem:[#allocation3 + $0x138] sm:$0xff]
        %v4679 = vld [vmem:[#allocation3 + $0x140] sm:$0xff]
        %v4680 = vld [vmem:[#allocation3 + $0x150] sm:$0xff]
        %v4681 = vld [vmem:[#allocation3 + $0x158] sm:$0xff]
        %v4682 = vld [vmem:[#allocation3 + $0x168] sm:$0xff]
        %v4683 = vld [vmem:[#allocation3 + $0x170] sm:$0xff]
        %v4684 = vld [vmem:[#allocation3 + $0x1e0] sm:$0xff]
        %v4685 = vld [vmem:[#allocation3 + $0x1e8] sm:$0xff]
        %v4686 = vld [vmem:[#allocation3 + $0x1f8] sm:$0xff]
        %v4687 = vld [vmem:[#allocation3 + $0x200] sm:$0xff]
        %v4688 = vld [vmem:[#allocation3 + $0x210] sm:$0xff]
        %v4689 = vld [vmem:[#allocation3 + $0x218] sm:$0xff]
        %v4690 = vld [vmem:[#allocation3 + $0x228] sm:$0xff]
        %v4691 = vld [vmem:[#allocation3 + $0x230] sm:$0xff]
        %v4692 = vld [vmem:[#allocation3 + $0x240] sm:$0xff]
        %v4693 = vld [vmem:[#allocation3 + $0x248] sm:$0xff]
        %v4694 = vld [vmem:[#allocation3 + $0x258] sm:$0xff]
        %v4695 = vld [vmem:[#allocation3 + $0x260] sm:$0xff]
        %v4696 = vld [vmem:[#allocation3 + $0x270] sm:$0xff]
        %v4697 = vld [vmem:[#allocation3 + $0x278] sm:$0xff]
        %v4698 = vld [vmem:[#allocation3 + $0x288] sm:$0xff]
        %v4699 = vld [vmem:[#allocation3 + $0x290] sm:$0xff]
        %v4700 = vld [vmem:[#allocation3 + $0x2a0] sm:$0xff]
        %v4701 = vld [vmem:[#allocation3 + $0x2a8] sm:$0xff]
        %v4702 = vld [vmem:[#allocation3 + $0x2b8] sm:$0xff]
        %v4703 = vld [vmem:[#allocation3 + $0x2c0] sm:$0xff]
        %v4704 = vld [vmem:[#allocation3 + $0x2d0] sm:$0xff]
        %v4705 = vld [vmem:[#allocation3 + $0x2d8] sm:$0xff]
        %v4706 = vld [vmem:[#allocation3 + $0x2e8] sm:$0xff]
        %v4707 = vld [vmem:[#allocation3 + $0x2f0] sm:$0xff]
        %v4708 = vld [vmem:[#allocation3 + $0x300] sm:$0xff]
        %v4709 = vld [vmem:[#allocation3 + $0x308] sm:$0xff]
        %v4710 = vld [vmem:[#allocation3 + $0x318] sm:$0xff]
        %v4711 = vld [vmem:[#allocation3 + $0x320] sm:$0xff]
        %v4712 = vld [vmem:[#allocation3 + $0x330] sm:$0xff]
        %v4713 = vld [vmem:[#allocation3 + $0x338] sm:$0xff]
        %v4714 = vld [vmem:[#allocation3 + $0x348] sm:$0xff]
        %v4715 = vld [vmem:[#allocation3 + $0x350] sm:$0xff]
        %v4716 = vld [vmem:[%s318] sm:$0xff]
        %v4717 = vld [vmem:[%s318 + $0x8] sm:$0xff]
        %v4718 = vld [vmem:[%s318 + $0x10] sm:$0xff]
        %v4719 = vld [vmem:[%s318 + $0x18] sm:$0xff]
        %v4720 = vld [vmem:[%s318 + $0x20] sm:$0xff]
        %v4721 = vld [vmem:[%s318 + $0x28] sm:$0xff]
        %v4722 = vld [vmem:[%s318 + $0x30] sm:$0xff]
        %v4723 = vld [vmem:[%s318 + $0x38] sm:$0xff]
        %v4724 = vld [vmem:[%s318 + $0x40] sm:$0xff]
        %v4725 = vld [vmem:[%s318 + $0x48] sm:$0xff]
        %v4726 = vld [vmem:[%s318 + $0x50] sm:$0xff]
        %v4727 = vld [vmem:[%s318 + $0x58] sm:$0xff]
        %v4728 = vld [vmem:[%s318 + $0x60] sm:$0xff]
        %v4729 = vld [vmem:[%s318 + $0x68] sm:$0xff]
        %v4730 = vld [vmem:[%s318 + $0x70] sm:$0xff]
        %v4731 = vld [vmem:[%s318 + $0x78] sm:$0xff]
        %v4732 = vld [vmem:[#allocation3 + $0x2] sm:$0xff]
        %v4733 = vld [vmem:[#allocation3 + $0xa] sm:$0xff]
        %v4734 = vld [vmem:[#allocation3 + $0x1a] sm:$0xff]
        %v4735 = vld [vmem:[#allocation3 + $0x22] sm:$0xff]
        %v4736 = vld [vmem:[#allocation3 + $0x32] sm:$0xff]
        %v4737 = vld [vmem:[#allocation3 + $0x3a] sm:$0xff]
        %v4738 = vld [vmem:[#allocation3 + $0x4a] sm:$0xff]
        %v4739 = vld [vmem:[#allocation3 + $0x52] sm:$0xff]
        %v4740 = vld [vmem:[#allocation3 + $0x62] sm:$0xff]
        %v4741 = vld [vmem:[#allocation3 + $0x6a] sm:$0xff]
        %v4742 = vld [vmem:[#allocation3 + $0x7a] sm:$0xff]
        %v4743 = vld [vmem:[#allocation3 + $0x82] sm:$0xff]
        %v4744 = vld [vmem:[#allocation3 + $0x92] sm:$0xff]
        %v4745 = vld [vmem:[#allocation3 + $0x9a] sm:$0xff]
        %v4746 = vld [vmem:[#allocation3 + $0xaa] sm:$0xff]
        %v4747 = vld [vmem:[#allocation3 + $0xb2] sm:$0xff]
        %v4748 = vld [vmem:[#allocation3 + $0xc2] sm:$0xff]
        %v4749 = vld [vmem:[#allocation3 + $0xca] sm:$0xff]
        %v4750 = vld [vmem:[#allocation3 + $0xda] sm:$0xff]
        %v4751 = vld [vmem:[#allocation3 + $0xe2] sm:$0xff]
        %v4752 = vld [vmem:[#allocation3 + $0xf2] sm:$0xff]
        %v4753 = vld [vmem:[#allocation3 + $0xfa] sm:$0xff]
        %v4754 = vld [vmem:[#allocation3 + $0x10a] sm:$0xff]
        %v4755 = vld [vmem:[#allocation3 + $0x112] sm:$0xff]
        %v4756 = vld [vmem:[#allocation3 + $0x122] sm:$0xff]
        %v4757 = vld [vmem:[#allocation3 + $0x12a] sm:$0xff]
        %v4758 = vld [vmem:[#allocation3 + $0x13a] sm:$0xff]
        %v4759 = vld [vmem:[#allocation3 + $0x142] sm:$0xff]
        %v4760 = vld [vmem:[#allocation3 + $0x152] sm:$0xff]
        %v4761 = vld [vmem:[#allocation3 + $0x15a] sm:$0xff]
        %v4762 = vld [vmem:[#allocation3 + $0x16a] sm:$0xff]
        %v4763 = vld [vmem:[#allocation3 + $0x172] sm:$0xff]
        %v4764 = vld [vmem:[#allocation3 + $0x1e2] sm:$0xff]
        %v4765 = vld [vmem:[#allocation3 + $0x1ea] sm:$0xff]
        %v4766 = vld [vmem:[#allocation3 + $0x1fa] sm:$0xff]
        %v4767 = vld [vmem:[#allocation3 + $0x202] sm:$0xff]
        %v4768 = vld [vmem:[#allocation3 + $0x212] sm:$0xff]
        %v4769 = vld [vmem:[#allocation3 + $0x21a] sm:$0xff]
        %v4770 = vld [vmem:[#allocation3 + $0x22a] sm:$0xff]
        %v4771 = vld [vmem:[#allocation3 + $0x232] sm:$0xff]
        %v4772 = vld [vmem:[#allocation3 + $0x242] sm:$0xff]
        %v4773 = vld [vmem:[#allocation3 + $0x24a] sm:$0xff]
        %v4774 = vld [vmem:[#allocation3 + $0x25a] sm:$0xff]
        %v4775 = vld [vmem:[#allocation3 + $0x262] sm:$0xff]
        %v4776 = vld [vmem:[#allocation3 + $0x272] sm:$0xff]
        %v4777 = vld [vmem:[#allocation3 + $0x27a] sm:$0xff]
        %v4778 = vld [vmem:[#allocation3 + $0x28a] sm:$0xff]
        %v4779 = vld [vmem:[#allocation3 + $0x292] sm:$0xff]
        %v4780 = vld [vmem:[#allocation3 + $0x2a2] sm:$0xff]
        %v4781 = vld [vmem:[#allocation3 + $0x2aa] sm:$0xff]
        %v4782 = vld [vmem:[#allocation3 + $0x2ba] sm:$0xff]
        %v4783 = vld [vmem:[#allocation3 + $0x2c2] sm:$0xff]
        %v4784 = vld [vmem:[#allocation3 + $0x2d2] sm:$0xff]
        %v4785 = vld [vmem:[#allocation3 + $0x2da] sm:$0xff]
        %v4786 = vld [vmem:[#allocation3 + $0x2ea] sm:$0xff]
        %v4787 = vld [vmem:[#allocation3 + $0x2f2] sm:$0xff]
        %v4788 = vld [vmem:[#allocation3 + $0x302] sm:$0xff]
        %v4789 = vld [vmem:[#allocation3 + $0x30a] sm:$0xff]
        %v4790 = vld [vmem:[#allocation3 + $0x31a] sm:$0xff]
        %v4791 = vld [vmem:[#allocation3 + $0x322] sm:$0xff]
        %v4792 = vld [vmem:[#allocation3 + $0x332] sm:$0xff]
        %v4793 = vld [vmem:[#allocation3 + $0x33a] sm:$0xff]
        %v4794 = vld [vmem:[#allocation3 + $0x34a] sm:$0xff]
        %v4795 = vld [vmem:[#allocation3 + $0x352] sm:$0xff]
        %s4796 = scalar_lea.vmem %s318, 128 [#allocation6]
        %v4797 = vld [vmem:[%s4796] sm:$0xff]
        %v4798 = vld [vmem:[%s4796 + $0x8] sm:$0xff]
        %v4799 = vld [vmem:[%s4796 + $0x10] sm:$0xff]
        %v4800 = vld [vmem:[%s4796 + $0x18] sm:$0xff]
        %v4801 = vld [vmem:[%s4796 + $0x20] sm:$0xff]
        %v4802 = vld [vmem:[%s4796 + $0x28] sm:$0xff]
        %v4803 = vld [vmem:[%s4796 + $0x30] sm:$0xff]
        %v4804 = vld [vmem:[%s4796 + $0x38] sm:$0xff]
        %v4805 = vld [vmem:[%s4796 + $0x40] sm:$0xff]
        %v4806 = vld [vmem:[%s4796 + $0x48] sm:$0xff]
        %v4807 = vld [vmem:[%s4796 + $0x50] sm:$0xff]
        %v4808 = vld [vmem:[%s4796 + $0x58] sm:$0xff]
        %v4809 = vld [vmem:[%s4796 + $0x60] sm:$0xff]
        %v4810 = vld [vmem:[%s4796 + $0x68] sm:$0xff]
        %v4811 = vld [vmem:[%s4796 + $0x70] sm:$0xff]
        %v4812 = vld [vmem:[%s4796 + $0x78] sm:$0xff]
        %4813 = vmatpush.msra.mxu0 %v4812
        %4814 = vmatpush.msra.mxu0 %v4811
        %4815 = vmatpush.msra.mxu0 %v4810
        %4816 = vmatpush.msra.mxu0 %v4809
        %4817 = vmatpush.msra.mxu0 %v4808
        %4818 = vmatpush.msra.mxu0 %v4807
        %4819 = vmatpush.msra.mxu0 %v4806
        %4820 = vmatpush.msra.mxu0 %v4805
        %4821 = vmatpush.msra.mxu0 %v4804
        %4822 = vmatpush.msra.mxu0 %v4803
        %4823 = vmatpush.msra.mxu0 %v4802
        %4824 = vmatpush.msra.mxu0 %v4801
        %4825 = vmatpush.msra.mxu0 %v4800
        %4826 = vmatpush.msra.mxu0 %v4799
        %4827 = vmatpush.msra.mxu0 %v4798
        %4828 = vmatpush.msra.mxu0 %v4797
        %4829 = vmatmul.f32.gmra.mxu0 %v4732
        %v4830 = vpop.f32.mrf.mxu0
        %v4831 = vadd.f32 0.0, %v4830
        %4832 = vmatmul.f32.gmra.mxu0 %v4733
        %v4833 = vpop.f32.mrf.mxu0
        %v4834 = vadd.f32 0.0, %v4833
        %4835 = vmatmul.f32.gmra.mxu0 %v4734
        %v4836 = vpop.f32.mrf.mxu0
        %v4837 = vadd.f32 0.0, %v4836
        %4838 = vmatmul.f32.gmra.mxu0 %v4735
        %v4839 = vpop.f32.mrf.mxu0
        %v4840 = vadd.f32 0.0, %v4839
        %4841 = vmatmul.f32.gmra.mxu0 %v4736
        %v4842 = vpop.f32.mrf.mxu0
        %v4843 = vadd.f32 0.0, %v4842
        %4844 = vmatmul.f32.gmra.mxu0 %v4737
        %v4845 = vpop.f32.mrf.mxu0
        %v4846 = vadd.f32 0.0, %v4845
        %4847 = vmatmul.f32.gmra.mxu0 %v4738
        %v4848 = vpop.f32.mrf.mxu0
        %v4849 = vadd.f32 0.0, %v4848
        %4850 = vmatmul.f32.gmra.mxu0 %v4739
        %v4851 = vpop.f32.mrf.mxu0
        %v4852 = vadd.f32 0.0, %v4851
        %4853 = vmatmul.f32.gmra.mxu0 %v4740
        %v4854 = vpop.f32.mrf.mxu0
        %v4855 = vadd.f32 0.0, %v4854
        %4856 = vmatmul.f32.gmra.mxu0 %v4741
        %v4857 = vpop.f32.mrf.mxu0
        %v4858 = vadd.f32 0.0, %v4857
        %4859 = vmatmul.f32.gmra.mxu0 %v4742
        %v4860 = vpop.f32.mrf.mxu0
        %v4861 = vadd.f32 0.0, %v4860
        %4862 = vmatmul.f32.gmra.mxu0 %v4743
        %v4863 = vpop.f32.mrf.mxu0
        %v4864 = vadd.f32 0.0, %v4863
        %4865 = vmatmul.f32.gmra.mxu0 %v4744
        %v4866 = vpop.f32.mrf.mxu0
        %v4867 = vadd.f32 0.0, %v4866
        %4868 = vmatmul.f32.gmra.mxu0 %v4745
        %v4869 = vpop.f32.mrf.mxu0
        %v4870 = vadd.f32 0.0, %v4869
        %4871 = vmatmul.f32.gmra.mxu0 %v4746
        %v4872 = vpop.f32.mrf.mxu0
        %v4873 = vadd.f32 0.0, %v4872
        %4874 = vmatmul.f32.gmra.mxu0 %v4747
        %v4875 = vpop.f32.mrf.mxu0
        %v4876 = vadd.f32 0.0, %v4875
        %4877 = vmatmul.f32.gmra.mxu0 %v4748
        %v4878 = vpop.f32.mrf.mxu0
        %v4879 = vadd.f32 0.0, %v4878
        %4880 = vmatmul.f32.gmra.mxu0 %v4749
        %v4881 = vpop.f32.mrf.mxu0
        %v4882 = vadd.f32 0.0, %v4881
        %4883 = vmatmul.f32.gmra.mxu0 %v4750
        %v4884 = vpop.f32.mrf.mxu0
        %v4885 = vadd.f32 0.0, %v4884
        %4886 = vmatmul.f32.gmra.mxu0 %v4751
        %v4887 = vpop.f32.mrf.mxu0
        %v4888 = vadd.f32 0.0, %v4887
        %4889 = vmatmul.f32.gmra.mxu0 %v4752
        %v4890 = vpop.f32.mrf.mxu0
        %v4891 = vadd.f32 0.0, %v4890
        %4892 = vmatmul.f32.gmra.mxu0 %v4753
        %v4893 = vpop.f32.mrf.mxu0
        %v4894 = vadd.f32 0.0, %v4893
        %4895 = vmatmul.f32.gmra.mxu0 %v4754
        %v4896 = vpop.f32.mrf.mxu0
        %v4897 = vadd.f32 0.0, %v4896
        %4898 = vmatmul.f32.gmra.mxu0 %v4755
        %v4899 = vpop.f32.mrf.mxu0
        %v4900 = vadd.f32 0.0, %v4899
        %4901 = vmatmul.f32.gmra.mxu0 %v4756
        %v4902 = vpop.f32.mrf.mxu0
        %v4903 = vadd.f32 0.0, %v4902
        %4904 = vmatmul.f32.gmra.mxu0 %v4757
        %v4905 = vpop.f32.mrf.mxu0
        %v4906 = vadd.f32 0.0, %v4905
        %4907 = vmatmul.f32.gmra.mxu0 %v4758
        %v4908 = vpop.f32.mrf.mxu0
        %v4909 = vadd.f32 0.0, %v4908
        %4910 = vmatmul.f32.gmra.mxu0 %v4759
        %v4911 = vpop.f32.mrf.mxu0
        %v4912 = vadd.f32 0.0, %v4911
        %4913 = vmatmul.f32.gmra.mxu0 %v4760
        %v4914 = vpop.f32.mrf.mxu0
        %v4915 = vadd.f32 0.0, %v4914
        %4916 = vmatmul.f32.gmra.mxu0 %v4761
        %v4917 = vpop.f32.mrf.mxu0
        %v4918 = vadd.f32 0.0, %v4917
        %4919 = vmatmul.f32.gmra.mxu0 %v4762
        %v4920 = vpop.f32.mrf.mxu0
        %v4921 = vadd.f32 0.0, %v4920
        %4922 = vmatmul.f32.gmra.mxu0 %v4763
        %v4923 = vpop.f32.mrf.mxu0
        %v4924 = vadd.f32 0.0, %v4923
        %4925 = vmatmul.f32.gmra.mxu0 %v4764
        %v4926 = vpop.f32.mrf.mxu0
        %v4927 = vadd.f32 0.0, %v4926
        %4928 = vmatmul.f32.gmra.mxu0 %v4765
        %v4929 = vpop.f32.mrf.mxu0
        %v4930 = vadd.f32 0.0, %v4929
        %4931 = vmatmul.f32.gmra.mxu0 %v4766
        %v4932 = vpop.f32.mrf.mxu0
        %v4933 = vadd.f32 0.0, %v4932
        %4934 = vmatmul.f32.gmra.mxu0 %v4767
        %v4935 = vpop.f32.mrf.mxu0
        %v4936 = vadd.f32 0.0, %v4935
        %4937 = vmatmul.f32.gmra.mxu0 %v4768
        %v4938 = vpop.f32.mrf.mxu0
        %v4939 = vadd.f32 0.0, %v4938
        %4940 = vmatmul.f32.gmra.mxu0 %v4769
        %v4941 = vpop.f32.mrf.mxu0
        %v4942 = vadd.f32 0.0, %v4941
        %4943 = vmatmul.f32.gmra.mxu0 %v4770
        %v4944 = vpop.f32.mrf.mxu0
        %v4945 = vadd.f32 0.0, %v4944
        %4946 = vmatmul.f32.gmra.mxu0 %v4771
        %v4947 = vpop.f32.mrf.mxu0
        %v4948 = vadd.f32 0.0, %v4947
        %4949 = vmatmul.f32.gmra.mxu0 %v4772
        %v4950 = vpop.f32.mrf.mxu0
        %v4951 = vadd.f32 0.0, %v4950
        %4952 = vmatmul.f32.gmra.mxu0 %v4773
        %v4953 = vpop.f32.mrf.mxu0
        %v4954 = vadd.f32 0.0, %v4953
        %4955 = vmatmul.f32.gmra.mxu0 %v4774
        %v4956 = vpop.f32.mrf.mxu0
        %v4957 = vadd.f32 0.0, %v4956
        %4958 = vmatmul.f32.gmra.mxu0 %v4775
        %v4959 = vpop.f32.mrf.mxu0
        %v4960 = vadd.f32 0.0, %v4959
        %4961 = vmatmul.f32.gmra.mxu0 %v4776
        %v4962 = vpop.f32.mrf.mxu0
        %v4963 = vadd.f32 0.0, %v4962
        %4964 = vmatmul.f32.gmra.mxu0 %v4777
        %v4965 = vpop.f32.mrf.mxu0
        %v4966 = vadd.f32 0.0, %v4965
        %4967 = vmatmul.f32.gmra.mxu0 %v4778
        %v4968 = vpop.f32.mrf.mxu0
        %v4969 = vadd.f32 0.0, %v4968
        %4970 = vmatmul.f32.gmra.mxu0 %v4779
        %v4971 = vpop.f32.mrf.mxu0
        %v4972 = vadd.f32 0.0, %v4971
        %4973 = vmatmul.f32.gmra.mxu0 %v4780
        %v4974 = vpop.f32.mrf.mxu0
        %v4975 = vadd.f32 0.0, %v4974
        %4976 = vmatmul.f32.gmra.mxu0 %v4781
        %v4977 = vpop.f32.mrf.mxu0
        %v4978 = vadd.f32 0.0, %v4977
        %4979 = vmatmul.f32.gmra.mxu0 %v4782
        %v4980 = vpop.f32.mrf.mxu0
        %v4981 = vadd.f32 0.0, %v4980
        %4982 = vmatmul.f32.gmra.mxu0 %v4783
        %v4983 = vpop.f32.mrf.mxu0
        %v4984 = vadd.f32 0.0, %v4983
        %4985 = vmatmul.f32.gmra.mxu0 %v4784
        %v4986 = vpop.f32.mrf.mxu0
        %v4987 = vadd.f32 0.0, %v4986
        %4988 = vmatmul.f32.gmra.mxu0 %v4785
        %v4989 = vpop.f32.mrf.mxu0
        %v4990 = vadd.f32 0.0, %v4989
        %4991 = vmatmul.f32.gmra.mxu0 %v4786
        %v4992 = vpop.f32.mrf.mxu0
        %v4993 = vadd.f32 0.0, %v4992
        %4994 = vmatmul.f32.gmra.mxu0 %v4787
        %v4995 = vpop.f32.mrf.mxu0
        %v4996 = vadd.f32 0.0, %v4995
        %4997 = vmatmul.f32.gmra.mxu0 %v4788
        %v4998 = vpop.f32.mrf.mxu0
        %v4999 = vadd.f32 0.0, %v4998
        %5000 = vmatmul.f32.gmra.mxu0 %v4789
        %v5001 = vpop.f32.mrf.mxu0
        %v5002 = vadd.f32 0.0, %v5001
        %5003 = vmatmul.f32.gmra.mxu0 %v4790
        %v5004 = vpop.f32.mrf.mxu0
        %v5005 = vadd.f32 0.0, %v5004
        %5006 = vmatmul.f32.gmra.mxu0 %v4791
        %v5007 = vpop.f32.mrf.mxu0
        %v5008 = vadd.f32 0.0, %v5007
        %5009 = vmatmul.f32.gmra.mxu0 %v4792
        %v5010 = vpop.f32.mrf.mxu0
        %v5011 = vadd.f32 0.0, %v5010
        %5012 = vmatmul.f32.gmra.mxu0 %v4793
        %v5013 = vpop.f32.mrf.mxu0
        %v5014 = vadd.f32 0.0, %v5013
        %5015 = vmatmul.f32.gmra.mxu0 %v4794
        %v5016 = vpop.f32.mrf.mxu0
        %v5017 = vadd.f32 0.0, %v5016
        %5018 = vmatmul.f32.gmra.mxu0 %v4795
        %v5019 = vpop.f32.mrf.mxu0
        %v5020 = vadd.f32 0.0, %v5019
        %5021 = vdwg.mxu0
        %5022 = vmatpush.msra.mxu0 %v4731
        %5023 = vmatpush.msra.mxu0 %v4730
        %5024 = vmatpush.msra.mxu0 %v4729
        %5025 = vmatpush.msra.mxu0 %v4728
        %5026 = vmatpush.msra.mxu0 %v4727
        %5027 = vmatpush.msra.mxu0 %v4726
        %5028 = vmatpush.msra.mxu0 %v4725
        %5029 = vmatpush.msra.mxu0 %v4724
        %5030 = vmatpush.msra.mxu0 %v4723
        %5031 = vmatpush.msra.mxu0 %v4722
        %5032 = vmatpush.msra.mxu0 %v4721
        %5033 = vmatpush.msra.mxu0 %v4720
        %5034 = vmatpush.msra.mxu0 %v4719
        %5035 = vmatpush.msra.mxu0 %v4718
        %5036 = vmatpush.msra.mxu0 %v4717
        %5037 = vmatpush.msra.mxu0 %v4716
        %5038 = vmatmul.f32.gmra.mxu0 %v4652
        %v5039 = vpop.f32.mrf.mxu0
        %v5040 = vadd.f32 %v4831, %v5039
        %5041 = vmatmul.f32.gmra.mxu0 %v4653
        %v5042 = vpop.f32.mrf.mxu0
        %v5043 = vadd.f32 %v4834, %v5042
        %5044 = vmatmul.f32.gmra.mxu0 %v4654
        %v5045 = vpop.f32.mrf.mxu0
        %v5046 = vadd.f32 %v4837, %v5045
        %5047 = vmatmul.f32.gmra.mxu0 %v4655
        %v5048 = vpop.f32.mrf.mxu0
        %v5049 = vadd.f32 %v4840, %v5048
        %5050 = vmatmul.f32.gmra.mxu0 %v4656
        %v5051 = vpop.f32.mrf.mxu0
        %v5052 = vadd.f32 %v4843, %v5051
        %5053 = vmatmul.f32.gmra.mxu0 %v4657
        %v5054 = vpop.f32.mrf.mxu0
        %v5055 = vadd.f32 %v4846, %v5054
        %5056 = vmatmul.f32.gmra.mxu0 %v4658
        %v5057 = vpop.f32.mrf.mxu0
        %v5058 = vadd.f32 %v4849, %v5057
        %5059 = vmatmul.f32.gmra.mxu0 %v4659
        %v5060 = vpop.f32.mrf.mxu0
        %v5061 = vadd.f32 %v4852, %v5060
        %5062 = vmatmul.f32.gmra.mxu0 %v4660
        %v5063 = vpop.f32.mrf.mxu0
        %v5064 = vadd.f32 %v4855, %v5063
        %5065 = vmatmul.f32.gmra.mxu0 %v4661
        %v5066 = vpop.f32.mrf.mxu0
        %v5067 = vadd.f32 %v4858, %v5066
        %5068 = vmatmul.f32.gmra.mxu0 %v4662
        %v5069 = vpop.f32.mrf.mxu0
        %v5070 = vadd.f32 %v4861, %v5069
        %5071 = vmatmul.f32.gmra.mxu0 %v4663
        %v5072 = vpop.f32.mrf.mxu0
        %v5073 = vadd.f32 %v4864, %v5072
        %5074 = vmatmul.f32.gmra.mxu0 %v4664
        %v5075 = vpop.f32.mrf.mxu0
        %v5076 = vadd.f32 %v4867, %v5075
        %5077 = vmatmul.f32.gmra.mxu0 %v4665
        %v5078 = vpop.f32.mrf.mxu0
        %v5079 = vadd.f32 %v4870, %v5078
        %5080 = vmatmul.f32.gmra.mxu0 %v4666
        %v5081 = vpop.f32.mrf.mxu0
        %v5082 = vadd.f32 %v4873, %v5081
        %5083 = vmatmul.f32.gmra.mxu0 %v4667
        %v5084 = vpop.f32.mrf.mxu0
        %v5085 = vadd.f32 %v4876, %v5084
        %5086 = vmatmul.f32.gmra.mxu0 %v4668
        %v5087 = vpop.f32.mrf.mxu0
        %v5088 = vadd.f32 %v4879, %v5087
        %5089 = vmatmul.f32.gmra.mxu0 %v4669
        %v5090 = vpop.f32.mrf.mxu0
        %v5091 = vadd.f32 %v4882, %v5090
        %5092 = vmatmul.f32.gmra.mxu0 %v4670
        %v5093 = vpop.f32.mrf.mxu0
        %v5094 = vadd.f32 %v4885, %v5093
        %5095 = vmatmul.f32.gmra.mxu0 %v4671
        %v5096 = vpop.f32.mrf.mxu0
        %v5097 = vadd.f32 %v4888, %v5096
        %5098 = vmatmul.f32.gmra.mxu0 %v4672
        %v5099 = vpop.f32.mrf.mxu0
        %v5100 = vadd.f32 %v4891, %v5099
        %5101 = vmatmul.f32.gmra.mxu0 %v4673
        %v5102 = vpop.f32.mrf.mxu0
        %v5103 = vadd.f32 %v4894, %v5102
        %5104 = vmatmul.f32.gmra.mxu0 %v4674
        %v5105 = vpop.f32.mrf.mxu0
        %v5106 = vadd.f32 %v4897, %v5105
        %5107 = vmatmul.f32.gmra.mxu0 %v4675
        %v5108 = vpop.f32.mrf.mxu0
        %v5109 = vadd.f32 %v4900, %v5108
        %5110 = vmatmul.f32.gmra.mxu0 %v4676
        %v5111 = vpop.f32.mrf.mxu0
        %v5112 = vadd.f32 %v4903, %v5111
        %5113 = vmatmul.f32.gmra.mxu0 %v4677
        %v5114 = vpop.f32.mrf.mxu0
        %v5115 = vadd.f32 %v4906, %v5114
        %5116 = vmatmul.f32.gmra.mxu0 %v4678
        %v5117 = vpop.f32.mrf.mxu0
        %v5118 = vadd.f32 %v4909, %v5117
        %5119 = vmatmul.f32.gmra.mxu0 %v4679
        %v5120 = vpop.f32.mrf.mxu0
        %v5121 = vadd.f32 %v4912, %v5120
        %5122 = vmatmul.f32.gmra.mxu0 %v4680
        %v5123 = vpop.f32.mrf.mxu0
        %v5124 = vadd.f32 %v4915, %v5123
        %5125 = vmatmul.f32.gmra.mxu0 %v4681
        %v5126 = vpop.f32.mrf.mxu0
        %v5127 = vadd.f32 %v4918, %v5126
        %5128 = vmatmul.f32.gmra.mxu0 %v4682
        %v5129 = vpop.f32.mrf.mxu0
        %v5130 = vadd.f32 %v4921, %v5129
        %5131 = vmatmul.f32.gmra.mxu0 %v4683
        %v5132 = vpop.f32.mrf.mxu0
        %v5133 = vadd.f32 %v4924, %v5132
        %5134 = vmatmul.f32.gmra.mxu0 %v4684
        %v5135 = vpop.f32.mrf.mxu0
        %v5136 = vadd.f32 %v4927, %v5135
        %5137 = vmatmul.f32.gmra.mxu0 %v4685
        %v5138 = vpop.f32.mrf.mxu0
        %v5139 = vadd.f32 %v4930, %v5138
        %5140 = vmatmul.f32.gmra.mxu0 %v4686
        %v5141 = vpop.f32.mrf.mxu0
        %v5142 = vadd.f32 %v4933, %v5141
        %5143 = vmatmul.f32.gmra.mxu0 %v4687
        %v5144 = vpop.f32.mrf.mxu0
        %v5145 = vadd.f32 %v4936, %v5144
        %5146 = vmatmul.f32.gmra.mxu0 %v4688
        %v5147 = vpop.f32.mrf.mxu0
        %v5148 = vadd.f32 %v4939, %v5147
        %5149 = vmatmul.f32.gmra.mxu0 %v4689
        %v5150 = vpop.f32.mrf.mxu0
        %v5151 = vadd.f32 %v4942, %v5150
        %5152 = vmatmul.f32.gmra.mxu0 %v4690
        %v5153 = vpop.f32.mrf.mxu0
        %v5154 = vadd.f32 %v4945, %v5153
        %5155 = vmatmul.f32.gmra.mxu0 %v4691
        %v5156 = vpop.f32.mrf.mxu0
        %v5157 = vadd.f32 %v4948, %v5156
        %5158 = vmatmul.f32.gmra.mxu0 %v4692
        %v5159 = vpop.f32.mrf.mxu0
        %v5160 = vadd.f32 %v4951, %v5159
        %5161 = vmatmul.f32.gmra.mxu0 %v4693
        %v5162 = vpop.f32.mrf.mxu0
        %v5163 = vadd.f32 %v4954, %v5162
        %5164 = vmatmul.f32.gmra.mxu0 %v4694
        %v5165 = vpop.f32.mrf.mxu0
        %v5166 = vadd.f32 %v4957, %v5165
        %5167 = vmatmul.f32.gmra.mxu0 %v4695
        %v5168 = vpop.f32.mrf.mxu0
        %v5169 = vadd.f32 %v4960, %v5168
        %5170 = vmatmul.f32.gmra.mxu0 %v4696
        %v5171 = vpop.f32.mrf.mxu0
        %v5172 = vadd.f32 %v4963, %v5171
        %5173 = vmatmul.f32.gmra.mxu0 %v4697
        %v5174 = vpop.f32.mrf.mxu0
        %v5175 = vadd.f32 %v4966, %v5174
        %5176 = vmatmul.f32.gmra.mxu0 %v4698
        %v5177 = vpop.f32.mrf.mxu0
        %v5178 = vadd.f32 %v4969, %v5177
        %5179 = vmatmul.f32.gmra.mxu0 %v4699
        %v5180 = vpop.f32.mrf.mxu0
        %v5181 = vadd.f32 %v4972, %v5180
        %5182 = vmatmul.f32.gmra.mxu0 %v4700
        %v5183 = vpop.f32.mrf.mxu0
        %v5184 = vadd.f32 %v4975, %v5183
        %5185 = vmatmul.f32.gmra.mxu0 %v4701
        %v5186 = vpop.f32.mrf.mxu0
        %v5187 = vadd.f32 %v4978, %v5186
        %5188 = vmatmul.f32.gmra.mxu0 %v4702
        %v5189 = vpop.f32.mrf.mxu0
        %v5190 = vadd.f32 %v4981, %v5189
        %5191 = vmatmul.f32.gmra.mxu0 %v4703
        %v5192 = vpop.f32.mrf.mxu0
        %v5193 = vadd.f32 %v4984, %v5192
        %5194 = vmatmul.f32.gmra.mxu0 %v4704
        %v5195 = vpop.f32.mrf.mxu0
        %v5196 = vadd.f32 %v4987, %v5195
        %5197 = vmatmul.f32.gmra.mxu0 %v4705
        %v5198 = vpop.f32.mrf.mxu0
        %v5199 = vadd.f32 %v4990, %v5198
        %5200 = vmatmul.f32.gmra.mxu0 %v4706
        %v5201 = vpop.f32.mrf.mxu0
        %v5202 = vadd.f32 %v4993, %v5201
        %5203 = vmatmul.f32.gmra.mxu0 %v4707
        %v5204 = vpop.f32.mrf.mxu0
        %v5205 = vadd.f32 %v4996, %v5204
        %5206 = vmatmul.f32.gmra.mxu0 %v4708
        %v5207 = vpop.f32.mrf.mxu0
        %v5208 = vadd.f32 %v4999, %v5207
        %5209 = vmatmul.f32.gmra.mxu0 %v4709
        %v5210 = vpop.f32.mrf.mxu0
        %v5211 = vadd.f32 %v5002, %v5210
        %5212 = vmatmul.f32.gmra.mxu0 %v4710
        %v5213 = vpop.f32.mrf.mxu0
        %v5214 = vadd.f32 %v5005, %v5213
        %5215 = vmatmul.f32.gmra.mxu0 %v4711
        %v5216 = vpop.f32.mrf.mxu0
        %v5217 = vadd.f32 %v5008, %v5216
        %5218 = vmatmul.f32.gmra.mxu0 %v4712
        %v5219 = vpop.f32.mrf.mxu0
        %v5220 = vadd.f32 %v5011, %v5219
        %5221 = vmatmul.f32.gmra.mxu0 %v4713
        %v5222 = vpop.f32.mrf.mxu0
        %v5223 = vadd.f32 %v5014, %v5222
        %5224 = vmatmul.f32.gmra.mxu0 %v4714
        %v5225 = vpop.f32.mrf.mxu0
        %v5226 = vadd.f32 %v5017, %v5225
        %5227 = vmatmul.f32.gmra.mxu0 %v4715
        %v5228 = vpop.f32.mrf.mxu0
        %v5229 = vadd.f32 %v5020, %v5228
        %5230 = vdwg.mxu0
        %v5231 = vld [vmem:[#allocation3 + $0x4] sm:$0xff]
        %v5232 = vld [vmem:[#allocation3 + $0xc] sm:$0xff]
        %v5233 = vld [vmem:[#allocation3 + $0x1c] sm:$0xff]
        %v5234 = vld [vmem:[#allocation3 + $0x24] sm:$0xff]
        %v5235 = vld [vmem:[#allocation3 + $0x34] sm:$0xff]
        %v5236 = vld [vmem:[#allocation3 + $0x3c] sm:$0xff]
        %v5237 = vld [vmem:[#allocation3 + $0x4c] sm:$0xff]
        %v5238 = vld [vmem:[#allocation3 + $0x54] sm:$0xff]
        %v5239 = vld [vmem:[#allocation3 + $0x64] sm:$0xff]
        %v5240 = vld [vmem:[#allocation3 + $0x6c] sm:$0xff]
        %v5241 = vld [vmem:[#allocation3 + $0x7c] sm:$0xff]
        %v5242 = vld [vmem:[#allocation3 + $0x84] sm:$0xff]
        %v5243 = vld [vmem:[#allocation3 + $0x94] sm:$0xff]
        %v5244 = vld [vmem:[#allocation3 + $0x9c] sm:$0xff]
        %v5245 = vld [vmem:[#allocation3 + $0xac] sm:$0xff]
        %v5246 = vld [vmem:[#allocation3 + $0xb4] sm:$0xff]
        %v5247 = vld [vmem:[#allocation3 + $0xc4] sm:$0xff]
        %v5248 = vld [vmem:[#allocation3 + $0xcc] sm:$0xff]
        %v5249 = vld [vmem:[#allocation3 + $0xdc] sm:$0xff]
        %v5250 = vld [vmem:[#allocation3 + $0xe4] sm:$0xff]
        %v5251 = vld [vmem:[#allocation3 + $0xf4] sm:$0xff]
        %v5252 = vld [vmem:[#allocation3 + $0xfc] sm:$0xff]
        %v5253 = vld [vmem:[#allocation3 + $0x10c] sm:$0xff]
        %v5254 = vld [vmem:[#allocation3 + $0x114] sm:$0xff]
        %v5255 = vld [vmem:[#allocation3 + $0x124] sm:$0xff]
        %v5256 = vld [vmem:[#allocation3 + $0x12c] sm:$0xff]
        %v5257 = vld [vmem:[#allocation3 + $0x13c] sm:$0xff]
        %v5258 = vld [vmem:[#allocation3 + $0x144] sm:$0xff]
        %v5259 = vld [vmem:[#allocation3 + $0x154] sm:$0xff]
        %v5260 = vld [vmem:[#allocation3 + $0x15c] sm:$0xff]
        %v5261 = vld [vmem:[#allocation3 + $0x16c] sm:$0xff]
        %v5262 = vld [vmem:[#allocation3 + $0x174] sm:$0xff]
        %v5263 = vld [vmem:[#allocation3 + $0x1e4] sm:$0xff]
        %v5264 = vld [vmem:[#allocation3 + $0x1ec] sm:$0xff]
        %v5265 = vld [vmem:[#allocation3 + $0x1fc] sm:$0xff]
        %v5266 = vld [vmem:[#allocation3 + $0x204] sm:$0xff]
        %v5267 = vld [vmem:[#allocation3 + $0x214] sm:$0xff]
        %v5268 = vld [vmem:[#allocation3 + $0x21c] sm:$0xff]
        %v5269 = vld [vmem:[#allocation3 + $0x22c] sm:$0xff]
        %v5270 = vld [vmem:[#allocation3 + $0x234] sm:$0xff]
        %v5271 = vld [vmem:[#allocation3 + $0x244] sm:$0xff]
        %v5272 = vld [vmem:[#allocation3 + $0x24c] sm:$0xff]
        %v5273 = vld [vmem:[#allocation3 + $0x25c] sm:$0xff]
        %v5274 = vld [vmem:[#allocation3 + $0x264] sm:$0xff]
        %v5275 = vld [vmem:[#allocation3 + $0x274] sm:$0xff]
        %v5276 = vld [vmem:[#allocation3 + $0x27c] sm:$0xff]
        %v5277 = vld [vmem:[#allocation3 + $0x28c] sm:$0xff]
        %v5278 = vld [vmem:[#allocation3 + $0x294] sm:$0xff]
        %v5279 = vld [vmem:[#allocation3 + $0x2a4] sm:$0xff]
        %v5280 = vld [vmem:[#allocation3 + $0x2ac] sm:$0xff]
        %v5281 = vld [vmem:[#allocation3 + $0x2bc] sm:$0xff]
        %v5282 = vld [vmem:[#allocation3 + $0x2c4] sm:$0xff]
        %v5283 = vld [vmem:[#allocation3 + $0x2d4] sm:$0xff]
        %v5284 = vld [vmem:[#allocation3 + $0x2dc] sm:$0xff]
        %v5285 = vld [vmem:[#allocation3 + $0x2ec] sm:$0xff]
        %v5286 = vld [vmem:[#allocation3 + $0x2f4] sm:$0xff]
        %v5287 = vld [vmem:[#allocation3 + $0x304] sm:$0xff]
        %v5288 = vld [vmem:[#allocation3 + $0x30c] sm:$0xff]
        %v5289 = vld [vmem:[#allocation3 + $0x31c] sm:$0xff]
        %v5290 = vld [vmem:[#allocation3 + $0x324] sm:$0xff]
        %v5291 = vld [vmem:[#allocation3 + $0x334] sm:$0xff]
        %v5292 = vld [vmem:[#allocation3 + $0x33c] sm:$0xff]
        %v5293 = vld [vmem:[#allocation3 + $0x34c] sm:$0xff]
        %v5294 = vld [vmem:[#allocation3 + $0x354] sm:$0xff]
        %s5295 = scalar_lea.vmem %s318, 256 [#allocation6]
        %v5296 = vld [vmem:[%s5295] sm:$0xff]
        %v5297 = vld [vmem:[%s5295 + $0x8] sm:$0xff]
        %v5298 = vld [vmem:[%s5295 + $0x10] sm:$0xff]
        %v5299 = vld [vmem:[%s5295 + $0x18] sm:$0xff]
        %v5300 = vld [vmem:[%s5295 + $0x20] sm:$0xff]
        %v5301 = vld [vmem:[%s5295 + $0x28] sm:$0xff]
        %v5302 = vld [vmem:[%s5295 + $0x30] sm:$0xff]
        %v5303 = vld [vmem:[%s5295 + $0x38] sm:$0xff]
        %v5304 = vld [vmem:[%s5295 + $0x40] sm:$0xff]
        %v5305 = vld [vmem:[%s5295 + $0x48] sm:$0xff]
        %v5306 = vld [vmem:[%s5295 + $0x50] sm:$0xff]
        %v5307 = vld [vmem:[%s5295 + $0x58] sm:$0xff]
        %v5308 = vld [vmem:[%s5295 + $0x60] sm:$0xff]
        %v5309 = vld [vmem:[%s5295 + $0x68] sm:$0xff]
        %v5310 = vld [vmem:[%s5295 + $0x70] sm:$0xff]
        %v5311 = vld [vmem:[%s5295 + $0x78] sm:$0xff]
        %5312 = vmatpush.msra.mxu0 %v5311
        %5313 = vmatpush.msra.mxu0 %v5310
        %5314 = vmatpush.msra.mxu0 %v5309
        %5315 = vmatpush.msra.mxu0 %v5308
        %5316 = vmatpush.msra.mxu0 %v5307
        %5317 = vmatpush.msra.mxu0 %v5306
        %5318 = vmatpush.msra.mxu0 %v5305
        %5319 = vmatpush.msra.mxu0 %v5304
        %5320 = vmatpush.msra.mxu0 %v5303
        %5321 = vmatpush.msra.mxu0 %v5302
        %5322 = vmatpush.msra.mxu0 %v5301
        %5323 = vmatpush.msra.mxu0 %v5300
        %5324 = vmatpush.msra.mxu0 %v5299
        %5325 = vmatpush.msra.mxu0 %v5298
        %5326 = vmatpush.msra.mxu0 %v5297
        %5327 = vmatpush.msra.mxu0 %v5296
        %5328 = vmatmul.f32.gmra.mxu0 %v5231
        %v5329 = vpop.f32.mrf.mxu0
        %v5330 = vadd.f32 0.0, %v5329
        %5331 = vmatmul.f32.gmra.mxu0 %v5232
        %v5332 = vpop.f32.mrf.mxu0
        %v5333 = vadd.f32 0.0, %v5332
        %5334 = vmatmul.f32.gmra.mxu0 %v5233
        %v5335 = vpop.f32.mrf.mxu0
        %v5336 = vadd.f32 0.0, %v5335
        %5337 = vmatmul.f32.gmra.mxu0 %v5234
        %v5338 = vpop.f32.mrf.mxu0
        %v5339 = vadd.f32 0.0, %v5338
        %5340 = vmatmul.f32.gmra.mxu0 %v5235
        %v5341 = vpop.f32.mrf.mxu0
        %v5342 = vadd.f32 0.0, %v5341
        %5343 = vmatmul.f32.gmra.mxu0 %v5236
        %v5344 = vpop.f32.mrf.mxu0
        %v5345 = vadd.f32 0.0, %v5344
        %5346 = vmatmul.f32.gmra.mxu0 %v5237
        %v5347 = vpop.f32.mrf.mxu0
        %v5348 = vadd.f32 0.0, %v5347
        %5349 = vmatmul.f32.gmra.mxu0 %v5238
        %v5350 = vpop.f32.mrf.mxu0
        %v5351 = vadd.f32 0.0, %v5350
        %5352 = vmatmul.f32.gmra.mxu0 %v5239
        %v5353 = vpop.f32.mrf.mxu0
        %v5354 = vadd.f32 0.0, %v5353
        %5355 = vmatmul.f32.gmra.mxu0 %v5240
        %v5356 = vpop.f32.mrf.mxu0
        %v5357 = vadd.f32 0.0, %v5356
        %5358 = vmatmul.f32.gmra.mxu0 %v5241
        %v5359 = vpop.f32.mrf.mxu0
        %v5360 = vadd.f32 0.0, %v5359
        %5361 = vmatmul.f32.gmra.mxu0 %v5242
        %v5362 = vpop.f32.mrf.mxu0
        %v5363 = vadd.f32 0.0, %v5362
        %5364 = vmatmul.f32.gmra.mxu0 %v5243
        %v5365 = vpop.f32.mrf.mxu0
        %v5366 = vadd.f32 0.0, %v5365
        %5367 = vmatmul.f32.gmra.mxu0 %v5244
        %v5368 = vpop.f32.mrf.mxu0
        %v5369 = vadd.f32 0.0, %v5368
        %5370 = vmatmul.f32.gmra.mxu0 %v5245
        %v5371 = vpop.f32.mrf.mxu0
        %v5372 = vadd.f32 0.0, %v5371
        %5373 = vmatmul.f32.gmra.mxu0 %v5246
        %v5374 = vpop.f32.mrf.mxu0
        %v5375 = vadd.f32 0.0, %v5374
        %5376 = vmatmul.f32.gmra.mxu0 %v5247
        %v5377 = vpop.f32.mrf.mxu0
        %v5378 = vadd.f32 0.0, %v5377
        %5379 = vmatmul.f32.gmra.mxu0 %v5248
        %v5380 = vpop.f32.mrf.mxu0
        %v5381 = vadd.f32 0.0, %v5380
        %5382 = vmatmul.f32.gmra.mxu0 %v5249
        %v5383 = vpop.f32.mrf.mxu0
        %v5384 = vadd.f32 0.0, %v5383
        %5385 = vmatmul.f32.gmra.mxu0 %v5250
        %v5386 = vpop.f32.mrf.mxu0
        %v5387 = vadd.f32 0.0, %v5386
        %5388 = vmatmul.f32.gmra.mxu0 %v5251
        %v5389 = vpop.f32.mrf.mxu0
        %v5390 = vadd.f32 0.0, %v5389
        %5391 = vmatmul.f32.gmra.mxu0 %v5252
        %v5392 = vpop.f32.mrf.mxu0
        %v5393 = vadd.f32 0.0, %v5392
        %5394 = vmatmul.f32.gmra.mxu0 %v5253
        %v5395 = vpop.f32.mrf.mxu0
        %v5396 = vadd.f32 0.0, %v5395
        %5397 = vmatmul.f32.gmra.mxu0 %v5254
        %v5398 = vpop.f32.mrf.mxu0
        %v5399 = vadd.f32 0.0, %v5398
        %5400 = vmatmul.f32.gmra.mxu0 %v5255
        %v5401 = vpop.f32.mrf.mxu0
        %v5402 = vadd.f32 0.0, %v5401
        %5403 = vmatmul.f32.gmra.mxu0 %v5256
        %v5404 = vpop.f32.mrf.mxu0
        %v5405 = vadd.f32 0.0, %v5404
        %5406 = vmatmul.f32.gmra.mxu0 %v5257
        %v5407 = vpop.f32.mrf.mxu0
        %v5408 = vadd.f32 0.0, %v5407
        %5409 = vmatmul.f32.gmra.mxu0 %v5258
        %v5410 = vpop.f32.mrf.mxu0
        %v5411 = vadd.f32 0.0, %v5410
        %5412 = vmatmul.f32.gmra.mxu0 %v5259
        %v5413 = vpop.f32.mrf.mxu0
        %v5414 = vadd.f32 0.0, %v5413
        %5415 = vmatmul.f32.gmra.mxu0 %v5260
        %v5416 = vpop.f32.mrf.mxu0
        %v5417 = vadd.f32 0.0, %v5416
        %5418 = vmatmul.f32.gmra.mxu0 %v5261
        %v5419 = vpop.f32.mrf.mxu0
        %v5420 = vadd.f32 0.0, %v5419
        %5421 = vmatmul.f32.gmra.mxu0 %v5262
        %v5422 = vpop.f32.mrf.mxu0
        %v5423 = vadd.f32 0.0, %v5422
        %5424 = vmatmul.f32.gmra.mxu0 %v5263
        %v5425 = vpop.f32.mrf.mxu0
        %v5426 = vadd.f32 0.0, %v5425
        %5427 = vmatmul.f32.gmra.mxu0 %v5264
        %v5428 = vpop.f32.mrf.mxu0
        %v5429 = vadd.f32 0.0, %v5428
        %5430 = vmatmul.f32.gmra.mxu0 %v5265
        %v5431 = vpop.f32.mrf.mxu0
        %v5432 = vadd.f32 0.0, %v5431
        %5433 = vmatmul.f32.gmra.mxu0 %v5266
        %v5434 = vpop.f32.mrf.mxu0
        %v5435 = vadd.f32 0.0, %v5434
        %5436 = vmatmul.f32.gmra.mxu0 %v5267
        %v5437 = vpop.f32.mrf.mxu0
        %v5438 = vadd.f32 0.0, %v5437
        %5439 = vmatmul.f32.gmra.mxu0 %v5268
        %v5440 = vpop.f32.mrf.mxu0
        %v5441 = vadd.f32 0.0, %v5440
        %5442 = vmatmul.f32.gmra.mxu0 %v5269
        %v5443 = vpop.f32.mrf.mxu0
        %v5444 = vadd.f32 0.0, %v5443
        %5445 = vmatmul.f32.gmra.mxu0 %v5270
        %v5446 = vpop.f32.mrf.mxu0
        %v5447 = vadd.f32 0.0, %v5446
        %5448 = vmatmul.f32.gmra.mxu0 %v5271
        %v5449 = vpop.f32.mrf.mxu0
        %v5450 = vadd.f32 0.0, %v5449
        %5451 = vmatmul.f32.gmra.mxu0 %v5272
        %v5452 = vpop.f32.mrf.mxu0
        %v5453 = vadd.f32 0.0, %v5452
        %5454 = vmatmul.f32.gmra.mxu0 %v5273
        %v5455 = vpop.f32.mrf.mxu0
        %v5456 = vadd.f32 0.0, %v5455
        %5457 = vmatmul.f32.gmra.mxu0 %v5274
        %v5458 = vpop.f32.mrf.mxu0
        %v5459 = vadd.f32 0.0, %v5458
        %5460 = vmatmul.f32.gmra.mxu0 %v5275
        %v5461 = vpop.f32.mrf.mxu0
        %v5462 = vadd.f32 0.0, %v5461
        %5463 = vmatmul.f32.gmra.mxu0 %v5276
        %v5464 = vpop.f32.mrf.mxu0
        %v5465 = vadd.f32 0.0, %v5464
        %5466 = vmatmul.f32.gmra.mxu0 %v5277
        %v5467 = vpop.f32.mrf.mxu0
        %v5468 = vadd.f32 0.0, %v5467
        %5469 = vmatmul.f32.gmra.mxu0 %v5278
        %v5470 = vpop.f32.mrf.mxu0
        %v5471 = vadd.f32 0.0, %v5470
        %5472 = vmatmul.f32.gmra.mxu0 %v5279
        %v5473 = vpop.f32.mrf.mxu0
        %v5474 = vadd.f32 0.0, %v5473
        %5475 = vmatmul.f32.gmra.mxu0 %v5280
        %v5476 = vpop.f32.mrf.mxu0
        %v5477 = vadd.f32 0.0, %v5476
        %5478 = vmatmul.f32.gmra.mxu0 %v5281
        %v5479 = vpop.f32.mrf.mxu0
        %v5480 = vadd.f32 0.0, %v5479
        %5481 = vmatmul.f32.gmra.mxu0 %v5282
        %v5482 = vpop.f32.mrf.mxu0
        %v5483 = vadd.f32 0.0, %v5482
        %5484 = vmatmul.f32.gmra.mxu0 %v5283
        %v5485 = vpop.f32.mrf.mxu0
        %v5486 = vadd.f32 0.0, %v5485
        %5487 = vmatmul.f32.gmra.mxu0 %v5284
        %v5488 = vpop.f32.mrf.mxu0
        %v5489 = vadd.f32 0.0, %v5488
        %5490 = vmatmul.f32.gmra.mxu0 %v5285
        %v5491 = vpop.f32.mrf.mxu0
        %v5492 = vadd.f32 0.0, %v5491
        %5493 = vmatmul.f32.gmra.mxu0 %v5286
        %v5494 = vpop.f32.mrf.mxu0
        %v5495 = vadd.f32 0.0, %v5494
        %5496 = vmatmul.f32.gmra.mxu0 %v5287
        %v5497 = vpop.f32.mrf.mxu0
        %v5498 = vadd.f32 0.0, %v5497
        %5499 = vmatmul.f32.gmra.mxu0 %v5288
        %v5500 = vpop.f32.mrf.mxu0
        %v5501 = vadd.f32 0.0, %v5500
        %5502 = vmatmul.f32.gmra.mxu0 %v5289
        %v5503 = vpop.f32.mrf.mxu0
        %v5504 = vadd.f32 0.0, %v5503
        %5505 = vmatmul.f32.gmra.mxu0 %v5290
        %v5506 = vpop.f32.mrf.mxu0
        %v5507 = vadd.f32 0.0, %v5506
        %5508 = vmatmul.f32.gmra.mxu0 %v5291
        %v5509 = vpop.f32.mrf.mxu0
        %v5510 = vadd.f32 0.0, %v5509
        %5511 = vmatmul.f32.gmra.mxu0 %v5292
        %v5512 = vpop.f32.mrf.mxu0
        %v5513 = vadd.f32 0.0, %v5512
        %5514 = vmatmul.f32.gmra.mxu0 %v5293
        %v5515 = vpop.f32.mrf.mxu0
        %v5516 = vadd.f32 0.0, %v5515
        %5517 = vmatmul.f32.gmra.mxu0 %v5294
        %v5518 = vpop.f32.mrf.mxu0
        %v5519 = vadd.f32 0.0, %v5518
        %5520 = vdwg.mxu0
        %v5521 = vadd.f32 %v5040, %v5330
        %v5522 = vadd.f32 %v5043, %v5333
        %v5523 = vadd.f32 %v5046, %v5336
        %v5524 = vadd.f32 %v5049, %v5339
        %v5525 = vadd.f32 %v5052, %v5342
        %v5526 = vadd.f32 %v5055, %v5345
        %v5527 = vadd.f32 %v5058, %v5348
        %v5528 = vadd.f32 %v5061, %v5351
        %v5529 = vadd.f32 %v5064, %v5354
        %v5530 = vadd.f32 %v5067, %v5357
        %v5531 = vadd.f32 %v5070, %v5360
        %v5532 = vadd.f32 %v5073, %v5363
        %v5533 = vadd.f32 %v5076, %v5366
        %v5534 = vadd.f32 %v5079, %v5369
        %v5535 = vadd.f32 %v5082, %v5372
        %v5536 = vadd.f32 %v5085, %v5375
        %v5537 = vadd.f32 %v5088, %v5378
        %v5538 = vadd.f32 %v5091, %v5381
        %v5539 = vadd.f32 %v5094, %v5384
        %v5540 = vadd.f32 %v5097, %v5387
        %v5541 = vadd.f32 %v5100, %v5390
        %v5542 = vadd.f32 %v5103, %v5393
        %v5543 = vadd.f32 %v5106, %v5396
        %v5544 = vadd.f32 %v5109, %v5399
        %v5545 = vadd.f32 %v5112, %v5402
        %v5546 = vadd.f32 %v5115, %v5405
        %v5547 = vadd.f32 %v5118, %v5408
        %v5548 = vadd.f32 %v5121, %v5411
        %v5549 = vadd.f32 %v5124, %v5414
        %v5550 = vadd.f32 %v5127, %v5417
        %v5551 = vadd.f32 %v5130, %v5420
        %v5552 = vadd.f32 %v5133, %v5423
        %v5553 = vadd.f32 %v5136, %v5426
        %v5554 = vadd.f32 %v5139, %v5429
        %v5555 = vadd.f32 %v5142, %v5432
        %v5556 = vadd.f32 %v5145, %v5435
        %v5557 = vadd.f32 %v5148, %v5438
        %v5558 = vadd.f32 %v5151, %v5441
        %v5559 = vadd.f32 %v5154, %v5444
        %v5560 = vadd.f32 %v5157, %v5447
        %v5561 = vadd.f32 %v5160, %v5450
        %v5562 = vadd.f32 %v5163, %v5453
        %v5563 = vadd.f32 %v5166, %v5456
        %v5564 = vadd.f32 %v5169, %v5459
        %v5565 = vadd.f32 %v5172, %v5462
        %v5566 = vadd.f32 %v5175, %v5465
        %v5567 = vadd.f32 %v5178, %v5468
        %v5568 = vadd.f32 %v5181, %v5471
        %v5569 = vadd.f32 %v5184, %v5474
        %v5570 = vadd.f32 %v5187, %v5477
        %v5571 = vadd.f32 %v5190, %v5480
        %v5572 = vadd.f32 %v5193, %v5483
        %v5573 = vadd.f32 %v5196, %v5486
        %v5574 = vadd.f32 %v5199, %v5489
        %v5575 = vadd.f32 %v5202, %v5492
        %v5576 = vadd.f32 %v5205, %v5495
        %v5577 = vadd.f32 %v5208, %v5498
        %v5578 = vadd.f32 %v5211, %v5501
        %v5579 = vadd.f32 %v5214, %v5504
        %v5580 = vadd.f32 %v5217, %v5507
        %v5581 = vadd.f32 %v5220, %v5510
        %v5582 = vadd.f32 %v5223, %v5513
        %v5583 = vadd.f32 %v5226, %v5516
        %v5584 = vadd.f32 %v5229, %v5519
        %v5585 = vld [vmem:[%s4587] sm:$0xff]
        %v5586 = vld [vmem:[%s4587 + $0x8] sm:$0xff]
        %v5587 = vld [vmem:[%s4587 + $0x18] sm:$0xff]
        %v5588 = vld [vmem:[%s4587 + $0x20] sm:$0xff]
        %v5589 = vld [vmem:[%s4587 + $0x30] sm:$0xff]
        %v5590 = vld [vmem:[%s4587 + $0x38] sm:$0xff]
        %v5591 = vld [vmem:[%s4587 + $0x48] sm:$0xff]
        %v5592 = vld [vmem:[%s4587 + $0x50] sm:$0xff]
        %v5593 = vld [vmem:[%s4587 + $0x60] sm:$0xff]
        %v5594 = vld [vmem:[%s4587 + $0x68] sm:$0xff]
        %v5595 = vld [vmem:[%s4587 + $0x78] sm:$0xff]
        %v5596 = vld [vmem:[%s4587 + $0x80] sm:$0xff]
        %v5597 = vld [vmem:[%s4587 + $0x90] sm:$0xff]
        %v5598 = vld [vmem:[%s4587 + $0x98] sm:$0xff]
        %v5599 = vld [vmem:[%s4587 + $0xa8] sm:$0xff]
        %v5600 = vld [vmem:[%s4587 + $0xb0] sm:$0xff]
        %v5601 = vld [vmem:[%s4587 + $0xc0] sm:$0xff]
        %v5602 = vld [vmem:[%s4587 + $0xc8] sm:$0xff]
        %v5603 = vld [vmem:[%s4587 + $0xd8] sm:$0xff]
        %v5604 = vld [vmem:[%s4587 + $0xe0] sm:$0xff]
        %v5605 = vld [vmem:[%s4587 + $0xf0] sm:$0xff]
        %v5606 = vld [vmem:[%s4587 + $0xf8] sm:$0xff]
        %v5607 = vld [vmem:[%s4587 + $0x108] sm:$0xff]
        %v5608 = vld [vmem:[%s4587 + $0x110] sm:$0xff]
        %v5609 = vld [vmem:[%s4587 + $0x120] sm:$0xff]
        %v5610 = vld [vmem:[%s4587 + $0x128] sm:$0xff]
        %v5611 = vld [vmem:[%s4587 + $0x138] sm:$0xff]
        %v5612 = vld [vmem:[%s4587 + $0x140] sm:$0xff]
        %v5613 = vld [vmem:[%s4587 + $0x150] sm:$0xff]
        %v5614 = vld [vmem:[%s4587 + $0x158] sm:$0xff]
        %v5615 = vld [vmem:[%s4587 + $0x168] sm:$0xff]
        %v5616 = vld [vmem:[%s4587 + $0x170] sm:$0xff]
        %v5617 = vld [vmem:[%s4587 + $0x1e0] sm:$0xff]
        %v5618 = vld [vmem:[%s4587 + $0x1e8] sm:$0xff]
        %v5619 = vld [vmem:[%s4587 + $0x1f8] sm:$0xff]
        %v5620 = vld [vmem:[%s4587 + $0x200] sm:$0xff]
        %v5621 = vld [vmem:[%s4587 + $0x210] sm:$0xff]
        %v5622 = vld [vmem:[%s4587 + $0x218] sm:$0xff]
        %v5623 = vld [vmem:[%s4587 + $0x228] sm:$0xff]
        %v5624 = vld [vmem:[%s4587 + $0x230] sm:$0xff]
        %v5625 = vld [vmem:[%s4587 + $0x240] sm:$0xff]
        %v5626 = vld [vmem:[%s4587 + $0x248] sm:$0xff]
        %v5627 = vld [vmem:[%s4587 + $0x258] sm:$0xff]
        %v5628 = vld [vmem:[%s4587 + $0x260] sm:$0xff]
        %v5629 = vld [vmem:[%s4587 + $0x270] sm:$0xff]
        %v5630 = vld [vmem:[%s4587 + $0x278] sm:$0xff]
        %v5631 = vld [vmem:[%s4587 + $0x288] sm:$0xff]
        %v5632 = vld [vmem:[%s4587 + $0x290] sm:$0xff]
        %v5633 = vld [vmem:[%s4587 + $0x2a0] sm:$0xff]
        %v5634 = vld [vmem:[%s4587 + $0x2a8] sm:$0xff]
        %v5635 = vld [vmem:[%s4587 + $0x2b8] sm:$0xff]
        %v5636 = vld [vmem:[%s4587 + $0x2c0] sm:$0xff]
        %v5637 = vld [vmem:[%s4587 + $0x2d0] sm:$0xff]
        %v5638 = vld [vmem:[%s4587 + $0x2d8] sm:$0xff]
        %v5639 = vld [vmem:[%s4587 + $0x2e8] sm:$0xff]
        %v5640 = vld [vmem:[%s4587 + $0x2f0] sm:$0xff]
        %v5641 = vld [vmem:[%s4587 + $0x300] sm:$0xff]
        %v5642 = vld [vmem:[%s4587 + $0x308] sm:$0xff]
        %v5643 = vld [vmem:[%s4587 + $0x318] sm:$0xff]
        %v5644 = vld [vmem:[%s4587 + $0x320] sm:$0xff]
        %v5645 = vld [vmem:[%s4587 + $0x330] sm:$0xff]
        %v5646 = vld [vmem:[%s4587 + $0x338] sm:$0xff]
        %v5647 = vld [vmem:[%s4587 + $0x348] sm:$0xff]
        %v5648 = vld [vmem:[%s4587 + $0x350] sm:$0xff]
        %s5649 = scalar_lea.vmem %s318, 384 [#allocation6]
        %v5650 = vld [vmem:[%s5649] sm:$0xff]
        %v5651 = vld [vmem:[%s5649 + $0x8] sm:$0xff]
        %v5652 = vld [vmem:[%s5649 + $0x10] sm:$0xff]
        %v5653 = vld [vmem:[%s5649 + $0x18] sm:$0xff]
        %v5654 = vld [vmem:[%s5649 + $0x20] sm:$0xff]
        %v5655 = vld [vmem:[%s5649 + $0x28] sm:$0xff]
        %v5656 = vld [vmem:[%s5649 + $0x30] sm:$0xff]
        %v5657 = vld [vmem:[%s5649 + $0x38] sm:$0xff]
        %v5658 = vld [vmem:[%s5649 + $0x40] sm:$0xff]
        %v5659 = vld [vmem:[%s5649 + $0x48] sm:$0xff]
        %v5660 = vld [vmem:[%s5649 + $0x50] sm:$0xff]
        %v5661 = vld [vmem:[%s5649 + $0x58] sm:$0xff]
        %v5662 = vld [vmem:[%s5649 + $0x60] sm:$0xff]
        %v5663 = vld [vmem:[%s5649 + $0x68] sm:$0xff]
        %v5664 = vld [vmem:[%s5649 + $0x70] sm:$0xff]
        %v5665 = vld [vmem:[%s5649 + $0x78] sm:$0xff]
        %5666 = vmatpush.msra.mxu0 %v5665
        %5667 = vmatpush.msra.mxu0 %v5664
        %5668 = vmatpush.msra.mxu0 %v5663
        %5669 = vmatpush.msra.mxu0 %v5662
        %5670 = vmatpush.msra.mxu0 %v5661
        %5671 = vmatpush.msra.mxu0 %v5660
        %5672 = vmatpush.msra.mxu0 %v5659
        %5673 = vmatpush.msra.mxu0 %v5658
        %5674 = vmatpush.msra.mxu0 %v5657
        %5675 = vmatpush.msra.mxu0 %v5656
        %5676 = vmatpush.msra.mxu0 %v5655
        %5677 = vmatpush.msra.mxu0 %v5654
        %5678 = vmatpush.msra.mxu0 %v5653
        %5679 = vmatpush.msra.mxu0 %v5652
        %5680 = vmatpush.msra.mxu0 %v5651
        %5681 = vmatpush.msra.mxu0 %v5650
        %5682 = vmatmul.f32.gmra.mxu0 %v5585
        %v5683 = vpop.f32.mrf.mxu0
        %v5684 = vadd.f32 0.0, %v5683
        %5685 = vmatmul.f32.gmra.mxu0 %v5586
        %v5686 = vpop.f32.mrf.mxu0
        %v5687 = vadd.f32 0.0, %v5686
        %5688 = vmatmul.f32.gmra.mxu0 %v5587
        %v5689 = vpop.f32.mrf.mxu0
        %v5690 = vadd.f32 0.0, %v5689
        %5691 = vmatmul.f32.gmra.mxu0 %v5588
        %v5692 = vpop.f32.mrf.mxu0
        %v5693 = vadd.f32 0.0, %v5692
        %5694 = vmatmul.f32.gmra.mxu0 %v5589
        %v5695 = vpop.f32.mrf.mxu0
        %v5696 = vadd.f32 0.0, %v5695
        %5697 = vmatmul.f32.gmra.mxu0 %v5590
        %v5698 = vpop.f32.mrf.mxu0
        %v5699 = vadd.f32 0.0, %v5698
        %5700 = vmatmul.f32.gmra.mxu0 %v5591
        %v5701 = vpop.f32.mrf.mxu0
        %v5702 = vadd.f32 0.0, %v5701
        %5703 = vmatmul.f32.gmra.mxu0 %v5592
        %v5704 = vpop.f32.mrf.mxu0
        %v5705 = vadd.f32 0.0, %v5704
        %5706 = vmatmul.f32.gmra.mxu0 %v5593
        %v5707 = vpop.f32.mrf.mxu0
        %v5708 = vadd.f32 0.0, %v5707
        %5709 = vmatmul.f32.gmra.mxu0 %v5594
        %v5710 = vpop.f32.mrf.mxu0
        %v5711 = vadd.f32 0.0, %v5710
        %5712 = vmatmul.f32.gmra.mxu0 %v5595
        %v5713 = vpop.f32.mrf.mxu0
        %v5714 = vadd.f32 0.0, %v5713
        %5715 = vmatmul.f32.gmra.mxu0 %v5596
        %v5716 = vpop.f32.mrf.mxu0
        %v5717 = vadd.f32 0.0, %v5716
        %5718 = vmatmul.f32.gmra.mxu0 %v5597
        %v5719 = vpop.f32.mrf.mxu0
        %v5720 = vadd.f32 0.0, %v5719
        %5721 = vmatmul.f32.gmra.mxu0 %v5598
        %v5722 = vpop.f32.mrf.mxu0
        %v5723 = vadd.f32 0.0, %v5722
        %5724 = vmatmul.f32.gmra.mxu0 %v5599
        %v5725 = vpop.f32.mrf.mxu0
        %v5726 = vadd.f32 0.0, %v5725
        %5727 = vmatmul.f32.gmra.mxu0 %v5600
        %v5728 = vpop.f32.mrf.mxu0
        %v5729 = vadd.f32 0.0, %v5728
        %5730 = vmatmul.f32.gmra.mxu0 %v5601
        %v5731 = vpop.f32.mrf.mxu0
        %v5732 = vadd.f32 0.0, %v5731
        %5733 = vmatmul.f32.gmra.mxu0 %v5602
        %v5734 = vpop.f32.mrf.mxu0
        %v5735 = vadd.f32 0.0, %v5734
        %5736 = vmatmul.f32.gmra.mxu0 %v5603
        %v5737 = vpop.f32.mrf.mxu0
        %v5738 = vadd.f32 0.0, %v5737
        %5739 = vmatmul.f32.gmra.mxu0 %v5604
        %v5740 = vpop.f32.mrf.mxu0
        %v5741 = vadd.f32 0.0, %v5740
        %5742 = vmatmul.f32.gmra.mxu0 %v5605
        %v5743 = vpop.f32.mrf.mxu0
        %v5744 = vadd.f32 0.0, %v5743
        %5745 = vmatmul.f32.gmra.mxu0 %v5606
        %v5746 = vpop.f32.mrf.mxu0
        %v5747 = vadd.f32 0.0, %v5746
        %5748 = vmatmul.f32.gmra.mxu0 %v5607
        %v5749 = vpop.f32.mrf.mxu0
        %v5750 = vadd.f32 0.0, %v5749
        %5751 = vmatmul.f32.gmra.mxu0 %v5608
        %v5752 = vpop.f32.mrf.mxu0
        %v5753 = vadd.f32 0.0, %v5752
        %5754 = vmatmul.f32.gmra.mxu0 %v5609
        %v5755 = vpop.f32.mrf.mxu0
        %v5756 = vadd.f32 0.0, %v5755
        %5757 = vmatmul.f32.gmra.mxu0 %v5610
        %v5758 = vpop.f32.mrf.mxu0
        %v5759 = vadd.f32 0.0, %v5758
        %5760 = vmatmul.f32.gmra.mxu0 %v5611
        %v5761 = vpop.f32.mrf.mxu0
        %v5762 = vadd.f32 0.0, %v5761
        %5763 = vmatmul.f32.gmra.mxu0 %v5612
        %v5764 = vpop.f32.mrf.mxu0
        %v5765 = vadd.f32 0.0, %v5764
        %5766 = vmatmul.f32.gmra.mxu0 %v5613
        %v5767 = vpop.f32.mrf.mxu0
        %v5768 = vadd.f32 0.0, %v5767
        %5769 = vmatmul.f32.gmra.mxu0 %v5614
        %v5770 = vpop.f32.mrf.mxu0
        %v5771 = vadd.f32 0.0, %v5770
        %5772 = vmatmul.f32.gmra.mxu0 %v5615
        %v5773 = vpop.f32.mrf.mxu0
        %v5774 = vadd.f32 0.0, %v5773
        %5775 = vmatmul.f32.gmra.mxu0 %v5616
        %v5776 = vpop.f32.mrf.mxu0
        %v5777 = vadd.f32 0.0, %v5776
        %5778 = vmatmul.f32.gmra.mxu0 %v5617
        %v5779 = vpop.f32.mrf.mxu0
        %v5780 = vadd.f32 0.0, %v5779
        %5781 = vmatmul.f32.gmra.mxu0 %v5618
        %v5782 = vpop.f32.mrf.mxu0
        %v5783 = vadd.f32 0.0, %v5782
        %5784 = vmatmul.f32.gmra.mxu0 %v5619
        %v5785 = vpop.f32.mrf.mxu0
        %v5786 = vadd.f32 0.0, %v5785
        %5787 = vmatmul.f32.gmra.mxu0 %v5620
        %v5788 = vpop.f32.mrf.mxu0
        %v5789 = vadd.f32 0.0, %v5788
        %5790 = vmatmul.f32.gmra.mxu0 %v5621
        %v5791 = vpop.f32.mrf.mxu0
        %v5792 = vadd.f32 0.0, %v5791
        %5793 = vmatmul.f32.gmra.mxu0 %v5622
        %v5794 = vpop.f32.mrf.mxu0
        %v5795 = vadd.f32 0.0, %v5794
        %5796 = vmatmul.f32.gmra.mxu0 %v5623
        %v5797 = vpop.f32.mrf.mxu0
        %v5798 = vadd.f32 0.0, %v5797
        %5799 = vmatmul.f32.gmra.mxu0 %v5624
        %v5800 = vpop.f32.mrf.mxu0
        %v5801 = vadd.f32 0.0, %v5800
        %5802 = vmatmul.f32.gmra.mxu0 %v5625
        %v5803 = vpop.f32.mrf.mxu0
        %v5804 = vadd.f32 0.0, %v5803
        %5805 = vmatmul.f32.gmra.mxu0 %v5626
        %v5806 = vpop.f32.mrf.mxu0
        %v5807 = vadd.f32 0.0, %v5806
        %5808 = vmatmul.f32.gmra.mxu0 %v5627
        %v5809 = vpop.f32.mrf.mxu0
        %v5810 = vadd.f32 0.0, %v5809
        %5811 = vmatmul.f32.gmra.mxu0 %v5628
        %v5812 = vpop.f32.mrf.mxu0
        %v5813 = vadd.f32 0.0, %v5812
        %5814 = vmatmul.f32.gmra.mxu0 %v5629
        %v5815 = vpop.f32.mrf.mxu0
        %v5816 = vadd.f32 0.0, %v5815
        %5817 = vmatmul.f32.gmra.mxu0 %v5630
        %v5818 = vpop.f32.mrf.mxu0
        %v5819 = vadd.f32 0.0, %v5818
        %5820 = vmatmul.f32.gmra.mxu0 %v5631
        %v5821 = vpop.f32.mrf.mxu0
        %v5822 = vadd.f32 0.0, %v5821
        %5823 = vmatmul.f32.gmra.mxu0 %v5632
        %v5824 = vpop.f32.mrf.mxu0
        %v5825 = vadd.f32 0.0, %v5824
        %5826 = vmatmul.f32.gmra.mxu0 %v5633
        %v5827 = vpop.f32.mrf.mxu0
        %v5828 = vadd.f32 0.0, %v5827
        %5829 = vmatmul.f32.gmra.mxu0 %v5634
        %v5830 = vpop.f32.mrf.mxu0
        %v5831 = vadd.f32 0.0, %v5830
        %5832 = vmatmul.f32.gmra.mxu0 %v5635
        %v5833 = vpop.f32.mrf.mxu0
        %v5834 = vadd.f32 0.0, %v5833
        %5835 = vmatmul.f32.gmra.mxu0 %v5636
        %v5836 = vpop.f32.mrf.mxu0
        %v5837 = vadd.f32 0.0, %v5836
        %5838 = vmatmul.f32.gmra.mxu0 %v5637
        %v5839 = vpop.f32.mrf.mxu0
        %v5840 = vadd.f32 0.0, %v5839
        %5841 = vmatmul.f32.gmra.mxu0 %v5638
        %v5842 = vpop.f32.mrf.mxu0
        %v5843 = vadd.f32 0.0, %v5842
        %5844 = vmatmul.f32.gmra.mxu0 %v5639
        %v5845 = vpop.f32.mrf.mxu0
        %v5846 = vadd.f32 0.0, %v5845
        %5847 = vmatmul.f32.gmra.mxu0 %v5640
        %v5848 = vpop.f32.mrf.mxu0
        %v5849 = vadd.f32 0.0, %v5848
        %5850 = vmatmul.f32.gmra.mxu0 %v5641
        %v5851 = vpop.f32.mrf.mxu0
        %v5852 = vadd.f32 0.0, %v5851
        %5853 = vmatmul.f32.gmra.mxu0 %v5642
        %v5854 = vpop.f32.mrf.mxu0
        %v5855 = vadd.f32 0.0, %v5854
        %5856 = vmatmul.f32.gmra.mxu0 %v5643
        %v5857 = vpop.f32.mrf.mxu0
        %v5858 = vadd.f32 0.0, %v5857
        %5859 = vmatmul.f32.gmra.mxu0 %v5644
        %v5860 = vpop.f32.mrf.mxu0
        %v5861 = vadd.f32 0.0, %v5860
        %5862 = vmatmul.f32.gmra.mxu0 %v5645
        %v5863 = vpop.f32.mrf.mxu0
        %v5864 = vadd.f32 0.0, %v5863
        %5865 = vmatmul.f32.gmra.mxu0 %v5646
        %v5866 = vpop.f32.mrf.mxu0
        %v5867 = vadd.f32 0.0, %v5866
        %5868 = vmatmul.f32.gmra.mxu0 %v5647
        %v5869 = vpop.f32.mrf.mxu0
        %v5870 = vadd.f32 0.0, %v5869
        %5871 = vmatmul.f32.gmra.mxu0 %v5648
        %v5872 = vpop.f32.mrf.mxu0
        %v5873 = vadd.f32 0.0, %v5872
        %5874 = vdwg.mxu0
        %v5875 = vadd.f32 %v5521, %v5684
        %v5876 = vadd.f32 %v5522, %v5687
        %v5877 = vadd.f32 %v5523, %v5690
        %v5878 = vadd.f32 %v5524, %v5693
        %v5879 = vadd.f32 %v5525, %v5696
        %v5880 = vadd.f32 %v5526, %v5699
        %v5881 = vadd.f32 %v5527, %v5702
        %v5882 = vadd.f32 %v5528, %v5705
        %v5883 = vadd.f32 %v5529, %v5708
        %v5884 = vadd.f32 %v5530, %v5711
        %v5885 = vadd.f32 %v5531, %v5714
        %v5886 = vadd.f32 %v5532, %v5717
        %v5887 = vadd.f32 %v5533, %v5720
        %v5888 = vadd.f32 %v5534, %v5723
        %v5889 = vadd.f32 %v5535, %v5726
        %v5890 = vadd.f32 %v5536, %v5729
        %v5891 = vadd.f32 %v5537, %v5732
        %v5892 = vadd.f32 %v5538, %v5735
        %v5893 = vadd.f32 %v5539, %v5738
        %v5894 = vadd.f32 %v5540, %v5741
        %v5895 = vadd.f32 %v5541, %v5744
        %v5896 = vadd.f32 %v5542, %v5747
        %v5897 = vadd.f32 %v5543, %v5750
        %v5898 = vadd.f32 %v5544, %v5753
        %v5899 = vadd.f32 %v5545, %v5756
        %v5900 = vadd.f32 %v5546, %v5759
        %v5901 = vadd.f32 %v5547, %v5762
        %v5902 = vadd.f32 %v5548, %v5765
        %v5903 = vadd.f32 %v5549, %v5768
        %v5904 = vadd.f32 %v5550, %v5771
        %v5905 = vadd.f32 %v5551, %v5774
        %v5906 = vadd.f32 %v5552, %v5777
        %v5907 = vadd.f32 %v5553, %v5780
        %v5908 = vadd.f32 %v5554, %v5783
        %v5909 = vadd.f32 %v5555, %v5786
        %v5910 = vadd.f32 %v5556, %v5789
        %v5911 = vadd.f32 %v5557, %v5792
        %v5912 = vadd.f32 %v5558, %v5795
        %v5913 = vadd.f32 %v5559, %v5798
        %v5914 = vadd.f32 %v5560, %v5801
        %v5915 = vadd.f32 %v5561, %v5804
        %v5916 = vadd.f32 %v5562, %v5807
        %v5917 = vadd.f32 %v5563, %v5810
        %v5918 = vadd.f32 %v5564, %v5813
        %v5919 = vadd.f32 %v5565, %v5816
        %v5920 = vadd.f32 %v5566, %v5819
        %v5921 = vadd.f32 %v5567, %v5822
        %v5922 = vadd.f32 %v5568, %v5825
        %v5923 = vadd.f32 %v5569, %v5828
        %v5924 = vadd.f32 %v5570, %v5831
        %v5925 = vadd.f32 %v5571, %v5834
        %v5926 = vadd.f32 %v5572, %v5837
        %v5927 = vadd.f32 %v5573, %v5840
        %v5928 = vadd.f32 %v5574, %v5843
        %v5929 = vadd.f32 %v5575, %v5846
        %v5930 = vadd.f32 %v5576, %v5849
        %v5931 = vadd.f32 %v5577, %v5852
        %v5932 = vadd.f32 %v5578, %v5855
        %v5933 = vadd.f32 %v5579, %v5858
        %v5934 = vadd.f32 %v5580, %v5861
        %v5935 = vadd.f32 %v5581, %v5864
        %v5936 = vadd.f32 %v5582, %v5867
        %v5937 = vadd.f32 %v5583, %v5870
        %v5938 = vadd.f32 %v5584, %v5873
        %v5939 = vld [vmem:[%s4587 + $0x2] sm:$0xff]
        %v5940 = vld [vmem:[%s4587 + $0xa] sm:$0xff]
        %v5941 = vld [vmem:[%s4587 + $0x1a] sm:$0xff]
        %v5942 = vld [vmem:[%s4587 + $0x22] sm:$0xff]
        %v5943 = vld [vmem:[%s4587 + $0x32] sm:$0xff]
        %v5944 = vld [vmem:[%s4587 + $0x3a] sm:$0xff]
        %v5945 = vld [vmem:[%s4587 + $0x4a] sm:$0xff]
        %v5946 = vld [vmem:[%s4587 + $0x52] sm:$0xff]
        %v5947 = vld [vmem:[%s4587 + $0x62] sm:$0xff]
        %v5948 = vld [vmem:[%s4587 + $0x6a] sm:$0xff]
        %v5949 = vld [vmem:[%s4587 + $0x7a] sm:$0xff]
        %v5950 = vld [vmem:[%s4587 + $0x82] sm:$0xff]
        %v5951 = vld [vmem:[%s4587 + $0x92] sm:$0xff]
        %v5952 = vld [vmem:[%s4587 + $0x9a] sm:$0xff]
        %v5953 = vld [vmem:[%s4587 + $0xaa] sm:$0xff]
        %v5954 = vld [vmem:[%s4587 + $0xb2] sm:$0xff]
        %v5955 = vld [vmem:[%s4587 + $0xc2] sm:$0xff]
        %v5956 = vld [vmem:[%s4587 + $0xca] sm:$0xff]
        %v5957 = vld [vmem:[%s4587 + $0xda] sm:$0xff]
        %v5958 = vld [vmem:[%s4587 + $0xe2] sm:$0xff]
        %v5959 = vld [vmem:[%s4587 + $0xf2] sm:$0xff]
        %v5960 = vld [vmem:[%s4587 + $0xfa] sm:$0xff]
        %v5961 = vld [vmem:[%s4587 + $0x10a] sm:$0xff]
        %v5962 = vld [vmem:[%s4587 + $0x112] sm:$0xff]
        %v5963 = vld [vmem:[%s4587 + $0x122] sm:$0xff]
        %v5964 = vld [vmem:[%s4587 + $0x12a] sm:$0xff]
        %v5965 = vld [vmem:[%s4587 + $0x13a] sm:$0xff]
        %v5966 = vld [vmem:[%s4587 + $0x142] sm:$0xff]
        %v5967 = vld [vmem:[%s4587 + $0x152] sm:$0xff]
        %v5968 = vld [vmem:[%s4587 + $0x15a] sm:$0xff]
        %v5969 = vld [vmem:[%s4587 + $0x16a] sm:$0xff]
        %v5970 = vld [vmem:[%s4587 + $0x172] sm:$0xff]
        %v5971 = vld [vmem:[%s4587 + $0x1e2] sm:$0xff]
        %v5972 = vld [vmem:[%s4587 + $0x1ea] sm:$0xff]
        %v5973 = vld [vmem:[%s4587 + $0x1fa] sm:$0xff]
        %v5974 = vld [vmem:[%s4587 + $0x202] sm:$0xff]
        %v5975 = vld [vmem:[%s4587 + $0x212] sm:$0xff]
        %v5976 = vld [vmem:[%s4587 + $0x21a] sm:$0xff]
        %v5977 = vld [vmem:[%s4587 + $0x22a] sm:$0xff]
        %v5978 = vld [vmem:[%s4587 + $0x232] sm:$0xff]
        %v5979 = vld [vmem:[%s4587 + $0x242] sm:$0xff]
        %v5980 = vld [vmem:[%s4587 + $0x24a] sm:$0xff]
        %v5981 = vld [vmem:[%s4587 + $0x25a] sm:$0xff]
        %v5982 = vld [vmem:[%s4587 + $0x262] sm:$0xff]
        %v5983 = vld [vmem:[%s4587 + $0x272] sm:$0xff]
        %v5984 = vld [vmem:[%s4587 + $0x27a] sm:$0xff]
        %v5985 = vld [vmem:[%s4587 + $0x28a] sm:$0xff]
        %v5986 = vld [vmem:[%s4587 + $0x292] sm:$0xff]
        %v5987 = vld [vmem:[%s4587 + $0x2a2] sm:$0xff]
        %v5988 = vld [vmem:[%s4587 + $0x2aa] sm:$0xff]
        %v5989 = vld [vmem:[%s4587 + $0x2ba] sm:$0xff]
        %v5990 = vld [vmem:[%s4587 + $0x2c2] sm:$0xff]
        %v5991 = vld [vmem:[%s4587 + $0x2d2] sm:$0xff]
        %v5992 = vld [vmem:[%s4587 + $0x2da] sm:$0xff]
        %v5993 = vld [vmem:[%s4587 + $0x2ea] sm:$0xff]
        %v5994 = vld [vmem:[%s4587 + $0x2f2] sm:$0xff]
        %v5995 = vld [vmem:[%s4587 + $0x302] sm:$0xff]
        %v5996 = vld [vmem:[%s4587 + $0x30a] sm:$0xff]
        %v5997 = vld [vmem:[%s4587 + $0x31a] sm:$0xff]
        %v5998 = vld [vmem:[%s4587 + $0x322] sm:$0xff]
        %v5999 = vld [vmem:[%s4587 + $0x332] sm:$0xff]
        %v6000 = vld [vmem:[%s4587 + $0x33a] sm:$0xff]
        %v6001 = vld [vmem:[%s4587 + $0x34a] sm:$0xff]
        %v6002 = vld [vmem:[%s4587 + $0x352] sm:$0xff]
        %s6003 = scalar_lea.vmem %s318, 512 [#allocation6]
        %v6004 = vld [vmem:[%s6003] sm:$0xff]
        %v6005 = vld [vmem:[%s6003 + $0x8] sm:$0xff]
        %v6006 = vld [vmem:[%s6003 + $0x10] sm:$0xff]
        %v6007 = vld [vmem:[%s6003 + $0x18] sm:$0xff]
        %v6008 = vld [vmem:[%s6003 + $0x20] sm:$0xff]
        %v6009 = vld [vmem:[%s6003 + $0x28] sm:$0xff]
        %v6010 = vld [vmem:[%s6003 + $0x30] sm:$0xff]
        %v6011 = vld [vmem:[%s6003 + $0x38] sm:$0xff]
        %v6012 = vld [vmem:[%s6003 + $0x40] sm:$0xff]
        %v6013 = vld [vmem:[%s6003 + $0x48] sm:$0xff]
        %v6014 = vld [vmem:[%s6003 + $0x50] sm:$0xff]
        %v6015 = vld [vmem:[%s6003 + $0x58] sm:$0xff]
        %v6016 = vld [vmem:[%s6003 + $0x60] sm:$0xff]
        %v6017 = vld [vmem:[%s6003 + $0x68] sm:$0xff]
        %v6018 = vld [vmem:[%s6003 + $0x70] sm:$0xff]
        %v6019 = vld [vmem:[%s6003 + $0x78] sm:$0xff]
        %6020 = vmatpush.msra.mxu0 %v6019
        %6021 = vmatpush.msra.mxu0 %v6018
        %6022 = vmatpush.msra.mxu0 %v6017
        %6023 = vmatpush.msra.mxu0 %v6016
        %6024 = vmatpush.msra.mxu0 %v6015
        %6025 = vmatpush.msra.mxu0 %v6014
        %6026 = vmatpush.msra.mxu0 %v6013
        %6027 = vmatpush.msra.mxu0 %v6012
        %6028 = vmatpush.msra.mxu0 %v6011
        %6029 = vmatpush.msra.mxu0 %v6010
        %6030 = vmatpush.msra.mxu0 %v6009
        %6031 = vmatpush.msra.mxu0 %v6008
        %6032 = vmatpush.msra.mxu0 %v6007
        %6033 = vmatpush.msra.mxu0 %v6006
        %6034 = vmatpush.msra.mxu0 %v6005
        %6035 = vmatpush.msra.mxu0 %v6004
        %6036 = vmatmul.f32.gmra.mxu0 %v5939
        %v6037 = vpop.f32.mrf.mxu0
        %v6038 = vadd.f32 0.0, %v6037
        %6039 = vmatmul.f32.gmra.mxu0 %v5940
        %v6040 = vpop.f32.mrf.mxu0
        %v6041 = vadd.f32 0.0, %v6040
        %6042 = vmatmul.f32.gmra.mxu0 %v5941
        %v6043 = vpop.f32.mrf.mxu0
        %v6044 = vadd.f32 0.0, %v6043
        %6045 = vmatmul.f32.gmra.mxu0 %v5942
        %v6046 = vpop.f32.mrf.mxu0
        %v6047 = vadd.f32 0.0, %v6046
        %6048 = vmatmul.f32.gmra.mxu0 %v5943
        %v6049 = vpop.f32.mrf.mxu0
        %v6050 = vadd.f32 0.0, %v6049
        %6051 = vmatmul.f32.gmra.mxu0 %v5944
        %v6052 = vpop.f32.mrf.mxu0
        %v6053 = vadd.f32 0.0, %v6052
        %6054 = vmatmul.f32.gmra.mxu0 %v5945
        %v6055 = vpop.f32.mrf.mxu0
        %v6056 = vadd.f32 0.0, %v6055
        %6057 = vmatmul.f32.gmra.mxu0 %v5946
        %v6058 = vpop.f32.mrf.mxu0
        %v6059 = vadd.f32 0.0, %v6058
        %6060 = vmatmul.f32.gmra.mxu0 %v5947
        %v6061 = vpop.f32.mrf.mxu0
        %v6062 = vadd.f32 0.0, %v6061
        %6063 = vmatmul.f32.gmra.mxu0 %v5948
        %v6064 = vpop.f32.mrf.mxu0
        %v6065 = vadd.f32 0.0, %v6064
        %6066 = vmatmul.f32.gmra.mxu0 %v5949
        %v6067 = vpop.f32.mrf.mxu0
        %v6068 = vadd.f32 0.0, %v6067
        %6069 = vmatmul.f32.gmra.mxu0 %v5950
        %v6070 = vpop.f32.mrf.mxu0
        %v6071 = vadd.f32 0.0, %v6070
        %6072 = vmatmul.f32.gmra.mxu0 %v5951
        %v6073 = vpop.f32.mrf.mxu0
        %v6074 = vadd.f32 0.0, %v6073
        %6075 = vmatmul.f32.gmra.mxu0 %v5952
        %v6076 = vpop.f32.mrf.mxu0
        %v6077 = vadd.f32 0.0, %v6076
        %6078 = vmatmul.f32.gmra.mxu0 %v5953
        %v6079 = vpop.f32.mrf.mxu0
        %v6080 = vadd.f32 0.0, %v6079
        %6081 = vmatmul.f32.gmra.mxu0 %v5954
        %v6082 = vpop.f32.mrf.mxu0
        %v6083 = vadd.f32 0.0, %v6082
        %6084 = vmatmul.f32.gmra.mxu0 %v5955
        %v6085 = vpop.f32.mrf.mxu0
        %v6086 = vadd.f32 0.0, %v6085
        %6087 = vmatmul.f32.gmra.mxu0 %v5956
        %v6088 = vpop.f32.mrf.mxu0
        %v6089 = vadd.f32 0.0, %v6088
        %6090 = vmatmul.f32.gmra.mxu0 %v5957
        %v6091 = vpop.f32.mrf.mxu0
        %v6092 = vadd.f32 0.0, %v6091
        %6093 = vmatmul.f32.gmra.mxu0 %v5958
        %v6094 = vpop.f32.mrf.mxu0
        %v6095 = vadd.f32 0.0, %v6094
        %6096 = vmatmul.f32.gmra.mxu0 %v5959
        %v6097 = vpop.f32.mrf.mxu0
        %v6098 = vadd.f32 0.0, %v6097
        %6099 = vmatmul.f32.gmra.mxu0 %v5960
        %v6100 = vpop.f32.mrf.mxu0
        %v6101 = vadd.f32 0.0, %v6100
        %6102 = vmatmul.f32.gmra.mxu0 %v5961
        %v6103 = vpop.f32.mrf.mxu0
        %v6104 = vadd.f32 0.0, %v6103
        %6105 = vmatmul.f32.gmra.mxu0 %v5962
        %v6106 = vpop.f32.mrf.mxu0
        %v6107 = vadd.f32 0.0, %v6106
        %6108 = vmatmul.f32.gmra.mxu0 %v5963
        %v6109 = vpop.f32.mrf.mxu0
        %v6110 = vadd.f32 0.0, %v6109
        %6111 = vmatmul.f32.gmra.mxu0 %v5964
        %v6112 = vpop.f32.mrf.mxu0
        %v6113 = vadd.f32 0.0, %v6112
        %6114 = vmatmul.f32.gmra.mxu0 %v5965
        %v6115 = vpop.f32.mrf.mxu0
        %v6116 = vadd.f32 0.0, %v6115
        %6117 = vmatmul.f32.gmra.mxu0 %v5966
        %v6118 = vpop.f32.mrf.mxu0
        %v6119 = vadd.f32 0.0, %v6118
        %6120 = vmatmul.f32.gmra.mxu0 %v5967
        %v6121 = vpop.f32.mrf.mxu0
        %v6122 = vadd.f32 0.0, %v6121
        %6123 = vmatmul.f32.gmra.mxu0 %v5968
        %v6124 = vpop.f32.mrf.mxu0
        %v6125 = vadd.f32 0.0, %v6124
        %6126 = vmatmul.f32.gmra.mxu0 %v5969
        %v6127 = vpop.f32.mrf.mxu0
        %v6128 = vadd.f32 0.0, %v6127
        %6129 = vmatmul.f32.gmra.mxu0 %v5970
        %v6130 = vpop.f32.mrf.mxu0
        %v6131 = vadd.f32 0.0, %v6130
        %6132 = vmatmul.f32.gmra.mxu0 %v5971
        %v6133 = vpop.f32.mrf.mxu0
        %v6134 = vadd.f32 0.0, %v6133
        %6135 = vmatmul.f32.gmra.mxu0 %v5972
        %v6136 = vpop.f32.mrf.mxu0
        %v6137 = vadd.f32 0.0, %v6136
        %6138 = vmatmul.f32.gmra.mxu0 %v5973
        %v6139 = vpop.f32.mrf.mxu0
        %v6140 = vadd.f32 0.0, %v6139
        %6141 = vmatmul.f32.gmra.mxu0 %v5974
        %v6142 = vpop.f32.mrf.mxu0
        %v6143 = vadd.f32 0.0, %v6142
        %6144 = vmatmul.f32.gmra.mxu0 %v5975
        %v6145 = vpop.f32.mrf.mxu0
        %v6146 = vadd.f32 0.0, %v6145
        %6147 = vmatmul.f32.gmra.mxu0 %v5976
        %v6148 = vpop.f32.mrf.mxu0
        %v6149 = vadd.f32 0.0, %v6148
        %6150 = vmatmul.f32.gmra.mxu0 %v5977
        %v6151 = vpop.f32.mrf.mxu0
        %v6152 = vadd.f32 0.0, %v6151
        %6153 = vmatmul.f32.gmra.mxu0 %v5978
        %v6154 = vpop.f32.mrf.mxu0
        %v6155 = vadd.f32 0.0, %v6154
        %6156 = vmatmul.f32.gmra.mxu0 %v5979
        %v6157 = vpop.f32.mrf.mxu0
        %v6158 = vadd.f32 0.0, %v6157
        %6159 = vmatmul.f32.gmra.mxu0 %v5980
        %v6160 = vpop.f32.mrf.mxu0
        %v6161 = vadd.f32 0.0, %v6160
        %6162 = vmatmul.f32.gmra.mxu0 %v5981
        %v6163 = vpop.f32.mrf.mxu0
        %v6164 = vadd.f32 0.0, %v6163
        %6165 = vmatmul.f32.gmra.mxu0 %v5982
        %v6166 = vpop.f32.mrf.mxu0
        %v6167 = vadd.f32 0.0, %v6166
        %6168 = vmatmul.f32.gmra.mxu0 %v5983
        %v6169 = vpop.f32.mrf.mxu0
        %v6170 = vadd.f32 0.0, %v6169
        %6171 = vmatmul.f32.gmra.mxu0 %v5984
        %v6172 = vpop.f32.mrf.mxu0
        %v6173 = vadd.f32 0.0, %v6172
        %6174 = vmatmul.f32.gmra.mxu0 %v5985
        %v6175 = vpop.f32.mrf.mxu0
        %v6176 = vadd.f32 0.0, %v6175
        %6177 = vmatmul.f32.gmra.mxu0 %v5986
        %v6178 = vpop.f32.mrf.mxu0
        %v6179 = vadd.f32 0.0, %v6178
        %6180 = vmatmul.f32.gmra.mxu0 %v5987
        %v6181 = vpop.f32.mrf.mxu0
        %v6182 = vadd.f32 0.0, %v6181
        %6183 = vmatmul.f32.gmra.mxu0 %v5988
        %v6184 = vpop.f32.mrf.mxu0
        %v6185 = vadd.f32 0.0, %v6184
        %6186 = vmatmul.f32.gmra.mxu0 %v5989
        %v6187 = vpop.f32.mrf.mxu0
        %v6188 = vadd.f32 0.0, %v6187
        %6189 = vmatmul.f32.gmra.mxu0 %v5990
        %v6190 = vpop.f32.mrf.mxu0
        %v6191 = vadd.f32 0.0, %v6190
        %6192 = vmatmul.f32.gmra.mxu0 %v5991
        %v6193 = vpop.f32.mrf.mxu0
        %v6194 = vadd.f32 0.0, %v6193
        %6195 = vmatmul.f32.gmra.mxu0 %v5992
        %v6196 = vpop.f32.mrf.mxu0
        %v6197 = vadd.f32 0.0, %v6196
        %6198 = vmatmul.f32.gmra.mxu0 %v5993
        %v6199 = vpop.f32.mrf.mxu0
        %v6200 = vadd.f32 0.0, %v6199
        %6201 = vmatmul.f32.gmra.mxu0 %v5994
        %v6202 = vpop.f32.mrf.mxu0
        %v6203 = vadd.f32 0.0, %v6202
        %6204 = vmatmul.f32.gmra.mxu0 %v5995
        %v6205 = vpop.f32.mrf.mxu0
        %v6206 = vadd.f32 0.0, %v6205
        %6207 = vmatmul.f32.gmra.mxu0 %v5996
        %v6208 = vpop.f32.mrf.mxu0
        %v6209 = vadd.f32 0.0, %v6208
        %6210 = vmatmul.f32.gmra.mxu0 %v5997
        %v6211 = vpop.f32.mrf.mxu0
        %v6212 = vadd.f32 0.0, %v6211
        %6213 = vmatmul.f32.gmra.mxu0 %v5998
        %v6214 = vpop.f32.mrf.mxu0
        %v6215 = vadd.f32 0.0, %v6214
        %6216 = vmatmul.f32.gmra.mxu0 %v5999
        %v6217 = vpop.f32.mrf.mxu0
        %v6218 = vadd.f32 0.0, %v6217
        %6219 = vmatmul.f32.gmra.mxu0 %v6000
        %v6220 = vpop.f32.mrf.mxu0
        %v6221 = vadd.f32 0.0, %v6220
        %6222 = vmatmul.f32.gmra.mxu0 %v6001
        %v6223 = vpop.f32.mrf.mxu0
        %v6224 = vadd.f32 0.0, %v6223
        %6225 = vmatmul.f32.gmra.mxu0 %v6002
        %v6226 = vpop.f32.mrf.mxu0
        %v6227 = vadd.f32 0.0, %v6226
        %6228 = vdwg.mxu0
        %v6229 = vadd.f32 %v5875, %v6038
        %v6230 = vadd.f32 %v5876, %v6041
        %v6231 = vadd.f32 %v5877, %v6044
        %v6232 = vadd.f32 %v5878, %v6047
        %v6233 = vadd.f32 %v5879, %v6050
        %v6234 = vadd.f32 %v5880, %v6053
        %v6235 = vadd.f32 %v5881, %v6056
        %v6236 = vadd.f32 %v5882, %v6059
        %v6237 = vadd.f32 %v5883, %v6062
        %v6238 = vadd.f32 %v5884, %v6065
        %v6239 = vadd.f32 %v5885, %v6068
        %v6240 = vadd.f32 %v5886, %v6071
        %v6241 = vadd.f32 %v5887, %v6074
        %v6242 = vadd.f32 %v5888, %v6077
        %v6243 = vadd.f32 %v5889, %v6080
        %v6244 = vadd.f32 %v5890, %v6083
        %v6245 = vadd.f32 %v5891, %v6086
        %v6246 = vadd.f32 %v5892, %v6089
        %v6247 = vadd.f32 %v5893, %v6092
        %v6248 = vadd.f32 %v5894, %v6095
        %v6249 = vadd.f32 %v5895, %v6098
        %v6250 = vadd.f32 %v5896, %v6101
        %v6251 = vadd.f32 %v5897, %v6104
        %v6252 = vadd.f32 %v5898, %v6107
        %v6253 = vadd.f32 %v5899, %v6110
        %v6254 = vadd.f32 %v5900, %v6113
        %v6255 = vadd.f32 %v5901, %v6116
        %v6256 = vadd.f32 %v5902, %v6119
        %v6257 = vadd.f32 %v5903, %v6122
        %v6258 = vadd.f32 %v5904, %v6125
        %v6259 = vadd.f32 %v5905, %v6128
        %v6260 = vadd.f32 %v5906, %v6131
        %v6261 = vadd.f32 %v5907, %v6134
        %v6262 = vadd.f32 %v5908, %v6137
        %v6263 = vadd.f32 %v5909, %v6140
        %v6264 = vadd.f32 %v5910, %v6143
        %v6265 = vadd.f32 %v5911, %v6146
        %v6266 = vadd.f32 %v5912, %v6149
        %v6267 = vadd.f32 %v5913, %v6152
        %v6268 = vadd.f32 %v5914, %v6155
        %v6269 = vadd.f32 %v5915, %v6158
        %v6270 = vadd.f32 %v5916, %v6161
        %v6271 = vadd.f32 %v5917, %v6164
        %v6272 = vadd.f32 %v5918, %v6167
        %v6273 = vadd.f32 %v5919, %v6170
        %v6274 = vadd.f32 %v5920, %v6173
        %v6275 = vadd.f32 %v5921, %v6176
        %v6276 = vadd.f32 %v5922, %v6179
        %v6277 = vadd.f32 %v5923, %v6182
        %v6278 = vadd.f32 %v5924, %v6185
        %v6279 = vadd.f32 %v5925, %v6188
        %v6280 = vadd.f32 %v5926, %v6191
        %v6281 = vadd.f32 %v5927, %v6194
        %v6282 = vadd.f32 %v5928, %v6197
        %v6283 = vadd.f32 %v5929, %v6200
        %v6284 = vadd.f32 %v5930, %v6203
        %v6285 = vadd.f32 %v5931, %v6206
        %v6286 = vadd.f32 %v5932, %v6209
        %v6287 = vadd.f32 %v5933, %v6212
        %v6288 = vadd.f32 %v5934, %v6215
        %v6289 = vadd.f32 %v5935, %v6218
        %v6290 = vadd.f32 %v5936, %v6221
        %v6291 = vadd.f32 %v5937, %v6224
        %v6292 = vadd.f32 %v5938, %v6227
        %v6293 = vld [vmem:[%s4587 + $0x4] sm:$0xff]
        %v6294 = vld [vmem:[%s4587 + $0xc] sm:$0xff]
        %v6295 = vld [vmem:[%s4587 + $0x1c] sm:$0xff]
        %v6296 = vld [vmem:[%s4587 + $0x24] sm:$0xff]
        %v6297 = vld [vmem:[%s4587 + $0x34] sm:$0xff]
        %v6298 = vld [vmem:[%s4587 + $0x3c] sm:$0xff]
        %v6299 = vld [vmem:[%s4587 + $0x4c] sm:$0xff]
        %v6300 = vld [vmem:[%s4587 + $0x54] sm:$0xff]
        %v6301 = vld [vmem:[%s4587 + $0x64] sm:$0xff]
        %v6302 = vld [vmem:[%s4587 + $0x6c] sm:$0xff]
        %v6303 = vld [vmem:[%s4587 + $0x7c] sm:$0xff]
        %v6304 = vld [vmem:[%s4587 + $0x84] sm:$0xff]
        %v6305 = vld [vmem:[%s4587 + $0x94] sm:$0xff]
        %v6306 = vld [vmem:[%s4587 + $0x9c] sm:$0xff]
        %v6307 = vld [vmem:[%s4587 + $0xac] sm:$0xff]
        %v6308 = vld [vmem:[%s4587 + $0xb4] sm:$0xff]
        %v6309 = vld [vmem:[%s4587 + $0xc4] sm:$0xff]
        %v6310 = vld [vmem:[%s4587 + $0xcc] sm:$0xff]
        %v6311 = vld [vmem:[%s4587 + $0xdc] sm:$0xff]
        %v6312 = vld [vmem:[%s4587 + $0xe4] sm:$0xff]
        %v6313 = vld [vmem:[%s4587 + $0xf4] sm:$0xff]
        %v6314 = vld [vmem:[%s4587 + $0xfc] sm:$0xff]
        %v6315 = vld [vmem:[%s4587 + $0x10c] sm:$0xff]
        %v6316 = vld [vmem:[%s4587 + $0x114] sm:$0xff]
        %v6317 = vld [vmem:[%s4587 + $0x124] sm:$0xff]
        %v6318 = vld [vmem:[%s4587 + $0x12c] sm:$0xff]
        %v6319 = vld [vmem:[%s4587 + $0x13c] sm:$0xff]
        %v6320 = vld [vmem:[%s4587 + $0x144] sm:$0xff]
        %v6321 = vld [vmem:[%s4587 + $0x154] sm:$0xff]
        %v6322 = vld [vmem:[%s4587 + $0x15c] sm:$0xff]
        %v6323 = vld [vmem:[%s4587 + $0x16c] sm:$0xff]
        %v6324 = vld [vmem:[%s4587 + $0x174] sm:$0xff]
        %v6325 = vld [vmem:[%s4587 + $0x1e4] sm:$0xff]
        %v6326 = vld [vmem:[%s4587 + $0x1ec] sm:$0xff]
        %v6327 = vld [vmem:[%s4587 + $0x1fc] sm:$0xff]
        %v6328 = vld [vmem:[%s4587 + $0x204] sm:$0xff]
        %v6329 = vld [vmem:[%s4587 + $0x214] sm:$0xff]
        %v6330 = vld [vmem:[%s4587 + $0x21c] sm:$0xff]
        %v6331 = vld [vmem:[%s4587 + $0x22c] sm:$0xff]
        %v6332 = vld [vmem:[%s4587 + $0x234] sm:$0xff]
        %v6333 = vld [vmem:[%s4587 + $0x244] sm:$0xff]
        %v6334 = vld [vmem:[%s4587 + $0x24c] sm:$0xff]
        %v6335 = vld [vmem:[%s4587 + $0x25c] sm:$0xff]
        %v6336 = vld [vmem:[%s4587 + $0x264] sm:$0xff]
        %v6337 = vld [vmem:[%s4587 + $0x274] sm:$0xff]
        %v6338 = vld [vmem:[%s4587 + $0x27c] sm:$0xff]
        %v6339 = vld [vmem:[%s4587 + $0x28c] sm:$0xff]
        %v6340 = vld [vmem:[%s4587 + $0x294] sm:$0xff]
        %v6341 = vld [vmem:[%s4587 + $0x2a4] sm:$0xff]
        %v6342 = vld [vmem:[%s4587 + $0x2ac] sm:$0xff]
        %v6343 = vld [vmem:[%s4587 + $0x2bc] sm:$0xff]
        %v6344 = vld [vmem:[%s4587 + $0x2c4] sm:$0xff]
        %v6345 = vld [vmem:[%s4587 + $0x2d4] sm:$0xff]
        %v6346 = vld [vmem:[%s4587 + $0x2dc] sm:$0xff]
        %v6347 = vld [vmem:[%s4587 + $0x2ec] sm:$0xff]
        %v6348 = vld [vmem:[%s4587 + $0x2f4] sm:$0xff]
        %v6349 = vld [vmem:[%s4587 + $0x304] sm:$0xff]
        %v6350 = vld [vmem:[%s4587 + $0x30c] sm:$0xff]
        %v6351 = vld [vmem:[%s4587 + $0x31c] sm:$0xff]
        %v6352 = vld [vmem:[%s4587 + $0x324] sm:$0xff]
        %v6353 = vld [vmem:[%s4587 + $0x334] sm:$0xff]
        %v6354 = vld [vmem:[%s4587 + $0x33c] sm:$0xff]
        %v6355 = vld [vmem:[%s4587 + $0x34c] sm:$0xff]
        %v6356 = vld [vmem:[%s4587 + $0x354] sm:$0xff]
        %s6357 = scalar_lea.vmem %s318, 640 [#allocation6]
        %v6358 = vld [vmem:[%s6357] sm:$0xff]
        %v6359 = vld [vmem:[%s6357 + $0x8] sm:$0xff]
        %v6360 = vld [vmem:[%s6357 + $0x10] sm:$0xff]
        %v6361 = vld [vmem:[%s6357 + $0x18] sm:$0xff]
        %v6362 = vld [vmem:[%s6357 + $0x20] sm:$0xff]
        %v6363 = vld [vmem:[%s6357 + $0x28] sm:$0xff]
        %v6364 = vld [vmem:[%s6357 + $0x30] sm:$0xff]
        %v6365 = vld [vmem:[%s6357 + $0x38] sm:$0xff]
        %v6366 = vld [vmem:[%s6357 + $0x40] sm:$0xff]
        %v6367 = vld [vmem:[%s6357 + $0x48] sm:$0xff]
        %v6368 = vld [vmem:[%s6357 + $0x50] sm:$0xff]
        %v6369 = vld [vmem:[%s6357 + $0x58] sm:$0xff]
        %v6370 = vld [vmem:[%s6357 + $0x60] sm:$0xff]
        %v6371 = vld [vmem:[%s6357 + $0x68] sm:$0xff]
        %v6372 = vld [vmem:[%s6357 + $0x70] sm:$0xff]
        %v6373 = vld [vmem:[%s6357 + $0x78] sm:$0xff]
        %6374 = vmatpush.msra.mxu0 %v6373
        %6375 = vmatpush.msra.mxu0 %v6372
        %6376 = vmatpush.msra.mxu0 %v6371
        %6377 = vmatpush.msra.mxu0 %v6370
        %6378 = vmatpush.msra.mxu0 %v6369
        %6379 = vmatpush.msra.mxu0 %v6368
        %6380 = vmatpush.msra.mxu0 %v6367
        %6381 = vmatpush.msra.mxu0 %v6366
        %6382 = vmatpush.msra.mxu0 %v6365
        %6383 = vmatpush.msra.mxu0 %v6364
        %6384 = vmatpush.msra.mxu0 %v6363
        %6385 = vmatpush.msra.mxu0 %v6362
        %6386 = vmatpush.msra.mxu0 %v6361
        %6387 = vmatpush.msra.mxu0 %v6360
        %6388 = vmatpush.msra.mxu0 %v6359
        %6389 = vmatpush.msra.mxu0 %v6358
        %6390 = vmatmul.f32.gmra.mxu0 %v6293
        %v6391 = vpop.f32.mrf.mxu0
        %v6392 = vadd.f32 0.0, %v6391
        %6393 = vmatmul.f32.gmra.mxu0 %v6294
        %v6394 = vpop.f32.mrf.mxu0
        %v6395 = vadd.f32 0.0, %v6394
        %6396 = vmatmul.f32.gmra.mxu0 %v6295
        %v6397 = vpop.f32.mrf.mxu0
        %v6398 = vadd.f32 0.0, %v6397
        %6399 = vmatmul.f32.gmra.mxu0 %v6296
        %v6400 = vpop.f32.mrf.mxu0
        %v6401 = vadd.f32 0.0, %v6400
        %6402 = vmatmul.f32.gmra.mxu0 %v6297
        %v6403 = vpop.f32.mrf.mxu0
        %v6404 = vadd.f32 0.0, %v6403
        %6405 = vmatmul.f32.gmra.mxu0 %v6298
        %v6406 = vpop.f32.mrf.mxu0
        %v6407 = vadd.f32 0.0, %v6406
        %6408 = vmatmul.f32.gmra.mxu0 %v6299
        %v6409 = vpop.f32.mrf.mxu0
        %v6410 = vadd.f32 0.0, %v6409
        %6411 = vmatmul.f32.gmra.mxu0 %v6300
        %v6412 = vpop.f32.mrf.mxu0
        %v6413 = vadd.f32 0.0, %v6412
        %6414 = vmatmul.f32.gmra.mxu0 %v6301
        %v6415 = vpop.f32.mrf.mxu0
        %v6416 = vadd.f32 0.0, %v6415
        %6417 = vmatmul.f32.gmra.mxu0 %v6302
        %v6418 = vpop.f32.mrf.mxu0
        %v6419 = vadd.f32 0.0, %v6418
        %6420 = vmatmul.f32.gmra.mxu0 %v6303
        %v6421 = vpop.f32.mrf.mxu0
        %v6422 = vadd.f32 0.0, %v6421
        %6423 = vmatmul.f32.gmra.mxu0 %v6304
        %v6424 = vpop.f32.mrf.mxu0
        %v6425 = vadd.f32 0.0, %v6424
        %6426 = vmatmul.f32.gmra.mxu0 %v6305
        %v6427 = vpop.f32.mrf.mxu0
        %v6428 = vadd.f32 0.0, %v6427
        %6429 = vmatmul.f32.gmra.mxu0 %v6306
        %v6430 = vpop.f32.mrf.mxu0
        %v6431 = vadd.f32 0.0, %v6430
        %6432 = vmatmul.f32.gmra.mxu0 %v6307
        %v6433 = vpop.f32.mrf.mxu0
        %v6434 = vadd.f32 0.0, %v6433
        %6435 = vmatmul.f32.gmra.mxu0 %v6308
        %v6436 = vpop.f32.mrf.mxu0
        %v6437 = vadd.f32 0.0, %v6436
        %6438 = vmatmul.f32.gmra.mxu0 %v6309
        %v6439 = vpop.f32.mrf.mxu0
        %v6440 = vadd.f32 0.0, %v6439
        %6441 = vmatmul.f32.gmra.mxu0 %v6310
        %v6442 = vpop.f32.mrf.mxu0
        %v6443 = vadd.f32 0.0, %v6442
        %6444 = vmatmul.f32.gmra.mxu0 %v6311
        %v6445 = vpop.f32.mrf.mxu0
        %v6446 = vadd.f32 0.0, %v6445
        %6447 = vmatmul.f32.gmra.mxu0 %v6312
        %v6448 = vpop.f32.mrf.mxu0
        %v6449 = vadd.f32 0.0, %v6448
        %6450 = vmatmul.f32.gmra.mxu0 %v6313
        %v6451 = vpop.f32.mrf.mxu0
        %v6452 = vadd.f32 0.0, %v6451
        %6453 = vmatmul.f32.gmra.mxu0 %v6314
        %v6454 = vpop.f32.mrf.mxu0
        %v6455 = vadd.f32 0.0, %v6454
        %6456 = vmatmul.f32.gmra.mxu0 %v6315
        %v6457 = vpop.f32.mrf.mxu0
        %v6458 = vadd.f32 0.0, %v6457
        %6459 = vmatmul.f32.gmra.mxu0 %v6316
        %v6460 = vpop.f32.mrf.mxu0
        %v6461 = vadd.f32 0.0, %v6460
        %6462 = vmatmul.f32.gmra.mxu0 %v6317
        %v6463 = vpop.f32.mrf.mxu0
        %v6464 = vadd.f32 0.0, %v6463
        %6465 = vmatmul.f32.gmra.mxu0 %v6318
        %v6466 = vpop.f32.mrf.mxu0
        %v6467 = vadd.f32 0.0, %v6466
        %6468 = vmatmul.f32.gmra.mxu0 %v6319
        %v6469 = vpop.f32.mrf.mxu0
        %v6470 = vadd.f32 0.0, %v6469
        %6471 = vmatmul.f32.gmra.mxu0 %v6320
        %v6472 = vpop.f32.mrf.mxu0
        %v6473 = vadd.f32 0.0, %v6472
        %6474 = vmatmul.f32.gmra.mxu0 %v6321
        %v6475 = vpop.f32.mrf.mxu0
        %v6476 = vadd.f32 0.0, %v6475
        %6477 = vmatmul.f32.gmra.mxu0 %v6322
        %v6478 = vpop.f32.mrf.mxu0
        %v6479 = vadd.f32 0.0, %v6478
        %6480 = vmatmul.f32.gmra.mxu0 %v6323
        %v6481 = vpop.f32.mrf.mxu0
        %v6482 = vadd.f32 0.0, %v6481
        %6483 = vmatmul.f32.gmra.mxu0 %v6324
        %v6484 = vpop.f32.mrf.mxu0
        %v6485 = vadd.f32 0.0, %v6484
        %6486 = vmatmul.f32.gmra.mxu0 %v6325
        %v6487 = vpop.f32.mrf.mxu0
        %v6488 = vadd.f32 0.0, %v6487
        %6489 = vmatmul.f32.gmra.mxu0 %v6326
        %v6490 = vpop.f32.mrf.mxu0
        %v6491 = vadd.f32 0.0, %v6490
        %6492 = vmatmul.f32.gmra.mxu0 %v6327
        %v6493 = vpop.f32.mrf.mxu0
        %v6494 = vadd.f32 0.0, %v6493
        %6495 = vmatmul.f32.gmra.mxu0 %v6328
        %v6496 = vpop.f32.mrf.mxu0
        %v6497 = vadd.f32 0.0, %v6496
        %6498 = vmatmul.f32.gmra.mxu0 %v6329
        %v6499 = vpop.f32.mrf.mxu0
        %v6500 = vadd.f32 0.0, %v6499
        %6501 = vmatmul.f32.gmra.mxu0 %v6330
        %v6502 = vpop.f32.mrf.mxu0
        %v6503 = vadd.f32 0.0, %v6502
        %6504 = vmatmul.f32.gmra.mxu0 %v6331
        %v6505 = vpop.f32.mrf.mxu0
        %v6506 = vadd.f32 0.0, %v6505
        %6507 = vmatmul.f32.gmra.mxu0 %v6332
        %v6508 = vpop.f32.mrf.mxu0
        %v6509 = vadd.f32 0.0, %v6508
        %6510 = vmatmul.f32.gmra.mxu0 %v6333
        %v6511 = vpop.f32.mrf.mxu0
        %v6512 = vadd.f32 0.0, %v6511
        %6513 = vmatmul.f32.gmra.mxu0 %v6334
        %v6514 = vpop.f32.mrf.mxu0
        %v6515 = vadd.f32 0.0, %v6514
        %6516 = vmatmul.f32.gmra.mxu0 %v6335
        %v6517 = vpop.f32.mrf.mxu0
        %v6518 = vadd.f32 0.0, %v6517
        %6519 = vmatmul.f32.gmra.mxu0 %v6336
        %v6520 = vpop.f32.mrf.mxu0
        %v6521 = vadd.f32 0.0, %v6520
        %6522 = vmatmul.f32.gmra.mxu0 %v6337
        %v6523 = vpop.f32.mrf.mxu0
        %v6524 = vadd.f32 0.0, %v6523
        %6525 = vmatmul.f32.gmra.mxu0 %v6338
        %v6526 = vpop.f32.mrf.mxu0
        %v6527 = vadd.f32 0.0, %v6526
        %6528 = vmatmul.f32.gmra.mxu0 %v6339
        %v6529 = vpop.f32.mrf.mxu0
        %v6530 = vadd.f32 0.0, %v6529
        %6531 = vmatmul.f32.gmra.mxu0 %v6340
        %v6532 = vpop.f32.mrf.mxu0
        %v6533 = vadd.f32 0.0, %v6532
        %6534 = vmatmul.f32.gmra.mxu0 %v6341
        %v6535 = vpop.f32.mrf.mxu0
        %v6536 = vadd.f32 0.0, %v6535
        %6537 = vmatmul.f32.gmra.mxu0 %v6342
        %v6538 = vpop.f32.mrf.mxu0
        %v6539 = vadd.f32 0.0, %v6538
        %6540 = vmatmul.f32.gmra.mxu0 %v6343
        %v6541 = vpop.f32.mrf.mxu0
        %v6542 = vadd.f32 0.0, %v6541
        %6543 = vmatmul.f32.gmra.mxu0 %v6344
        %v6544 = vpop.f32.mrf.mxu0
        %v6545 = vadd.f32 0.0, %v6544
        %6546 = vmatmul.f32.gmra.mxu0 %v6345
        %v6547 = vpop.f32.mrf.mxu0
        %v6548 = vadd.f32 0.0, %v6547
        %6549 = vmatmul.f32.gmra.mxu0 %v6346
        %v6550 = vpop.f32.mrf.mxu0
        %v6551 = vadd.f32 0.0, %v6550
        %6552 = vmatmul.f32.gmra.mxu0 %v6347
        %v6553 = vpop.f32.mrf.mxu0
        %v6554 = vadd.f32 0.0, %v6553
        %6555 = vmatmul.f32.gmra.mxu0 %v6348
        %v6556 = vpop.f32.mrf.mxu0
        %v6557 = vadd.f32 0.0, %v6556
        %6558 = vmatmul.f32.gmra.mxu0 %v6349
        %v6559 = vpop.f32.mrf.mxu0
        %v6560 = vadd.f32 0.0, %v6559
        %6561 = vmatmul.f32.gmra.mxu0 %v6350
        %v6562 = vpop.f32.mrf.mxu0
        %v6563 = vadd.f32 0.0, %v6562
        %6564 = vmatmul.f32.gmra.mxu0 %v6351
        %v6565 = vpop.f32.mrf.mxu0
        %v6566 = vadd.f32 0.0, %v6565
        %6567 = vmatmul.f32.gmra.mxu0 %v6352
        %v6568 = vpop.f32.mrf.mxu0
        %v6569 = vadd.f32 0.0, %v6568
        %6570 = vmatmul.f32.gmra.mxu0 %v6353
        %v6571 = vpop.f32.mrf.mxu0
        %v6572 = vadd.f32 0.0, %v6571
        %6573 = vmatmul.f32.gmra.mxu0 %v6354
        %v6574 = vpop.f32.mrf.mxu0
        %v6575 = vadd.f32 0.0, %v6574
        %6576 = vmatmul.f32.gmra.mxu0 %v6355
        %v6577 = vpop.f32.mrf.mxu0
        %v6578 = vadd.f32 0.0, %v6577
        %6579 = vmatmul.f32.gmra.mxu0 %v6356
        %v6580 = vpop.f32.mrf.mxu0
        %v6581 = vadd.f32 0.0, %v6580
        %6582 = vdwg.mxu0
        %v6583 = vadd.f32 %v6229, %v6392
        %v6584 = vadd.f32 %v6230, %v6395
        %v6585 = vadd.f32 %v6231, %v6398
        %v6586 = vadd.f32 %v6232, %v6401
        %v6587 = vadd.f32 %v6233, %v6404
        %v6588 = vadd.f32 %v6234, %v6407
        %v6589 = vadd.f32 %v6235, %v6410
        %v6590 = vadd.f32 %v6236, %v6413
        %v6591 = vadd.f32 %v6237, %v6416
        %v6592 = vadd.f32 %v6238, %v6419
        %v6593 = vadd.f32 %v6239, %v6422
        %v6594 = vadd.f32 %v6240, %v6425
        %v6595 = vadd.f32 %v6241, %v6428
        %v6596 = vadd.f32 %v6242, %v6431
        %v6597 = vadd.f32 %v6243, %v6434
        %v6598 = vadd.f32 %v6244, %v6437
        %v6599 = vadd.f32 %v6245, %v6440
        %v6600 = vadd.f32 %v6246, %v6443
        %v6601 = vadd.f32 %v6247, %v6446
        %v6602 = vadd.f32 %v6248, %v6449
        %v6603 = vadd.f32 %v6249, %v6452
        %v6604 = vadd.f32 %v6250, %v6455
        %v6605 = vadd.f32 %v6251, %v6458
        %v6606 = vadd.f32 %v6252, %v6461
        %v6607 = vadd.f32 %v6253, %v6464
        %v6608 = vadd.f32 %v6254, %v6467
        %v6609 = vadd.f32 %v6255, %v6470
        %v6610 = vadd.f32 %v6256, %v6473
        %v6611 = vadd.f32 %v6257, %v6476
        %v6612 = vadd.f32 %v6258, %v6479
        %v6613 = vadd.f32 %v6259, %v6482
        %v6614 = vadd.f32 %v6260, %v6485
        %v6615 = vadd.f32 %v6261, %v6488
        %v6616 = vadd.f32 %v6262, %v6491
        %v6617 = vadd.f32 %v6263, %v6494
        %v6618 = vadd.f32 %v6264, %v6497
        %v6619 = vadd.f32 %v6265, %v6500
        %v6620 = vadd.f32 %v6266, %v6503
        %v6621 = vadd.f32 %v6267, %v6506
        %v6622 = vadd.f32 %v6268, %v6509
        %v6623 = vadd.f32 %v6269, %v6512
        %v6624 = vadd.f32 %v6270, %v6515
        %v6625 = vadd.f32 %v6271, %v6518
        %v6626 = vadd.f32 %v6272, %v6521
        %v6627 = vadd.f32 %v6273, %v6524
        %v6628 = vadd.f32 %v6274, %v6527
        %v6629 = vadd.f32 %v6275, %v6530
        %v6630 = vadd.f32 %v6276, %v6533
        %v6631 = vadd.f32 %v6277, %v6536
        %v6632 = vadd.f32 %v6278, %v6539
        %v6633 = vadd.f32 %v6279, %v6542
        %v6634 = vadd.f32 %v6280, %v6545
        %v6635 = vadd.f32 %v6281, %v6548
        %v6636 = vadd.f32 %v6282, %v6551
        %v6637 = vadd.f32 %v6283, %v6554
        %v6638 = vadd.f32 %v6284, %v6557
        %v6639 = vadd.f32 %v6285, %v6560
        %v6640 = vadd.f32 %v6286, %v6563
        %v6641 = vadd.f32 %v6287, %v6566
        %v6642 = vadd.f32 %v6288, %v6569
        %v6643 = vadd.f32 %v6289, %v6572
        %v6644 = vadd.f32 %v6290, %v6575
        %v6645 = vadd.f32 %v6291, %v6578
        %v6646 = vadd.f32 %v6292, %v6581
        %s6647 = scalar_lea.vmem [#allocation3], 96
        %v6648 = vld [vmem:[%s6647] sm:$0xff]
        %v6649 = vld [vmem:[%s6647 + $0x8] sm:$0xff]
        %v6650 = vld [vmem:[%s6647 + $0x18] sm:$0xff]
        %v6651 = vld [vmem:[%s6647 + $0x20] sm:$0xff]
        %v6652 = vld [vmem:[%s6647 + $0x30] sm:$0xff]
        %v6653 = vld [vmem:[%s6647 + $0x38] sm:$0xff]
        %v6654 = vld [vmem:[%s6647 + $0x48] sm:$0xff]
        %v6655 = vld [vmem:[%s6647 + $0x50] sm:$0xff]
        %v6656 = vld [vmem:[%s6647 + $0x60] sm:$0xff]
        %v6657 = vld [vmem:[%s6647 + $0x68] sm:$0xff]
        %v6658 = vld [vmem:[%s6647 + $0x78] sm:$0xff]
        %v6659 = vld [vmem:[%s6647 + $0x80] sm:$0xff]
        %v6660 = vld [vmem:[%s6647 + $0x90] sm:$0xff]
        %v6661 = vld [vmem:[%s6647 + $0x98] sm:$0xff]
        %v6662 = vld [vmem:[%s6647 + $0xa8] sm:$0xff]
        %v6663 = vld [vmem:[%s6647 + $0xb0] sm:$0xff]
        %v6664 = vld [vmem:[%s6647 + $0xc0] sm:$0xff]
        %v6665 = vld [vmem:[%s6647 + $0xc8] sm:$0xff]
        %v6666 = vld [vmem:[%s6647 + $0xd8] sm:$0xff]
        %v6667 = vld [vmem:[%s6647 + $0xe0] sm:$0xff]
        %v6668 = vld [vmem:[%s6647 + $0xf0] sm:$0xff]
        %v6669 = vld [vmem:[%s6647 + $0xf8] sm:$0xff]
        %v6670 = vld [vmem:[%s6647 + $0x108] sm:$0xff]
        %v6671 = vld [vmem:[%s6647 + $0x110] sm:$0xff]
        %v6672 = vld [vmem:[%s6647 + $0x120] sm:$0xff]
        %v6673 = vld [vmem:[%s6647 + $0x128] sm:$0xff]
        %v6674 = vld [vmem:[%s6647 + $0x138] sm:$0xff]
        %v6675 = vld [vmem:[%s6647 + $0x140] sm:$0xff]
        %v6676 = vld [vmem:[%s6647 + $0x150] sm:$0xff]
        %v6677 = vld [vmem:[%s6647 + $0x158] sm:$0xff]
        %v6678 = vld [vmem:[%s6647 + $0x168] sm:$0xff]
        %v6679 = vld [vmem:[%s6647 + $0x170] sm:$0xff]
        %v6680 = vld [vmem:[%s6647 + $0x1e0] sm:$0xff]
        %v6681 = vld [vmem:[%s6647 + $0x1e8] sm:$0xff]
        %v6682 = vld [vmem:[%s6647 + $0x1f8] sm:$0xff]
        %v6683 = vld [vmem:[%s6647 + $0x200] sm:$0xff]
        %v6684 = vld [vmem:[%s6647 + $0x210] sm:$0xff]
        %v6685 = vld [vmem:[%s6647 + $0x218] sm:$0xff]
        %v6686 = vld [vmem:[%s6647 + $0x228] sm:$0xff]
        %v6687 = vld [vmem:[%s6647 + $0x230] sm:$0xff]
        %v6688 = vld [vmem:[%s6647 + $0x240] sm:$0xff]
        %v6689 = vld [vmem:[%s6647 + $0x248] sm:$0xff]
        %v6690 = vld [vmem:[%s6647 + $0x258] sm:$0xff]
        %v6691 = vld [vmem:[%s6647 + $0x260] sm:$0xff]
        %v6692 = vld [vmem:[%s6647 + $0x270] sm:$0xff]
        %v6693 = vld [vmem:[%s6647 + $0x278] sm:$0xff]
        %v6694 = vld [vmem:[%s6647 + $0x288] sm:$0xff]
        %v6695 = vld [vmem:[%s6647 + $0x290] sm:$0xff]
        %v6696 = vld [vmem:[%s6647 + $0x2a0] sm:$0xff]
        %v6697 = vld [vmem:[%s6647 + $0x2a8] sm:$0xff]
        %v6698 = vld [vmem:[%s6647 + $0x2b8] sm:$0xff]
        %v6699 = vld [vmem:[%s6647 + $0x2c0] sm:$0xff]
        %v6700 = vld [vmem:[%s6647 + $0x2d0] sm:$0xff]
        %v6701 = vld [vmem:[%s6647 + $0x2d8] sm:$0xff]
        %v6702 = vld [vmem:[%s6647 + $0x2e8] sm:$0xff]
        %v6703 = vld [vmem:[%s6647 + $0x2f0] sm:$0xff]
        %v6704 = vld [vmem:[%s6647 + $0x300] sm:$0xff]
        %v6705 = vld [vmem:[%s6647 + $0x308] sm:$0xff]
        %v6706 = vld [vmem:[%s6647 + $0x318] sm:$0xff]
        %v6707 = vld [vmem:[%s6647 + $0x320] sm:$0xff]
        %v6708 = vld [vmem:[%s6647 + $0x330] sm:$0xff]
        %v6709 = vld [vmem:[%s6647 + $0x338] sm:$0xff]
        %v6710 = vld [vmem:[%s6647 + $0x348] sm:$0xff]
        %v6711 = vld [vmem:[%s6647 + $0x350] sm:$0xff]
        %s6712 = scalar_lea.vmem %s318, 768 [#allocation6]
        %v6713 = vld [vmem:[%s6712] sm:$0xff]
        %v6714 = vld [vmem:[%s6712 + $0x8] sm:$0xff]
        %v6715 = vld [vmem:[%s6712 + $0x10] sm:$0xff]
        %v6716 = vld [vmem:[%s6712 + $0x18] sm:$0xff]
        %v6717 = vld [vmem:[%s6712 + $0x20] sm:$0xff]
        %v6718 = vld [vmem:[%s6712 + $0x28] sm:$0xff]
        %v6719 = vld [vmem:[%s6712 + $0x30] sm:$0xff]
        %v6720 = vld [vmem:[%s6712 + $0x38] sm:$0xff]
        %v6721 = vld [vmem:[%s6712 + $0x40] sm:$0xff]
        %v6722 = vld [vmem:[%s6712 + $0x48] sm:$0xff]
        %v6723 = vld [vmem:[%s6712 + $0x50] sm:$0xff]
        %v6724 = vld [vmem:[%s6712 + $0x58] sm:$0xff]
        %v6725 = vld [vmem:[%s6712 + $0x60] sm:$0xff]
        %v6726 = vld [vmem:[%s6712 + $0x68] sm:$0xff]
        %v6727 = vld [vmem:[%s6712 + $0x70] sm:$0xff]
        %v6728 = vld [vmem:[%s6712 + $0x78] sm:$0xff]
        %6729 = vmatpush.msra.mxu0 %v6728
        %6730 = vmatpush.msra.mxu0 %v6727
        %6731 = vmatpush.msra.mxu0 %v6726
        %6732 = vmatpush.msra.mxu0 %v6725
        %6733 = vmatpush.msra.mxu0 %v6724
        %6734 = vmatpush.msra.mxu0 %v6723
        %6735 = vmatpush.msra.mxu0 %v6722
        %6736 = vmatpush.msra.mxu0 %v6721
        %6737 = vmatpush.msra.mxu0 %v6720
        %6738 = vmatpush.msra.mxu0 %v6719
        %6739 = vmatpush.msra.mxu0 %v6718
        %6740 = vmatpush.msra.mxu0 %v6717
        %6741 = vmatpush.msra.mxu0 %v6716
        %6742 = vmatpush.msra.mxu0 %v6715
        %6743 = vmatpush.msra.mxu0 %v6714
        %6744 = vmatpush.msra.mxu0 %v6713
        %6745 = vmatmul.f32.gmra.mxu0 %v6648
        %v6746 = vpop.f32.mrf.mxu0
        %v6747 = vadd.f32 0.0, %v6746
        %6748 = vmatmul.f32.gmra.mxu0 %v6649
        %v6749 = vpop.f32.mrf.mxu0
        %v6750 = vadd.f32 0.0, %v6749
        %6751 = vmatmul.f32.gmra.mxu0 %v6650
        %v6752 = vpop.f32.mrf.mxu0
        %v6753 = vadd.f32 0.0, %v6752
        %6754 = vmatmul.f32.gmra.mxu0 %v6651
        %v6755 = vpop.f32.mrf.mxu0
        %v6756 = vadd.f32 0.0, %v6755
        %6757 = vmatmul.f32.gmra.mxu0 %v6652
        %v6758 = vpop.f32.mrf.mxu0
        %v6759 = vadd.f32 0.0, %v6758
        %6760 = vmatmul.f32.gmra.mxu0 %v6653
        %v6761 = vpop.f32.mrf.mxu0
        %v6762 = vadd.f32 0.0, %v6761
        %6763 = vmatmul.f32.gmra.mxu0 %v6654
        %v6764 = vpop.f32.mrf.mxu0
        %v6765 = vadd.f32 0.0, %v6764
        %6766 = vmatmul.f32.gmra.mxu0 %v6655
        %v6767 = vpop.f32.mrf.mxu0
        %v6768 = vadd.f32 0.0, %v6767
        %6769 = vmatmul.f32.gmra.mxu0 %v6656
        %v6770 = vpop.f32.mrf.mxu0
        %v6771 = vadd.f32 0.0, %v6770
        %6772 = vmatmul.f32.gmra.mxu0 %v6657
        %v6773 = vpop.f32.mrf.mxu0
        %v6774 = vadd.f32 0.0, %v6773
        %6775 = vmatmul.f32.gmra.mxu0 %v6658
        %v6776 = vpop.f32.mrf.mxu0
        %v6777 = vadd.f32 0.0, %v6776
        %6778 = vmatmul.f32.gmra.mxu0 %v6659
        %v6779 = vpop.f32.mrf.mxu0
        %v6780 = vadd.f32 0.0, %v6779
        %6781 = vmatmul.f32.gmra.mxu0 %v6660
        %v6782 = vpop.f32.mrf.mxu0
        %v6783 = vadd.f32 0.0, %v6782
        %6784 = vmatmul.f32.gmra.mxu0 %v6661
        %v6785 = vpop.f32.mrf.mxu0
        %v6786 = vadd.f32 0.0, %v6785
        %6787 = vmatmul.f32.gmra.mxu0 %v6662
        %v6788 = vpop.f32.mrf.mxu0
        %v6789 = vadd.f32 0.0, %v6788
        %6790 = vmatmul.f32.gmra.mxu0 %v6663
        %v6791 = vpop.f32.mrf.mxu0
        %v6792 = vadd.f32 0.0, %v6791
        %6793 = vmatmul.f32.gmra.mxu0 %v6664
        %v6794 = vpop.f32.mrf.mxu0
        %v6795 = vadd.f32 0.0, %v6794
        %6796 = vmatmul.f32.gmra.mxu0 %v6665
        %v6797 = vpop.f32.mrf.mxu0
        %v6798 = vadd.f32 0.0, %v6797
        %6799 = vmatmul.f32.gmra.mxu0 %v6666
        %v6800 = vpop.f32.mrf.mxu0
        %v6801 = vadd.f32 0.0, %v6800
        %6802 = vmatmul.f32.gmra.mxu0 %v6667
        %v6803 = vpop.f32.mrf.mxu0
        %v6804 = vadd.f32 0.0, %v6803
        %6805 = vmatmul.f32.gmra.mxu0 %v6668
        %v6806 = vpop.f32.mrf.mxu0
        %v6807 = vadd.f32 0.0, %v6806
        %6808 = vmatmul.f32.gmra.mxu0 %v6669
        %v6809 = vpop.f32.mrf.mxu0
        %v6810 = vadd.f32 0.0, %v6809
        %6811 = vmatmul.f32.gmra.mxu0 %v6670
        %v6812 = vpop.f32.mrf.mxu0
        %v6813 = vadd.f32 0.0, %v6812
        %6814 = vmatmul.f32.gmra.mxu0 %v6671
        %v6815 = vpop.f32.mrf.mxu0
        %v6816 = vadd.f32 0.0, %v6815
        %6817 = vmatmul.f32.gmra.mxu0 %v6672
        %v6818 = vpop.f32.mrf.mxu0
        %v6819 = vadd.f32 0.0, %v6818
        %6820 = vmatmul.f32.gmra.mxu0 %v6673
        %v6821 = vpop.f32.mrf.mxu0
        %v6822 = vadd.f32 0.0, %v6821
        %6823 = vmatmul.f32.gmra.mxu0 %v6674
        %v6824 = vpop.f32.mrf.mxu0
        %v6825 = vadd.f32 0.0, %v6824
        %6826 = vmatmul.f32.gmra.mxu0 %v6675
        %v6827 = vpop.f32.mrf.mxu0
        %v6828 = vadd.f32 0.0, %v6827
        %6829 = vmatmul.f32.gmra.mxu0 %v6676
        %v6830 = vpop.f32.mrf.mxu0
        %v6831 = vadd.f32 0.0, %v6830
        %6832 = vmatmul.f32.gmra.mxu0 %v6677
        %v6833 = vpop.f32.mrf.mxu0
        %v6834 = vadd.f32 0.0, %v6833
        %6835 = vmatmul.f32.gmra.mxu0 %v6678
        %v6836 = vpop.f32.mrf.mxu0
        %v6837 = vadd.f32 0.0, %v6836
        %6838 = vmatmul.f32.gmra.mxu0 %v6679
        %v6839 = vpop.f32.mrf.mxu0
        %v6840 = vadd.f32 0.0, %v6839
        %6841 = vmatmul.f32.gmra.mxu0 %v6680
        %v6842 = vpop.f32.mrf.mxu0
        %v6843 = vadd.f32 0.0, %v6842
        %6844 = vmatmul.f32.gmra.mxu0 %v6681
        %v6845 = vpop.f32.mrf.mxu0
        %v6846 = vadd.f32 0.0, %v6845
        %6847 = vmatmul.f32.gmra.mxu0 %v6682
        %v6848 = vpop.f32.mrf.mxu0
        %v6849 = vadd.f32 0.0, %v6848
        %6850 = vmatmul.f32.gmra.mxu0 %v6683
        %v6851 = vpop.f32.mrf.mxu0
        %v6852 = vadd.f32 0.0, %v6851
        %6853 = vmatmul.f32.gmra.mxu0 %v6684
        %v6854 = vpop.f32.mrf.mxu0
        %v6855 = vadd.f32 0.0, %v6854
        %6856 = vmatmul.f32.gmra.mxu0 %v6685
        %v6857 = vpop.f32.mrf.mxu0
        %v6858 = vadd.f32 0.0, %v6857
        %6859 = vmatmul.f32.gmra.mxu0 %v6686
        %v6860 = vpop.f32.mrf.mxu0
        %v6861 = vadd.f32 0.0, %v6860
        %6862 = vmatmul.f32.gmra.mxu0 %v6687
        %v6863 = vpop.f32.mrf.mxu0
        %v6864 = vadd.f32 0.0, %v6863
        %6865 = vmatmul.f32.gmra.mxu0 %v6688
        %v6866 = vpop.f32.mrf.mxu0
        %v6867 = vadd.f32 0.0, %v6866
        %6868 = vmatmul.f32.gmra.mxu0 %v6689
        %v6869 = vpop.f32.mrf.mxu0
        %v6870 = vadd.f32 0.0, %v6869
        %6871 = vmatmul.f32.gmra.mxu0 %v6690
        %v6872 = vpop.f32.mrf.mxu0
        %v6873 = vadd.f32 0.0, %v6872
        %6874 = vmatmul.f32.gmra.mxu0 %v6691
        %v6875 = vpop.f32.mrf.mxu0
        %v6876 = vadd.f32 0.0, %v6875
        %6877 = vmatmul.f32.gmra.mxu0 %v6692
        %v6878 = vpop.f32.mrf.mxu0
        %v6879 = vadd.f32 0.0, %v6878
        %6880 = vmatmul.f32.gmra.mxu0 %v6693
        %v6881 = vpop.f32.mrf.mxu0
        %v6882 = vadd.f32 0.0, %v6881
        %6883 = vmatmul.f32.gmra.mxu0 %v6694
        %v6884 = vpop.f32.mrf.mxu0
        %v6885 = vadd.f32 0.0, %v6884
        %6886 = vmatmul.f32.gmra.mxu0 %v6695
        %v6887 = vpop.f32.mrf.mxu0
        %v6888 = vadd.f32 0.0, %v6887
        %6889 = vmatmul.f32.gmra.mxu0 %v6696
        %v6890 = vpop.f32.mrf.mxu0
        %v6891 = vadd.f32 0.0, %v6890
        %6892 = vmatmul.f32.gmra.mxu0 %v6697
        %v6893 = vpop.f32.mrf.mxu0
        %v6894 = vadd.f32 0.0, %v6893
        %6895 = vmatmul.f32.gmra.mxu0 %v6698
        %v6896 = vpop.f32.mrf.mxu0
        %v6897 = vadd.f32 0.0, %v6896
        %6898 = vmatmul.f32.gmra.mxu0 %v6699
        %v6899 = vpop.f32.mrf.mxu0
        %v6900 = vadd.f32 0.0, %v6899
        %6901 = vmatmul.f32.gmra.mxu0 %v6700
        %v6902 = vpop.f32.mrf.mxu0
        %v6903 = vadd.f32 0.0, %v6902
        %6904 = vmatmul.f32.gmra.mxu0 %v6701
        %v6905 = vpop.f32.mrf.mxu0
        %v6906 = vadd.f32 0.0, %v6905
        %6907 = vmatmul.f32.gmra.mxu0 %v6702
        %v6908 = vpop.f32.mrf.mxu0
        %v6909 = vadd.f32 0.0, %v6908
        %6910 = vmatmul.f32.gmra.mxu0 %v6703
        %v6911 = vpop.f32.mrf.mxu0
        %v6912 = vadd.f32 0.0, %v6911
        %6913 = vmatmul.f32.gmra.mxu0 %v6704
        %v6914 = vpop.f32.mrf.mxu0
        %v6915 = vadd.f32 0.0, %v6914
        %6916 = vmatmul.f32.gmra.mxu0 %v6705
        %v6917 = vpop.f32.mrf.mxu0
        %v6918 = vadd.f32 0.0, %v6917
        %6919 = vmatmul.f32.gmra.mxu0 %v6706
        %v6920 = vpop.f32.mrf.mxu0
        %v6921 = vadd.f32 0.0, %v6920
        %6922 = vmatmul.f32.gmra.mxu0 %v6707
        %v6923 = vpop.f32.mrf.mxu0
        %v6924 = vadd.f32 0.0, %v6923
        %6925 = vmatmul.f32.gmra.mxu0 %v6708
        %v6926 = vpop.f32.mrf.mxu0
        %v6927 = vadd.f32 0.0, %v6926
        %6928 = vmatmul.f32.gmra.mxu0 %v6709
        %v6929 = vpop.f32.mrf.mxu0
        %v6930 = vadd.f32 0.0, %v6929
        %6931 = vmatmul.f32.gmra.mxu0 %v6710
        %v6932 = vpop.f32.mrf.mxu0
        %v6933 = vadd.f32 0.0, %v6932
        %6934 = vmatmul.f32.gmra.mxu0 %v6711
        %v6935 = vpop.f32.mrf.mxu0
        %v6936 = vadd.f32 0.0, %v6935
        %6937 = vdwg.mxu0
        %v6938 = vadd.f32 %v6583, %v6747
        %v6939 = vadd.f32 %v6584, %v6750
        %v6940 = vadd.f32 %v6585, %v6753
        %v6941 = vadd.f32 %v6586, %v6756
        %v6942 = vadd.f32 %v6587, %v6759
        %v6943 = vadd.f32 %v6588, %v6762
        %v6944 = vadd.f32 %v6589, %v6765
        %v6945 = vadd.f32 %v6590, %v6768
        %v6946 = vadd.f32 %v6591, %v6771
        %v6947 = vadd.f32 %v6592, %v6774
        %v6948 = vadd.f32 %v6593, %v6777
        %v6949 = vadd.f32 %v6594, %v6780
        %v6950 = vadd.f32 %v6595, %v6783
        %v6951 = vadd.f32 %v6596, %v6786
        %v6952 = vadd.f32 %v6597, %v6789
        %v6953 = vadd.f32 %v6598, %v6792
        %v6954 = vadd.f32 %v6599, %v6795
        %v6955 = vadd.f32 %v6600, %v6798
        %v6956 = vadd.f32 %v6601, %v6801
        %v6957 = vadd.f32 %v6602, %v6804
        %v6958 = vadd.f32 %v6603, %v6807
        %v6959 = vadd.f32 %v6604, %v6810
        %v6960 = vadd.f32 %v6605, %v6813
        %v6961 = vadd.f32 %v6606, %v6816
        %v6962 = vadd.f32 %v6607, %v6819
        %v6963 = vadd.f32 %v6608, %v6822
        %v6964 = vadd.f32 %v6609, %v6825
        %v6965 = vadd.f32 %v6610, %v6828
        %v6966 = vadd.f32 %v6611, %v6831
        %v6967 = vadd.f32 %v6612, %v6834
        %v6968 = vadd.f32 %v6613, %v6837
        %v6969 = vadd.f32 %v6614, %v6840
        %v6970 = vadd.f32 %v6615, %v6843
        %v6971 = vadd.f32 %v6616, %v6846
        %v6972 = vadd.f32 %v6617, %v6849
        %v6973 = vadd.f32 %v6618, %v6852
        %v6974 = vadd.f32 %v6619, %v6855
        %v6975 = vadd.f32 %v6620, %v6858
        %v6976 = vadd.f32 %v6621, %v6861
        %v6977 = vadd.f32 %v6622, %v6864
        %v6978 = vadd.f32 %v6623, %v6867
        %v6979 = vadd.f32 %v6624, %v6870
        %v6980 = vadd.f32 %v6625, %v6873
        %v6981 = vadd.f32 %v6626, %v6876
        %v6982 = vadd.f32 %v6627, %v6879
        %v6983 = vadd.f32 %v6628, %v6882
        %v6984 = vadd.f32 %v6629, %v6885
        %v6985 = vadd.f32 %v6630, %v6888
        %v6986 = vadd.f32 %v6631, %v6891
        %v6987 = vadd.f32 %v6632, %v6894
        %v6988 = vadd.f32 %v6633, %v6897
        %v6989 = vadd.f32 %v6634, %v6900
        %v6990 = vadd.f32 %v6635, %v6903
        %v6991 = vadd.f32 %v6636, %v6906
        %v6992 = vadd.f32 %v6637, %v6909
        %v6993 = vadd.f32 %v6638, %v6912
        %v6994 = vadd.f32 %v6639, %v6915
        %v6995 = vadd.f32 %v6640, %v6918
        %v6996 = vadd.f32 %v6641, %v6921
        %v6997 = vadd.f32 %v6642, %v6924
        %v6998 = vadd.f32 %v6643, %v6927
        %v6999 = vadd.f32 %v6644, %v6930
        %v7000 = vadd.f32 %v6645, %v6933
        %v7001 = vadd.f32 %v6646, %v6936
        %v7002 = vld [vmem:[%s6647 + $0x2] sm:$0xff]
        %v7003 = vld [vmem:[%s6647 + $0xa] sm:$0xff]
        %v7004 = vld [vmem:[%s6647 + $0x1a] sm:$0xff]
        %v7005 = vld [vmem:[%s6647 + $0x22] sm:$0xff]
        %v7006 = vld [vmem:[%s6647 + $0x32] sm:$0xff]
        %v7007 = vld [vmem:[%s6647 + $0x3a] sm:$0xff]
        %v7008 = vld [vmem:[%s6647 + $0x4a] sm:$0xff]
        %v7009 = vld [vmem:[%s6647 + $0x52] sm:$0xff]
        %v7010 = vld [vmem:[%s6647 + $0x62] sm:$0xff]
        %v7011 = vld [vmem:[%s6647 + $0x6a] sm:$0xff]
        %v7012 = vld [vmem:[%s6647 + $0x7a] sm:$0xff]
        %v7013 = vld [vmem:[%s6647 + $0x82] sm:$0xff]
        %v7014 = vld [vmem:[%s6647 + $0x92] sm:$0xff]
        %v7015 = vld [vmem:[%s6647 + $0x9a] sm:$0xff]
        %v7016 = vld [vmem:[%s6647 + $0xaa] sm:$0xff]
        %v7017 = vld [vmem:[%s6647 + $0xb2] sm:$0xff]
        %v7018 = vld [vmem:[%s6647 + $0xc2] sm:$0xff]
        %v7019 = vld [vmem:[%s6647 + $0xca] sm:$0xff]
        %v7020 = vld [vmem:[%s6647 + $0xda] sm:$0xff]
        %v7021 = vld [vmem:[%s6647 + $0xe2] sm:$0xff]
        %v7022 = vld [vmem:[%s6647 + $0xf2] sm:$0xff]
        %v7023 = vld [vmem:[%s6647 + $0xfa] sm:$0xff]
        %v7024 = vld [vmem:[%s6647 + $0x10a] sm:$0xff]
        %v7025 = vld [vmem:[%s6647 + $0x112] sm:$0xff]
        %v7026 = vld [vmem:[%s6647 + $0x122] sm:$0xff]
        %v7027 = vld [vmem:[%s6647 + $0x12a] sm:$0xff]
        %v7028 = vld [vmem:[%s6647 + $0x13a] sm:$0xff]
        %v7029 = vld [vmem:[%s6647 + $0x142] sm:$0xff]
        %v7030 = vld [vmem:[%s6647 + $0x152] sm:$0xff]
        %v7031 = vld [vmem:[%s6647 + $0x15a] sm:$0xff]
        %v7032 = vld [vmem:[%s6647 + $0x16a] sm:$0xff]
        %v7033 = vld [vmem:[%s6647 + $0x172] sm:$0xff]
        %v7034 = vld [vmem:[%s6647 + $0x1e2] sm:$0xff]
        %v7035 = vld [vmem:[%s6647 + $0x1ea] sm:$0xff]
        %v7036 = vld [vmem:[%s6647 + $0x1fa] sm:$0xff]
        %v7037 = vld [vmem:[%s6647 + $0x202] sm:$0xff]
        %v7038 = vld [vmem:[%s6647 + $0x212] sm:$0xff]
        %v7039 = vld [vmem:[%s6647 + $0x21a] sm:$0xff]
        %v7040 = vld [vmem:[%s6647 + $0x22a] sm:$0xff]
        %v7041 = vld [vmem:[%s6647 + $0x232] sm:$0xff]
        %v7042 = vld [vmem:[%s6647 + $0x242] sm:$0xff]
        %v7043 = vld [vmem:[%s6647 + $0x24a] sm:$0xff]
        %v7044 = vld [vmem:[%s6647 + $0x25a] sm:$0xff]
        %v7045 = vld [vmem:[%s6647 + $0x262] sm:$0xff]
        %v7046 = vld [vmem:[%s6647 + $0x272] sm:$0xff]
        %v7047 = vld [vmem:[%s6647 + $0x27a] sm:$0xff]
        %v7048 = vld [vmem:[%s6647 + $0x28a] sm:$0xff]
        %v7049 = vld [vmem:[%s6647 + $0x292] sm:$0xff]
        %v7050 = vld [vmem:[%s6647 + $0x2a2] sm:$0xff]
        %v7051 = vld [vmem:[%s6647 + $0x2aa] sm:$0xff]
        %v7052 = vld [vmem:[%s6647 + $0x2ba] sm:$0xff]
        %v7053 = vld [vmem:[%s6647 + $0x2c2] sm:$0xff]
        %v7054 = vld [vmem:[%s6647 + $0x2d2] sm:$0xff]
        %v7055 = vld [vmem:[%s6647 + $0x2da] sm:$0xff]
        %v7056 = vld [vmem:[%s6647 + $0x2ea] sm:$0xff]
        %v7057 = vld [vmem:[%s6647 + $0x2f2] sm:$0xff]
        %v7058 = vld [vmem:[%s6647 + $0x302] sm:$0xff]
        %v7059 = vld [vmem:[%s6647 + $0x30a] sm:$0xff]
        %v7060 = vld [vmem:[%s6647 + $0x31a] sm:$0xff]
        %v7061 = vld [vmem:[%s6647 + $0x322] sm:$0xff]
        %v7062 = vld [vmem:[%s6647 + $0x332] sm:$0xff]
        %v7063 = vld [vmem:[%s6647 + $0x33a] sm:$0xff]
        %v7064 = vld [vmem:[%s6647 + $0x34a] sm:$0xff]
        %v7065 = vld [vmem:[%s6647 + $0x352] sm:$0xff]
        %s7066 = scalar_lea.vmem %s318, 896 [#allocation6]
        %v7067 = vld [vmem:[%s7066] sm:$0xff]
        %v7068 = vld [vmem:[%s7066 + $0x8] sm:$0xff]
        %v7069 = vld [vmem:[%s7066 + $0x10] sm:$0xff]
        %v7070 = vld [vmem:[%s7066 + $0x18] sm:$0xff]
        %v7071 = vld [vmem:[%s7066 + $0x20] sm:$0xff]
        %v7072 = vld [vmem:[%s7066 + $0x28] sm:$0xff]
        %v7073 = vld [vmem:[%s7066 + $0x30] sm:$0xff]
        %v7074 = vld [vmem:[%s7066 + $0x38] sm:$0xff]
        %v7075 = vld [vmem:[%s7066 + $0x40] sm:$0xff]
        %v7076 = vld [vmem:[%s7066 + $0x48] sm:$0xff]
        %v7077 = vld [vmem:[%s7066 + $0x50] sm:$0xff]
        %v7078 = vld [vmem:[%s7066 + $0x58] sm:$0xff]
        %v7079 = vld [vmem:[%s7066 + $0x60] sm:$0xff]
        %v7080 = vld [vmem:[%s7066 + $0x68] sm:$0xff]
        %v7081 = vld [vmem:[%s7066 + $0x70] sm:$0xff]
        %v7082 = vld [vmem:[%s7066 + $0x78] sm:$0xff]
        %7083 = vmatpush.msra.mxu0 %v7082
        %7084 = vmatpush.msra.mxu0 %v7081
        %7085 = vmatpush.msra.mxu0 %v7080
        %7086 = vmatpush.msra.mxu0 %v7079
        %7087 = vmatpush.msra.mxu0 %v7078
        %7088 = vmatpush.msra.mxu0 %v7077
        %7089 = vmatpush.msra.mxu0 %v7076
        %7090 = vmatpush.msra.mxu0 %v7075
        %7091 = vmatpush.msra.mxu0 %v7074
        %7092 = vmatpush.msra.mxu0 %v7073
        %7093 = vmatpush.msra.mxu0 %v7072
        %7094 = vmatpush.msra.mxu0 %v7071
        %7095 = vmatpush.msra.mxu0 %v7070
        %7096 = vmatpush.msra.mxu0 %v7069
        %7097 = vmatpush.msra.mxu0 %v7068
        %7098 = vmatpush.msra.mxu0 %v7067
        %7099 = vmatmul.f32.gmra.mxu0 %v7002
        %v7100 = vpop.f32.mrf.mxu0
        %v7101 = vadd.f32 0.0, %v7100
        %7102 = vmatmul.f32.gmra.mxu0 %v7003
        %v7103 = vpop.f32.mrf.mxu0
        %v7104 = vadd.f32 0.0, %v7103
        %7105 = vmatmul.f32.gmra.mxu0 %v7004
        %v7106 = vpop.f32.mrf.mxu0
        %v7107 = vadd.f32 0.0, %v7106
        %7108 = vmatmul.f32.gmra.mxu0 %v7005
        %v7109 = vpop.f32.mrf.mxu0
        %v7110 = vadd.f32 0.0, %v7109
        %7111 = vmatmul.f32.gmra.mxu0 %v7006
        %v7112 = vpop.f32.mrf.mxu0
        %v7113 = vadd.f32 0.0, %v7112
        %7114 = vmatmul.f32.gmra.mxu0 %v7007
        %v7115 = vpop.f32.mrf.mxu0
        %v7116 = vadd.f32 0.0, %v7115
        %7117 = vmatmul.f32.gmra.mxu0 %v7008
        %v7118 = vpop.f32.mrf.mxu0
        %v7119 = vadd.f32 0.0, %v7118
        %7120 = vmatmul.f32.gmra.mxu0 %v7009
        %v7121 = vpop.f32.mrf.mxu0
        %v7122 = vadd.f32 0.0, %v7121
        %7123 = vmatmul.f32.gmra.mxu0 %v7010
        %v7124 = vpop.f32.mrf.mxu0
        %v7125 = vadd.f32 0.0, %v7124
        %7126 = vmatmul.f32.gmra.mxu0 %v7011
        %v7127 = vpop.f32.mrf.mxu0
        %v7128 = vadd.f32 0.0, %v7127
        %7129 = vmatmul.f32.gmra.mxu0 %v7012
        %v7130 = vpop.f32.mrf.mxu0
        %v7131 = vadd.f32 0.0, %v7130
        %7132 = vmatmul.f32.gmra.mxu0 %v7013
        %v7133 = vpop.f32.mrf.mxu0
        %v7134 = vadd.f32 0.0, %v7133
        %7135 = vmatmul.f32.gmra.mxu0 %v7014
        %v7136 = vpop.f32.mrf.mxu0
        %v7137 = vadd.f32 0.0, %v7136
        %7138 = vmatmul.f32.gmra.mxu0 %v7015
        %v7139 = vpop.f32.mrf.mxu0
        %v7140 = vadd.f32 0.0, %v7139
        %7141 = vmatmul.f32.gmra.mxu0 %v7016
        %v7142 = vpop.f32.mrf.mxu0
        %v7143 = vadd.f32 0.0, %v7142
        %7144 = vmatmul.f32.gmra.mxu0 %v7017
        %v7145 = vpop.f32.mrf.mxu0
        %v7146 = vadd.f32 0.0, %v7145
        %7147 = vmatmul.f32.gmra.mxu0 %v7018
        %v7148 = vpop.f32.mrf.mxu0
        %v7149 = vadd.f32 0.0, %v7148
        %7150 = vmatmul.f32.gmra.mxu0 %v7019
        %v7151 = vpop.f32.mrf.mxu0
        %v7152 = vadd.f32 0.0, %v7151
        %7153 = vmatmul.f32.gmra.mxu0 %v7020
        %v7154 = vpop.f32.mrf.mxu0
        %v7155 = vadd.f32 0.0, %v7154
        %7156 = vmatmul.f32.gmra.mxu0 %v7021
        %v7157 = vpop.f32.mrf.mxu0
        %v7158 = vadd.f32 0.0, %v7157
        %7159 = vmatmul.f32.gmra.mxu0 %v7022
        %v7160 = vpop.f32.mrf.mxu0
        %v7161 = vadd.f32 0.0, %v7160
        %7162 = vmatmul.f32.gmra.mxu0 %v7023
        %v7163 = vpop.f32.mrf.mxu0
        %v7164 = vadd.f32 0.0, %v7163
        %7165 = vmatmul.f32.gmra.mxu0 %v7024
        %v7166 = vpop.f32.mrf.mxu0
        %v7167 = vadd.f32 0.0, %v7166
        %7168 = vmatmul.f32.gmra.mxu0 %v7025
        %v7169 = vpop.f32.mrf.mxu0
        %v7170 = vadd.f32 0.0, %v7169
        %7171 = vmatmul.f32.gmra.mxu0 %v7026
        %v7172 = vpop.f32.mrf.mxu0
        %v7173 = vadd.f32 0.0, %v7172
        %7174 = vmatmul.f32.gmra.mxu0 %v7027
        %v7175 = vpop.f32.mrf.mxu0
        %v7176 = vadd.f32 0.0, %v7175
        %7177 = vmatmul.f32.gmra.mxu0 %v7028
        %v7178 = vpop.f32.mrf.mxu0
        %v7179 = vadd.f32 0.0, %v7178
        %7180 = vmatmul.f32.gmra.mxu0 %v7029
        %v7181 = vpop.f32.mrf.mxu0
        %v7182 = vadd.f32 0.0, %v7181
        %7183 = vmatmul.f32.gmra.mxu0 %v7030
        %v7184 = vpop.f32.mrf.mxu0
        %v7185 = vadd.f32 0.0, %v7184
        %7186 = vmatmul.f32.gmra.mxu0 %v7031
        %v7187 = vpop.f32.mrf.mxu0
        %v7188 = vadd.f32 0.0, %v7187
        %7189 = vmatmul.f32.gmra.mxu0 %v7032
        %v7190 = vpop.f32.mrf.mxu0
        %v7191 = vadd.f32 0.0, %v7190
        %7192 = vmatmul.f32.gmra.mxu0 %v7033
        %v7193 = vpop.f32.mrf.mxu0
        %v7194 = vadd.f32 0.0, %v7193
        %7195 = vmatmul.f32.gmra.mxu0 %v7034
        %v7196 = vpop.f32.mrf.mxu0
        %v7197 = vadd.f32 0.0, %v7196
        %7198 = vmatmul.f32.gmra.mxu0 %v7035
        %v7199 = vpop.f32.mrf.mxu0
        %v7200 = vadd.f32 0.0, %v7199
        %7201 = vmatmul.f32.gmra.mxu0 %v7036
        %v7202 = vpop.f32.mrf.mxu0
        %v7203 = vadd.f32 0.0, %v7202
        %7204 = vmatmul.f32.gmra.mxu0 %v7037
        %v7205 = vpop.f32.mrf.mxu0
        %v7206 = vadd.f32 0.0, %v7205
        %7207 = vmatmul.f32.gmra.mxu0 %v7038
        %v7208 = vpop.f32.mrf.mxu0
        %v7209 = vadd.f32 0.0, %v7208
        %7210 = vmatmul.f32.gmra.mxu0 %v7039
        %v7211 = vpop.f32.mrf.mxu0
        %v7212 = vadd.f32 0.0, %v7211
        %7213 = vmatmul.f32.gmra.mxu0 %v7040
        %v7214 = vpop.f32.mrf.mxu0
        %v7215 = vadd.f32 0.0, %v7214
        %7216 = vmatmul.f32.gmra.mxu0 %v7041
        %v7217 = vpop.f32.mrf.mxu0
        %v7218 = vadd.f32 0.0, %v7217
        %7219 = vmatmul.f32.gmra.mxu0 %v7042
        %v7220 = vpop.f32.mrf.mxu0
        %v7221 = vadd.f32 0.0, %v7220
        %7222 = vmatmul.f32.gmra.mxu0 %v7043
        %v7223 = vpop.f32.mrf.mxu0
        %v7224 = vadd.f32 0.0, %v7223
        %7225 = vmatmul.f32.gmra.mxu0 %v7044
        %v7226 = vpop.f32.mrf.mxu0
        %v7227 = vadd.f32 0.0, %v7226
        %7228 = vmatmul.f32.gmra.mxu0 %v7045
        %v7229 = vpop.f32.mrf.mxu0
        %v7230 = vadd.f32 0.0, %v7229
        %7231 = vmatmul.f32.gmra.mxu0 %v7046
        %v7232 = vpop.f32.mrf.mxu0
        %v7233 = vadd.f32 0.0, %v7232
        %7234 = vmatmul.f32.gmra.mxu0 %v7047
        %v7235 = vpop.f32.mrf.mxu0
        %v7236 = vadd.f32 0.0, %v7235
        %7237 = vmatmul.f32.gmra.mxu0 %v7048
        %v7238 = vpop.f32.mrf.mxu0
        %v7239 = vadd.f32 0.0, %v7238
        %7240 = vmatmul.f32.gmra.mxu0 %v7049
        %v7241 = vpop.f32.mrf.mxu0
        %v7242 = vadd.f32 0.0, %v7241
        %7243 = vmatmul.f32.gmra.mxu0 %v7050
        %v7244 = vpop.f32.mrf.mxu0
        %v7245 = vadd.f32 0.0, %v7244
        %7246 = vmatmul.f32.gmra.mxu0 %v7051
        %v7247 = vpop.f32.mrf.mxu0
        %v7248 = vadd.f32 0.0, %v7247
        %7249 = vmatmul.f32.gmra.mxu0 %v7052
        %v7250 = vpop.f32.mrf.mxu0
        %v7251 = vadd.f32 0.0, %v7250
        %7252 = vmatmul.f32.gmra.mxu0 %v7053
        %v7253 = vpop.f32.mrf.mxu0
        %v7254 = vadd.f32 0.0, %v7253
        %7255 = vmatmul.f32.gmra.mxu0 %v7054
        %v7256 = vpop.f32.mrf.mxu0
        %v7257 = vadd.f32 0.0, %v7256
        %7258 = vmatmul.f32.gmra.mxu0 %v7055
        %v7259 = vpop.f32.mrf.mxu0
        %v7260 = vadd.f32 0.0, %v7259
        %7261 = vmatmul.f32.gmra.mxu0 %v7056
        %v7262 = vpop.f32.mrf.mxu0
        %v7263 = vadd.f32 0.0, %v7262
        %7264 = vmatmul.f32.gmra.mxu0 %v7057
        %v7265 = vpop.f32.mrf.mxu0
        %v7266 = vadd.f32 0.0, %v7265
        %7267 = vmatmul.f32.gmra.mxu0 %v7058
        %v7268 = vpop.f32.mrf.mxu0
        %v7269 = vadd.f32 0.0, %v7268
        %7270 = vmatmul.f32.gmra.mxu0 %v7059
        %v7271 = vpop.f32.mrf.mxu0
        %v7272 = vadd.f32 0.0, %v7271
        %7273 = vmatmul.f32.gmra.mxu0 %v7060
        %v7274 = vpop.f32.mrf.mxu0
        %v7275 = vadd.f32 0.0, %v7274
        %7276 = vmatmul.f32.gmra.mxu0 %v7061
        %v7277 = vpop.f32.mrf.mxu0
        %v7278 = vadd.f32 0.0, %v7277
        %7279 = vmatmul.f32.gmra.mxu0 %v7062
        %v7280 = vpop.f32.mrf.mxu0
        %v7281 = vadd.f32 0.0, %v7280
        %7282 = vmatmul.f32.gmra.mxu0 %v7063
        %v7283 = vpop.f32.mrf.mxu0
        %v7284 = vadd.f32 0.0, %v7283
        %7285 = vmatmul.f32.gmra.mxu0 %v7064
        %v7286 = vpop.f32.mrf.mxu0
        %v7287 = vadd.f32 0.0, %v7286
        %7288 = vmatmul.f32.gmra.mxu0 %v7065
        %v7289 = vpop.f32.mrf.mxu0
        %v7290 = vadd.f32 0.0, %v7289
        %7291 = vdwg.mxu0
        %v7292 = vadd.f32 %v6938, %v7101
        %v7293 = vadd.f32 %v6939, %v7104
        %v7294 = vadd.f32 %v6940, %v7107
        %v7295 = vadd.f32 %v6941, %v7110
        %v7296 = vadd.f32 %v6942, %v7113
        %v7297 = vadd.f32 %v6943, %v7116
        %v7298 = vadd.f32 %v6944, %v7119
        %v7299 = vadd.f32 %v6945, %v7122
        %v7300 = vadd.f32 %v6946, %v7125
        %v7301 = vadd.f32 %v6947, %v7128
        %v7302 = vadd.f32 %v6948, %v7131
        %v7303 = vadd.f32 %v6949, %v7134
        %v7304 = vadd.f32 %v6950, %v7137
        %v7305 = vadd.f32 %v6951, %v7140
        %v7306 = vadd.f32 %v6952, %v7143
        %v7307 = vadd.f32 %v6953, %v7146
        %v7308 = vadd.f32 %v6954, %v7149
        %v7309 = vadd.f32 %v6955, %v7152
        %v7310 = vadd.f32 %v6956, %v7155
        %v7311 = vadd.f32 %v6957, %v7158
        %v7312 = vadd.f32 %v6958, %v7161
        %v7313 = vadd.f32 %v6959, %v7164
        %v7314 = vadd.f32 %v6960, %v7167
        %v7315 = vadd.f32 %v6961, %v7170
        %v7316 = vadd.f32 %v6962, %v7173
        %v7317 = vadd.f32 %v6963, %v7176
        %v7318 = vadd.f32 %v6964, %v7179
        %v7319 = vadd.f32 %v6965, %v7182
        %v7320 = vadd.f32 %v6966, %v7185
        %v7321 = vadd.f32 %v6967, %v7188
        %v7322 = vadd.f32 %v6968, %v7191
        %v7323 = vadd.f32 %v6969, %v7194
        %v7324 = vadd.f32 %v6970, %v7197
        %v7325 = vadd.f32 %v6971, %v7200
        %v7326 = vadd.f32 %v6972, %v7203
        %v7327 = vadd.f32 %v6973, %v7206
        %v7328 = vadd.f32 %v6974, %v7209
        %v7329 = vadd.f32 %v6975, %v7212
        %v7330 = vadd.f32 %v6976, %v7215
        %v7331 = vadd.f32 %v6977, %v7218
        %v7332 = vadd.f32 %v6978, %v7221
        %v7333 = vadd.f32 %v6979, %v7224
        %v7334 = vadd.f32 %v6980, %v7227
        %v7335 = vadd.f32 %v6981, %v7230
        %v7336 = vadd.f32 %v6982, %v7233
        %v7337 = vadd.f32 %v6983, %v7236
        %v7338 = vadd.f32 %v6984, %v7239
        %v7339 = vadd.f32 %v6985, %v7242
        %v7340 = vadd.f32 %v6986, %v7245
        %v7341 = vadd.f32 %v6987, %v7248
        %v7342 = vadd.f32 %v6988, %v7251
        %v7343 = vadd.f32 %v6989, %v7254
        %v7344 = vadd.f32 %v6990, %v7257
        %v7345 = vadd.f32 %v6991, %v7260
        %v7346 = vadd.f32 %v6992, %v7263
        %v7347 = vadd.f32 %v6993, %v7266
        %v7348 = vadd.f32 %v6994, %v7269
        %v7349 = vadd.f32 %v6995, %v7272
        %v7350 = vadd.f32 %v6996, %v7275
        %v7351 = vadd.f32 %v6997, %v7278
        %v7352 = vadd.f32 %v6998, %v7281
        %v7353 = vadd.f32 %v6999, %v7284
        %v7354 = vadd.f32 %v7000, %v7287
        %v7355 = vadd.f32 %v7001, %v7290
        %v7356 = vld [vmem:[%s6647 + $0x4] sm:$0xff]
        %v7357 = vld [vmem:[%s6647 + $0xc] sm:$0xff]
        %v7358 = vld [vmem:[%s6647 + $0x1c] sm:$0xff]
        %v7359 = vld [vmem:[%s6647 + $0x24] sm:$0xff]
        %v7360 = vld [vmem:[%s6647 + $0x34] sm:$0xff]
        %v7361 = vld [vmem:[%s6647 + $0x3c] sm:$0xff]
        %v7362 = vld [vmem:[%s6647 + $0x4c] sm:$0xff]
        %v7363 = vld [vmem:[%s6647 + $0x54] sm:$0xff]
        %v7364 = vld [vmem:[%s6647 + $0x64] sm:$0xff]
        %v7365 = vld [vmem:[%s6647 + $0x6c] sm:$0xff]
        %v7366 = vld [vmem:[%s6647 + $0x7c] sm:$0xff]
        %v7367 = vld [vmem:[%s6647 + $0x84] sm:$0xff]
        %v7368 = vld [vmem:[%s6647 + $0x94] sm:$0xff]
        %v7369 = vld [vmem:[%s6647 + $0x9c] sm:$0xff]
        %v7370 = vld [vmem:[%s6647 + $0xac] sm:$0xff]
        %v7371 = vld [vmem:[%s6647 + $0xb4] sm:$0xff]
        %v7372 = vld [vmem:[%s6647 + $0xc4] sm:$0xff]
        %v7373 = vld [vmem:[%s6647 + $0xcc] sm:$0xff]
        %v7374 = vld [vmem:[%s6647 + $0xdc] sm:$0xff]
        %v7375 = vld [vmem:[%s6647 + $0xe4] sm:$0xff]
        %v7376 = vld [vmem:[%s6647 + $0xf4] sm:$0xff]
        %v7377 = vld [vmem:[%s6647 + $0xfc] sm:$0xff]
        %v7378 = vld [vmem:[%s6647 + $0x10c] sm:$0xff]
        %v7379 = vld [vmem:[%s6647 + $0x114] sm:$0xff]
        %v7380 = vld [vmem:[%s6647 + $0x124] sm:$0xff]
        %v7381 = vld [vmem:[%s6647 + $0x12c] sm:$0xff]
        %v7382 = vld [vmem:[%s6647 + $0x13c] sm:$0xff]
        %v7383 = vld [vmem:[%s6647 + $0x144] sm:$0xff]
        %v7384 = vld [vmem:[%s6647 + $0x154] sm:$0xff]
        %v7385 = vld [vmem:[%s6647 + $0x15c] sm:$0xff]
        %v7386 = vld [vmem:[%s6647 + $0x16c] sm:$0xff]
        %v7387 = vld [vmem:[%s6647 + $0x174] sm:$0xff]
        %v7388 = vld [vmem:[%s6647 + $0x1e4] sm:$0xff]
        %v7389 = vld [vmem:[%s6647 + $0x1ec] sm:$0xff]
        %v7390 = vld [vmem:[%s6647 + $0x1fc] sm:$0xff]
        %v7391 = vld [vmem:[%s6647 + $0x204] sm:$0xff]
        %v7392 = vld [vmem:[%s6647 + $0x214] sm:$0xff]
        %v7393 = vld [vmem:[%s6647 + $0x21c] sm:$0xff]
        %v7394 = vld [vmem:[%s6647 + $0x22c] sm:$0xff]
        %v7395 = vld [vmem:[%s6647 + $0x234] sm:$0xff]
        %v7396 = vld [vmem:[%s6647 + $0x244] sm:$0xff]
        %v7397 = vld [vmem:[%s6647 + $0x24c] sm:$0xff]
        %v7398 = vld [vmem:[%s6647 + $0x25c] sm:$0xff]
        %v7399 = vld [vmem:[%s6647 + $0x264] sm:$0xff]
        %v7400 = vld [vmem:[%s6647 + $0x274] sm:$0xff]
        %v7401 = vld [vmem:[%s6647 + $0x27c] sm:$0xff]
        %v7402 = vld [vmem:[%s6647 + $0x28c] sm:$0xff]
        %v7403 = vld [vmem:[%s6647 + $0x294] sm:$0xff]
        %v7404 = vld [vmem:[%s6647 + $0x2a4] sm:$0xff]
        %v7405 = vld [vmem:[%s6647 + $0x2ac] sm:$0xff]
        %v7406 = vld [vmem:[%s6647 + $0x2bc] sm:$0xff]
        %v7407 = vld [vmem:[%s6647 + $0x2c4] sm:$0xff]
        %v7408 = vld [vmem:[%s6647 + $0x2d4] sm:$0xff]
        %v7409 = vld [vmem:[%s6647 + $0x2dc] sm:$0xff]
        %v7410 = vld [vmem:[%s6647 + $0x2ec] sm:$0xff]
        %v7411 = vld [vmem:[%s6647 + $0x2f4] sm:$0xff]
        %v7412 = vld [vmem:[%s6647 + $0x304] sm:$0xff]
        %v7413 = vld [vmem:[%s6647 + $0x30c] sm:$0xff]
        %v7414 = vld [vmem:[%s6647 + $0x31c] sm:$0xff]
        %v7415 = vld [vmem:[%s6647 + $0x324] sm:$0xff]
        %v7416 = vld [vmem:[%s6647 + $0x334] sm:$0xff]
        %v7417 = vld [vmem:[%s6647 + $0x33c] sm:$0xff]
        %v7418 = vld [vmem:[%s6647 + $0x34c] sm:$0xff]
        %v7419 = vld [vmem:[%s6647 + $0x354] sm:$0xff]
        %s7420 = scalar_lea.vmem %s318, 1024 [#allocation6]
        %v7421 = vld [vmem:[%s7420] sm:$0xff]
        %v7422 = vld [vmem:[%s7420 + $0x8] sm:$0xff]
        %v7423 = vld [vmem:[%s7420 + $0x10] sm:$0xff]
        %v7424 = vld [vmem:[%s7420 + $0x18] sm:$0xff]
        %v7425 = vld [vmem:[%s7420 + $0x20] sm:$0xff]
        %v7426 = vld [vmem:[%s7420 + $0x28] sm:$0xff]
        %v7427 = vld [vmem:[%s7420 + $0x30] sm:$0xff]
        %v7428 = vld [vmem:[%s7420 + $0x38] sm:$0xff]
        %v7429 = vld [vmem:[%s7420 + $0x40] sm:$0xff]
        %v7430 = vld [vmem:[%s7420 + $0x48] sm:$0xff]
        %v7431 = vld [vmem:[%s7420 + $0x50] sm:$0xff]
        %v7432 = vld [vmem:[%s7420 + $0x58] sm:$0xff]
        %v7433 = vld [vmem:[%s7420 + $0x60] sm:$0xff]
        %v7434 = vld [vmem:[%s7420 + $0x68] sm:$0xff]
        %v7435 = vld [vmem:[%s7420 + $0x70] sm:$0xff]
        %v7436 = vld [vmem:[%s7420 + $0x78] sm:$0xff]
        %7437 = vmatpush.msra.mxu0 %v7436
        %7438 = vmatpush.msra.mxu0 %v7435
        %7439 = vmatpush.msra.mxu0 %v7434
        %7440 = vmatpush.msra.mxu0 %v7433
        %7441 = vmatpush.msra.mxu0 %v7432
        %7442 = vmatpush.msra.mxu0 %v7431
        %7443 = vmatpush.msra.mxu0 %v7430
        %7444 = vmatpush.msra.mxu0 %v7429
        %7445 = vmatpush.msra.mxu0 %v7428
        %7446 = vmatpush.msra.mxu0 %v7427
        %7447 = vmatpush.msra.mxu0 %v7426
        %7448 = vmatpush.msra.mxu0 %v7425
        %7449 = vmatpush.msra.mxu0 %v7424
        %7450 = vmatpush.msra.mxu0 %v7423
        %7451 = vmatpush.msra.mxu0 %v7422
        %7452 = vmatpush.msra.mxu0 %v7421
        %7453 = vmatmul.f32.gmra.mxu0 %v7356
        %v7454 = vpop.f32.mrf.mxu0
        %v7455 = vadd.f32 0.0, %v7454
        %7456 = vmatmul.f32.gmra.mxu0 %v7357
        %v7457 = vpop.f32.mrf.mxu0
        %v7458 = vadd.f32 0.0, %v7457
        %7459 = vmatmul.f32.gmra.mxu0 %v7358
        %v7460 = vpop.f32.mrf.mxu0
        %v7461 = vadd.f32 0.0, %v7460
        %7462 = vmatmul.f32.gmra.mxu0 %v7359
        %v7463 = vpop.f32.mrf.mxu0
        %v7464 = vadd.f32 0.0, %v7463
        %7465 = vmatmul.f32.gmra.mxu0 %v7360
        %v7466 = vpop.f32.mrf.mxu0
        %v7467 = vadd.f32 0.0, %v7466
        %7468 = vmatmul.f32.gmra.mxu0 %v7361
        %v7469 = vpop.f32.mrf.mxu0
        %v7470 = vadd.f32 0.0, %v7469
        %7471 = vmatmul.f32.gmra.mxu0 %v7362
        %v7472 = vpop.f32.mrf.mxu0
        %v7473 = vadd.f32 0.0, %v7472
        %7474 = vmatmul.f32.gmra.mxu0 %v7363
        %v7475 = vpop.f32.mrf.mxu0
        %v7476 = vadd.f32 0.0, %v7475
        %7477 = vmatmul.f32.gmra.mxu0 %v7364
        %v7478 = vpop.f32.mrf.mxu0
        %v7479 = vadd.f32 0.0, %v7478
        %7480 = vmatmul.f32.gmra.mxu0 %v7365
        %v7481 = vpop.f32.mrf.mxu0
        %v7482 = vadd.f32 0.0, %v7481
        %7483 = vmatmul.f32.gmra.mxu0 %v7366
        %v7484 = vpop.f32.mrf.mxu0
        %v7485 = vadd.f32 0.0, %v7484
        %7486 = vmatmul.f32.gmra.mxu0 %v7367
        %v7487 = vpop.f32.mrf.mxu0
        %v7488 = vadd.f32 0.0, %v7487
        %7489 = vmatmul.f32.gmra.mxu0 %v7368
        %v7490 = vpop.f32.mrf.mxu0
        %v7491 = vadd.f32 0.0, %v7490
        %7492 = vmatmul.f32.gmra.mxu0 %v7369
        %v7493 = vpop.f32.mrf.mxu0
        %v7494 = vadd.f32 0.0, %v7493
        %7495 = vmatmul.f32.gmra.mxu0 %v7370
        %v7496 = vpop.f32.mrf.mxu0
        %v7497 = vadd.f32 0.0, %v7496
        %7498 = vmatmul.f32.gmra.mxu0 %v7371
        %v7499 = vpop.f32.mrf.mxu0
        %v7500 = vadd.f32 0.0, %v7499
        %7501 = vmatmul.f32.gmra.mxu0 %v7372
        %v7502 = vpop.f32.mrf.mxu0
        %v7503 = vadd.f32 0.0, %v7502
        %7504 = vmatmul.f32.gmra.mxu0 %v7373
        %v7505 = vpop.f32.mrf.mxu0
        %v7506 = vadd.f32 0.0, %v7505
        %7507 = vmatmul.f32.gmra.mxu0 %v7374
        %v7508 = vpop.f32.mrf.mxu0
        %v7509 = vadd.f32 0.0, %v7508
        %7510 = vmatmul.f32.gmra.mxu0 %v7375
        %v7511 = vpop.f32.mrf.mxu0
        %v7512 = vadd.f32 0.0, %v7511
        %7513 = vmatmul.f32.gmra.mxu0 %v7376
        %v7514 = vpop.f32.mrf.mxu0
        %v7515 = vadd.f32 0.0, %v7514
        %7516 = vmatmul.f32.gmra.mxu0 %v7377
        %v7517 = vpop.f32.mrf.mxu0
        %v7518 = vadd.f32 0.0, %v7517
        %7519 = vmatmul.f32.gmra.mxu0 %v7378
        %v7520 = vpop.f32.mrf.mxu0
        %v7521 = vadd.f32 0.0, %v7520
        %7522 = vmatmul.f32.gmra.mxu0 %v7379
        %v7523 = vpop.f32.mrf.mxu0
        %v7524 = vadd.f32 0.0, %v7523
        %7525 = vmatmul.f32.gmra.mxu0 %v7380
        %v7526 = vpop.f32.mrf.mxu0
        %v7527 = vadd.f32 0.0, %v7526
        %7528 = vmatmul.f32.gmra.mxu0 %v7381
        %v7529 = vpop.f32.mrf.mxu0
        %v7530 = vadd.f32 0.0, %v7529
        %7531 = vmatmul.f32.gmra.mxu0 %v7382
        %v7532 = vpop.f32.mrf.mxu0
        %v7533 = vadd.f32 0.0, %v7532
        %7534 = vmatmul.f32.gmra.mxu0 %v7383
        %v7535 = vpop.f32.mrf.mxu0
        %v7536 = vadd.f32 0.0, %v7535
        %7537 = vmatmul.f32.gmra.mxu0 %v7384
        %v7538 = vpop.f32.mrf.mxu0
        %v7539 = vadd.f32 0.0, %v7538
        %7540 = vmatmul.f32.gmra.mxu0 %v7385
        %v7541 = vpop.f32.mrf.mxu0
        %v7542 = vadd.f32 0.0, %v7541
        %7543 = vmatmul.f32.gmra.mxu0 %v7386
        %v7544 = vpop.f32.mrf.mxu0
        %v7545 = vadd.f32 0.0, %v7544
        %7546 = vmatmul.f32.gmra.mxu0 %v7387
        %v7547 = vpop.f32.mrf.mxu0
        %v7548 = vadd.f32 0.0, %v7547
        %7549 = vmatmul.f32.gmra.mxu0 %v7388
        %v7550 = vpop.f32.mrf.mxu0
        %v7551 = vadd.f32 0.0, %v7550
        %7552 = vmatmul.f32.gmra.mxu0 %v7389
        %v7553 = vpop.f32.mrf.mxu0
        %v7554 = vadd.f32 0.0, %v7553
        %7555 = vmatmul.f32.gmra.mxu0 %v7390
        %v7556 = vpop.f32.mrf.mxu0
        %v7557 = vadd.f32 0.0, %v7556
        %7558 = vmatmul.f32.gmra.mxu0 %v7391
        %v7559 = vpop.f32.mrf.mxu0
        %v7560 = vadd.f32 0.0, %v7559
        %7561 = vmatmul.f32.gmra.mxu0 %v7392
        %v7562 = vpop.f32.mrf.mxu0
        %v7563 = vadd.f32 0.0, %v7562
        %7564 = vmatmul.f32.gmra.mxu0 %v7393
        %v7565 = vpop.f32.mrf.mxu0
        %v7566 = vadd.f32 0.0, %v7565
        %7567 = vmatmul.f32.gmra.mxu0 %v7394
        %v7568 = vpop.f32.mrf.mxu0
        %v7569 = vadd.f32 0.0, %v7568
        %7570 = vmatmul.f32.gmra.mxu0 %v7395
        %v7571 = vpop.f32.mrf.mxu0
        %v7572 = vadd.f32 0.0, %v7571
        %7573 = vmatmul.f32.gmra.mxu0 %v7396
        %v7574 = vpop.f32.mrf.mxu0
        %v7575 = vadd.f32 0.0, %v7574
        %7576 = vmatmul.f32.gmra.mxu0 %v7397
        %v7577 = vpop.f32.mrf.mxu0
        %v7578 = vadd.f32 0.0, %v7577
        %7579 = vmatmul.f32.gmra.mxu0 %v7398
        %v7580 = vpop.f32.mrf.mxu0
        %v7581 = vadd.f32 0.0, %v7580
        %7582 = vmatmul.f32.gmra.mxu0 %v7399
        %v7583 = vpop.f32.mrf.mxu0
        %v7584 = vadd.f32 0.0, %v7583
        %7585 = vmatmul.f32.gmra.mxu0 %v7400
        %v7586 = vpop.f32.mrf.mxu0
        %v7587 = vadd.f32 0.0, %v7586
        %7588 = vmatmul.f32.gmra.mxu0 %v7401
        %v7589 = vpop.f32.mrf.mxu0
        %v7590 = vadd.f32 0.0, %v7589
        %7591 = vmatmul.f32.gmra.mxu0 %v7402
        %v7592 = vpop.f32.mrf.mxu0
        %v7593 = vadd.f32 0.0, %v7592
        %7594 = vmatmul.f32.gmra.mxu0 %v7403
        %v7595 = vpop.f32.mrf.mxu0
        %v7596 = vadd.f32 0.0, %v7595
        %7597 = vmatmul.f32.gmra.mxu0 %v7404
        %v7598 = vpop.f32.mrf.mxu0
        %v7599 = vadd.f32 0.0, %v7598
        %7600 = vmatmul.f32.gmra.mxu0 %v7405
        %v7601 = vpop.f32.mrf.mxu0
        %v7602 = vadd.f32 0.0, %v7601
        %7603 = vmatmul.f32.gmra.mxu0 %v7406
        %v7604 = vpop.f32.mrf.mxu0
        %v7605 = vadd.f32 0.0, %v7604
        %7606 = vmatmul.f32.gmra.mxu0 %v7407
        %v7607 = vpop.f32.mrf.mxu0
        %v7608 = vadd.f32 0.0, %v7607
        %7609 = vmatmul.f32.gmra.mxu0 %v7408
        %v7610 = vpop.f32.mrf.mxu0
        %v7611 = vadd.f32 0.0, %v7610
        %7612 = vmatmul.f32.gmra.mxu0 %v7409
        %v7613 = vpop.f32.mrf.mxu0
        %v7614 = vadd.f32 0.0, %v7613
        %7615 = vmatmul.f32.gmra.mxu0 %v7410
        %v7616 = vpop.f32.mrf.mxu0
        %v7617 = vadd.f32 0.0, %v7616
        %7618 = vmatmul.f32.gmra.mxu0 %v7411
        %v7619 = vpop.f32.mrf.mxu0
        %v7620 = vadd.f32 0.0, %v7619
        %7621 = vmatmul.f32.gmra.mxu0 %v7412
        %v7622 = vpop.f32.mrf.mxu0
        %v7623 = vadd.f32 0.0, %v7622
        %7624 = vmatmul.f32.gmra.mxu0 %v7413
        %v7625 = vpop.f32.mrf.mxu0
        %v7626 = vadd.f32 0.0, %v7625
        %7627 = vmatmul.f32.gmra.mxu0 %v7414
        %v7628 = vpop.f32.mrf.mxu0
        %v7629 = vadd.f32 0.0, %v7628
        %7630 = vmatmul.f32.gmra.mxu0 %v7415
        %v7631 = vpop.f32.mrf.mxu0
        %v7632 = vadd.f32 0.0, %v7631
        %7633 = vmatmul.f32.gmra.mxu0 %v7416
        %v7634 = vpop.f32.mrf.mxu0
        %v7635 = vadd.f32 0.0, %v7634
        %7636 = vmatmul.f32.gmra.mxu0 %v7417
        %v7637 = vpop.f32.mrf.mxu0
        %v7638 = vadd.f32 0.0, %v7637
        %7639 = vmatmul.f32.gmra.mxu0 %v7418
        %v7640 = vpop.f32.mrf.mxu0
        %v7641 = vadd.f32 0.0, %v7640
        %7642 = vmatmul.f32.gmra.mxu0 %v7419
        %v7643 = vpop.f32.mrf.mxu0
        %v7644 = vadd.f32 0.0, %v7643
        %7645 = vdwg.mxu0
        %v7646 = vadd.f32 %v7292, %v7455
        %v7647 = vadd.f32 %v7293, %v7458
        %v7648 = vadd.f32 %v7294, %v7461
        %v7649 = vadd.f32 %v7295, %v7464
        %v7650 = vadd.f32 %v7296, %v7467
        %v7651 = vadd.f32 %v7297, %v7470
        %v7652 = vadd.f32 %v7298, %v7473
        %v7653 = vadd.f32 %v7299, %v7476
        %v7654 = vadd.f32 %v7300, %v7479
        %v7655 = vadd.f32 %v7301, %v7482
        %v7656 = vadd.f32 %v7302, %v7485
        %v7657 = vadd.f32 %v7303, %v7488
        %v7658 = vadd.f32 %v7304, %v7491
        %v7659 = vadd.f32 %v7305, %v7494
        %v7660 = vadd.f32 %v7306, %v7497
        %v7661 = vadd.f32 %v7307, %v7500
        %v7662 = vadd.f32 %v7308, %v7503
        %v7663 = vadd.f32 %v7309, %v7506
        %v7664 = vadd.f32 %v7310, %v7509
        %v7665 = vadd.f32 %v7311, %v7512
        %v7666 = vadd.f32 %v7312, %v7515
        %v7667 = vadd.f32 %v7313, %v7518
        %v7668 = vadd.f32 %v7314, %v7521
        %v7669 = vadd.f32 %v7315, %v7524
        %v7670 = vadd.f32 %v7316, %v7527
        %v7671 = vadd.f32 %v7317, %v7530
        %v7672 = vadd.f32 %v7318, %v7533
        %v7673 = vadd.f32 %v7319, %v7536
        %v7674 = vadd.f32 %v7320, %v7539
        %v7675 = vadd.f32 %v7321, %v7542
        %v7676 = vadd.f32 %v7322, %v7545
        %v7677 = vadd.f32 %v7323, %v7548
        %v7678 = vadd.f32 %v7324, %v7551
        %v7679 = vadd.f32 %v7325, %v7554
        %v7680 = vadd.f32 %v7326, %v7557
        %v7681 = vadd.f32 %v7327, %v7560
        %v7682 = vadd.f32 %v7328, %v7563
        %v7683 = vadd.f32 %v7329, %v7566
        %v7684 = vadd.f32 %v7330, %v7569
        %v7685 = vadd.f32 %v7331, %v7572
        %v7686 = vadd.f32 %v7332, %v7575
        %v7687 = vadd.f32 %v7333, %v7578
        %v7688 = vadd.f32 %v7334, %v7581
        %v7689 = vadd.f32 %v7335, %v7584
        %v7690 = vadd.f32 %v7336, %v7587
        %v7691 = vadd.f32 %v7337, %v7590
        %v7692 = vadd.f32 %v7338, %v7593
        %v7693 = vadd.f32 %v7339, %v7596
        %v7694 = vadd.f32 %v7340, %v7599
        %v7695 = vadd.f32 %v7341, %v7602
        %v7696 = vadd.f32 %v7342, %v7605
        %v7697 = vadd.f32 %v7343, %v7608
        %v7698 = vadd.f32 %v7344, %v7611
        %v7699 = vadd.f32 %v7345, %v7614
        %v7700 = vadd.f32 %v7346, %v7617
        %v7701 = vadd.f32 %v7347, %v7620
        %v7702 = vadd.f32 %v7348, %v7623
        %v7703 = vadd.f32 %v7349, %v7626
        %v7704 = vadd.f32 %v7350, %v7629
        %v7705 = vadd.f32 %v7351, %v7632
        %v7706 = vadd.f32 %v7352, %v7635
        %v7707 = vadd.f32 %v7353, %v7638
        %v7708 = vadd.f32 %v7354, %v7641
        %v7709 = vadd.f32 %v7355, %v7644
        %v7710 = vld [vmem:[%s388] sm:$0x1]
        %v7712 = vperm.slane %v7710, 0
        %v7714 = vadd.f32 %v7646, %v7712
        %v7715 = vadd.f32 %v7647, %v7712
        %v7716 = vadd.f32 %v7648, %v7712
        %v7717 = vadd.f32 %v7649, %v7712
        %v7718 = vadd.f32 %v7650, %v7712
        %v7719 = vadd.f32 %v7651, %v7712
        %v7720 = vadd.f32 %v7652, %v7712
        %v7721 = vadd.f32 %v7653, %v7712
        %v7722 = vadd.f32 %v7654, %v7712
        %v7723 = vadd.f32 %v7655, %v7712
        %v7724 = vadd.f32 %v7656, %v7712
        %v7725 = vadd.f32 %v7657, %v7712
        %v7726 = vadd.f32 %v7658, %v7712
        %v7727 = vadd.f32 %v7659, %v7712
        %v7728 = vadd.f32 %v7660, %v7712
        %v7729 = vadd.f32 %v7661, %v7712
        %v7730 = vadd.f32 %v7662, %v7712
        %v7731 = vadd.f32 %v7663, %v7712
        %v7732 = vadd.f32 %v7664, %v7712
        %v7733 = vadd.f32 %v7665, %v7712
        %v7734 = vadd.f32 %v7666, %v7712
        %v7735 = vadd.f32 %v7667, %v7712
        %v7736 = vadd.f32 %v7668, %v7712
        %v7737 = vadd.f32 %v7669, %v7712
        %v7738 = vadd.f32 %v7670, %v7712
        %v7739 = vadd.f32 %v7671, %v7712
        %v7740 = vadd.f32 %v7672, %v7712
        %v7741 = vadd.f32 %v7673, %v7712
        %v7742 = vadd.f32 %v7674, %v7712
        %v7743 = vadd.f32 %v7675, %v7712
        %v7744 = vadd.f32 %v7676, %v7712
        %v7745 = vadd.f32 %v7677, %v7712
        %v7746 = vadd.f32 %v7678, %v7712
        %v7747 = vadd.f32 %v7679, %v7712
        %v7748 = vadd.f32 %v7680, %v7712
        %v7749 = vadd.f32 %v7681, %v7712
        %v7750 = vadd.f32 %v7682, %v7712
        %v7751 = vadd.f32 %v7683, %v7712
        %v7752 = vadd.f32 %v7684, %v7712
        %v7753 = vadd.f32 %v7685, %v7712
        %v7754 = vadd.f32 %v7686, %v7712
        %v7755 = vadd.f32 %v7687, %v7712
        %v7756 = vadd.f32 %v7688, %v7712
        %v7757 = vadd.f32 %v7689, %v7712
        %v7758 = vadd.f32 %v7690, %v7712
        %v7759 = vadd.f32 %v7691, %v7712
        %v7760 = vadd.f32 %v7692, %v7712
        %v7761 = vadd.f32 %v7693, %v7712
        %v7762 = vadd.f32 %v7694, %v7712
        %v7763 = vadd.f32 %v7695, %v7712
        %v7764 = vadd.f32 %v7696, %v7712
        %v7765 = vadd.f32 %v7697, %v7712
        %v7766 = vadd.f32 %v7698, %v7712
        %v7767 = vadd.f32 %v7699, %v7712
        %v7768 = vadd.f32 %v7700, %v7712
        %v7769 = vadd.f32 %v7701, %v7712
        %v7770 = vadd.f32 %v7702, %v7712
        %v7771 = vadd.f32 %v7703, %v7712
        %v7772 = vadd.f32 %v7704, %v7712
        %v7773 = vadd.f32 %v7705, %v7712
        %v7774 = vadd.f32 %v7706, %v7712
        %v7775 = vadd.f32 %v7707, %v7712
        %v7776 = vadd.f32 %v7708, %v7712
        %v7777 = vadd.f32 %v7709, %v7712
        %v7778 = vmax.f32 %v7714, 0.0
        %v7779 = vmax.f32 %v7715, 0.0
        %v7780 = vmax.f32 %v7716, 0.0
        %v7781 = vmax.f32 %v7717, 0.0
        %v7782 = vmax.f32 %v7718, 0.0
        %v7783 = vmax.f32 %v7719, 0.0
        %v7784 = vmax.f32 %v7720, 0.0
        %v7785 = vmax.f32 %v7721, 0.0
        %v7786 = vmax.f32 %v7722, 0.0
        %v7787 = vmax.f32 %v7723, 0.0
        %v7788 = vmax.f32 %v7724, 0.0
        %v7789 = vmax.f32 %v7725, 0.0
        %v7790 = vmax.f32 %v7726, 0.0
        %v7791 = vmax.f32 %v7727, 0.0
        %v7792 = vmax.f32 %v7728, 0.0
        %v7793 = vmax.f32 %v7729, 0.0
        %v7794 = vmax.f32 %v7730, 0.0
        %v7795 = vmax.f32 %v7731, 0.0
        %v7796 = vmax.f32 %v7732, 0.0
        %v7797 = vmax.f32 %v7733, 0.0
        %v7798 = vmax.f32 %v7734, 0.0
        %v7799 = vmax.f32 %v7735, 0.0
        %v7800 = vmax.f32 %v7736, 0.0
        %v7801 = vmax.f32 %v7737, 0.0
        %v7802 = vmax.f32 %v7738, 0.0
        %v7803 = vmax.f32 %v7739, 0.0
        %v7804 = vmax.f32 %v7740, 0.0
        %v7805 = vmax.f32 %v7741, 0.0
        %v7806 = vmax.f32 %v7742, 0.0
        %v7807 = vmax.f32 %v7743, 0.0
        %v7808 = vmax.f32 %v7744, 0.0
        %v7809 = vmax.f32 %v7745, 0.0
        %v7810 = vmax.f32 %v7746, 0.0
        %v7811 = vmax.f32 %v7747, 0.0
        %v7812 = vmax.f32 %v7748, 0.0
        %v7813 = vmax.f32 %v7749, 0.0
        %v7814 = vmax.f32 %v7750, 0.0
        %v7815 = vmax.f32 %v7751, 0.0
        %v7816 = vmax.f32 %v7752, 0.0
        %v7817 = vmax.f32 %v7753, 0.0
        %v7818 = vmax.f32 %v7754, 0.0
        %v7819 = vmax.f32 %v7755, 0.0
        %v7820 = vmax.f32 %v7756, 0.0
        %v7821 = vmax.f32 %v7757, 0.0
        %v7822 = vmax.f32 %v7758, 0.0
        %v7823 = vmax.f32 %v7759, 0.0
        %v7824 = vmax.f32 %v7760, 0.0
        %v7825 = vmax.f32 %v7761, 0.0
        %v7826 = vmax.f32 %v7762, 0.0
        %v7827 = vmax.f32 %v7763, 0.0
        %v7828 = vmax.f32 %v7764, 0.0
        %v7829 = vmax.f32 %v7765, 0.0
        %v7830 = vmax.f32 %v7766, 0.0
        %v7831 = vmax.f32 %v7767, 0.0
        %v7832 = vmax.f32 %v7768, 0.0
        %v7833 = vmax.f32 %v7769, 0.0
        %v7834 = vmax.f32 %v7770, 0.0
        %v7835 = vmax.f32 %v7771, 0.0
        %v7836 = vmax.f32 %v7772, 0.0
        %v7837 = vmax.f32 %v7773, 0.0
        %v7838 = vmax.f32 %v7774, 0.0
        %v7839 = vmax.f32 %v7775, 0.0
        %v7840 = vmax.f32 %v7776, 0.0
        %v7841 = vmax.f32 %v7777, 0.0
        %s7842 = scalar_lea.vmem [#allocation4], 48
        %7843 = vst [vmem:[%s7842 + $0x2] sm:$0xff] %v7778
        %7844 = vst [vmem:[%s7842 + $0xa] sm:$0xff] %v7779
        %7845 = vst [vmem:[%s7842 + $0x1a] sm:$0xff] %v7780
        %7846 = vst [vmem:[%s7842 + $0x22] sm:$0xff] %v7781
        %7847 = vst [vmem:[%s7842 + $0x32] sm:$0xff] %v7782
        %7848 = vst [vmem:[%s7842 + $0x3a] sm:$0xff] %v7783
        %7849 = vst [vmem:[%s7842 + $0x4a] sm:$0xff] %v7784
        %7850 = vst [vmem:[%s7842 + $0x52] sm:$0xff] %v7785
        %7851 = vst [vmem:[%s7842 + $0x62] sm:$0xff] %v7786
        %7852 = vst [vmem:[%s7842 + $0x6a] sm:$0xff] %v7787
        %7853 = vst [vmem:[%s7842 + $0x7a] sm:$0xff] %v7788
        %7854 = vst [vmem:[%s7842 + $0x82] sm:$0xff] %v7789
        %7855 = vst [vmem:[%s7842 + $0x92] sm:$0xff] %v7790
        %7856 = vst [vmem:[%s7842 + $0x9a] sm:$0xff] %v7791
        %7857 = vst [vmem:[%s7842 + $0xaa] sm:$0xff] %v7792
        %7858 = vst [vmem:[%s7842 + $0xb2] sm:$0xff] %v7793
        %7859 = vst [vmem:[%s7842 + $0xc2] sm:$0xff] %v7794
        %7860 = vst [vmem:[%s7842 + $0xca] sm:$0xff] %v7795
        %7861 = vst [vmem:[%s7842 + $0xda] sm:$0xff] %v7796
        %7862 = vst [vmem:[%s7842 + $0xe2] sm:$0xff] %v7797
        %7863 = vst [vmem:[%s7842 + $0xf2] sm:$0xff] %v7798
        %7864 = vst [vmem:[%s7842 + $0xfa] sm:$0xff] %v7799
        %7865 = vst [vmem:[%s7842 + $0x10a] sm:$0xff] %v7800
        %7866 = vst [vmem:[%s7842 + $0x112] sm:$0xff] %v7801
        %7867 = vst [vmem:[%s7842 + $0x122] sm:$0xff] %v7802
        %7868 = vst [vmem:[%s7842 + $0x12a] sm:$0xff] %v7803
        %7869 = vst [vmem:[%s7842 + $0x13a] sm:$0xff] %v7804
        %7870 = vst [vmem:[%s7842 + $0x142] sm:$0xff] %v7805
        %7871 = vst [vmem:[%s7842 + $0x152] sm:$0xff] %v7806
        %7872 = vst [vmem:[%s7842 + $0x15a] sm:$0xff] %v7807
        %7873 = vst [vmem:[%s7842 + $0x16a] sm:$0xff] %v7808
        %7874 = vst [vmem:[%s7842 + $0x172] sm:$0xff] %v7809
        %7875 = vst [vmem:[%s7842 + $0x1e2] sm:$0xff] %v7810
        %7876 = vst [vmem:[%s7842 + $0x1ea] sm:$0xff] %v7811
        %7877 = vst [vmem:[%s7842 + $0x1fa] sm:$0xff] %v7812
        %7878 = vst [vmem:[%s7842 + $0x202] sm:$0xff] %v7813
        %7879 = vst [vmem:[%s7842 + $0x212] sm:$0xff] %v7814
        %7880 = vst [vmem:[%s7842 + $0x21a] sm:$0xff] %v7815
        %7881 = vst [vmem:[%s7842 + $0x22a] sm:$0xff] %v7816
        %7882 = vst [vmem:[%s7842 + $0x232] sm:$0xff] %v7817
        %7883 = vst [vmem:[%s7842 + $0x242] sm:$0xff] %v7818
        %7884 = vst [vmem:[%s7842 + $0x24a] sm:$0xff] %v7819
        %7885 = vst [vmem:[%s7842 + $0x25a] sm:$0xff] %v7820
        %7886 = vst [vmem:[%s7842 + $0x262] sm:$0xff] %v7821
        %7887 = vst [vmem:[%s7842 + $0x272] sm:$0xff] %v7822
        %7888 = vst [vmem:[%s7842 + $0x27a] sm:$0xff] %v7823
        %7889 = vst [vmem:[%s7842 + $0x28a] sm:$0xff] %v7824
        %7890 = vst [vmem:[%s7842 + $0x292] sm:$0xff] %v7825
        %7891 = vst [vmem:[%s7842 + $0x2a2] sm:$0xff] %v7826
        %7892 = vst [vmem:[%s7842 + $0x2aa] sm:$0xff] %v7827
        %7893 = vst [vmem:[%s7842 + $0x2ba] sm:$0xff] %v7828
        %7894 = vst [vmem:[%s7842 + $0x2c2] sm:$0xff] %v7829
        %7895 = vst [vmem:[%s7842 + $0x2d2] sm:$0xff] %v7830
        %7896 = vst [vmem:[%s7842 + $0x2da] sm:$0xff] %v7831
        %7897 = vst [vmem:[%s7842 + $0x2ea] sm:$0xff] %v7832
        %7898 = vst [vmem:[%s7842 + $0x2f2] sm:$0xff] %v7833
        %7899 = vst [vmem:[%s7842 + $0x302] sm:$0xff] %v7834
        %7900 = vst [vmem:[%s7842 + $0x30a] sm:$0xff] %v7835
        %7901 = vst [vmem:[%s7842 + $0x31a] sm:$0xff] %v7836
        %7902 = vst [vmem:[%s7842 + $0x322] sm:$0xff] %v7837
        %7903 = vst [vmem:[%s7842 + $0x332] sm:$0xff] %v7838
        %7904 = vst [vmem:[%s7842 + $0x33a] sm:$0xff] %v7839
        %7905 = vst [vmem:[%s7842 + $0x34a] sm:$0xff] %v7840
        %7906 = vst [vmem:[%s7842 + $0x352] sm:$0xff] %v7841
        %v7907 = vld [vmem:[%s7842 + $0x2] sm:$0xff]
        %v7908 = vld [vmem:[%s7842 + $0xa] sm:$0xff]
        %v7909 = vld [vmem:[%s7842 + $0x1a] sm:$0xff]
        %v7910 = vld [vmem:[%s7842 + $0x22] sm:$0xff]
        %v7911 = vld [vmem:[%s7842 + $0x32] sm:$0xff]
        %v7912 = vld [vmem:[%s7842 + $0x3a] sm:$0xff]
        %v7913 = vld [vmem:[%s7842 + $0x4a] sm:$0xff]
        %v7914 = vld [vmem:[%s7842 + $0x52] sm:$0xff]
        %v7915 = vld [vmem:[%s7842 + $0x62] sm:$0xff]
        %v7916 = vld [vmem:[%s7842 + $0x6a] sm:$0xff]
        %v7917 = vld [vmem:[%s7842 + $0x7a] sm:$0xff]
        %v7918 = vld [vmem:[%s7842 + $0x82] sm:$0xff]
        %v7919 = vld [vmem:[%s7842 + $0x92] sm:$0xff]
        %v7920 = vld [vmem:[%s7842 + $0x9a] sm:$0xff]
        %v7921 = vld [vmem:[%s7842 + $0xaa] sm:$0xff]
        %v7922 = vld [vmem:[%s7842 + $0xb2] sm:$0xff]
        %v7923 = vld [vmem:[%s7842 + $0xc2] sm:$0xff]
        %v7924 = vld [vmem:[%s7842 + $0xca] sm:$0xff]
        %v7925 = vld [vmem:[%s7842 + $0xda] sm:$0xff]
        %v7926 = vld [vmem:[%s7842 + $0xe2] sm:$0xff]
        %v7927 = vld [vmem:[%s7842 + $0xf2] sm:$0xff]
        %v7928 = vld [vmem:[%s7842 + $0xfa] sm:$0xff]
        %v7929 = vld [vmem:[%s7842 + $0x10a] sm:$0xff]
        %v7930 = vld [vmem:[%s7842 + $0x112] sm:$0xff]
        %v7931 = vld [vmem:[%s7842 + $0x122] sm:$0xff]
        %v7932 = vld [vmem:[%s7842 + $0x12a] sm:$0xff]
        %v7933 = vld [vmem:[%s7842 + $0x13a] sm:$0xff]
        %v7934 = vld [vmem:[%s7842 + $0x142] sm:$0xff]
        %v7935 = vld [vmem:[%s7842 + $0x152] sm:$0xff]
        %v7936 = vld [vmem:[%s7842 + $0x15a] sm:$0xff]
        %v7937 = vld [vmem:[%s7842 + $0x16a] sm:$0xff]
        %v7938 = vld [vmem:[%s7842 + $0x172] sm:$0xff]
        %v7939 = vld [vmem:[%s7842 + $0x1e2] sm:$0xff]
        %v7940 = vld [vmem:[%s7842 + $0x1ea] sm:$0xff]
        %v7941 = vld [vmem:[%s7842 + $0x1fa] sm:$0xff]
        %v7942 = vld [vmem:[%s7842 + $0x202] sm:$0xff]
        %v7943 = vld [vmem:[%s7842 + $0x212] sm:$0xff]
        %v7944 = vld [vmem:[%s7842 + $0x21a] sm:$0xff]
        %v7945 = vld [vmem:[%s7842 + $0x22a] sm:$0xff]
        %v7946 = vld [vmem:[%s7842 + $0x232] sm:$0xff]
        %v7947 = vld [vmem:[%s7842 + $0x242] sm:$0xff]
        %v7948 = vld [vmem:[%s7842 + $0x24a] sm:$0xff]
        %v7949 = vld [vmem:[%s7842 + $0x25a] sm:$0xff]
        %v7950 = vld [vmem:[%s7842 + $0x262] sm:$0xff]
        %v7951 = vld [vmem:[%s7842 + $0x272] sm:$0xff]
        %v7952 = vld [vmem:[%s7842 + $0x27a] sm:$0xff]
        %v7953 = vld [vmem:[%s7842 + $0x28a] sm:$0xff]
        %v7954 = vld [vmem:[%s7842 + $0x292] sm:$0xff]
        %v7955 = vld [vmem:[%s7842 + $0x2a2] sm:$0xff]
        %v7956 = vld [vmem:[%s7842 + $0x2aa] sm:$0xff]
        %v7957 = vld [vmem:[%s7842 + $0x2ba] sm:$0xff]
        %v7958 = vld [vmem:[%s7842 + $0x2c2] sm:$0xff]
        %v7959 = vld [vmem:[%s7842 + $0x2d2] sm:$0xff]
        %v7960 = vld [vmem:[%s7842 + $0x2da] sm:$0xff]
        %v7961 = vld [vmem:[%s7842 + $0x2ea] sm:$0xff]
        %v7962 = vld [vmem:[%s7842 + $0x2f2] sm:$0xff]
        %v7963 = vld [vmem:[%s7842 + $0x302] sm:$0xff]
        %v7964 = vld [vmem:[%s7842 + $0x30a] sm:$0xff]
        %v7965 = vld [vmem:[%s7842 + $0x31a] sm:$0xff]
        %v7966 = vld [vmem:[%s7842 + $0x322] sm:$0xff]
        %v7967 = vld [vmem:[%s7842 + $0x332] sm:$0xff]
        %v7968 = vld [vmem:[%s7842 + $0x33a] sm:$0xff]
        %v7969 = vld [vmem:[%s7842 + $0x34a] sm:$0xff]
        %v7970 = vld [vmem:[%s7842 + $0x352] sm:$0xff]
        %v7971 = vld [vmem:[%s7842 + $0x4] sm:$0xff]
        %v7972 = vld [vmem:[%s7842 + $0xc] sm:$0xff]
        %v7973 = vld [vmem:[%s7842 + $0x1c] sm:$0xff]
        %v7974 = vld [vmem:[%s7842 + $0x24] sm:$0xff]
        %v7975 = vld [vmem:[%s7842 + $0x34] sm:$0xff]
        %v7976 = vld [vmem:[%s7842 + $0x3c] sm:$0xff]
        %v7977 = vld [vmem:[%s7842 + $0x4c] sm:$0xff]
        %v7978 = vld [vmem:[%s7842 + $0x54] sm:$0xff]
        %v7979 = vld [vmem:[%s7842 + $0x64] sm:$0xff]
        %v7980 = vld [vmem:[%s7842 + $0x6c] sm:$0xff]
        %v7981 = vld [vmem:[%s7842 + $0x7c] sm:$0xff]
        %v7982 = vld [vmem:[%s7842 + $0x84] sm:$0xff]
        %v7983 = vld [vmem:[%s7842 + $0x94] sm:$0xff]
        %v7984 = vld [vmem:[%s7842 + $0x9c] sm:$0xff]
        %v7985 = vld [vmem:[%s7842 + $0xac] sm:$0xff]
        %v7986 = vld [vmem:[%s7842 + $0xb4] sm:$0xff]
        %v7987 = vld [vmem:[%s7842 + $0xc4] sm:$0xff]
        %v7988 = vld [vmem:[%s7842 + $0xcc] sm:$0xff]
        %v7989 = vld [vmem:[%s7842 + $0xdc] sm:$0xff]
        %v7990 = vld [vmem:[%s7842 + $0xe4] sm:$0xff]
        %v7991 = vld [vmem:[%s7842 + $0xf4] sm:$0xff]
        %v7992 = vld [vmem:[%s7842 + $0xfc] sm:$0xff]
        %v7993 = vld [vmem:[%s7842 + $0x10c] sm:$0xff]
        %v7994 = vld [vmem:[%s7842 + $0x114] sm:$0xff]
        %v7995 = vld [vmem:[%s7842 + $0x124] sm:$0xff]
        %v7996 = vld [vmem:[%s7842 + $0x12c] sm:$0xff]
        %v7997 = vld [vmem:[%s7842 + $0x13c] sm:$0xff]
        %v7998 = vld [vmem:[%s7842 + $0x144] sm:$0xff]
        %v7999 = vld [vmem:[%s7842 + $0x154] sm:$0xff]
        %v8000 = vld [vmem:[%s7842 + $0x15c] sm:$0xff]
        %v8001 = vld [vmem:[%s7842 + $0x16c] sm:$0xff]
        %v8002 = vld [vmem:[%s7842 + $0x174] sm:$0xff]
        %v8003 = vld [vmem:[%s7842 + $0x1e4] sm:$0xff]
        %v8004 = vld [vmem:[%s7842 + $0x1ec] sm:$0xff]
        %v8005 = vld [vmem:[%s7842 + $0x1fc] sm:$0xff]
        %v8006 = vld [vmem:[%s7842 + $0x204] sm:$0xff]
        %v8007 = vld [vmem:[%s7842 + $0x214] sm:$0xff]
        %v8008 = vld [vmem:[%s7842 + $0x21c] sm:$0xff]
        %v8009 = vld [vmem:[%s7842 + $0x22c] sm:$0xff]
        %v8010 = vld [vmem:[%s7842 + $0x234] sm:$0xff]
        %v8011 = vld [vmem:[%s7842 + $0x244] sm:$0xff]
        %v8012 = vld [vmem:[%s7842 + $0x24c] sm:$0xff]
        %v8013 = vld [vmem:[%s7842 + $0x25c] sm:$0xff]
        %v8014 = vld [vmem:[%s7842 + $0x264] sm:$0xff]
        %v8015 = vld [vmem:[%s7842 + $0x274] sm:$0xff]
        %v8016 = vld [vmem:[%s7842 + $0x27c] sm:$0xff]
        %v8017 = vld [vmem:[%s7842 + $0x28c] sm:$0xff]
        %v8018 = vld [vmem:[%s7842 + $0x294] sm:$0xff]
        %v8019 = vld [vmem:[%s7842 + $0x2a4] sm:$0xff]
        %v8020 = vld [vmem:[%s7842 + $0x2ac] sm:$0xff]
        %v8021 = vld [vmem:[%s7842 + $0x2bc] sm:$0xff]
        %v8022 = vld [vmem:[%s7842 + $0x2c4] sm:$0xff]
        %v8023 = vld [vmem:[%s7842 + $0x2d4] sm:$0xff]
        %v8024 = vld [vmem:[%s7842 + $0x2dc] sm:$0xff]
        %v8025 = vld [vmem:[%s7842 + $0x2ec] sm:$0xff]
        %v8026 = vld [vmem:[%s7842 + $0x2f4] sm:$0xff]
        %v8027 = vld [vmem:[%s7842 + $0x304] sm:$0xff]
        %v8028 = vld [vmem:[%s7842 + $0x30c] sm:$0xff]
        %v8029 = vld [vmem:[%s7842 + $0x31c] sm:$0xff]
        %v8030 = vld [vmem:[%s7842 + $0x324] sm:$0xff]
        %v8031 = vld [vmem:[%s7842 + $0x334] sm:$0xff]
        %v8032 = vld [vmem:[%s7842 + $0x33c] sm:$0xff]
        %v8033 = vld [vmem:[%s7842 + $0x34c] sm:$0xff]
        %v8034 = vld [vmem:[%s7842 + $0x354] sm:$0xff]
        %v8035 = vmax.f32 %v7907, %v7971
        %v8036 = vmax.f32 %v7908, %v7972
        %v8037 = vmax.f32 %v7909, %v7973
        %v8038 = vmax.f32 %v7910, %v7974
        %v8039 = vmax.f32 %v7911, %v7975
        %v8040 = vmax.f32 %v7912, %v7976
        %v8041 = vmax.f32 %v7913, %v7977
        %v8042 = vmax.f32 %v7914, %v7978
        %v8043 = vmax.f32 %v7915, %v7979
        %v8044 = vmax.f32 %v7916, %v7980
        %v8045 = vmax.f32 %v7917, %v7981
        %v8046 = vmax.f32 %v7918, %v7982
        %v8047 = vmax.f32 %v7919, %v7983
        %v8048 = vmax.f32 %v7920, %v7984
        %v8049 = vmax.f32 %v7921, %v7985
        %v8050 = vmax.f32 %v7922, %v7986
        %v8051 = vmax.f32 %v7923, %v7987
        %v8052 = vmax.f32 %v7924, %v7988
        %v8053 = vmax.f32 %v7925, %v7989
        %v8054 = vmax.f32 %v7926, %v7990
        %v8055 = vmax.f32 %v7927, %v7991
        %v8056 = vmax.f32 %v7928, %v7992
        %v8057 = vmax.f32 %v7929, %v7993
        %v8058 = vmax.f32 %v7930, %v7994
        %v8059 = vmax.f32 %v7931, %v7995
        %v8060 = vmax.f32 %v7932, %v7996
        %v8061 = vmax.f32 %v7933, %v7997
        %v8062 = vmax.f32 %v7934, %v7998
        %v8063 = vmax.f32 %v7935, %v7999
        %v8064 = vmax.f32 %v7936, %v8000
        %v8065 = vmax.f32 %v7937, %v8001
        %v8066 = vmax.f32 %v7938, %v8002
        %v8067 = vmax.f32 %v7939, %v8003
        %v8068 = vmax.f32 %v7940, %v8004
        %v8069 = vmax.f32 %v7941, %v8005
        %v8070 = vmax.f32 %v7942, %v8006
        %v8071 = vmax.f32 %v7943, %v8007
        %v8072 = vmax.f32 %v7944, %v8008
        %v8073 = vmax.f32 %v7945, %v8009
        %v8074 = vmax.f32 %v7946, %v8010
        %v8075 = vmax.f32 %v7947, %v8011
        %v8076 = vmax.f32 %v7948, %v8012
        %v8077 = vmax.f32 %v7949, %v8013
        %v8078 = vmax.f32 %v7950, %v8014
        %v8079 = vmax.f32 %v7951, %v8015
        %v8080 = vmax.f32 %v7952, %v8016
        %v8081 = vmax.f32 %v7953, %v8017
        %v8082 = vmax.f32 %v7954, %v8018
        %v8083 = vmax.f32 %v7955, %v8019
        %v8084 = vmax.f32 %v7956, %v8020
        %v8085 = vmax.f32 %v7957, %v8021
        %v8086 = vmax.f32 %v7958, %v8022
        %v8087 = vmax.f32 %v7959, %v8023
        %v8088 = vmax.f32 %v7960, %v8024
        %v8089 = vmax.f32 %v7961, %v8025
        %v8090 = vmax.f32 %v7962, %v8026
        %v8091 = vmax.f32 %v7963, %v8027
        %v8092 = vmax.f32 %v7964, %v8028
        %v8093 = vmax.f32 %v7965, %v8029
        %v8094 = vmax.f32 %v7966, %v8030
        %v8095 = vmax.f32 %v7967, %v8031
        %v8096 = vmax.f32 %v7968, %v8032
        %v8097 = vmax.f32 %v7969, %v8033
        %v8098 = vmax.f32 %v7970, %v8034
        %s8099 = scalar_lea.vmem [#allocation4], 96
        %v8100 = vld [vmem:[%s8099 + $0x2] sm:$0xff]
        %v8101 = vld [vmem:[%s8099 + $0xa] sm:$0xff]
        %v8102 = vld [vmem:[%s8099 + $0x1a] sm:$0xff]
        %v8103 = vld [vmem:[%s8099 + $0x22] sm:$0xff]
        %v8104 = vld [vmem:[%s8099 + $0x32] sm:$0xff]
        %v8105 = vld [vmem:[%s8099 + $0x3a] sm:$0xff]
        %v8106 = vld [vmem:[%s8099 + $0x4a] sm:$0xff]
        %v8107 = vld [vmem:[%s8099 + $0x52] sm:$0xff]
        %v8108 = vld [vmem:[%s8099 + $0x62] sm:$0xff]
        %v8109 = vld [vmem:[%s8099 + $0x6a] sm:$0xff]
        %v8110 = vld [vmem:[%s8099 + $0x7a] sm:$0xff]
        %v8111 = vld [vmem:[%s8099 + $0x82] sm:$0xff]
        %v8112 = vld [vmem:[%s8099 + $0x92] sm:$0xff]
        %v8113 = vld [vmem:[%s8099 + $0x9a] sm:$0xff]
        %v8114 = vld [vmem:[%s8099 + $0xaa] sm:$0xff]
        %v8115 = vld [vmem:[%s8099 + $0xb2] sm:$0xff]
        %v8116 = vld [vmem:[%s8099 + $0xc2] sm:$0xff]
        %v8117 = vld [vmem:[%s8099 + $0xca] sm:$0xff]
        %v8118 = vld [vmem:[%s8099 + $0xda] sm:$0xff]
        %v8119 = vld [vmem:[%s8099 + $0xe2] sm:$0xff]
        %v8120 = vld [vmem:[%s8099 + $0xf2] sm:$0xff]
        %v8121 = vld [vmem:[%s8099 + $0xfa] sm:$0xff]
        %v8122 = vld [vmem:[%s8099 + $0x10a] sm:$0xff]
        %v8123 = vld [vmem:[%s8099 + $0x112] sm:$0xff]
        %v8124 = vld [vmem:[%s8099 + $0x122] sm:$0xff]
        %v8125 = vld [vmem:[%s8099 + $0x12a] sm:$0xff]
        %v8126 = vld [vmem:[%s8099 + $0x13a] sm:$0xff]
        %v8127 = vld [vmem:[%s8099 + $0x142] sm:$0xff]
        %v8128 = vld [vmem:[%s8099 + $0x152] sm:$0xff]
        %v8129 = vld [vmem:[%s8099 + $0x15a] sm:$0xff]
        %v8130 = vld [vmem:[%s8099 + $0x16a] sm:$0xff]
        %v8131 = vld [vmem:[%s8099 + $0x172] sm:$0xff]
        %v8132 = vld [vmem:[%s8099 + $0x1e2] sm:$0xff]
        %v8133 = vld [vmem:[%s8099 + $0x1ea] sm:$0xff]
        %v8134 = vld [vmem:[%s8099 + $0x1fa] sm:$0xff]
        %v8135 = vld [vmem:[%s8099 + $0x202] sm:$0xff]
        %v8136 = vld [vmem:[%s8099 + $0x212] sm:$0xff]
        %v8137 = vld [vmem:[%s8099 + $0x21a] sm:$0xff]
        %v8138 = vld [vmem:[%s8099 + $0x22a] sm:$0xff]
        %v8139 = vld [vmem:[%s8099 + $0x232] sm:$0xff]
        %v8140 = vld [vmem:[%s8099 + $0x242] sm:$0xff]
        %v8141 = vld [vmem:[%s8099 + $0x24a] sm:$0xff]
        %v8142 = vld [vmem:[%s8099 + $0x25a] sm:$0xff]
        %v8143 = vld [vmem:[%s8099 + $0x262] sm:$0xff]
        %v8144 = vld [vmem:[%s8099 + $0x272] sm:$0xff]
        %v8145 = vld [vmem:[%s8099 + $0x27a] sm:$0xff]
        %v8146 = vld [vmem:[%s8099 + $0x28a] sm:$0xff]
        %v8147 = vld [vmem:[%s8099 + $0x292] sm:$0xff]
        %v8148 = vld [vmem:[%s8099 + $0x2a2] sm:$0xff]
        %v8149 = vld [vmem:[%s8099 + $0x2aa] sm:$0xff]
        %v8150 = vld [vmem:[%s8099 + $0x2ba] sm:$0xff]
        %v8151 = vld [vmem:[%s8099 + $0x2c2] sm:$0xff]
        %v8152 = vld [vmem:[%s8099 + $0x2d2] sm:$0xff]
        %v8153 = vld [vmem:[%s8099 + $0x2da] sm:$0xff]
        %v8154 = vld [vmem:[%s8099 + $0x2ea] sm:$0xff]
        %v8155 = vld [vmem:[%s8099 + $0x2f2] sm:$0xff]
        %v8156 = vld [vmem:[%s8099 + $0x302] sm:$0xff]
        %v8157 = vld [vmem:[%s8099 + $0x30a] sm:$0xff]
        %v8158 = vld [vmem:[%s8099 + $0x31a] sm:$0xff]
        %v8159 = vld [vmem:[%s8099 + $0x322] sm:$0xff]
        %v8160 = vld [vmem:[%s8099 + $0x332] sm:$0xff]
        %v8161 = vld [vmem:[%s8099 + $0x33a] sm:$0xff]
        %v8162 = vld [vmem:[%s8099 + $0x34a] sm:$0xff]
        %v8163 = vld [vmem:[%s8099 + $0x352] sm:$0xff]
        %v8164 = vmax.f32 %v8035, %v8100
        %v8165 = vmax.f32 %v8036, %v8101
        %v8166 = vmax.f32 %v8037, %v8102
        %v8167 = vmax.f32 %v8038, %v8103
        %v8168 = vmax.f32 %v8039, %v8104
        %v8169 = vmax.f32 %v8040, %v8105
        %v8170 = vmax.f32 %v8041, %v8106
        %v8171 = vmax.f32 %v8042, %v8107
        %v8172 = vmax.f32 %v8043, %v8108
        %v8173 = vmax.f32 %v8044, %v8109
        %v8174 = vmax.f32 %v8045, %v8110
        %v8175 = vmax.f32 %v8046, %v8111
        %v8176 = vmax.f32 %v8047, %v8112
        %v8177 = vmax.f32 %v8048, %v8113
        %v8178 = vmax.f32 %v8049, %v8114
        %v8179 = vmax.f32 %v8050, %v8115
        %v8180 = vmax.f32 %v8051, %v8116
        %v8181 = vmax.f32 %v8052, %v8117
        %v8182 = vmax.f32 %v8053, %v8118
        %v8183 = vmax.f32 %v8054, %v8119
        %v8184 = vmax.f32 %v8055, %v8120
        %v8185 = vmax.f32 %v8056, %v8121
        %v8186 = vmax.f32 %v8057, %v8122
        %v8187 = vmax.f32 %v8058, %v8123
        %v8188 = vmax.f32 %v8059, %v8124
        %v8189 = vmax.f32 %v8060, %v8125
        %v8190 = vmax.f32 %v8061, %v8126
        %v8191 = vmax.f32 %v8062, %v8127
        %v8192 = vmax.f32 %v8063, %v8128
        %v8193 = vmax.f32 %v8064, %v8129
        %v8194 = vmax.f32 %v8065, %v8130
        %v8195 = vmax.f32 %v8066, %v8131
        %v8196 = vmax.f32 %v8067, %v8132
        %v8197 = vmax.f32 %v8068, %v8133
        %v8198 = vmax.f32 %v8069, %v8134
        %v8199 = vmax.f32 %v8070, %v8135
        %v8200 = vmax.f32 %v8071, %v8136
        %v8201 = vmax.f32 %v8072, %v8137
        %v8202 = vmax.f32 %v8073, %v8138
        %v8203 = vmax.f32 %v8074, %v8139
        %v8204 = vmax.f32 %v8075, %v8140
        %v8205 = vmax.f32 %v8076, %v8141
        %v8206 = vmax.f32 %v8077, %v8142
        %v8207 = vmax.f32 %v8078, %v8143
        %v8208 = vmax.f32 %v8079, %v8144
        %v8209 = vmax.f32 %v8080, %v8145
        %v8210 = vmax.f32 %v8081, %v8146
        %v8211 = vmax.f32 %v8082, %v8147
        %v8212 = vmax.f32 %v8083, %v8148
        %v8213 = vmax.f32 %v8084, %v8149
        %v8214 = vmax.f32 %v8085, %v8150
        %v8215 = vmax.f32 %v8086, %v8151
        %v8216 = vmax.f32 %v8087, %v8152
        %v8217 = vmax.f32 %v8088, %v8153
        %v8218 = vmax.f32 %v8089, %v8154
        %v8219 = vmax.f32 %v8090, %v8155
        %v8220 = vmax.f32 %v8091, %v8156
        %v8221 = vmax.f32 %v8092, %v8157
        %v8222 = vmax.f32 %v8093, %v8158
        %v8223 = vmax.f32 %v8094, %v8159
        %v8224 = vmax.f32 %v8095, %v8160
        %v8225 = vmax.f32 %v8096, %v8161
        %v8226 = vmax.f32 %v8097, %v8162
        %v8227 = vmax.f32 %v8098, %v8163
        %v8228 = vld [vmem:[%s8099 + $0x4] sm:$0xff]
        %v8229 = vld [vmem:[%s8099 + $0xc] sm:$0xff]
        %v8230 = vld [vmem:[%s8099 + $0x1c] sm:$0xff]
        %v8231 = vld [vmem:[%s8099 + $0x24] sm:$0xff]
        %v8232 = vld [vmem:[%s8099 + $0x34] sm:$0xff]
        %v8233 = vld [vmem:[%s8099 + $0x3c] sm:$0xff]
        %v8234 = vld [vmem:[%s8099 + $0x4c] sm:$0xff]
        %v8235 = vld [vmem:[%s8099 + $0x54] sm:$0xff]
        %v8236 = vld [vmem:[%s8099 + $0x64] sm:$0xff]
        %v8237 = vld [vmem:[%s8099 + $0x6c] sm:$0xff]
        %v8238 = vld [vmem:[%s8099 + $0x7c] sm:$0xff]
        %v8239 = vld [vmem:[%s8099 + $0x84] sm:$0xff]
        %v8240 = vld [vmem:[%s8099 + $0x94] sm:$0xff]
        %v8241 = vld [vmem:[%s8099 + $0x9c] sm:$0xff]
        %v8242 = vld [vmem:[%s8099 + $0xac] sm:$0xff]
        %v8243 = vld [vmem:[%s8099 + $0xb4] sm:$0xff]
        %v8244 = vld [vmem:[%s8099 + $0xc4] sm:$0xff]
        %v8245 = vld [vmem:[%s8099 + $0xcc] sm:$0xff]
        %v8246 = vld [vmem:[%s8099 + $0xdc] sm:$0xff]
        %v8247 = vld [vmem:[%s8099 + $0xe4] sm:$0xff]
        %v8248 = vld [vmem:[%s8099 + $0xf4] sm:$0xff]
        %v8249 = vld [vmem:[%s8099 + $0xfc] sm:$0xff]
        %v8250 = vld [vmem:[%s8099 + $0x10c] sm:$0xff]
        %v8251 = vld [vmem:[%s8099 + $0x114] sm:$0xff]
        %v8252 = vld [vmem:[%s8099 + $0x124] sm:$0xff]
        %v8253 = vld [vmem:[%s8099 + $0x12c] sm:$0xff]
        %v8254 = vld [vmem:[%s8099 + $0x13c] sm:$0xff]
        %v8255 = vld [vmem:[%s8099 + $0x144] sm:$0xff]
        %v8256 = vld [vmem:[%s8099 + $0x154] sm:$0xff]
        %v8257 = vld [vmem:[%s8099 + $0x15c] sm:$0xff]
        %v8258 = vld [vmem:[%s8099 + $0x16c] sm:$0xff]
        %v8259 = vld [vmem:[%s8099 + $0x174] sm:$0xff]
        %v8260 = vld [vmem:[%s8099 + $0x1e4] sm:$0xff]
        %v8261 = vld [vmem:[%s8099 + $0x1ec] sm:$0xff]
        %v8262 = vld [vmem:[%s8099 + $0x1fc] sm:$0xff]
        %v8263 = vld [vmem:[%s8099 + $0x204] sm:$0xff]
        %v8264 = vld [vmem:[%s8099 + $0x214] sm:$0xff]
        %v8265 = vld [vmem:[%s8099 + $0x21c] sm:$0xff]
        %v8266 = vld [vmem:[%s8099 + $0x22c] sm:$0xff]
        %v8267 = vld [vmem:[%s8099 + $0x234] sm:$0xff]
        %v8268 = vld [vmem:[%s8099 + $0x244] sm:$0xff]
        %v8269 = vld [vmem:[%s8099 + $0x24c] sm:$0xff]
        %v8270 = vld [vmem:[%s8099 + $0x25c] sm:$0xff]
        %v8271 = vld [vmem:[%s8099 + $0x264] sm:$0xff]
        %v8272 = vld [vmem:[%s8099 + $0x274] sm:$0xff]
        %v8273 = vld [vmem:[%s8099 + $0x27c] sm:$0xff]
        %v8274 = vld [vmem:[%s8099 + $0x28c] sm:$0xff]
        %v8275 = vld [vmem:[%s8099 + $0x294] sm:$0xff]
        %v8276 = vld [vmem:[%s8099 + $0x2a4] sm:$0xff]
        %v8277 = vld [vmem:[%s8099 + $0x2ac] sm:$0xff]
        %v8278 = vld [vmem:[%s8099 + $0x2bc] sm:$0xff]
        %v8279 = vld [vmem:[%s8099 + $0x2c4] sm:$0xff]
        %v8280 = vld [vmem:[%s8099 + $0x2d4] sm:$0xff]
        %v8281 = vld [vmem:[%s8099 + $0x2dc] sm:$0xff]
        %v8282 = vld [vmem:[%s8099 + $0x2ec] sm:$0xff]
        %v8283 = vld [vmem:[%s8099 + $0x2f4] sm:$0xff]
        %v8284 = vld [vmem:[%s8099 + $0x304] sm:$0xff]
        %v8285 = vld [vmem:[%s8099 + $0x30c] sm:$0xff]
        %v8286 = vld [vmem:[%s8099 + $0x31c] sm:$0xff]
        %v8287 = vld [vmem:[%s8099 + $0x324] sm:$0xff]
        %v8288 = vld [vmem:[%s8099 + $0x334] sm:$0xff]
        %v8289 = vld [vmem:[%s8099 + $0x33c] sm:$0xff]
        %v8290 = vld [vmem:[%s8099 + $0x34c] sm:$0xff]
        %v8291 = vld [vmem:[%s8099 + $0x354] sm:$0xff]
        %v8292 = vmax.f32 %v8164, %v8228
        %v8293 = vmax.f32 %v8165, %v8229
        %v8294 = vmax.f32 %v8166, %v8230
        %v8295 = vmax.f32 %v8167, %v8231
        %v8296 = vmax.f32 %v8168, %v8232
        %v8297 = vmax.f32 %v8169, %v8233
        %v8298 = vmax.f32 %v8170, %v8234
        %v8299 = vmax.f32 %v8171, %v8235
        %v8300 = vmax.f32 %v8172, %v8236
        %v8301 = vmax.f32 %v8173, %v8237
        %v8302 = vmax.f32 %v8174, %v8238
        %v8303 = vmax.f32 %v8175, %v8239
        %v8304 = vmax.f32 %v8176, %v8240
        %v8305 = vmax.f32 %v8177, %v8241
        %v8306 = vmax.f32 %v8178, %v8242
        %v8307 = vmax.f32 %v8179, %v8243
        %v8308 = vmax.f32 %v8180, %v8244
        %v8309 = vmax.f32 %v8181, %v8245
        %v8310 = vmax.f32 %v8182, %v8246
        %v8311 = vmax.f32 %v8183, %v8247
        %v8312 = vmax.f32 %v8184, %v8248
        %v8313 = vmax.f32 %v8185, %v8249
        %v8314 = vmax.f32 %v8186, %v8250
        %v8315 = vmax.f32 %v8187, %v8251
        %v8316 = vmax.f32 %v8188, %v8252
        %v8317 = vmax.f32 %v8189, %v8253
        %v8318 = vmax.f32 %v8190, %v8254
        %v8319 = vmax.f32 %v8191, %v8255
        %v8320 = vmax.f32 %v8192, %v8256
        %v8321 = vmax.f32 %v8193, %v8257
        %v8322 = vmax.f32 %v8194, %v8258
        %v8323 = vmax.f32 %v8195, %v8259
        %v8324 = vmax.f32 %v8196, %v8260
        %v8325 = vmax.f32 %v8197, %v8261
        %v8326 = vmax.f32 %v8198, %v8262
        %v8327 = vmax.f32 %v8199, %v8263
        %v8328 = vmax.f32 %v8200, %v8264
        %v8329 = vmax.f32 %v8201, %v8265
        %v8330 = vmax.f32 %v8202, %v8266
        %v8331 = vmax.f32 %v8203, %v8267
        %v8332 = vmax.f32 %v8204, %v8268
        %v8333 = vmax.f32 %v8205, %v8269
        %v8334 = vmax.f32 %v8206, %v8270
        %v8335 = vmax.f32 %v8207, %v8271
        %v8336 = vmax.f32 %v8208, %v8272
        %v8337 = vmax.f32 %v8209, %v8273
        %v8338 = vmax.f32 %v8210, %v8274
        %v8339 = vmax.f32 %v8211, %v8275
        %v8340 = vmax.f32 %v8212, %v8276
        %v8341 = vmax.f32 %v8213, %v8277
        %v8342 = vmax.f32 %v8214, %v8278
        %v8343 = vmax.f32 %v8215, %v8279
        %v8344 = vmax.f32 %v8216, %v8280
        %v8345 = vmax.f32 %v8217, %v8281
        %v8346 = vmax.f32 %v8218, %v8282
        %v8347 = vmax.f32 %v8219, %v8283
        %v8348 = vmax.f32 %v8220, %v8284
        %v8349 = vmax.f32 %v8221, %v8285
        %v8350 = vmax.f32 %v8222, %v8286
        %v8351 = vmax.f32 %v8223, %v8287
        %v8352 = vmax.f32 %v8224, %v8288
        %v8353 = vmax.f32 %v8225, %v8289
        %v8354 = vmax.f32 %v8226, %v8290
        %v8355 = vmax.f32 %v8227, %v8291
        %s8356 = scalar_lea.vmem [#allocation5], 48
        %8357 = vst [vmem:[%s8356 + $0x2] sm:$0xff] %v8292
        %8358 = vst [vmem:[%s8356 + $0xa] sm:$0xff] %v8293
        %8359 = vst [vmem:[%s8356 + $0x1a] sm:$0xff] %v8294
        %8360 = vst [vmem:[%s8356 + $0x22] sm:$0xff] %v8295
        %8361 = vst [vmem:[%s8356 + $0x32] sm:$0xff] %v8296
        %8362 = vst [vmem:[%s8356 + $0x3a] sm:$0xff] %v8297
        %8363 = vst [vmem:[%s8356 + $0x4a] sm:$0xff] %v8298
        %8364 = vst [vmem:[%s8356 + $0x52] sm:$0xff] %v8299
        %8365 = vst [vmem:[%s8356 + $0x62] sm:$0xff] %v8300
        %8366 = vst [vmem:[%s8356 + $0x6a] sm:$0xff] %v8301
        %8367 = vst [vmem:[%s8356 + $0x7a] sm:$0xff] %v8302
        %8368 = vst [vmem:[%s8356 + $0x82] sm:$0xff] %v8303
        %8369 = vst [vmem:[%s8356 + $0x92] sm:$0xff] %v8304
        %8370 = vst [vmem:[%s8356 + $0x9a] sm:$0xff] %v8305
        %8371 = vst [vmem:[%s8356 + $0xaa] sm:$0xff] %v8306
        %8372 = vst [vmem:[%s8356 + $0xb2] sm:$0xff] %v8307
        %8373 = vst [vmem:[%s8356 + $0xc2] sm:$0xff] %v8308
        %8374 = vst [vmem:[%s8356 + $0xca] sm:$0xff] %v8309
        %8375 = vst [vmem:[%s8356 + $0xda] sm:$0xff] %v8310
        %8376 = vst [vmem:[%s8356 + $0xe2] sm:$0xff] %v8311
        %8377 = vst [vmem:[%s8356 + $0xf2] sm:$0xff] %v8312
        %8378 = vst [vmem:[%s8356 + $0xfa] sm:$0xff] %v8313
        %8379 = vst [vmem:[%s8356 + $0x10a] sm:$0xff] %v8314
        %8380 = vst [vmem:[%s8356 + $0x112] sm:$0xff] %v8315
        %8381 = vst [vmem:[%s8356 + $0x122] sm:$0xff] %v8316
        %8382 = vst [vmem:[%s8356 + $0x12a] sm:$0xff] %v8317
        %8383 = vst [vmem:[%s8356 + $0x13a] sm:$0xff] %v8318
        %8384 = vst [vmem:[%s8356 + $0x142] sm:$0xff] %v8319
        %8385 = vst [vmem:[%s8356 + $0x152] sm:$0xff] %v8320
        %8386 = vst [vmem:[%s8356 + $0x15a] sm:$0xff] %v8321
        %8387 = vst [vmem:[%s8356 + $0x16a] sm:$0xff] %v8322
        %8388 = vst [vmem:[%s8356 + $0x172] sm:$0xff] %v8323
        %8389 = vst [vmem:[%s8356 + $0x1e2] sm:$0xff] %v8324
        %8390 = vst [vmem:[%s8356 + $0x1ea] sm:$0xff] %v8325
        %8391 = vst [vmem:[%s8356 + $0x1fa] sm:$0xff] %v8326
        %8392 = vst [vmem:[%s8356 + $0x202] sm:$0xff] %v8327
        %8393 = vst [vmem:[%s8356 + $0x212] sm:$0xff] %v8328
        %8394 = vst [vmem:[%s8356 + $0x21a] sm:$0xff] %v8329
        %8395 = vst [vmem:[%s8356 + $0x22a] sm:$0xff] %v8330
        %8396 = vst [vmem:[%s8356 + $0x232] sm:$0xff] %v8331
        %8397 = vst [vmem:[%s8356 + $0x242] sm:$0xff] %v8332
        %8398 = vst [vmem:[%s8356 + $0x24a] sm:$0xff] %v8333
        %8399 = vst [vmem:[%s8356 + $0x25a] sm:$0xff] %v8334
        %8400 = vst [vmem:[%s8356 + $0x262] sm:$0xff] %v8335
        %8401 = vst [vmem:[%s8356 + $0x272] sm:$0xff] %v8336
        %8402 = vst [vmem:[%s8356 + $0x27a] sm:$0xff] %v8337
        %8403 = vst [vmem:[%s8356 + $0x28a] sm:$0xff] %v8338
        %8404 = vst [vmem:[%s8356 + $0x292] sm:$0xff] %v8339
        %8405 = vst [vmem:[%s8356 + $0x2a2] sm:$0xff] %v8340
        %8406 = vst [vmem:[%s8356 + $0x2aa] sm:$0xff] %v8341
        %8407 = vst [vmem:[%s8356 + $0x2ba] sm:$0xff] %v8342
        %8408 = vst [vmem:[%s8356 + $0x2c2] sm:$0xff] %v8343
        %8409 = vst [vmem:[%s8356 + $0x2d2] sm:$0xff] %v8344
        %8410 = vst [vmem:[%s8356 + $0x2da] sm:$0xff] %v8345
        %8411 = vst [vmem:[%s8356 + $0x2ea] sm:$0xff] %v8346
        %8412 = vst [vmem:[%s8356 + $0x2f2] sm:$0xff] %v8347
        %8413 = vst [vmem:[%s8356 + $0x302] sm:$0xff] %v8348
        %8414 = vst [vmem:[%s8356 + $0x30a] sm:$0xff] %v8349
        %8415 = vst [vmem:[%s8356 + $0x31a] sm:$0xff] %v8350
        %8416 = vst [vmem:[%s8356 + $0x322] sm:$0xff] %v8351
        %8417 = vst [vmem:[%s8356 + $0x332] sm:$0xff] %v8352
        %8418 = vst [vmem:[%s8356 + $0x33a] sm:$0xff] %v8353
        %8419 = vst [vmem:[%s8356 + $0x34a] sm:$0xff] %v8354
        %8420 = vst [vmem:[%s8356 + $0x352] sm:$0xff] %v8355
        %v8421 = vld [vmem:[%s396] sm:$0x1]
        %v8423 = vperm.slane %v8421, 0
        %v8425 = vadd.f32 %v8423, 0.0
        %v8426 = vld [vmem:[%s8356 + $0x2] sm:$0x1]
        %v8427 = vld [vmem:[%s8356 + $0x1e2] sm:$0x1]
        %v8428 = vld [vmem:[%s393] sm:$0xff]
        %v8429 = vld [vmem:[%s393 + $0x8] sm:$0xff]
        %v8430 = vld [vmem:[%s393 + $0x10] sm:$0xff]
        %v8431 = vld [vmem:[%s393 + $0x18] sm:$0xff]
        %v8432 = vld [vmem:[%s393 + $0x20] sm:$0xff]
        %v8433 = vld [vmem:[%s393 + $0x28] sm:$0xff]
        %v8434 = vld [vmem:[%s393 + $0x30] sm:$0xff]
        %v8435 = vld [vmem:[%s393 + $0x38] sm:$0xff]
        %v8436 = vld [vmem:[%s393 + $0x40] sm:$0xff]
        %v8437 = vld [vmem:[%s393 + $0x48] sm:$0xff]
        %v8438 = vld [vmem:[%s393 + $0x50] sm:$0xff]
        %v8439 = vld [vmem:[%s393 + $0x58] sm:$0xff]
        %v8440 = vld [vmem:[%s393 + $0x60] sm:$0xff]
        %v8441 = vld [vmem:[%s393 + $0x68] sm:$0xff]
        %v8442 = vld [vmem:[%s393 + $0x70] sm:$0xff]
        %v8443 = vld [vmem:[%s393 + $0x78] sm:$0xff]
        %v8446 = vrot.slane %v8427, 7
        %vm8447 = vcmask 1041409
        %v8448 = vsel %vm8447, %v8446, %v8426
        %8450 = vmatpush.msra.mxu0 %v8443
        %8451 = vmatpush.msra.mxu0 %v8442
        %8452 = vmatpush.msra.mxu0 %v8441
        %8453 = vmatpush.msra.mxu0 %v8440
        %8454 = vmatpush.msra.mxu0 %v8439
        %8455 = vmatpush.msra.mxu0 %v8438
        %8456 = vmatpush.msra.mxu0 %v8437
        %8457 = vmatpush.msra.mxu0 %v8436
        %8458 = vmatpush.msra.mxu0 %v8435
        %8459 = vmatpush.msra.mxu0 %v8434
        %8460 = vmatpush.msra.mxu0 %v8433
        %8461 = vmatpush.msra.mxu0 %v8432
        %8462 = vmatpush.msra.mxu0 %v8431
        %8463 = vmatpush.msra.mxu0 %v8430
        %8464 = vmatpush.msra.mxu0 %v8429
        %8465 = vmatpush.msra.mxu0 %v8428
        %8466 = vmatmul.f32.gmra.mxu0 %v8448
        %v8467 = vpop.f32.mrf.mxu0
        %v8468 = vadd.f32 0.0, %v8467
        %8469 = vdwg.mxu0
        %v8470 = vadd.f32 %v8425, %v8468
        %v8471 = vld [vmem:[%s8356 + $0x6] sm:$0x1]
        %v8472 = vld [vmem:[%s8356 + $0x1e6] sm:$0x1]
        %s8473 = scalar_lea.vmem %s393, 128
        %v8474 = vld [vmem:[%s8473] sm:$0xff]
        %v8475 = vld [vmem:[%s8473 + $0x8] sm:$0xff]
        %v8476 = vld [vmem:[%s8473 + $0x10] sm:$0xff]
        %v8477 = vld [vmem:[%s8473 + $0x18] sm:$0xff]
        %v8478 = vld [vmem:[%s8473 + $0x20] sm:$0xff]
        %v8479 = vld [vmem:[%s8473 + $0x28] sm:$0xff]
        %v8480 = vld [vmem:[%s8473 + $0x30] sm:$0xff]
        %v8481 = vld [vmem:[%s8473 + $0x38] sm:$0xff]
        %v8482 = vld [vmem:[%s8473 + $0x40] sm:$0xff]
        %v8483 = vld [vmem:[%s8473 + $0x48] sm:$0xff]
        %v8484 = vld [vmem:[%s8473 + $0x50] sm:$0xff]
        %v8485 = vld [vmem:[%s8473 + $0x58] sm:$0xff]
        %v8486 = vld [vmem:[%s8473 + $0x60] sm:$0xff]
        %v8487 = vld [vmem:[%s8473 + $0x68] sm:$0xff]
        %v8488 = vld [vmem:[%s8473 + $0x70] sm:$0xff]
        %v8489 = vld [vmem:[%s8473 + $0x78] sm:$0xff]
        %v8492 = vrot.slane %v8472, 7
        %v8493 = vsel %vm8447, %v8492, %v8471
        %8495 = vmatpush.msra.mxu0 %v8489
        %8496 = vmatpush.msra.mxu0 %v8488
        %8497 = vmatpush.msra.mxu0 %v8487
        %8498 = vmatpush.msra.mxu0 %v8486
        %8499 = vmatpush.msra.mxu0 %v8485
        %8500 = vmatpush.msra.mxu0 %v8484
        %8501 = vmatpush.msra.mxu0 %v8483
        %8502 = vmatpush.msra.mxu0 %v8482
        %8503 = vmatpush.msra.mxu0 %v8481
        %8504 = vmatpush.msra.mxu0 %v8480
        %8505 = vmatpush.msra.mxu0 %v8479
        %8506 = vmatpush.msra.mxu0 %v8478
        %8507 = vmatpush.msra.mxu0 %v8477
        %8508 = vmatpush.msra.mxu0 %v8476
        %8509 = vmatpush.msra.mxu0 %v8475
        %8510 = vmatpush.msra.mxu0 %v8474
        %8511 = vmatmul.f32.gmra.mxu0 %v8493
        %v8512 = vpop.f32.mrf.mxu0
        %v8513 = vadd.f32 0.0, %v8512
        %8514 = vdwg.mxu0
        %v8515 = vadd.f32 %v8470, %v8513
        %v8516 = vld [vmem:[%s8356 + $0xa] sm:$0x1]
        %v8517 = vld [vmem:[%s8356 + $0x1ea] sm:$0x1]
        %s8518 = scalar_lea.vmem %s393, 256
        %v8519 = vld [vmem:[%s8518] sm:$0xff]
        %v8520 = vld [vmem:[%s8518 + $0x8] sm:$0xff]
        %v8521 = vld [vmem:[%s8518 + $0x10] sm:$0xff]
        %v8522 = vld [vmem:[%s8518 + $0x18] sm:$0xff]
        %v8523 = vld [vmem:[%s8518 + $0x20] sm:$0xff]
        %v8524 = vld [vmem:[%s8518 + $0x28] sm:$0xff]
        %v8525 = vld [vmem:[%s8518 + $0x30] sm:$0xff]
        %v8526 = vld [vmem:[%s8518 + $0x38] sm:$0xff]
        %v8527 = vld [vmem:[%s8518 + $0x40] sm:$0xff]
        %v8528 = vld [vmem:[%s8518 + $0x48] sm:$0xff]
        %v8529 = vld [vmem:[%s8518 + $0x50] sm:$0xff]
        %v8530 = vld [vmem:[%s8518 + $0x58] sm:$0xff]
        %v8531 = vld [vmem:[%s8518 + $0x60] sm:$0xff]
        %v8532 = vld [vmem:[%s8518 + $0x68] sm:$0xff]
        %v8533 = vld [vmem:[%s8518 + $0x70] sm:$0xff]
        %v8534 = vld [vmem:[%s8518 + $0x78] sm:$0xff]
        %v8537 = vrot.slane %v8517, 7
        %v8538 = vsel %vm8447, %v8537, %v8516
        %8540 = vmatpush.msra.mxu0 %v8534
        %8541 = vmatpush.msra.mxu0 %v8533
        %8542 = vmatpush.msra.mxu0 %v8532
        %8543 = vmatpush.msra.mxu0 %v8531
        %8544 = vmatpush.msra.mxu0 %v8530
        %8545 = vmatpush.msra.mxu0 %v8529
        %8546 = vmatpush.msra.mxu0 %v8528
        %8547 = vmatpush.msra.mxu0 %v8527
        %8548 = vmatpush.msra.mxu0 %v8526
        %8549 = vmatpush.msra.mxu0 %v8525
        %8550 = vmatpush.msra.mxu0 %v8524
        %8551 = vmatpush.msra.mxu0 %v8523
        %8552 = vmatpush.msra.mxu0 %v8522
        %8553 = vmatpush.msra.mxu0 %v8521
        %8554 = vmatpush.msra.mxu0 %v8520
        %8555 = vmatpush.msra.mxu0 %v8519
        %8556 = vmatmul.f32.gmra.mxu0 %v8538
        %v8557 = vpop.f32.mrf.mxu0
        %v8558 = vadd.f32 0.0, %v8557
        %8559 = vdwg.mxu0
        %v8560 = vadd.f32 %v8515, %v8558
        %v8561 = vld [vmem:[%s8356 + $0xe] sm:$0x1]
        %v8562 = vld [vmem:[%s8356 + $0x1ee] sm:$0x1]
        %s8563 = scalar_lea.vmem %s393, 384
        %v8564 = vld [vmem:[%s8563] sm:$0xff]
        %v8565 = vld [vmem:[%s8563 + $0x8] sm:$0xff]
        %v8566 = vld [vmem:[%s8563 + $0x10] sm:$0xff]
        %v8567 = vld [vmem:[%s8563 + $0x18] sm:$0xff]
        %v8568 = vld [vmem:[%s8563 + $0x20] sm:$0xff]
        %v8569 = vld [vmem:[%s8563 + $0x28] sm:$0xff]
        %v8570 = vld [vmem:[%s8563 + $0x30] sm:$0xff]
        %v8571 = vld [vmem:[%s8563 + $0x38] sm:$0xff]
        %v8572 = vld [vmem:[%s8563 + $0x40] sm:$0xff]
        %v8573 = vld [vmem:[%s8563 + $0x48] sm:$0xff]
        %v8574 = vld [vmem:[%s8563 + $0x50] sm:$0xff]
        %v8575 = vld [vmem:[%s8563 + $0x58] sm:$0xff]
        %v8576 = vld [vmem:[%s8563 + $0x60] sm:$0xff]
        %v8577 = vld [vmem:[%s8563 + $0x68] sm:$0xff]
        %v8578 = vld [vmem:[%s8563 + $0x70] sm:$0xff]
        %v8579 = vld [vmem:[%s8563 + $0x78] sm:$0xff]
        %v8582 = vrot.slane %v8562, 7
        %v8583 = vsel %vm8447, %v8582, %v8561
        %8585 = vmatpush.msra.mxu0 %v8579
        %8586 = vmatpush.msra.mxu0 %v8578
        %8587 = vmatpush.msra.mxu0 %v8577
        %8588 = vmatpush.msra.mxu0 %v8576
        %8589 = vmatpush.msra.mxu0 %v8575
        %8590 = vmatpush.msra.mxu0 %v8574
        %8591 = vmatpush.msra.mxu0 %v8573
        %8592 = vmatpush.msra.mxu0 %v8572
        %8593 = vmatpush.msra.mxu0 %v8571
        %8594 = vmatpush.msra.mxu0 %v8570
        %8595 = vmatpush.msra.mxu0 %v8569
        %8596 = vmatpush.msra.mxu0 %v8568
        %8597 = vmatpush.msra.mxu0 %v8567
        %8598 = vmatpush.msra.mxu0 %v8566
        %8599 = vmatpush.msra.mxu0 %v8565
        %8600 = vmatpush.msra.mxu0 %v8564
        %8601 = vmatmul.f32.gmra.mxu0 %v8583
        %v8602 = vpop.f32.mrf.mxu0
        %v8603 = vadd.f32 0.0, %v8602
        %8604 = vdwg.mxu0
        %v8605 = vadd.f32 %v8560, %v8603
        %s8606 = scalar_lea.vmem [#allocation5], 144
        %v8607 = vld [vmem:[%s8606 + $0x2] sm:$0x1]
        %v8608 = vld [vmem:[%s8606 + $0x1e2] sm:$0x1]
        %s8609 = scalar_lea.vmem %s393, 512
        %v8610 = vld [vmem:[%s8609] sm:$0xff]
        %v8611 = vld [vmem:[%s8609 + $0x8] sm:$0xff]
        %v8612 = vld [vmem:[%s8609 + $0x10] sm:$0xff]
        %v8613 = vld [vmem:[%s8609 + $0x18] sm:$0xff]
        %v8614 = vld [vmem:[%s8609 + $0x20] sm:$0xff]
        %v8615 = vld [vmem:[%s8609 + $0x28] sm:$0xff]
        %v8616 = vld [vmem:[%s8609 + $0x30] sm:$0xff]
        %v8617 = vld [vmem:[%s8609 + $0x38] sm:$0xff]
        %v8618 = vld [vmem:[%s8609 + $0x40] sm:$0xff]
        %v8619 = vld [vmem:[%s8609 + $0x48] sm:$0xff]
        %v8620 = vld [vmem:[%s8609 + $0x50] sm:$0xff]
        %v8621 = vld [vmem:[%s8609 + $0x58] sm:$0xff]
        %v8622 = vld [vmem:[%s8609 + $0x60] sm:$0xff]
        %v8623 = vld [vmem:[%s8609 + $0x68] sm:$0xff]
        %v8624 = vld [vmem:[%s8609 + $0x70] sm:$0xff]
        %v8625 = vld [vmem:[%s8609 + $0x78] sm:$0xff]
        %v8628 = vrot.slane %v8608, 7
        %v8629 = vsel %vm8447, %v8628, %v8607
        %8631 = vmatpush.msra.mxu0 %v8625
        %8632 = vmatpush.msra.mxu0 %v8624
        %8633 = vmatpush.msra.mxu0 %v8623
        %8634 = vmatpush.msra.mxu0 %v8622
        %8635 = vmatpush.msra.mxu0 %v8621
        %8636 = vmatpush.msra.mxu0 %v8620
        %8637 = vmatpush.msra.mxu0 %v8619
        %8638 = vmatpush.msra.mxu0 %v8618
        %8639 = vmatpush.msra.mxu0 %v8617
        %8640 = vmatpush.msra.mxu0 %v8616
        %8641 = vmatpush.msra.mxu0 %v8615
        %8642 = vmatpush.msra.mxu0 %v8614
        %8643 = vmatpush.msra.mxu0 %v8613
        %8644 = vmatpush.msra.mxu0 %v8612
        %8645 = vmatpush.msra.mxu0 %v8611
        %8646 = vmatpush.msra.mxu0 %v8610
        %8647 = vmatmul.f32.gmra.mxu0 %v8629
        %v8648 = vpop.f32.mrf.mxu0
        %v8649 = vadd.f32 0.0, %v8648
        %8650 = vdwg.mxu0
        %v8651 = vadd.f32 %v8605, %v8649
        %v8652 = vld [vmem:[%s8606 + $0x6] sm:$0x1]
        %v8653 = vld [vmem:[%s8606 + $0x1e6] sm:$0x1]
        %s8654 = scalar_lea.vmem %s393, 640
        %v8655 = vld [vmem:[%s8654] sm:$0xff]
        %v8656 = vld [vmem:[%s8654 + $0x8] sm:$0xff]
        %v8657 = vld [vmem:[%s8654 + $0x10] sm:$0xff]
        %v8658 = vld [vmem:[%s8654 + $0x18] sm:$0xff]
        %v8659 = vld [vmem:[%s8654 + $0x20] sm:$0xff]
        %v8660 = vld [vmem:[%s8654 + $0x28] sm:$0xff]
        %v8661 = vld [vmem:[%s8654 + $0x30] sm:$0xff]
        %v8662 = vld [vmem:[%s8654 + $0x38] sm:$0xff]
        %v8663 = vld [vmem:[%s8654 + $0x40] sm:$0xff]
        %v8664 = vld [vmem:[%s8654 + $0x48] sm:$0xff]
        %v8665 = vld [vmem:[%s8654 + $0x50] sm:$0xff]
        %v8666 = vld [vmem:[%s8654 + $0x58] sm:$0xff]
        %v8667 = vld [vmem:[%s8654 + $0x60] sm:$0xff]
        %v8668 = vld [vmem:[%s8654 + $0x68] sm:$0xff]
        %v8669 = vld [vmem:[%s8654 + $0x70] sm:$0xff]
        %v8670 = vld [vmem:[%s8654 + $0x78] sm:$0xff]
        %v8673 = vrot.slane %v8653, 7
        %v8674 = vsel %vm8447, %v8673, %v8652
        %8676 = vmatpush.msra.mxu0 %v8670
        %8677 = vmatpush.msra.mxu0 %v8669
        %8678 = vmatpush.msra.mxu0 %v8668
        %8679 = vmatpush.msra.mxu0 %v8667
        %8680 = vmatpush.msra.mxu0 %v8666
        %8681 = vmatpush.msra.mxu0 %v8665
        %8682 = vmatpush.msra.mxu0 %v8664
        %8683 = vmatpush.msra.mxu0 %v8663
        %8684 = vmatpush.msra.mxu0 %v8662
        %8685 = vmatpush.msra.mxu0 %v8661
        %8686 = vmatpush.msra.mxu0 %v8660
        %8687 = vmatpush.msra.mxu0 %v8659
        %8688 = vmatpush.msra.mxu0 %v8658
        %8689 = vmatpush.msra.mxu0 %v8657
        %8690 = vmatpush.msra.mxu0 %v8656
        %8691 = vmatpush.msra.mxu0 %v8655
        %8692 = vmatmul.f32.gmra.mxu0 %v8674
        %v8693 = vpop.f32.mrf.mxu0
        %v8694 = vadd.f32 0.0, %v8693
        %8695 = vdwg.mxu0
        %v8696 = vadd.f32 %v8651, %v8694
        %v8697 = vld [vmem:[%s8606 + $0xa] sm:$0x1]
        %v8698 = vld [vmem:[%s8606 + $0x1ea] sm:$0x1]
        %s8699 = scalar_lea.vmem %s393, 768
        %v8700 = vld [vmem:[%s8699] sm:$0xff]
        %v8701 = vld [vmem:[%s8699 + $0x8] sm:$0xff]
        %v8702 = vld [vmem:[%s8699 + $0x10] sm:$0xff]
        %v8703 = vld [vmem:[%s8699 + $0x18] sm:$0xff]
        %v8704 = vld [vmem:[%s8699 + $0x20] sm:$0xff]
        %v8705 = vld [vmem:[%s8699 + $0x28] sm:$0xff]
        %v8706 = vld [vmem:[%s8699 + $0x30] sm:$0xff]
        %v8707 = vld [vmem:[%s8699 + $0x38] sm:$0xff]
        %v8708 = vld [vmem:[%s8699 + $0x40] sm:$0xff]
        %v8709 = vld [vmem:[%s8699 + $0x48] sm:$0xff]
        %v8710 = vld [vmem:[%s8699 + $0x50] sm:$0xff]
        %v8711 = vld [vmem:[%s8699 + $0x58] sm:$0xff]
        %v8712 = vld [vmem:[%s8699 + $0x60] sm:$0xff]
        %v8713 = vld [vmem:[%s8699 + $0x68] sm:$0xff]
        %v8714 = vld [vmem:[%s8699 + $0x70] sm:$0xff]
        %v8715 = vld [vmem:[%s8699 + $0x78] sm:$0xff]
        %v8718 = vrot.slane %v8698, 7
        %v8719 = vsel %vm8447, %v8718, %v8697
        %8721 = vmatpush.msra.mxu0 %v8715
        %8722 = vmatpush.msra.mxu0 %v8714
        %8723 = vmatpush.msra.mxu0 %v8713
        %8724 = vmatpush.msra.mxu0 %v8712
        %8725 = vmatpush.msra.mxu0 %v8711
        %8726 = vmatpush.msra.mxu0 %v8710
        %8727 = vmatpush.msra.mxu0 %v8709
        %8728 = vmatpush.msra.mxu0 %v8708
        %8729 = vmatpush.msra.mxu0 %v8707
        %8730 = vmatpush.msra.mxu0 %v8706
        %8731 = vmatpush.msra.mxu0 %v8705
        %8732 = vmatpush.msra.mxu0 %v8704
        %8733 = vmatpush.msra.mxu0 %v8703
        %8734 = vmatpush.msra.mxu0 %v8702
        %8735 = vmatpush.msra.mxu0 %v8701
        %8736 = vmatpush.msra.mxu0 %v8700
        %8737 = vmatmul.f32.gmra.mxu0 %v8719
        %v8738 = vpop.f32.mrf.mxu0
        %v8739 = vadd.f32 0.0, %v8738
        %8740 = vdwg.mxu0
        %v8741 = vadd.f32 %v8696, %v8739
        %v8742 = vld [vmem:[%s8606 + $0xe] sm:$0x1]
        %v8743 = vld [vmem:[%s8606 + $0x1ee] sm:$0x1]
        %s8744 = scalar_lea.vmem %s393, 896
        %v8745 = vld [vmem:[%s8744] sm:$0xff]
        %v8746 = vld [vmem:[%s8744 + $0x8] sm:$0xff]
        %v8747 = vld [vmem:[%s8744 + $0x10] sm:$0xff]
        %v8748 = vld [vmem:[%s8744 + $0x18] sm:$0xff]
        %v8749 = vld [vmem:[%s8744 + $0x20] sm:$0xff]
        %v8750 = vld [vmem:[%s8744 + $0x28] sm:$0xff]
        %v8751 = vld [vmem:[%s8744 + $0x30] sm:$0xff]
        %v8752 = vld [vmem:[%s8744 + $0x38] sm:$0xff]
        %v8753 = vld [vmem:[%s8744 + $0x40] sm:$0xff]
        %v8754 = vld [vmem:[%s8744 + $0x48] sm:$0xff]
        %v8755 = vld [vmem:[%s8744 + $0x50] sm:$0xff]
        %v8756 = vld [vmem:[%s8744 + $0x58] sm:$0xff]
        %v8757 = vld [vmem:[%s8744 + $0x60] sm:$0xff]
        %v8758 = vld [vmem:[%s8744 + $0x68] sm:$0xff]
        %v8759 = vld [vmem:[%s8744 + $0x70] sm:$0xff]
        %v8760 = vld [vmem:[%s8744 + $0x78] sm:$0xff]
        %v8763 = vrot.slane %v8743, 7
        %v8764 = vsel %vm8447, %v8763, %v8742
        %8766 = vmatpush.msra.mxu0 %v8760
        %8767 = vmatpush.msra.mxu0 %v8759
        %8768 = vmatpush.msra.mxu0 %v8758
        %8769 = vmatpush.msra.mxu0 %v8757
        %8770 = vmatpush.msra.mxu0 %v8756
        %8771 = vmatpush.msra.mxu0 %v8755
        %8772 = vmatpush.msra.mxu0 %v8754
        %8773 = vmatpush.msra.mxu0 %v8753
        %8774 = vmatpush.msra.mxu0 %v8752
        %8775 = vmatpush.msra.mxu0 %v8751
        %8776 = vmatpush.msra.mxu0 %v8750
        %8777 = vmatpush.msra.mxu0 %v8749
        %8778 = vmatpush.msra.mxu0 %v8748
        %8779 = vmatpush.msra.mxu0 %v8747
        %8780 = vmatpush.msra.mxu0 %v8746
        %8781 = vmatpush.msra.mxu0 %v8745
        %8782 = vmatmul.f32.gmra.mxu0 %v8764
        %v8783 = vpop.f32.mrf.mxu0
        %v8784 = vadd.f32 0.0, %v8783
        %8785 = vdwg.mxu0
        %v8786 = vadd.f32 %v8741, %v8784
        %s8787 = scalar_lea.vmem [#allocation5], 240
        %v8788 = vld [vmem:[%s8787 + $0x2] sm:$0x1]
        %v8789 = vld [vmem:[%s8787 + $0x1e2] sm:$0x1]
        %s8790 = scalar_lea.vmem %s393, 1024
        %v8791 = vld [vmem:[%s8790] sm:$0xff]
        %v8792 = vld [vmem:[%s8790 + $0x8] sm:$0xff]
        %v8793 = vld [vmem:[%s8790 + $0x10] sm:$0xff]
        %v8794 = vld [vmem:[%s8790 + $0x18] sm:$0xff]
        %v8795 = vld [vmem:[%s8790 + $0x20] sm:$0xff]
        %v8796 = vld [vmem:[%s8790 + $0x28] sm:$0xff]
        %v8797 = vld [vmem:[%s8790 + $0x30] sm:$0xff]
        %v8798 = vld [vmem:[%s8790 + $0x38] sm:$0xff]
        %v8799 = vld [vmem:[%s8790 + $0x40] sm:$0xff]
        %v8800 = vld [vmem:[%s8790 + $0x48] sm:$0xff]
        %v8801 = vld [vmem:[%s8790 + $0x50] sm:$0xff]
        %v8802 = vld [vmem:[%s8790 + $0x58] sm:$0xff]
        %v8803 = vld [vmem:[%s8790 + $0x60] sm:$0xff]
        %v8804 = vld [vmem:[%s8790 + $0x68] sm:$0xff]
        %v8805 = vld [vmem:[%s8790 + $0x70] sm:$0xff]
        %v8806 = vld [vmem:[%s8790 + $0x78] sm:$0xff]
        %v8809 = vrot.slane %v8789, 7
        %v8810 = vsel %vm8447, %v8809, %v8788
        %8812 = vmatpush.msra.mxu0 %v8806
        %8813 = vmatpush.msra.mxu0 %v8805
        %8814 = vmatpush.msra.mxu0 %v8804
        %8815 = vmatpush.msra.mxu0 %v8803
        %8816 = vmatpush.msra.mxu0 %v8802
        %8817 = vmatpush.msra.mxu0 %v8801
        %8818 = vmatpush.msra.mxu0 %v8800
        %8819 = vmatpush.msra.mxu0 %v8799
        %8820 = vmatpush.msra.mxu0 %v8798
        %8821 = vmatpush.msra.mxu0 %v8797
        %8822 = vmatpush.msra.mxu0 %v8796
        %8823 = vmatpush.msra.mxu0 %v8795
        %8824 = vmatpush.msra.mxu0 %v8794
        %8825 = vmatpush.msra.mxu0 %v8793
        %8826 = vmatpush.msra.mxu0 %v8792
        %8827 = vmatpush.msra.mxu0 %v8791
        %8828 = vmatmul.f32.gmra.mxu0 %v8810
        %v8829 = vpop.f32.mrf.mxu0
        %v8830 = vadd.f32 0.0, %v8829
        %8831 = vdwg.mxu0
        %v8832 = vadd.f32 %v8786, %v8830
        %v8833 = vld [vmem:[%s8787 + $0x6] sm:$0x1]
        %v8834 = vld [vmem:[%s8787 + $0x1e6] sm:$0x1]
        %s8835 = scalar_lea.vmem %s393, 1152
        %v8836 = vld [vmem:[%s8835] sm:$0xff]
        %v8837 = vld [vmem:[%s8835 + $0x8] sm:$0xff]
        %v8838 = vld [vmem:[%s8835 + $0x10] sm:$0xff]
        %v8839 = vld [vmem:[%s8835 + $0x18] sm:$0xff]
        %v8840 = vld [vmem:[%s8835 + $0x20] sm:$0xff]
        %v8841 = vld [vmem:[%s8835 + $0x28] sm:$0xff]
        %v8842 = vld [vmem:[%s8835 + $0x30] sm:$0xff]
        %v8843 = vld [vmem:[%s8835 + $0x38] sm:$0xff]
        %v8844 = vld [vmem:[%s8835 + $0x40] sm:$0xff]
        %v8845 = vld [vmem:[%s8835 + $0x48] sm:$0xff]
        %v8846 = vld [vmem:[%s8835 + $0x50] sm:$0xff]
        %v8847 = vld [vmem:[%s8835 + $0x58] sm:$0xff]
        %v8848 = vld [vmem:[%s8835 + $0x60] sm:$0xff]
        %v8849 = vld [vmem:[%s8835 + $0x68] sm:$0xff]
        %v8850 = vld [vmem:[%s8835 + $0x70] sm:$0xff]
        %v8851 = vld [vmem:[%s8835 + $0x78] sm:$0xff]
        %v8854 = vrot.slane %v8834, 7
        %v8855 = vsel %vm8447, %v8854, %v8833
        %8857 = vmatpush.msra.mxu0 %v8851
        %8858 = vmatpush.msra.mxu0 %v8850
        %8859 = vmatpush.msra.mxu0 %v8849
        %8860 = vmatpush.msra.mxu0 %v8848
        %8861 = vmatpush.msra.mxu0 %v8847
        %8862 = vmatpush.msra.mxu0 %v8846
        %8863 = vmatpush.msra.mxu0 %v8845
        %8864 = vmatpush.msra.mxu0 %v8844
        %8865 = vmatpush.msra.mxu0 %v8843
        %8866 = vmatpush.msra.mxu0 %v8842
        %8867 = vmatpush.msra.mxu0 %v8841
        %8868 = vmatpush.msra.mxu0 %v8840
        %8869 = vmatpush.msra.mxu0 %v8839
        %8870 = vmatpush.msra.mxu0 %v8838
        %8871 = vmatpush.msra.mxu0 %v8837
        %8872 = vmatpush.msra.mxu0 %v8836
        %8873 = vmatmul.f32.gmra.mxu0 %v8855
        %v8874 = vpop.f32.mrf.mxu0
        %v8875 = vadd.f32 0.0, %v8874
        %8876 = vdwg.mxu0
        %v8877 = vadd.f32 %v8832, %v8875
        %v8878 = vld [vmem:[%s8787 + $0xa] sm:$0x1]
        %v8879 = vld [vmem:[%s8787 + $0x1ea] sm:$0x1]
        %s8880 = scalar_lea.vmem %s393, 1280
        %v8881 = vld [vmem:[%s8880] sm:$0xff]
        %v8882 = vld [vmem:[%s8880 + $0x8] sm:$0xff]
        %v8883 = vld [vmem:[%s8880 + $0x10] sm:$0xff]
        %v8884 = vld [vmem:[%s8880 + $0x18] sm:$0xff]
        %v8885 = vld [vmem:[%s8880 + $0x20] sm:$0xff]
        %v8886 = vld [vmem:[%s8880 + $0x28] sm:$0xff]
        %v8887 = vld [vmem:[%s8880 + $0x30] sm:$0xff]
        %v8888 = vld [vmem:[%s8880 + $0x38] sm:$0xff]
        %v8889 = vld [vmem:[%s8880 + $0x40] sm:$0xff]
        %v8890 = vld [vmem:[%s8880 + $0x48] sm:$0xff]
        %v8891 = vld [vmem:[%s8880 + $0x50] sm:$0xff]
        %v8892 = vld [vmem:[%s8880 + $0x58] sm:$0xff]
        %v8893 = vld [vmem:[%s8880 + $0x60] sm:$0xff]
        %v8894 = vld [vmem:[%s8880 + $0x68] sm:$0xff]
        %v8895 = vld [vmem:[%s8880 + $0x70] sm:$0xff]
        %v8896 = vld [vmem:[%s8880 + $0x78] sm:$0xff]
        %v8899 = vrot.slane %v8879, 7
        %v8900 = vsel %vm8447, %v8899, %v8878
        %8902 = vmatpush.msra.mxu0 %v8896
        %8903 = vmatpush.msra.mxu0 %v8895
        %8904 = vmatpush.msra.mxu0 %v8894
        %8905 = vmatpush.msra.mxu0 %v8893
        %8906 = vmatpush.msra.mxu0 %v8892
        %8907 = vmatpush.msra.mxu0 %v8891
        %8908 = vmatpush.msra.mxu0 %v8890
        %8909 = vmatpush.msra.mxu0 %v8889
        %8910 = vmatpush.msra.mxu0 %v8888
        %8911 = vmatpush.msra.mxu0 %v8887
        %8912 = vmatpush.msra.mxu0 %v8886
        %8913 = vmatpush.msra.mxu0 %v8885
        %8914 = vmatpush.msra.mxu0 %v8884
        %8915 = vmatpush.msra.mxu0 %v8883
        %8916 = vmatpush.msra.mxu0 %v8882
        %8917 = vmatpush.msra.mxu0 %v8881
        %8918 = vmatmul.f32.gmra.mxu0 %v8900
        %v8919 = vpop.f32.mrf.mxu0
        %v8920 = vadd.f32 0.0, %v8919
        %8921 = vdwg.mxu0
        %v8922 = vadd.f32 %v8877, %v8920
        %v8923 = vld [vmem:[%s8787 + $0xe] sm:$0x1]
        %v8924 = vld [vmem:[%s8787 + $0x1ee] sm:$0x1]
        %s8925 = scalar_lea.vmem %s393, 1408
        %v8926 = vld [vmem:[%s8925] sm:$0xff]
        %v8927 = vld [vmem:[%s8925 + $0x8] sm:$0xff]
        %v8928 = vld [vmem:[%s8925 + $0x10] sm:$0xff]
        %v8929 = vld [vmem:[%s8925 + $0x18] sm:$0xff]
        %v8930 = vld [vmem:[%s8925 + $0x20] sm:$0xff]
        %v8931 = vld [vmem:[%s8925 + $0x28] sm:$0xff]
        %v8932 = vld [vmem:[%s8925 + $0x30] sm:$0xff]
        %v8933 = vld [vmem:[%s8925 + $0x38] sm:$0xff]
        %v8934 = vld [vmem:[%s8925 + $0x40] sm:$0xff]
        %v8935 = vld [vmem:[%s8925 + $0x48] sm:$0xff]
        %v8936 = vld [vmem:[%s8925 + $0x50] sm:$0xff]
        %v8937 = vld [vmem:[%s8925 + $0x58] sm:$0xff]
        %v8938 = vld [vmem:[%s8925 + $0x60] sm:$0xff]
        %v8939 = vld [vmem:[%s8925 + $0x68] sm:$0xff]
        %v8940 = vld [vmem:[%s8925 + $0x70] sm:$0xff]
        %v8941 = vld [vmem:[%s8925 + $0x78] sm:$0xff]
        %v8944 = vrot.slane %v8924, 7
        %v8945 = vsel %vm8447, %v8944, %v8923
        %8947 = vmatpush.msra.mxu0 %v8941
        %8948 = vmatpush.msra.mxu0 %v8940
        %8949 = vmatpush.msra.mxu0 %v8939
        %8950 = vmatpush.msra.mxu0 %v8938
        %8951 = vmatpush.msra.mxu0 %v8937
        %8952 = vmatpush.msra.mxu0 %v8936
        %8953 = vmatpush.msra.mxu0 %v8935
        %8954 = vmatpush.msra.mxu0 %v8934
        %8955 = vmatpush.msra.mxu0 %v8933
        %8956 = vmatpush.msra.mxu0 %v8932
        %8957 = vmatpush.msra.mxu0 %v8931
        %8958 = vmatpush.msra.mxu0 %v8930
        %8959 = vmatpush.msra.mxu0 %v8929
        %8960 = vmatpush.msra.mxu0 %v8928
        %8961 = vmatpush.msra.mxu0 %v8927
        %8962 = vmatpush.msra.mxu0 %v8926
        %8963 = vmatmul.f32.gmra.mxu0 %v8945
        %v8964 = vpop.f32.mrf.mxu0
        %v8965 = vadd.f32 0.0, %v8964
        %8966 = vdwg.mxu0
        %v8967 = vadd.f32 %v8922, %v8965
        %s8968 = scalar_lea.vmem [#allocation5], 336
        %v8969 = vld [vmem:[%s8968 + $0x2] sm:$0x1]
        %v8970 = vld [vmem:[%s8968 + $0x1e2] sm:$0x1]
        %s8971 = scalar_lea.vmem %s393, 1536
        %v8972 = vld [vmem:[%s8971] sm:$0xff]
        %v8973 = vld [vmem:[%s8971 + $0x8] sm:$0xff]
        %v8974 = vld [vmem:[%s8971 + $0x10] sm:$0xff]
        %v8975 = vld [vmem:[%s8971 + $0x18] sm:$0xff]
        %v8976 = vld [vmem:[%s8971 + $0x20] sm:$0xff]
        %v8977 = vld [vmem:[%s8971 + $0x28] sm:$0xff]
        %v8978 = vld [vmem:[%s8971 + $0x30] sm:$0xff]
        %v8979 = vld [vmem:[%s8971 + $0x38] sm:$0xff]
        %v8980 = vld [vmem:[%s8971 + $0x40] sm:$0xff]
        %v8981 = vld [vmem:[%s8971 + $0x48] sm:$0xff]
        %v8982 = vld [vmem:[%s8971 + $0x50] sm:$0xff]
        %v8983 = vld [vmem:[%s8971 + $0x58] sm:$0xff]
        %v8984 = vld [vmem:[%s8971 + $0x60] sm:$0xff]
        %v8985 = vld [vmem:[%s8971 + $0x68] sm:$0xff]
        %v8986 = vld [vmem:[%s8971 + $0x70] sm:$0xff]
        %v8987 = vld [vmem:[%s8971 + $0x78] sm:$0xff]
        %v8990 = vrot.slane %v8970, 7
        %v8991 = vsel %vm8447, %v8990, %v8969
        %8993 = vmatpush.msra.mxu0 %v8987
        %8994 = vmatpush.msra.mxu0 %v8986
        %8995 = vmatpush.msra.mxu0 %v8985
        %8996 = vmatpush.msra.mxu0 %v8984
        %8997 = vmatpush.msra.mxu0 %v8983
        %8998 = vmatpush.msra.mxu0 %v8982
        %8999 = vmatpush.msra.mxu0 %v8981
        %9000 = vmatpush.msra.mxu0 %v8980
        %9001 = vmatpush.msra.mxu0 %v8979
        %9002 = vmatpush.msra.mxu0 %v8978
        %9003 = vmatpush.msra.mxu0 %v8977
        %9004 = vmatpush.msra.mxu0 %v8976
        %9005 = vmatpush.msra.mxu0 %v8975
        %9006 = vmatpush.msra.mxu0 %v8974
        %9007 = vmatpush.msra.mxu0 %v8973
        %9008 = vmatpush.msra.mxu0 %v8972
        %9009 = vmatmul.f32.gmra.mxu0 %v8991
        %v9010 = vpop.f32.mrf.mxu0
        %v9011 = vadd.f32 0.0, %v9010
        %9012 = vdwg.mxu0
        %v9013 = vadd.f32 %v8967, %v9011
        %v9014 = vld [vmem:[%s8968 + $0x6] sm:$0x1]
        %v9015 = vld [vmem:[%s8968 + $0x1e6] sm:$0x1]
        %s9016 = scalar_lea.vmem %s393, 1664
        %v9017 = vld [vmem:[%s9016] sm:$0xff]
        %v9018 = vld [vmem:[%s9016 + $0x8] sm:$0xff]
        %v9019 = vld [vmem:[%s9016 + $0x10] sm:$0xff]
        %v9020 = vld [vmem:[%s9016 + $0x18] sm:$0xff]
        %v9021 = vld [vmem:[%s9016 + $0x20] sm:$0xff]
        %v9022 = vld [vmem:[%s9016 + $0x28] sm:$0xff]
        %v9023 = vld [vmem:[%s9016 + $0x30] sm:$0xff]
        %v9024 = vld [vmem:[%s9016 + $0x38] sm:$0xff]
        %v9025 = vld [vmem:[%s9016 + $0x40] sm:$0xff]
        %v9026 = vld [vmem:[%s9016 + $0x48] sm:$0xff]
        %v9027 = vld [vmem:[%s9016 + $0x50] sm:$0xff]
        %v9028 = vld [vmem:[%s9016 + $0x58] sm:$0xff]
        %v9029 = vld [vmem:[%s9016 + $0x60] sm:$0xff]
        %v9030 = vld [vmem:[%s9016 + $0x68] sm:$0xff]
        %v9031 = vld [vmem:[%s9016 + $0x70] sm:$0xff]
        %v9032 = vld [vmem:[%s9016 + $0x78] sm:$0xff]
        %v9035 = vrot.slane %v9015, 7
        %v9036 = vsel %vm8447, %v9035, %v9014
        %9038 = vmatpush.msra.mxu0 %v9032
        %9039 = vmatpush.msra.mxu0 %v9031
        %9040 = vmatpush.msra.mxu0 %v9030
        %9041 = vmatpush.msra.mxu0 %v9029
        %9042 = vmatpush.msra.mxu0 %v9028
        %9043 = vmatpush.msra.mxu0 %v9027
        %9044 = vmatpush.msra.mxu0 %v9026
        %9045 = vmatpush.msra.mxu0 %v9025
        %9046 = vmatpush.msra.mxu0 %v9024
        %9047 = vmatpush.msra.mxu0 %v9023
        %9048 = vmatpush.msra.mxu0 %v9022
        %9049 = vmatpush.msra.mxu0 %v9021
        %9050 = vmatpush.msra.mxu0 %v9020
        %9051 = vmatpush.msra.mxu0 %v9019
        %9052 = vmatpush.msra.mxu0 %v9018
        %9053 = vmatpush.msra.mxu0 %v9017
        %9054 = vmatmul.f32.gmra.mxu0 %v9036
        %v9055 = vpop.f32.mrf.mxu0
        %v9056 = vadd.f32 0.0, %v9055
        %9057 = vdwg.mxu0
        %v9058 = vadd.f32 %v9013, %v9056
        %v9059 = vld [vmem:[%s8968 + $0xa] sm:$0x1]
        %v9060 = vld [vmem:[%s8968 + $0x1ea] sm:$0x1]
        %s9061 = scalar_lea.vmem %s393, 1792
        %v9062 = vld [vmem:[%s9061] sm:$0xff]
        %v9063 = vld [vmem:[%s9061 + $0x8] sm:$0xff]
        %v9064 = vld [vmem:[%s9061 + $0x10] sm:$0xff]
        %v9065 = vld [vmem:[%s9061 + $0x18] sm:$0xff]
        %v9066 = vld [vmem:[%s9061 + $0x20] sm:$0xff]
        %v9067 = vld [vmem:[%s9061 + $0x28] sm:$0xff]
        %v9068 = vld [vmem:[%s9061 + $0x30] sm:$0xff]
        %v9069 = vld [vmem:[%s9061 + $0x38] sm:$0xff]
        %v9070 = vld [vmem:[%s9061 + $0x40] sm:$0xff]
        %v9071 = vld [vmem:[%s9061 + $0x48] sm:$0xff]
        %v9072 = vld [vmem:[%s9061 + $0x50] sm:$0xff]
        %v9073 = vld [vmem:[%s9061 + $0x58] sm:$0xff]
        %v9074 = vld [vmem:[%s9061 + $0x60] sm:$0xff]
        %v9075 = vld [vmem:[%s9061 + $0x68] sm:$0xff]
        %v9076 = vld [vmem:[%s9061 + $0x70] sm:$0xff]
        %v9077 = vld [vmem:[%s9061 + $0x78] sm:$0xff]
        %v9080 = vrot.slane %v9060, 7
        %v9081 = vsel %vm8447, %v9080, %v9059
        %9083 = vmatpush.msra.mxu0 %v9077
        %9084 = vmatpush.msra.mxu0 %v9076
        %9085 = vmatpush.msra.mxu0 %v9075
        %9086 = vmatpush.msra.mxu0 %v9074
        %9087 = vmatpush.msra.mxu0 %v9073
        %9088 = vmatpush.msra.mxu0 %v9072
        %9089 = vmatpush.msra.mxu0 %v9071
        %9090 = vmatpush.msra.mxu0 %v9070
        %9091 = vmatpush.msra.mxu0 %v9069
        %9092 = vmatpush.msra.mxu0 %v9068
        %9093 = vmatpush.msra.mxu0 %v9067
        %9094 = vmatpush.msra.mxu0 %v9066
        %9095 = vmatpush.msra.mxu0 %v9065
        %9096 = vmatpush.msra.mxu0 %v9064
        %9097 = vmatpush.msra.mxu0 %v9063
        %9098 = vmatpush.msra.mxu0 %v9062
        %9099 = vmatmul.f32.gmra.mxu0 %v9081
        %v9100 = vpop.f32.mrf.mxu0
        %v9101 = vadd.f32 0.0, %v9100
        %9102 = vdwg.mxu0
        %v9103 = vadd.f32 %v9058, %v9101
        %v9104 = vld [vmem:[%s8968 + $0xe] sm:$0x1]
        %v9105 = vld [vmem:[%s8968 + $0x1ee] sm:$0x1]
        %s9106 = scalar_lea.vmem %s393, 1920
        %v9107 = vld [vmem:[%s9106] sm:$0xff]
        %v9108 = vld [vmem:[%s9106 + $0x8] sm:$0xff]
        %v9109 = vld [vmem:[%s9106 + $0x10] sm:$0xff]
        %v9110 = vld [vmem:[%s9106 + $0x18] sm:$0xff]
        %v9111 = vld [vmem:[%s9106 + $0x20] sm:$0xff]
        %v9112 = vld [vmem:[%s9106 + $0x28] sm:$0xff]
        %v9113 = vld [vmem:[%s9106 + $0x30] sm:$0xff]
        %v9114 = vld [vmem:[%s9106 + $0x38] sm:$0xff]
        %v9115 = vld [vmem:[%s9106 + $0x40] sm:$0xff]
        %v9116 = vld [vmem:[%s9106 + $0x48] sm:$0xff]
        %v9117 = vld [vmem:[%s9106 + $0x50] sm:$0xff]
        %v9118 = vld [vmem:[%s9106 + $0x58] sm:$0xff]
        %v9119 = vld [vmem:[%s9106 + $0x60] sm:$0xff]
        %v9120 = vld [vmem:[%s9106 + $0x68] sm:$0xff]
        %v9121 = vld [vmem:[%s9106 + $0x70] sm:$0xff]
        %v9122 = vld [vmem:[%s9106 + $0x78] sm:$0xff]
        %v9125 = vrot.slane %v9105, 7
        %v9126 = vsel %vm8447, %v9125, %v9104
        %9128 = vmatpush.msra.mxu0 %v9122
        %9129 = vmatpush.msra.mxu0 %v9121
        %9130 = vmatpush.msra.mxu0 %v9120
        %9131 = vmatpush.msra.mxu0 %v9119
        %9132 = vmatpush.msra.mxu0 %v9118
        %9133 = vmatpush.msra.mxu0 %v9117
        %9134 = vmatpush.msra.mxu0 %v9116
        %9135 = vmatpush.msra.mxu0 %v9115
        %9136 = vmatpush.msra.mxu0 %v9114
        %9137 = vmatpush.msra.mxu0 %v9113
        %9138 = vmatpush.msra.mxu0 %v9112
        %9139 = vmatpush.msra.mxu0 %v9111
        %9140 = vmatpush.msra.mxu0 %v9110
        %9141 = vmatpush.msra.mxu0 %v9109
        %9142 = vmatpush.msra.mxu0 %v9108
        %9143 = vmatpush.msra.mxu0 %v9107
        %9144 = vmatmul.f32.gmra.mxu0 %v9126
        %v9145 = vpop.f32.mrf.mxu0
        %v9146 = vadd.f32 0.0, %v9145
        %9147 = vdwg.mxu0
        %v9148 = vadd.f32 %v9103, %v9146
        %v9149 = vmul.f32 %v9148, %v9148
        %vm9150 = vcmask 1041408
        %v9151 = vsel %vm9150, %v9149, 0.0
        %9152 = vadd.xlane.f32.xlu0 %v9151
        %v9153 = vpop.xlane.xlu0 %9152
        %v9154 = vmax.f32 %v9153, 1e-24
        %v9155 = vrsqrt.pop %v9154
        %v9156 = vmul.f32 %v9155, %v9154
        %v9157 = vmul.f32 %v9156, %v9155
        %v9158 = vmul.f32 0.5, %v9157
        %v9159 = vsub.f32 1.5, %v9158
        %v9160 = vmul.f32 %v9155, %v9159
        %vm9161 = vweird.f32 %v9154
        %vm9162 = vweird.f32 %v9155
        %vm9163 = vmor %vm9161, %vm9162
        %v9164 = vsel %vm9163, %v9155, %v9160
        %v9165 = vmul.f32 %v9148, %v9164
        %9166 = vst [vmem:[%s400] sm:$0x3] %v9165
        %p9167 = scmp.lt.s32.totalorder %s21, 1
        %s9168 = scalar_select %p9167, %s21, 1
        %s9169 = smul.addr %s9168, 2
        %s9170 = scalar_lea.vmem %s7, %s9169
        // Predicated region
        $region53: #{moco_forward.2} parent=47 // pred_check
          %p9171 = pneg %p221
        $region54: #{moco_forward.2} parent=47 // pred_check_branch
          %9173 = sbr.rel (%p9171) target = $region56
        $region55: #{moco_forward.2} parent=47 // pred_region
          _
        $region56: #{moco_forward.2} parent=47 // pred_fallthru
          _
      $region48: #{moco_forward.2} parent=5 // pred_fallthru
        _
      %p9174 = scmp.le.s32.totalorder 2, %s16
      // Predicated region
      $region57: #{moco_forward.2} parent=5 // pred_check
        %p9175 = pneg %p9174
      $region58: #{moco_forward.2} parent=5 // pred_check_branch
        %9177 = sbr.rel (%p9175) target = $region60
      $region59: #{moco_forward.2} parent=5 // pred_region
        %s9178 = ssub.s32 %s16, 2
        // Predicated region
        $region61: #{moco_forward.2} parent=59 // pred_check
          %p9179 = pneg %p227
        $region62: #{moco_forward.2} parent=59 // pred_check_branch
          %9181 = sbr.rel (%p9179) target = $region64
        $region63: #{moco_forward.2} parent=59 // pred_region
          %p9182 = scmp.lt.s32.totalorder %s22, 1
          %s9183 = scalar_select %p9182, %s22, 1
          %s9184 = smul.addr %s9183, 2
          %s9185 = scalar_lea.vmem %s7, %s9184
        $region64: #{moco_forward.2} parent=59 // pred_fallthru
          _
      $region60: #{moco_forward.2} parent=5 // pred_fallthru
        _
    $region6: #{moco_forward.2} parent=1 // loop_footer
      %s20 = sadd.s32 1, %s16
    $region7: #{moco_forward.2} parent=1 // loop_footer_branch
      %15 = sbr.rel target = $region3
    $region8: #{moco_forward.2} parent=1 // loop_exit
      _
    %9186 = vsyncpa [#allocation7], 1
    %s9187 = scalar_lea.sflag [#allocation7], 1
    %9188 = vsyncpa %s9187, 1

</llo_original>
